<compile_context>
chip_gen: v5e
topology: v5e:2x2
jax: 0.10.0
libtpu: 0.0.40
codegen_flags: <defaults>
</compile_context>

<pallas_src>
import jax
import jax.numpy as jnp
from jax.experimental import pallas as pl
from jax.experimental.pallas import tpu as pltpu


# ----------------------------------------------------------------------------
# parameter helpers
# ----------------------------------------------------------------------------
def _group_avg_matrix(c, num_groups):
    gs = c // num_groups
    gid = jnp.arange(c) // gs
    return (gid[:, None] == gid[None, :]).astype(jnp.float32) / gs


def init_params(key, channel, groups):
    """Deterministic synthetic parameters with the same shapes as the module."""
    c4 = channel // 4
    ks = jax.random.split(key, 5)
    gates = []
    for i in range(4):
        ki = jax.random.split(ks[i], 6)
        gates.append(dict(
            w1=jax.random.normal(ki[0], (c4, c4, 3, 3), jnp.float32) * 0.1,
            b1=jax.random.normal(ki[1], (c4,), jnp.float32) * 0.05,
            gamma=1.0 + 0.1 * jax.random.normal(ki[2], (c4,), jnp.float32),
            beta=0.1 * jax.random.normal(ki[3], (c4,), jnp.float32),
            alpha=jnp.float32(0.25),                     # nn.PReLU() default
            w2=jax.random.normal(ki[4], (1, c4, 1, 1), jnp.float32) * 0.1,
            b2=jax.random.normal(ki[5], (1,), jnp.float32) * 0.05,
        ))
    kc = jax.random.split(ks[4], 4)
    conv = dict(
        w=jax.random.normal(kc[0], (channel, channel, 3, 3), jnp.float32) * 0.05,
        b=jax.random.normal(kc[1], (channel,), jnp.float32) * 0.05,
        gamma=1.0 + 0.1 * jax.random.normal(kc[2], (channel,), jnp.float32),
        beta=0.1 * jax.random.normal(kc[3], (channel,), jnp.float32),
        alpha=jnp.float32(0.25),
    )
    return dict(gates=gates, conv=conv)


def _assemble(params, channel, groups, cp):
    """Pack the module parameters into padded, kernel-friendly tensors."""
    c = channel
    c4 = c // 4
    wg = jnp.zeros((9, cp, cp), jnp.float32)          # block-diag gate 3x3 taps
    bg = jnp.zeros((1, cp), jnp.float32)
    gamg = jnp.zeros((1, cp), jnp.float32)
    betg = jnp.zeros((1, cp), jnp.float32)
    alpg = jnp.zeros((1, cp), jnp.float32)
    w2 = jnp.zeros((cp, 4), jnp.float32)              # block-diag 1x1 conv -> 4 gates
    b2 = jnp.zeros((1, 4), jnp.float32)
    for i, g in enumerate(params['gates']):
        taps = jnp.transpose(g['w1'], (2, 3, 1, 0)).reshape(9, c4, c4)  # [k, ci, co]
        sl = slice(i * c4, (i + 1) * c4)
        wg = wg.at[:, sl, sl].set(taps)
        bg = bg.at[0, sl].set(g['b1'])
        gamg = gamg.at[0, sl].set(g['gamma'])
        betg = betg.at[0, sl].set(g['beta'])
        alpg = alpg.at[0, sl].set(jnp.full((c4,), g['alpha'], jnp.float32))
        w2 = w2.at[sl, i].set(g['w2'][0, :, 0, 0])
        b2 = b2.at[0, i].set(g['b2'][0])
    # 4 parallel GroupNorm(groups, C/4) == GroupNorm(4*groups, C) on the concat
    gmatg = jnp.zeros((cp, cp), jnp.float32).at[:c, :c].set(
        _group_avg_matrix(c, 4 * groups))
    # [4, 9*Cp] matrix: softmax weights -> per-channel scale for every tap column
    qid = jnp.arange(c) // c4
    expand = jnp.zeros((4, cp), jnp.float32).at[:, :c].set(
        (qid[None, :] == jnp.arange(4)[:, None]).astype(jnp.float32))
    expand9 = jnp.tile(expand, (1, 9))
    cv = params['conv']
    wc = jnp.zeros((9, cp, cp), jnp.float32).at[:, :c, :c].set(
        jnp.transpose(cv['w'], (2, 3, 1, 0)).reshape(9, c, c))
    bc = jnp.zeros((1, cp), jnp.float32).at[0, :c].set(cv['b'])
    gamc = jnp.zeros((1, cp), jnp.float32).at[0, :c].set(cv['gamma'])
    betc = jnp.zeros((1, cp), jnp.float32).at[0, :c].set(cv['beta'])
    gmatc = jnp.zeros((cp, cp), jnp.float32).at[:c, :c].set(
        _group_avg_matrix(c, groups))
    return dict(
        wg=wg.reshape(9 * cp, cp).astype(jnp.bfloat16),
        bg=bg, gamg=gamg, betg=betg, alpg=alpg, gmatg=gmatg,
        w2=w2, b2=b2, expand9=expand9,
        wc=wc.reshape(9 * cp, cp).astype(jnp.bfloat16),
        bc=bc, gamc=gamc, betc=betc,
        alpc=jnp.full((1, 1), cv['alpha'], jnp.float32),
        gmatc=gmatc)


# ----------------------------------------------------------------------------
# fused Pallas kernel (one grid step = one batch item)
# ----------------------------------------------------------------------------
def _make_big_kernel(h, w, hw, cp):
    shifts = [(dy, dx) for dy in (-1, 0, 1) for dx in (-1, 0, 1)]
    inv_hw = 1.0 / float(hw)

    def kernel(x_ref, edge_ref,
               wg_ref, bg_ref, gamg_ref, betg_ref, alpg_ref, gmatg_ref,
               w2_ref, b2_ref, expand9_ref,
               wc_ref, bc_ref, gamc_ref, betc_ref, alpc_ref, gmatc_ref,
               out_ref, xcol):
        # ---- im2col built in VMEM: 9 rolled + masked copies of x -> [HW, 9*Cp]
        xf = x_ref[0].astype(jnp.float32)                      # [HW, Cp]
        row = jax.lax.broadcasted_iota(jnp.int32, (hw, 1), 0)
        col = row % w
        row_ok = {-1: (row >= w).astype(jnp.float32),
                  1: (row < hw - w).astype(jnp.float32)}
        col_ok = {-1: (col >= 1).astype(jnp.float32),
                  1: (col <= w - 2).astype(jnp.float32)}
        for k, (dy, dx) in enumerate(shifts):
            s = dy * w + dx                                    # flat-HW shift
            tap = xf if s == 0 else pltpu.roll(xf, (-s) % hw, axis=0)
            if dy != 0 or dx != 0:
                m = None
                if dy != 0:
                    m = row_ok[dy]
                if dx != 0:
                    m = col_ok[dx] if m is None else m * col_ok[dx]
                tap = tap * m                                  # zero padding
            xcol[:, k * cp:(k + 1) * cp] = tap.astype(jnp.bfloat16)

        ones_hw = jnp.ones((1, hw), jnp.float32)

        def gn_prelu(acc, gmat, gamma, beta, alpha):
            # spatial sums on the MXU; group averaging via the [Cp, Cp] matrix
            mu = jnp.dot(ones_hw, acc, preferred_element_type=jnp.float32) * inv_hw
            ex2 = jnp.dot(ones_hw, acc * acc,
                          preferred_element_type=jnp.float32) * inv_hw
            gmu = jnp.dot(mu, gmat, preferred_element_type=jnp.float32)
            gex2 = jnp.dot(ex2, gmat, preferred_element_type=jnp.float32)
            y = (acc - gmu) * jax.lax.rsqrt(gex2 - gmu * gmu + 1e-5)
            y = y * gamma + beta
            return jnp.where(y >= 0, y, alpha * y)             # PReLU

        # ---- 4 gate branches fused: block-diag conv3x3 (K = 9*Cp) + GN + PReLU
        acc_g = jnp.dot(xcol[...], wg_ref[...],
                        preferred_element_type=jnp.float32) + bg_ref[...]
        yg = gn_prelu(acc_g, gmatg_ref[...], gamg_ref[...], betg_ref[...],
                      alpg_ref[...])
        # block-diag 1x1 conv -> 4 gate maps, sigmoid, edge gating
        cm = jax.nn.sigmoid(jnp.dot(yg, w2_ref[...],
                                    preferred_element_type=jnp.float32)
                            + b2_ref[...])                     # [HW, 4]
        e = cm * jax.nn.sigmoid(edge_ref[0])                   # [HW, 4] * [HW, 1]
        gv = jnp.dot(ones_hw, e, preferred_element_type=jnp.float32) * inv_hw
        mx = jnp.max(gv, axis=1, keepdims=True)                # softmax over gates
        ew = jnp.exp(gv - mx)
        wsm = ew / jnp.sum(ew, axis=1, keepdims=True)          # [1, 4]
        wch9 = jnp.dot(wsm, expand9_ref[...],
                       preferred_element_type=jnp.float32)     # [1, 9*Cp]

        # ---- nx = x * w applied in-register to the im2col; final conv+GN+PReLU
        xcol[...] = xcol[...] * wch9.astype(jnp.bfloat16)
        acc_c = jnp.dot(xcol[...], wc_ref[...],
                        preferred_element_type=jnp.float32) + bc_ref[...]
        y = gn_prelu(acc_c, gmatc_ref[...], gamc_ref[...], betc_ref[...],
                     alpc_ref[...])
        out_ref[0] = y.astype(out_ref.dtype)

    return kernel


# ----------------------------------------------------------------------------
# host-side wrapper
# ----------------------------------------------------------------------------
def big_forward(x, edge, params, channel, groups):
    b, c, h, w = x.shape
    assert c == channel and c % 4 == 0 and (c // 4) % groups == 0
    hw = h * w
    cp = ((c + 127) // 128) * 128          # pad channels -> lane-dense vst
    k9c = 9 * cp
    kp = _assemble(params, channel, groups, cp)

    x_flat = jnp.transpose(x, (0, 2, 3, 1)).reshape(b, hw, c).astype(jnp.bfloat16)
    x_flat = jnp.pad(x_flat, ((0, 0), (0, 0), (0, cp - c)))
    edge_flat = jnp.transpose(edge, (0, 2, 3, 1)).reshape(b, hw, 1).astype(jnp.float32)

    kernel = _make_big_kernel(h, w, hw, cp)

    def rep(shape):
        return pl.BlockSpec(shape, lambda i, _n=len(shape): (0,) * _n)

    # rough advisory cost: two K=9*Cp convs + stats matmuls, bf16 I/O
    flops = int(b * (4 * hw * k9c * cp + 16 * hw * cp))
    bytes_accessed = int(b * hw * cp * 2 + b * hw * 4
                         + 2 * k9c * cp * 2 + b * hw * cp * 4)
    cost = pl.CostEstimate(flops=flops, transcendentals=int(6 * b * hw),
                           bytes_accessed=bytes_accessed)

    # explicit scoped-VMEM budget (x/out double-buffered, im2col scratch, temps)
    est = (2 * hw * cp * 2 + 2 * hw * cp * 4 + hw * k9c * 2
           + 4 * k9c * cp * 2 + 6 * cp * cp * 4 + 8 * hw * cp * 4)
    vmem_limit = int(min(max(est + (4 << 20), 32 << 20), 96 << 20))

    out_flat = pl.pallas_call(
        kernel,
        out_shape=jax.ShapeDtypeStruct((b, hw, cp), jnp.float32),
        grid_spec=pltpu.PrefetchScalarGridSpec(
            num_scalar_prefetch=0,
            grid=(b,),
            in_specs=[
                pl.BlockSpec((1, hw, cp), lambda i: (i, 0, 0)),
                pl.BlockSpec((1, hw, 1), lambda i: (i, 0, 0)),
                rep((k9c, cp)), rep((1, cp)), rep((1, cp)), rep((1, cp)),
                rep((1, cp)), rep((cp, cp)), rep((cp, 4)), rep((1, 4)),
                rep((4, k9c)),
                rep((k9c, cp)), rep((1, cp)), rep((1, cp)), rep((1, cp)),
                rep((1, 1)), rep((cp, cp)),
            ],
            out_specs=pl.BlockSpec((1, hw, cp), lambda i: (i, 0, 0)),
            scratch_shapes=[pltpu.VMEM((hw, k9c), jnp.bfloat16)],
        ),
        compiler_params=pltpu.CompilerParams(
            dimension_semantics=("parallel",),
            vmem_limit_bytes=vmem_limit),
        cost_estimate=cost,
    )(x_flat, edge_flat, kp['wg'], kp['bg'], kp['gamg'], kp['betg'], kp['alpg'],
      kp['gmatg'], kp['w2'], kp['b2'], kp['expand9'],
      kp['wc'], kp['bc'], kp['gamc'], kp['betc'], kp['alpc'], kp['gmatc'])

    out = out_flat[..., :c].reshape(b, h, w, c)
    return jnp.transpose(out, (0, 3, 1, 2))                   # NCHW


# ----------------------------------------------------------------------------
# pure-JAX reference (mirrors the PyTorch forward) for a correctness check
# ----------------------------------------------------------------------------
def big_reference(x, edge, params, channel, groups):
    c4 = channel // 4
    xn = jnp.transpose(x, (0, 2, 3, 1))
    en = jnp.transpose(edge, (0, 2, 3, 1))

    def conv2d(xin, w_oihw, bias, pad):
        w_hwio = jnp.transpose(w_oihw, (2, 3, 1, 0))
        out = jax.lax.conv_general_dilated(
            xin, w_hwio, (1, 1), ((pad, pad), (pad, pad)),
            dimension_numbers=('NHWC', 'HWIO', 'NHWC'),
            precision=jax.lax.Precision.HIGHEST)
        return out + bias[None, None, None, :]

    def gn(xin, gamma, beta, ng, eps=1e-5):
        bsz, hh, ww, cc = xin.shape
        gs = cc // ng
        xg = xin.reshape(bsz, hh, ww, ng, gs)
        mu = xg.mean(axis=(1, 2, 4), keepdims=True)
        var = ((xg - mu) ** 2).mean(axis=(1, 2, 4), keepdims=True)
        out = ((xg - mu) / jnp.sqrt(var + eps)).reshape(bsz, hh, ww, cc)
        return out * gamma[None, None, None, :] + beta[None, None, None, :]

    xs = [xn[..., i * c4:(i + 1) * c4] for i in range(4)]
    gvs = []
    for i, g in enumerate(params['gates']):
        y = conv2d(xs[i], g['w1'], g['b1'], 1)
        y = gn(y, g['gamma'], g['beta'], groups)
        y = jnp.where(y >= 0, y, g['alpha'] * y)
        cm = jax.nn.sigmoid(conv2d(y, g['w2'], g['b2'], 0))
        e = cm * jax.nn.sigmoid(en)
        gvs.append(e.mean(axis=(1, 2, 3)))
    wsm = jax.nn.softmax(jnp.stack(gvs, axis=1), axis=1)
    nx = jnp.concatenate(
        [xs[i] * wsm[:, i][:, None, None, None] for i in range(4)], axis=-1)
    cv = params['conv']
    y = conv2d(nx, cv['w'], cv['b'], 1)
    y = gn(y, cv['gamma'], cv['beta'], groups)
    y = jnp.where(y >= 0, y, cv['alpha'] * y)
    return jnp.transpose(y, (0, 3, 1, 2))


if __name__ == "__main__":
    B, C, H, W = 2, 16, 16, 16
    GROUPS = 2                     # must divide C//4 (PyTorch default 16 needs C>=64)
    key = jax.random.PRNGKey(0)
    kparam, kx, ke = jax.random.split(key, 3)
    params = init_params(kparam, C, GROUPS)
    x = jax.random.normal(kx, (B, C, H, W), jnp.float32)
    edge = jax.random.normal(ke, (B, 1, H, W), jnp.float32)

    out = big_forward(x, edge, params, C, GROUPS)
    out = jax.block_until_ready(out)
    assert out.shape == (B, C, H, W), out.shape

    ref = big_reference(x, edge, params, C, GROUPS)
    max_err = float(jnp.max(jnp.abs(out - ref)))
    if not bool(jnp.allclose(out, ref, atol=5e-2, rtol=5e-2)):
        raise AssertionError(
            f"Pallas BIG kernel does not match JAX reference (max abs err {max_err})")

    print("KERNEL_OK")
</pallas_src>

<mosaic_0001>
module attributes {stable_mosaic.version = 11 : i64} {
  func.func @kernel(%arg0: i32, %arg1: memref<1x256x128xbf16, #tpu.memory_space<vmem>>, %arg2: memref<1x256x1xf32, #tpu.memory_space<vmem>>, %arg3: memref<1152x128xbf16, #tpu.memory_space<vmem>>, %arg4: memref<1x128xf32, #tpu.memory_space<vmem>>, %arg5: memref<1x128xf32, #tpu.memory_space<vmem>>, %arg6: memref<1x128xf32, #tpu.memory_space<vmem>>, %arg7: memref<1x128xf32, #tpu.memory_space<vmem>>, %arg8: memref<128x128xf32, #tpu.memory_space<vmem>>, %arg9: memref<128x4xf32, #tpu.memory_space<vmem>>, %arg10: memref<1x4xf32, #tpu.memory_space<vmem>>, %arg11: memref<4x1152xf32, #tpu.memory_space<vmem>>, %arg12: memref<1152x128xbf16, #tpu.memory_space<vmem>>, %arg13: memref<1x128xf32, #tpu.memory_space<vmem>>, %arg14: memref<1x128xf32, #tpu.memory_space<vmem>>, %arg15: memref<1x128xf32, #tpu.memory_space<vmem>>, %arg16: memref<1x1xf32, #tpu.memory_space<vmem>>, %arg17: memref<128x128xf32, #tpu.memory_space<vmem>>, %arg18: memref<1x256x128xf32, #tpu.memory_space<vmem>>, %arg19: memref<256x1152xbf16, #tpu.memory_space<vmem>>) attributes {dimension_semantics = [#tpu.dimension_semantics<parallel>], iteration_bounds = array<i64: 2>, scalar_prefetch = 0 : i64, scratch_operands = 1 : i64, tpu.core_type = #tpu.core_type<tc>, window_params = [{transform_indices = @transform_0, window_bounds = array<i64: 1, 256, 128>}, {transform_indices = @transform_1, window_bounds = array<i64: 1, 256, 1>}, {pipeline_mode = #tpu.pipeline_mode<synchronous>, transform_indices = @transform_2, window_bounds = array<i64: 1152, 128>}, {pipeline_mode = #tpu.pipeline_mode<synchronous>, transform_indices = @transform_3, window_bounds = array<i64: 1, 128>}, {pipeline_mode = #tpu.pipeline_mode<synchronous>, transform_indices = @transform_4, window_bounds = array<i64: 1, 128>}, {pipeline_mode = #tpu.pipeline_mode<synchronous>, transform_indices = @transform_5, window_bounds = array<i64: 1, 128>}, {pipeline_mode = #tpu.pipeline_mode<synchronous>, transform_indices = @transform_6, window_bounds = array<i64: 1, 128>}, {pipeline_mode = #tpu.pipeline_mode<synchronous>, transform_indices = @transform_7, window_bounds = array<i64: 128, 128>}, {pipeline_mode = #tpu.pipeline_mode<synchronous>, transform_indices = @transform_8, window_bounds = array<i64: 128, 4>}, {pipeline_mode = #tpu.pipeline_mode<synchronous>, transform_indices = @transform_9, window_bounds = array<i64: 1, 4>}, {pipeline_mode = #tpu.pipeline_mode<synchronous>, transform_indices = @transform_10, window_bounds = array<i64: 4, 1152>}, {pipeline_mode = #tpu.pipeline_mode<synchronous>, transform_indices = @transform_11, window_bounds = array<i64: 1152, 128>}, {pipeline_mode = #tpu.pipeline_mode<synchronous>, transform_indices = @transform_12, window_bounds = array<i64: 1, 128>}, {pipeline_mode = #tpu.pipeline_mode<synchronous>, transform_indices = @transform_13, window_bounds = array<i64: 1, 128>}, {pipeline_mode = #tpu.pipeline_mode<synchronous>, transform_indices = @transform_14, window_bounds = array<i64: 1, 128>}, {pipeline_mode = #tpu.pipeline_mode<synchronous>, transform_indices = @transform_15, window_bounds = array<i64: 1, 1>}, {pipeline_mode = #tpu.pipeline_mode<synchronous>, transform_indices = @transform_16, window_bounds = array<i64: 128, 128>}, {transform_indices = @transform_17, window_bounds = array<i64: 1, 256, 128>}]} {
    %c0 = arith.constant 0 : index
    %c0_0 = arith.constant 0 : index
    %c0_1 = arith.constant 0 : index
    %0 = vector.load %arg1[%c0, %c0_0, %c0_1] : memref<1x256x128xbf16, #tpu.memory_space<vmem>>, vector<1x256x128xbf16>
    %1 = vector.shape_cast %0 : vector<1x256x128xbf16> to vector<256x128xbf16>
    %2 = arith.extf %1 : vector<256x128xbf16> to vector<256x128xf32>
    %3 = tpu.iota {dimensions = array<i32: 0>} : vector<256x1xi32>
    %c16_i32 = arith.constant 16 : i32
    %c0_i32 = arith.constant 0 : i32
    %4 = arith.cmpi eq, %c16_i32, %c0_i32 : i32
    %c1_i32 = arith.constant 1 : i32
    %5 = arith.select %4, %c1_i32, %c16_i32 : i32
    %6 = vector.broadcast %5 : i32 to vector<256x1xi32>
    %7 = arith.remsi %3, %6 : vector<256x1xi32>
    %c0_i32_2 = arith.constant 0 : i32
    %8 = vector.broadcast %c0_i32_2 : i32 to vector<256x1xi32>
    %9 = arith.cmpi ne, %7, %8 : vector<256x1xi32>
    %c0_i32_3 = arith.constant 0 : i32
    %10 = vector.broadcast %c0_i32_3 : i32 to vector<256x1xi32>
    %11 = arith.cmpi slt, %7, %10 : vector<256x1xi32>
    %c0_i32_4 = arith.constant 0 : i32
    %12 = arith.cmpi slt, %5, %c0_i32_4 : i32
    %13 = vector.broadcast %12 : i1 to vector<256x1xi1>
    %14 = vector.broadcast %13 : vector<256x1xi1> to vector<256x1xi1>
    %15 = arith.xori %11, %14 : vector<256x1xi1>
    %16 = arith.andi %15, %9 : vector<256x1xi1>
    %17 = vector.broadcast %5 : i32 to vector<256x1xi32>
    %18 = arith.addi %7, %17 : vector<256x1xi32>
    %19 = arith.select %16, %18, %7 : vector<256x1xi1>, vector<256x1xi32>
    %c16_i32_5 = arith.constant 16 : i32
    %20 = vector.broadcast %c16_i32_5 : i32 to vector<256x1xi32>
    %21 = arith.cmpi sge, %3, %20 : vector<256x1xi32>
    %22 = arith.extui %21 : vector<256x1xi1> to vector<256x1xi32>
    %23 = arith.sitofp %22 : vector<256x1xi32> to vector<256x1xf32>
    %c240_i32 = arith.constant 240 : i32
    %24 = vector.broadcast %c240_i32 : i32 to vector<256x1xi32>
    %25 = arith.cmpi slt, %3, %24 : vector<256x1xi32>
    %26 = arith.extui %25 : vector<256x1xi1> to vector<256x1xi32>
    %27 = arith.sitofp %26 : vector<256x1xi32> to vector<256x1xf32>
    %c1_i32_6 = arith.constant 1 : i32
    %28 = vector.broadcast %c1_i32_6 : i32 to vector<256x1xi32>
    %29 = arith.cmpi sge, %19, %28 : vector<256x1xi32>
    %30 = arith.extui %29 : vector<256x1xi1> to vector<256x1xi32>
    %31 = arith.sitofp %30 : vector<256x1xi32> to vector<256x1xf32>
    %c14_i32 = arith.constant 14 : i32
    %32 = vector.broadcast %c14_i32 : i32 to vector<256x1xi32>
    %33 = arith.cmpi sle, %19, %32 : vector<256x1xi32>
    %34 = arith.extui %33 : vector<256x1xi1> to vector<256x1xi32>
    %35 = arith.sitofp %34 : vector<256x1xi32> to vector<256x1xf32>
    %c17_i32 = arith.constant 17 : i32
    %36 = tpu.dynamic_rotate %2 by %c17_i32 dim 0 : vector<256x128xf32>, i32 -> vector<256x128xf32>
    %37 = arith.mulf %23, %31 : vector<256x1xf32>
    %38 = vector.broadcast %37 : vector<256x1xf32> to vector<256x128xf32>
    %39 = arith.mulf %36, %38 : vector<256x128xf32>
    %40 = arith.truncf %39 : vector<256x128xf32> to vector<256x128xbf16>
    %c0_7 = arith.constant 0 : index
    %c0_8 = arith.constant 0 : index
    %41 = vector.load %arg19[%c0_7, %c0_8] : memref<256x1152xbf16, #tpu.memory_space<vmem>>, vector<256x128xbf16>
    tpu.vector_store %arg19[%c0_7, %c0_8], %40 {strides = array<i32>} : memref<256x1152xbf16, #tpu.memory_space<vmem>>, vector<256x128xbf16>,
    %c16_i32_9 = arith.constant 16 : i32
    %42 = tpu.dynamic_rotate %2 by %c16_i32_9 dim 0 : vector<256x128xf32>, i32 -> vector<256x128xf32>
    %43 = vector.broadcast %23 : vector<256x1xf32> to vector<256x128xf32>
    %44 = arith.mulf %42, %43 : vector<256x128xf32>
    %45 = arith.truncf %44 : vector<256x128xf32> to vector<256x128xbf16>
    %c0_10 = arith.constant 0 : index
    %c128 = arith.constant 128 : index
    %46 = vector.load %arg19[%c0_10, %c128] : memref<256x1152xbf16, #tpu.memory_space<vmem>>, vector<256x128xbf16>
    tpu.vector_store %arg19[%c0_10, %c128], %45 {strides = array<i32>} : memref<256x1152xbf16, #tpu.memory_space<vmem>>, vector<256x128xbf16>,
    %c15_i32 = arith.constant 15 : i32
    %47 = tpu.dynamic_rotate %2 by %c15_i32 dim 0 : vector<256x128xf32>, i32 -> vector<256x128xf32>
    %48 = arith.mulf %23, %35 : vector<256x1xf32>
    %49 = vector.broadcast %48 : vector<256x1xf32> to vector<256x128xf32>
    %50 = arith.mulf %47, %49 : vector<256x128xf32>
    %51 = arith.truncf %50 : vector<256x128xf32> to vector<256x128xbf16>
    %c0_11 = arith.constant 0 : index
    %c256 = arith.constant 256 : index
    %52 = vector.load %arg19[%c0_11, %c256] : memref<256x1152xbf16, #tpu.memory_space<vmem>>, vector<256x128xbf16>
    tpu.vector_store %arg19[%c0_11, %c256], %51 {strides = array<i32>} : memref<256x1152xbf16, #tpu.memory_space<vmem>>, vector<256x128xbf16>,
    %c1_i32_12 = arith.constant 1 : i32
    %53 = tpu.dynamic_rotate %2 by %c1_i32_12 dim 0 : vector<256x128xf32>, i32 -> vector<256x128xf32>
    %54 = vector.broadcast %31 : vector<256x1xf32> to vector<256x128xf32>
    %55 = arith.mulf %53, %54 : vector<256x128xf32>
    %56 = arith.truncf %55 : vector<256x128xf32> to vector<256x128xbf16>
    %c0_13 = arith.constant 0 : index
    %c384 = arith.constant 384 : index
    %57 = vector.load %arg19[%c0_13, %c384] : memref<256x1152xbf16, #tpu.memory_space<vmem>>, vector<256x128xbf16>
    tpu.vector_store %arg19[%c0_13, %c384], %56 {strides = array<i32>} : memref<256x1152xbf16, #tpu.memory_space<vmem>>, vector<256x128xbf16>,
    %58 = arith.truncf %2 : vector<256x128xf32> to vector<256x128xbf16>
    %c0_14 = arith.constant 0 : index
    %c512 = arith.constant 512 : index
    %59 = vector.load %arg19[%c0_14, %c512] : memref<256x1152xbf16, #tpu.memory_space<vmem>>, vector<256x128xbf16>
    tpu.vector_store %arg19[%c0_14, %c512], %58 {strides = array<i32>} : memref<256x1152xbf16, #tpu.memory_space<vmem>>, vector<256x128xbf16>,
    %c255_i32 = arith.constant 255 : i32
    %60 = tpu.dynamic_rotate %2 by %c255_i32 dim 0 : vector<256x128xf32>, i32 -> vector<256x128xf32>
    %61 = vector.broadcast %35 : vector<256x1xf32> to vector<256x128xf32>
    %62 = arith.mulf %60, %61 : vector<256x128xf32>
    %63 = arith.truncf %62 : vector<256x128xf32> to vector<256x128xbf16>
    %c0_15 = arith.constant 0 : index
    %c640 = arith.constant 640 : index
    %64 = vector.load %arg19[%c0_15, %c640] : memref<256x1152xbf16, #tpu.memory_space<vmem>>, vector<256x128xbf16>
    tpu.vector_store %arg19[%c0_15, %c640], %63 {strides = array<i32>} : memref<256x1152xbf16, #tpu.memory_space<vmem>>, vector<256x128xbf16>,
    %c241_i32 = arith.constant 241 : i32
    %65 = tpu.dynamic_rotate %2 by %c241_i32 dim 0 : vector<256x128xf32>, i32 -> vector<256x128xf32>
    %66 = arith.mulf %27, %31 : vector<256x1xf32>
    %67 = vector.broadcast %66 : vector<256x1xf32> to vector<256x128xf32>
    %68 = arith.mulf %65, %67 : vector<256x128xf32>
    %69 = arith.truncf %68 : vector<256x128xf32> to vector<256x128xbf16>
    %c0_16 = arith.constant 0 : index
    %c768 = arith.constant 768 : index
    %70 = vector.load %arg19[%c0_16, %c768] : memref<256x1152xbf16, #tpu.memory_space<vmem>>, vector<256x128xbf16>
    tpu.vector_store %arg19[%c0_16, %c768], %69 {strides = array<i32>} : memref<256x1152xbf16, #tpu.memory_space<vmem>>, vector<256x128xbf16>,
    %c240_i32_17 = arith.constant 240 : i32
    %71 = tpu.dynamic_rotate %2 by %c240_i32_17 dim 0 : vector<256x128xf32>, i32 -> vector<256x128xf32>
    %72 = vector.broadcast %27 : vector<256x1xf32> to vector<256x128xf32>
    %73 = arith.mulf %71, %72 : vector<256x128xf32>
    %74 = arith.truncf %73 : vector<256x128xf32> to vector<256x128xbf16>
    %c0_18 = arith.constant 0 : index
    %c896 = arith.constant 896 : index
    %75 = vector.load %arg19[%c0_18, %c896] : memref<256x1152xbf16, #tpu.memory_space<vmem>>, vector<256x128xbf16>
    tpu.vector_store %arg19[%c0_18, %c896], %74 {strides = array<i32>} : memref<256x1152xbf16, #tpu.memory_space<vmem>>, vector<256x128xbf16>,
    %c239_i32 = arith.constant 239 : i32
    %76 = tpu.dynamic_rotate %2 by %c239_i32 dim 0 : vector<256x128xf32>, i32 -> vector<256x128xf32>
    %77 = arith.mulf %27, %35 : vector<256x1xf32>
    %78 = vector.broadcast %77 : vector<256x1xf32> to vector<256x128xf32>
    %79 = arith.mulf %76, %78 : vector<256x128xf32>
    %80 = arith.truncf %79 : vector<256x128xf32> to vector<256x128xbf16>
    %c0_19 = arith.constant 0 : index
    %c1024 = arith.constant 1024 : index
    %81 = vector.load %arg19[%c0_19, %c1024] : memref<256x1152xbf16, #tpu.memory_space<vmem>>, vector<256x128xbf16>
    tpu.vector_store %arg19[%c0_19, %c1024], %80 {strides = array<i32>} : memref<256x1152xbf16, #tpu.memory_space<vmem>>, vector<256x128xbf16>,
    %cst = arith.constant 1.000000e+00 : f32
    %82 = vector.broadcast %cst : f32 to vector<1x256xf32>
    %c0_20 = arith.constant 0 : index
    %c0_21 = arith.constant 0 : index
    %83 = vector.load %arg19[%c0_20, %c0_21] : memref<256x1152xbf16, #tpu.memory_space<vmem>>, vector<256x1152xbf16>
    %c0_22 = arith.constant 0 : index
    %c0_23 = arith.constant 0 : index
    %84 = vector.load %arg3[%c0_22, %c0_23] : memref<1152x128xbf16, #tpu.memory_space<vmem>>, vector<1152x128xbf16>
    %cst_24 = arith.constant dense<0.000000e+00> : vector<256x128xf32>
    %85 = tpu.matmul %83, %84, %cst_24 {dimension_numbers = #tpu.dot_dimension_numbers<[1], [0], [0], [1], [0, 0, 1, 1], [], []>} : vector<256x1152xbf16>, vector<1152x128xbf16>, vector<256x128xf32> -> vector<256x128xf32>
    %c0_25 = arith.constant 0 : index
    %c0_26 = arith.constant 0 : index
    %86 = vector.load %arg4[%c0_25, %c0_26] : memref<1x128xf32, #tpu.memory_space<vmem>>, vector<1x128xf32>
    %87 = vector.broadcast %86 : vector<1x128xf32> to vector<256x128xf32>
    %88 = arith.addf %85, %87 : vector<256x128xf32>
    %c0_27 = arith.constant 0 : index
    %c0_28 = arith.constant 0 : index
    %89 = vector.load %arg8[%c0_27, %c0_28] : memref<128x128xf32, #tpu.memory_space<vmem>>, vector<128x128xf32>
    %c0_29 = arith.constant 0 : index
    %c0_30 = arith.constant 0 : index
    %90 = vector.load %arg5[%c0_29, %c0_30] : memref<1x128xf32, #tpu.memory_space<vmem>>, vector<1x128xf32>
    %c0_31 = arith.constant 0 : index
    %c0_32 = arith.constant 0 : index
    %91 = vector.load %arg6[%c0_31, %c0_32] : memref<1x128xf32, #tpu.memory_space<vmem>>, vector<1x128xf32>
    %c0_33 = arith.constant 0 : index
    %c0_34 = arith.constant 0 : index
    %92 = vector.load %arg7[%c0_33, %c0_34] : memref<1x128xf32, #tpu.memory_space<vmem>>, vector<1x128xf32>
    %cst_35 = arith.constant dense<0.000000e+00> : vector<1x128xf32>
    %93 = tpu.matmul %82, %88, %cst_35 {dimension_numbers = #tpu.dot_dimension_numbers<[1], [0], [0], [1], [0, 0, 1, 1], [], []>} : vector<1x256xf32>, vector<256x128xf32>, vector<1x128xf32> -> vector<1x128xf32>
    %cst_36 = arith.constant 3.906250e-03 : f32
    %94 = vector.broadcast %cst_36 : f32 to vector<1x128xf32>
    %95 = arith.mulf %93, %94 : vector<1x128xf32>
    %96 = arith.mulf %88, %88 : vector<256x128xf32>
    %cst_37 = arith.constant dense<0.000000e+00> : vector<1x128xf32>
    %97 = tpu.matmul %82, %96, %cst_37 {dimension_numbers = #tpu.dot_dimension_numbers<[1], [0], [0], [1], [0, 0, 1, 1], [], []>} : vector<1x256xf32>, vector<256x128xf32>, vector<1x128xf32> -> vector<1x128xf32>
    %cst_38 = arith.constant 3.906250e-03 : f32
    %98 = vector.broadcast %cst_38 : f32 to vector<1x128xf32>
    %99 = arith.mulf %97, %98 : vector<1x128xf32>
    %cst_39 = arith.constant dense<0.000000e+00> : vector<1x128xf32>
    %100 = tpu.matmul %95, %89, %cst_39 {dimension_numbers = #tpu.dot_dimension_numbers<[1], [0], [0], [1], [0, 0, 1, 1], [], []>} : vector<1x128xf32>, vector<128x128xf32>, vector<1x128xf32> -> vector<1x128xf32>
    %cst_40 = arith.constant dense<0.000000e+00> : vector<1x128xf32>
    %101 = tpu.matmul %99, %89, %cst_40 {dimension_numbers = #tpu.dot_dimension_numbers<[1], [0], [0], [1], [0, 0, 1, 1], [], []>} : vector<1x128xf32>, vector<128x128xf32>, vector<1x128xf32> -> vector<1x128xf32>
    %102 = vector.broadcast %100 : vector<1x128xf32> to vector<256x128xf32>
    %103 = arith.subf %88, %102 : vector<256x128xf32>
    %104 = arith.mulf %100, %100 : vector<1x128xf32>
    %105 = arith.subf %101, %104 : vector<1x128xf32>
    %cst_41 = arith.constant 9.99999974E-6 : f32
    %106 = vector.broadcast %cst_41 : f32 to vector<1x128xf32>
    %107 = arith.addf %105, %106 : vector<1x128xf32>
    %108 = math.rsqrt %107 : vector<1x128xf32>
    %109 = vector.broadcast %108 : vector<1x128xf32> to vector<256x128xf32>
    %110 = arith.mulf %103, %109 : vector<256x128xf32>
    %111 = vector.broadcast %90 : vector<1x128xf32> to vector<256x128xf32>
    %112 = arith.mulf %110, %111 : vector<256x128xf32>
    %113 = vector.broadcast %91 : vector<1x128xf32> to vector<256x128xf32>
    %114 = arith.addf %112, %113 : vector<256x128xf32>
    %cst_42 = arith.constant 0.000000e+00 : f32
    %115 = vector.broadcast %cst_42 : f32 to vector<256x128xf32>
    %116 = arith.cmpf oge, %114, %115 : vector<256x128xf32>
    %117 = vector.broadcast %92 : vector<1x128xf32> to vector<256x128xf32>
    %118 = arith.mulf %117, %114 : vector<256x128xf32>
    %119 = arith.select %116, %114, %118 : vector<256x128xi1>, vector<256x128xf32>
    %c0_43 = arith.constant 0 : index
    %c0_44 = arith.constant 0 : index
    %120 = vector.load %arg9[%c0_43, %c0_44] : memref<128x4xf32, #tpu.memory_space<vmem>>, vector<128x4xf32>
    %cst_45 = arith.constant dense<0.000000e+00> : vector<256x4xf32>
    %121 = tpu.matmul %119, %120, %cst_45 {dimension_numbers = #tpu.dot_dimension_numbers<[1], [0], [0], [1], [0, 0, 1, 1], [], []>} : vector<256x128xf32>, vector<128x4xf32>, vector<256x4xf32> -> vector<256x4xf32>
    %c0_46 = arith.constant 0 : index
    %c0_47 = arith.constant 0 : index
    %122 = vector.load %arg10[%c0_46, %c0_47] : memref<1x4xf32, #tpu.memory_space<vmem>>, vector<1x4xf32>
    %123 = vector.broadcast %122 : vector<1x4xf32> to vector<256x4xf32>
    %124 = arith.addf %121, %123 : vector<256x4xf32>
    %125 = arith.negf %124 : vector<256x4xf32>
    %126 = math.exp %125 : vector<256x4xf32>
    %cst_48 = arith.constant 1.000000e+00 : f32
    %127 = vector.broadcast %cst_48 : f32 to vector<256x4xf32>
    %128 = arith.addf %127, %126 : vector<256x4xf32>
    %129 = arith.divf %127, %128 : vector<256x4xf32>
    %c0_49 = arith.constant 0 : index
    %c0_50 = arith.constant 0 : index
    %c0_51 = arith.constant 0 : index
    %130 = vector.load %arg2[%c0_49, %c0_50, %c0_51] : memref<1x256x1xf32, #tpu.memory_space<vmem>>, vector<1x256x1xf32>
    %131 = vector.shape_cast %130 : vector<1x256x1xf32> to vector<256x1xf32>
    %132 = arith.negf %131 : vector<256x1xf32>
    %133 = math.exp %132 : vector<256x1xf32>
    %cst_52 = arith.constant 1.000000e+00 : f32
    %134 = vector.broadcast %cst_52 : f32 to vector<256x1xf32>
    %135 = arith.addf %134, %133 : vector<256x1xf32>
    %136 = arith.divf %134, %135 : vector<256x1xf32>
    %137 = vector.broadcast %136 : vector<256x1xf32> to vector<256x4xf32>
    %138 = arith.mulf %129, %137 : vector<256x4xf32>
    %cst_53 = arith.constant dense<0.000000e+00> : vector<1x4xf32>
    %139 = tpu.matmul %82, %138, %cst_53 {dimension_numbers = #tpu.dot_dimension_numbers<[1], [0], [0], [1], [0, 0, 1, 1], [], []>} : vector<1x256xf32>, vector<256x4xf32>, vector<1x4xf32> -> vector<1x4xf32>
    %cst_54 = arith.constant 3.906250e-03 : f32
    %140 = vector.broadcast %cst_54 : f32 to vector<1x4xf32>
    %141 = arith.mulf %139, %140 : vector<1x4xf32>
    %cst_55 = arith.constant dense<0xFF800000> : vector<1xf32>
    %142 = vector.multi_reduction <maximumf>, %141, %cst_55 [1] : vector<1x4xf32> to vector<1xf32>
    %143 = vector.shape_cast %142 : vector<1xf32> to vector<1x1xf32>
    %144 = vector.broadcast %143 : vector<1x1xf32> to vector<1x4xf32>
    %145 = arith.subf %141, %144 : vector<1x4xf32>
    %146 = math.exp %145 : vector<1x4xf32>
    %cst_56 = arith.constant dense<0.000000e+00> : vector<1xf32>
    %147 = vector.multi_reduction <add>, %146, %cst_56 [1] : vector<1x4xf32> to vector<1xf32>
    %148 = vector.shape_cast %147 : vector<1xf32> to vector<1x1xf32>
    %149 = vector.broadcast %148 : vector<1x1xf32> to vector<1x4xf32>
    %150 = arith.divf %146, %149 : vector<1x4xf32>
    %c0_57 = arith.constant 0 : index
    %c0_58 = arith.constant 0 : index
    %151 = vector.load %arg11[%c0_57, %c0_58] : memref<4x1152xf32, #tpu.memory_space<vmem>>, vector<4x1152xf32>
    %cst_59 = arith.constant dense<0.000000e+00> : vector<1x1152xf32>
    %152 = tpu.matmul %150, %151, %cst_59 {dimension_numbers = #tpu.dot_dimension_numbers<[1], [0], [0], [1], [0, 0, 1, 1], [], []>} : vector<1x4xf32>, vector<4x1152xf32>, vector<1x1152xf32> -> vector<1x1152xf32>
    %c0_60 = arith.constant 0 : index
    %c0_61 = arith.constant 0 : index
    %153 = vector.load %arg19[%c0_60, %c0_61] : memref<256x1152xbf16, #tpu.memory_space<vmem>>, vector<256x1152xbf16>
    %154 = arith.truncf %152 : vector<1x1152xf32> to vector<1x1152xbf16>
    %155 = vector.broadcast %154 : vector<1x1152xbf16> to vector<256x1152xbf16>
    %156 = arith.mulf %153, %155 : vector<256x1152xbf16>
    %c0_62 = arith.constant 0 : index
    %c0_63 = arith.constant 0 : index
    %157 = vector.load %arg19[%c0_62, %c0_63] : memref<256x1152xbf16, #tpu.memory_space<vmem>>, vector<256x1152xbf16>
    tpu.vector_store %arg19[%c0_62, %c0_63], %156 {strides = array<i32>} : memref<256x1152xbf16, #tpu.memory_space<vmem>>, vector<256x1152xbf16>,
    %c0_64 = arith.constant 0 : index
    %c0_65 = arith.constant 0 : index
    %158 = vector.load %arg19[%c0_64, %c0_65] : memref<256x1152xbf16, #tpu.memory_space<vmem>>, vector<256x1152xbf16>
    %c0_66 = arith.constant 0 : index
    %c0_67 = arith.constant 0 : index
    %159 = vector.load %arg12[%c0_66, %c0_67] : memref<1152x128xbf16, #tpu.memory_space<vmem>>, vector<1152x128xbf16>
    %cst_68 = arith.constant dense<0.000000e+00> : vector<256x128xf32>
    %160 = tpu.matmul %158, %159, %cst_68 {dimension_numbers = #tpu.dot_dimension_numbers<[1], [0], [0], [1], [0, 0, 1, 1], [], []>} : vector<256x1152xbf16>, vector<1152x128xbf16>, vector<256x128xf32> -> vector<256x128xf32>
    %c0_69 = arith.constant 0 : index
    %c0_70 = arith.constant 0 : index
    %161 = vector.load %arg13[%c0_69, %c0_70] : memref<1x128xf32, #tpu.memory_space<vmem>>, vector<1x128xf32>
    %162 = vector.broadcast %161 : vector<1x128xf32> to vector<256x128xf32>
    %163 = arith.addf %160, %162 : vector<256x128xf32>
    %c0_71 = arith.constant 0 : index
    %c0_72 = arith.constant 0 : index
    %164 = vector.load %arg17[%c0_71, %c0_72] : memref<128x128xf32, #tpu.memory_space<vmem>>, vector<128x128xf32>
    %c0_73 = arith.constant 0 : index
    %c0_74 = arith.constant 0 : index
    %165 = vector.load %arg14[%c0_73, %c0_74] : memref<1x128xf32, #tpu.memory_space<vmem>>, vector<1x128xf32>
    %c0_75 = arith.constant 0 : index
    %c0_76 = arith.constant 0 : index
    %166 = vector.load %arg15[%c0_75, %c0_76] : memref<1x128xf32, #tpu.memory_space<vmem>>, vector<1x128xf32>
    %c0_77 = arith.constant 0 : index
    %c0_78 = arith.constant 0 : index
    %167 = vector.load %arg16[%c0_77, %c0_78] : memref<1x1xf32, #tpu.memory_space<vmem>>, vector<1x1xf32>
    %cst_79 = arith.constant dense<0.000000e+00> : vector<1x128xf32>
    %168 = tpu.matmul %82, %163, %cst_79 {dimension_numbers = #tpu.dot_dimension_numbers<[1], [0], [0], [1], [0, 0, 1, 1], [], []>} : vector<1x256xf32>, vector<256x128xf32>, vector<1x128xf32> -> vector<1x128xf32>
    %cst_80 = arith.constant 3.906250e-03 : f32
    %169 = vector.broadcast %cst_80 : f32 to vector<1x128xf32>
    %170 = arith.mulf %168, %169 : vector<1x128xf32>
    %171 = arith.mulf %163, %163 : vector<256x128xf32>
    %cst_81 = arith.constant dense<0.000000e+00> : vector<1x128xf32>
    %172 = tpu.matmul %82, %171, %cst_81 {dimension_numbers = #tpu.dot_dimension_numbers<[1], [0], [0], [1], [0, 0, 1, 1], [], []>} : vector<1x256xf32>, vector<256x128xf32>, vector<1x128xf32> -> vector<1x128xf32>
    %cst_82 = arith.constant 3.906250e-03 : f32
    %173 = vector.broadcast %cst_82 : f32 to vector<1x128xf32>
    %174 = arith.mulf %172, %173 : vector<1x128xf32>
    %cst_83 = arith.constant dense<0.000000e+00> : vector<1x128xf32>
    %175 = tpu.matmul %170, %164, %cst_83 {dimension_numbers = #tpu.dot_dimension_numbers<[1], [0], [0], [1], [0, 0, 1, 1], [], []>} : vector<1x128xf32>, vector<128x128xf32>, vector<1x128xf32> -> vector<1x128xf32>
    %cst_84 = arith.constant dense<0.000000e+00> : vector<1x128xf32>
    %176 = tpu.matmul %174, %164, %cst_84 {dimension_numbers = #tpu.dot_dimension_numbers<[1], [0], [0], [1], [0, 0, 1, 1], [], []>} : vector<1x128xf32>, vector<128x128xf32>, vector<1x128xf32> -> vector<1x128xf32>
    %177 = vector.broadcast %175 : vector<1x128xf32> to vector<256x128xf32>
    %178 = arith.subf %163, %177 : vector<256x128xf32>
    %179 = arith.mulf %175, %175 : vector<1x128xf32>
    %180 = arith.subf %176, %179 : vector<1x128xf32>
    %cst_85 = arith.constant 9.99999974E-6 : f32
    %181 = vector.broadcast %cst_85 : f32 to vector<1x128xf32>
    %182 = arith.addf %180, %181 : vector<1x128xf32>
    %183 = math.rsqrt %182 : vector<1x128xf32>
    %184 = vector.broadcast %183 : vector<1x128xf32> to vector<256x128xf32>
    %185 = arith.mulf %178, %184 : vector<256x128xf32>
    %186 = vector.broadcast %165 : vector<1x128xf32> to vector<256x128xf32>
    %187 = arith.mulf %185, %186 : vector<256x128xf32>
    %188 = vector.broadcast %166 : vector<1x128xf32> to vector<256x128xf32>
    %189 = arith.addf %187, %188 : vector<256x128xf32>
    %cst_86 = arith.constant 0.000000e+00 : f32
    %190 = vector.broadcast %cst_86 : f32 to vector<256x128xf32>
    %191 = arith.cmpf oge, %189, %190 : vector<256x128xf32>
    %192 = vector.broadcast %167 : vector<1x1xf32> to vector<256x128xf32>
    %193 = arith.mulf %192, %189 : vector<256x128xf32>
    %194 = arith.select %191, %189, %193 : vector<256x128xi1>, vector<256x128xf32>
    %c0_87 = arith.constant 0 : index
    %c0_88 = arith.constant 0 : index
    %c0_89 = arith.constant 0 : index
    %195 = vector.load %arg18[%c0_87, %c0_88, %c0_89] : memref<1x256x128xf32, #tpu.memory_space<vmem>>, vector<1x256x128xf32>
    %196 = vector.shape_cast %195 : vector<1x256x128xf32> to vector<256x128xf32>
    %197 = vector.shape_cast %194 : vector<256x128xf32> to vector<1x256x128xf32>
    tpu.vector_store %arg18[%c0_87, %c0_88, %c0_89], %197 {strides = array<i32>} : memref<1x256x128xf32, #tpu.memory_space<vmem>>, vector<1x256x128xf32>,
    return
  }
  func.func @transform_0(%arg0: i32) -> (i32, i32, i32) {
    %c0_i32 = arith.constant 0 : i32
    %c0_i32_0 = arith.constant 0 : i32
    %c0_i32_1 = arith.constant 0 : i32
    return %arg0, %c0_i32, %c0_i32_0 : i32, i32, i32
  }
  func.func @transform_1(%arg0: i32) -> (i32, i32, i32) {
    %c0_i32 = arith.constant 0 : i32
    %c0_i32_0 = arith.constant 0 : i32
    %c0_i32_1 = arith.constant 0 : i32
    return %arg0, %c0_i32, %c0_i32_0 : i32, i32, i32
  }
  func.func @transform_2(%arg0: i32) -> (i32, i32) {
    %c0_i32 = arith.constant 0 : i32
    %c0_i32_0 = arith.constant 0 : i32
    %c0_i32_1 = arith.constant 0 : i32
    return %c0_i32, %c0_i32_0 : i32, i32
  }
  func.func @transform_3(%arg0: i32) -> (i32, i32) {
    %c0_i32 = arith.constant 0 : i32
    %c0_i32_0 = arith.constant 0 : i32
    %c0_i32_1 = arith.constant 0 : i32
    return %c0_i32, %c0_i32_0 : i32, i32
  }
  func.func @transform_4(%arg0: i32) -> (i32, i32) {
    %c0_i32 = arith.constant 0 : i32
    %c0_i32_0 = arith.constant 0 : i32
    %c0_i32_1 = arith.constant 0 : i32
    return %c0_i32, %c0_i32_0 : i32, i32
  }
  func.func @transform_5(%arg0: i32) -> (i32, i32) {
    %c0_i32 = arith.constant 0 : i32
    %c0_i32_0 = arith.constant 0 : i32
    %c0_i32_1 = arith.constant 0 : i32
    return %c0_i32, %c0_i32_0 : i32, i32
  }
  func.func @transform_6(%arg0: i32) -> (i32, i32) {
    %c0_i32 = arith.constant 0 : i32
    %c0_i32_0 = arith.constant 0 : i32
    %c0_i32_1 = arith.constant 0 : i32
    return %c0_i32, %c0_i32_0 : i32, i32
  }
  func.func @transform_7(%arg0: i32) -> (i32, i32) {
    %c0_i32 = arith.constant 0 : i32
    %c0_i32_0 = arith.constant 0 : i32
    %c0_i32_1 = arith.constant 0 : i32
    return %c0_i32, %c0_i32_0 : i32, i32
  }
  func.func @transform_8(%arg0: i32) -> (i32, i32) {
    %c0_i32 = arith.constant 0 : i32
    %c0_i32_0 = arith.constant 0 : i32
    %c0_i32_1 = arith.constant 0 : i32
    return %c0_i32, %c0_i32_0 : i32, i32
  }
  func.func @transform_9(%arg0: i32) -> (i32, i32) {
    %c0_i32 = arith.constant 0 : i32
    %c0_i32_0 = arith.constant 0 : i32
    %c0_i32_1 = arith.constant 0 : i32
    return %c0_i32, %c0_i32_0 : i32, i32
  }
  func.func @transform_10(%arg0: i32) -> (i32, i32) {
    %c0_i32 = arith.constant 0 : i32
    %c0_i32_0 = arith.constant 0 : i32
    %c0_i32_1 = arith.constant 0 : i32
    return %c0_i32, %c0_i32_0 : i32, i32
  }
  func.func @transform_11(%arg0: i32) -> (i32, i32) {
    %c0_i32 = arith.constant 0 : i32
    %c0_i32_0 = arith.constant 0 : i32
    %c0_i32_1 = arith.constant 0 : i32
    return %c0_i32, %c0_i32_0 : i32, i32
  }
  func.func @transform_12(%arg0: i32) -> (i32, i32) {
    %c0_i32 = arith.constant 0 : i32
    %c0_i32_0 = arith.constant 0 : i32
    %c0_i32_1 = arith.constant 0 : i32
    return %c0_i32, %c0_i32_0 : i32, i32
  }
  func.func @transform_13(%arg0: i32) -> (i32, i32) {
    %c0_i32 = arith.constant 0 : i32
    %c0_i32_0 = arith.constant 0 : i32
    %c0_i32_1 = arith.constant 0 : i32
    return %c0_i32, %c0_i32_0 : i32, i32
  }
  func.func @transform_14(%arg0: i32) -> (i32, i32) {
    %c0_i32 = arith.constant 0 : i32
    %c0_i32_0 = arith.constant 0 : i32
    %c0_i32_1 = arith.constant 0 : i32
    return %c0_i32, %c0_i32_0 : i32, i32
  }
  func.func @transform_15(%arg0: i32) -> (i32, i32) {
    %c0_i32 = arith.constant 0 : i32
    %c0_i32_0 = arith.constant 0 : i32
    %c0_i32_1 = arith.constant 0 : i32
    return %c0_i32, %c0_i32_0 : i32, i32
  }
  func.func @transform_16(%arg0: i32) -> (i32, i32) {
    %c0_i32 = arith.constant 0 : i32
    %c0_i32_0 = arith.constant 0 : i32
    %c0_i32_1 = arith.constant 0 : i32
    return %c0_i32, %c0_i32_0 : i32, i32
  }
  func.func @transform_17(%arg0: i32) -> (i32, i32, i32) {
    %c0_i32 = arith.constant 0 : i32
    %c0_i32_0 = arith.constant 0 : i32
    %c0_i32_1 = arith.constant 0 : i32
    return %arg0, %c0_i32, %c0_i32_0 : i32, i32, i32
  }
}

</mosaic_0001>

<llo_original>
// kernel: tpu_custom_call.1
$region0: #{tpu_custom_call.1}
  #allocation0 [shape = 'u32[]', space=smem, size = 0x4, offset = 0x4, fixed_abs, tag = 'smem constant byte address 0x4 - core index']
  #allocation1 [shape = 'u32[72,128]{1,0:T(1,128)}', space=vmem, size = 0x9000, scoped, tag = 'internal scratch']
  #allocation2 [shape = 'bf16[256,1152]{1,0:T(8,128)(2,1)}', space=vmem, size = 0x90000, scoped, tag = 'scratch operand']
  #allocation3 [shape = 'f32[1,1]{1,0:T(1,128)S(1)}', space=vmem, size = 0x200, scoped, tag = 'scoped memory for tpu_custom_call.1']
  %s0 = inlined_call_operand.hbm [shape: bf16[2,256,128], index: 0, kind: input, shape index: {}]
  %s1 = inlined_call_operand.vmem [shape: f32[2,256,1], index: 1, kind: input, shape index: {}]
  %s2 = inlined_call_operand.vmem [shape: bf16[1152,128], index: 2, kind: input, shape index: {}]
  %s3 = inlined_call_operand.vmem [shape: f32[1,128], index: 3, kind: input, shape index: {}]
  %s4 = inlined_call_operand.vmem [shape: f32[1,128], index: 4, kind: input, shape index: {}]
  %s5 = inlined_call_operand.vmem [shape: f32[1,128], index: 5, kind: input, shape index: {}]
  %s6 = inlined_call_operand.vmem [shape: f32[1,128], index: 6, kind: input, shape index: {}]
  %s7 = inlined_call_operand.hbm [shape: f32[128,128], index: 7, kind: input, shape index: {}]
  %s8 = inlined_call_operand.vmem [shape: f32[128,4], index: 8, kind: input, shape index: {}]
  %s9 = inlined_call_operand.vmem [shape: f32[1,4], index: 9, kind: input, shape index: {}]
  %s10 = inlined_call_operand.vmem [shape: f32[4,1152], index: 10, kind: input, shape index: {}]
  %s11 = inlined_call_operand.hbm [shape: bf16[1152,128], index: 11, kind: input, shape index: {}]
  %s12 = inlined_call_operand.vmem [shape: f32[1,128], index: 12, kind: input, shape index: {}]
  %s13 = inlined_call_operand.vmem [shape: f32[1,128], index: 13, kind: input, shape index: {}]
  %s14 = inlined_call_operand.vmem [shape: f32[1,128], index: 14, kind: input, shape index: {}]
  %s15 = inlined_call_operand.<no memory space> [shape: f32[1,1], index: 15, kind: input, shape index: {}]
  %s16 = inlined_call_operand.hbm [shape: f32[128,128], index: 16, kind: input, shape index: {}]
  %s17 = inlined_call_operand.hbm [shape: f32[2,256,128], index: 17, kind: output, shape index: {}]
  %s18 = sld [smem:[#allocation0]]
  $region117: #{tpu_custom_call.1} parent=0
    _
  %s20 = ssub.s32 1, %s18
  %s21 = scalar_select 0, %s20, %s18
  %v22 = vstv %s15
  %23 = vst [vmem:[#allocation3] sm:$0x1] %v22
  $region1: #{tpu_custom_call.1} parent=0
    #allocation4 [shape = 'u8[131072]{0}', space=vmem, size = 0x20000, scoped, tag = 'input window, operand 0']
    #allocation5 [shape = 's32[2]{0}', space=sflag, size = 0x8, scoped, tag = 'scoped memory for tpu_custom_call.1']
    #allocation6 [shape = 's32[2]{0}', space=sflag, size = 0x8, scoped, tag = 'scoped memory for tpu_custom_call.1']
    #allocation7 [shape = 'u8[65536]{0}', space=vmem, size = 0x10000, scoped, tag = 'input window, operand 7, single buffered']
    #allocation8 [shape = 's32[1]{0}', space=sflag, size = 0x4, scoped, tag = 'scoped memory for tpu_custom_call.1']
    #allocation9 [shape = 'u8[294912]{0}', space=vmem, size = 0x48000, scoped, tag = 'input window, operand 11, single buffered']
    #allocation10 [shape = 'u8[65536]{0}', space=vmem, size = 0x10000, scoped, tag = 'input window, operand 16, single buffered']
    #allocation11 [shape = 's32[1]{0}', space=sflag, size = 0x4, scoped, tag = 'scoped memory for tpu_custom_call.1']
    #allocation12 [shape = 'u8[262144]{0}', space=vmem, size = 0x40000, scoped, tag = 'output window, operand 0']
    %24 = vsyncpa [#allocation5], 0
    %s25 = scalar_lea.sflag [#allocation5], 1
    %26 = vsyncpa %s25, 0
    %27 = vsyncpa [#allocation8], 0
    %28 = vsyncpa [#allocation11], 0
    %29 = vsyncpa [#allocation6], 0
    %s30 = scalar_lea.sflag [#allocation6], 1
    %31 = vsyncpa %s30, 0
    loop: start=0, step=1, limit=4
    $region2: #{tpu_custom_call.1} parent=1 // loop_pre_header
      _
    $region3: #{tpu_custom_call.1} parent=1 // loop_header
      %s33 = sphi 0, %s37
      %p34 = scmp.ge.s32.totalorder %s33, 4
      %s43 = sphi 0, %s45
      %s46 = sphi 0, %s43
      %s47 = sphi 0, %s46
      %s63 = sphi 0, %s47
      %s69 = sphi 0, %s71
      %s72 = sphi 0, %s69
      %s73 = sphi 0, %s72
      %s89 = sphi 0, %s73
      %s93 = sphi 0, %s93
      %s95 = sphi 0, %s93
      %s96 = sphi 0, %s95
      %s110 = sphi 0, %s96
      %s114 = sphi 0, %s114
      %s116 = sphi 0, %s114
      %s117 = sphi 0, %s116
      %s131 = sphi 0, %s117
      %s135 = sphi 0, %s135
      %s137 = sphi 0, %s135
      %s138 = sphi 0, %s137
      %s152 = sphi 0, %s138
      %s156 = sphi 0, %s156
      %s158 = sphi 0, %s156
      %s159 = sphi 0, %s158
      %s173 = sphi 0, %s159
      %s177 = sphi 0, %s177
      %s179 = sphi 0, %s177
      %s180 = sphi 0, %s179
      %s194 = sphi 0, %s180
      %s198 = sphi 0, %s198
      %s200 = sphi 0, %s198
      %s201 = sphi 0, %s200
      %s215 = sphi 0, %s201
      %s219 = sphi 0, %s219
      %s221 = sphi 0, %s219
      %s222 = sphi 0, %s221
      %s236 = sphi 0, %s222
      %s240 = sphi 0, %s240
      %s242 = sphi 0, %s240
      %s243 = sphi 0, %s242
      %s257 = sphi 0, %s243
      %s261 = sphi 0, %s261
      %s263 = sphi 0, %s261
      %s264 = sphi 0, %s263
      %s278 = sphi 0, %s264
      %s282 = sphi 0, %s282
      %s284 = sphi 0, %s282
      %s285 = sphi 0, %s284
      %s299 = sphi 0, %s285
      %s303 = sphi 0, %s303
      %s305 = sphi 0, %s303
      %s306 = sphi 0, %s305
      %s320 = sphi 0, %s306
      %s324 = sphi 0, %s324
      %s326 = sphi 0, %s324
      %s327 = sphi 0, %s326
      %s341 = sphi 0, %s327
      %s345 = sphi 0, %s345
      %s347 = sphi 0, %s345
      %s348 = sphi 0, %s347
      %s362 = sphi 0, %s348
      %s366 = sphi 0, %s366
      %s368 = sphi 0, %s366
      %s369 = sphi 0, %s368
      %s383 = sphi 0, %s369
      %s387 = sphi 0, %s387
      %s389 = sphi 0, %s387
      %s390 = sphi 0, %s389
      %s404 = sphi 0, %s390
      %s410 = sphi 0, %s412
      %s413 = sphi 0, %s410
      %s414 = sphi 0, %s413
      %s430 = sphi 0, %s414
    $region4: #{tpu_custom_call.1} parent=1 // loop_header_branch
      %36 = sbr.rel (%p34) target = $region8
    $region5: #{tpu_custom_call.1} parent=1 // loop_body
      %s38 = ssub.s32 %s33, 1
      %s39 = ssub.s32 %s33, 2
      %s40 = sadd.s32 %s33, 1
      %s41 = ssub.s32 %s33, %s40
      %p42 = scmp.eq.s32.totalorder %s41, 0
      %s44 = sadd.s32 %s43, 1
      %s45 = scalar_select %p42, %s43, %s44
      %p48 = pneg %p42
      %p49 = scmp.eq.s32.totalorder %s33, 1
      %p50 = por %p48, %p49
      %p51 = scmp.ne.s32.totalorder %s43, %s46
      %p52 = scmp.eq.s32.totalorder %s33, 0
      %p53 = por %p51, %p52
      %p54 = scmp.ne.s32.totalorder %s43, %s46
      %p55 = scmp.eq.s32.totalorder %s38, 1
      %p56 = por %p54, %p55
      %p57 = scmp.ne.s32.totalorder %s46, %s47
      %p58 = scmp.eq.s32.totalorder %s38, 0
      %p59 = por %p57, %p58
      %p60 = scmp.ne.s32.totalorder %s46, %s47
      %p61 = scmp.eq.s32.totalorder %s39, 1
      %p62 = por %p60, %p61
      %p64 = scmp.ne.s32.totalorder %s47, %s63
      %p65 = scmp.eq.s32.totalorder %s39, 0
      %p66 = por %p64, %p65
      %s67 = ssub.s32 %s33, %s40
      %p68 = scmp.eq.s32.totalorder %s67, 0
      %s70 = sadd.s32 %s69, 1
      %s71 = scalar_select %p68, %s69, %s70
      %p74 = pneg %p68
      %p75 = scmp.eq.s32.totalorder %s33, 1
      %p76 = por %p74, %p75
      %p77 = scmp.ne.s32.totalorder %s69, %s72
      %p78 = scmp.eq.s32.totalorder %s33, 0
      %p79 = por %p77, %p78
      %p80 = scmp.ne.s32.totalorder %s69, %s72
      %p81 = scmp.eq.s32.totalorder %s38, 1
      %p82 = por %p80, %p81
      %p83 = scmp.ne.s32.totalorder %s72, %s73
      %p84 = scmp.eq.s32.totalorder %s38, 0
      %p85 = por %p83, %p84
      %p86 = scmp.ne.s32.totalorder %s72, %s73
      %p87 = scmp.eq.s32.totalorder %s39, 1
      %p88 = por %p86, %p87
      %p90 = scmp.ne.s32.totalorder %s73, %s89
      %p91 = scmp.eq.s32.totalorder %s39, 0
      %p92 = por %p90, %p91
      %s94 = sadd.s32 %s93, 1
      %p97 = scmp.eq.s32.totalorder %s33, 1
      %p98 = scmp.ne.s32.totalorder %s93, %s95
      %p99 = scmp.eq.s32.totalorder %s33, 0
      %p100 = por %p98, %p99
      %p101 = scmp.ne.s32.totalorder %s93, %s95
      %p102 = scmp.eq.s32.totalorder %s38, 1
      %p103 = por %p101, %p102
      %p104 = scmp.ne.s32.totalorder %s95, %s96
      %p105 = scmp.eq.s32.totalorder %s38, 0
      %p106 = por %p104, %p105
      %p107 = scmp.ne.s32.totalorder %s95, %s96
      %p108 = scmp.eq.s32.totalorder %s39, 1
      %p109 = por %p107, %p108
      %p111 = scmp.ne.s32.totalorder %s96, %s110
      %p112 = scmp.eq.s32.totalorder %s39, 0
      %p113 = por %p111, %p112
      %s115 = sadd.s32 %s114, 1
      %p118 = scmp.eq.s32.totalorder %s33, 1
      %p119 = scmp.ne.s32.totalorder %s114, %s116
      %p120 = scmp.eq.s32.totalorder %s33, 0
      %p121 = por %p119, %p120
      %p122 = scmp.ne.s32.totalorder %s114, %s116
      %p123 = scmp.eq.s32.totalorder %s38, 1
      %p124 = por %p122, %p123
      %p125 = scmp.ne.s32.totalorder %s116, %s117
      %p126 = scmp.eq.s32.totalorder %s38, 0
      %p127 = por %p125, %p126
      %p128 = scmp.ne.s32.totalorder %s116, %s117
      %p129 = scmp.eq.s32.totalorder %s39, 1
      %p130 = por %p128, %p129
      %p132 = scmp.ne.s32.totalorder %s117, %s131
      %p133 = scmp.eq.s32.totalorder %s39, 0
      %p134 = por %p132, %p133
      %s136 = sadd.s32 %s135, 1
      %p139 = scmp.eq.s32.totalorder %s33, 1
      %p140 = scmp.ne.s32.totalorder %s135, %s137
      %p141 = scmp.eq.s32.totalorder %s33, 0
      %p142 = por %p140, %p141
      %p143 = scmp.ne.s32.totalorder %s135, %s137
      %p144 = scmp.eq.s32.totalorder %s38, 1
      %p145 = por %p143, %p144
      %p146 = scmp.ne.s32.totalorder %s137, %s138
      %p147 = scmp.eq.s32.totalorder %s38, 0
      %p148 = por %p146, %p147
      %p149 = scmp.ne.s32.totalorder %s137, %s138
      %p150 = scmp.eq.s32.totalorder %s39, 1
      %p151 = por %p149, %p150
      %p153 = scmp.ne.s32.totalorder %s138, %s152
      %p154 = scmp.eq.s32.totalorder %s39, 0
      %p155 = por %p153, %p154
      %s157 = sadd.s32 %s156, 1
      %p160 = scmp.eq.s32.totalorder %s33, 1
      %p161 = scmp.ne.s32.totalorder %s156, %s158
      %p162 = scmp.eq.s32.totalorder %s33, 0
      %p163 = por %p161, %p162
      %p164 = scmp.ne.s32.totalorder %s156, %s158
      %p165 = scmp.eq.s32.totalorder %s38, 1
      %p166 = por %p164, %p165
      %p167 = scmp.ne.s32.totalorder %s158, %s159
      %p168 = scmp.eq.s32.totalorder %s38, 0
      %p169 = por %p167, %p168
      %p170 = scmp.ne.s32.totalorder %s158, %s159
      %p171 = scmp.eq.s32.totalorder %s39, 1
      %p172 = por %p170, %p171
      %p174 = scmp.ne.s32.totalorder %s159, %s173
      %p175 = scmp.eq.s32.totalorder %s39, 0
      %p176 = por %p174, %p175
      %s178 = sadd.s32 %s177, 1
      %p181 = scmp.eq.s32.totalorder %s33, 1
      %p182 = scmp.ne.s32.totalorder %s177, %s179
      %p183 = scmp.eq.s32.totalorder %s33, 0
      %p184 = por %p182, %p183
      %p185 = scmp.ne.s32.totalorder %s177, %s179
      %p186 = scmp.eq.s32.totalorder %s38, 1
      %p187 = por %p185, %p186
      %p188 = scmp.ne.s32.totalorder %s179, %s180
      %p189 = scmp.eq.s32.totalorder %s38, 0
      %p190 = por %p188, %p189
      %p191 = scmp.ne.s32.totalorder %s179, %s180
      %p192 = scmp.eq.s32.totalorder %s39, 1
      %p193 = por %p191, %p192
      %p195 = scmp.ne.s32.totalorder %s180, %s194
      %p196 = scmp.eq.s32.totalorder %s39, 0
      %p197 = por %p195, %p196
      %s199 = sadd.s32 %s198, 1
      %p202 = scmp.eq.s32.totalorder %s33, 1
      %p203 = scmp.ne.s32.totalorder %s198, %s200
      %p204 = scmp.eq.s32.totalorder %s33, 0
      %p205 = por %p203, %p204
      %p206 = scmp.ne.s32.totalorder %s198, %s200
      %p207 = scmp.eq.s32.totalorder %s38, 1
      %p208 = por %p206, %p207
      %p209 = scmp.ne.s32.totalorder %s200, %s201
      %p210 = scmp.eq.s32.totalorder %s38, 0
      %p211 = por %p209, %p210
      %p212 = scmp.ne.s32.totalorder %s200, %s201
      %p213 = scmp.eq.s32.totalorder %s39, 1
      %p214 = por %p212, %p213
      %p216 = scmp.ne.s32.totalorder %s201, %s215
      %p217 = scmp.eq.s32.totalorder %s39, 0
      %p218 = por %p216, %p217
      %s220 = sadd.s32 %s219, 1
      %p223 = scmp.eq.s32.totalorder %s33, 1
      %p224 = scmp.ne.s32.totalorder %s219, %s221
      %p225 = scmp.eq.s32.totalorder %s33, 0
      %p226 = por %p224, %p225
      %p227 = scmp.ne.s32.totalorder %s219, %s221
      %p228 = scmp.eq.s32.totalorder %s38, 1
      %p229 = por %p227, %p228
      %p230 = scmp.ne.s32.totalorder %s221, %s222
      %p231 = scmp.eq.s32.totalorder %s38, 0
      %p232 = por %p230, %p231
      %p233 = scmp.ne.s32.totalorder %s221, %s222
      %p234 = scmp.eq.s32.totalorder %s39, 1
      %p235 = por %p233, %p234
      %p237 = scmp.ne.s32.totalorder %s222, %s236
      %p238 = scmp.eq.s32.totalorder %s39, 0
      %p239 = por %p237, %p238
      %s241 = sadd.s32 %s240, 1
      %p244 = scmp.eq.s32.totalorder %s33, 1
      %p245 = scmp.ne.s32.totalorder %s240, %s242
      %p246 = scmp.eq.s32.totalorder %s33, 0
      %p247 = por %p245, %p246
      %p248 = scmp.ne.s32.totalorder %s240, %s242
      %p249 = scmp.eq.s32.totalorder %s38, 1
      %p250 = por %p248, %p249
      %p251 = scmp.ne.s32.totalorder %s242, %s243
      %p252 = scmp.eq.s32.totalorder %s38, 0
      %p253 = por %p251, %p252
      %p254 = scmp.ne.s32.totalorder %s242, %s243
      %p255 = scmp.eq.s32.totalorder %s39, 1
      %p256 = por %p254, %p255
      %p258 = scmp.ne.s32.totalorder %s243, %s257
      %p259 = scmp.eq.s32.totalorder %s39, 0
      %p260 = por %p258, %p259
      %s262 = sadd.s32 %s261, 1
      %p265 = scmp.eq.s32.totalorder %s33, 1
      %p266 = scmp.ne.s32.totalorder %s261, %s263
      %p267 = scmp.eq.s32.totalorder %s33, 0
      %p268 = por %p266, %p267
      %p269 = scmp.ne.s32.totalorder %s261, %s263
      %p270 = scmp.eq.s32.totalorder %s38, 1
      %p271 = por %p269, %p270
      %p272 = scmp.ne.s32.totalorder %s263, %s264
      %p273 = scmp.eq.s32.totalorder %s38, 0
      %p274 = por %p272, %p273
      %p275 = scmp.ne.s32.totalorder %s263, %s264
      %p276 = scmp.eq.s32.totalorder %s39, 1
      %p277 = por %p275, %p276
      %p279 = scmp.ne.s32.totalorder %s264, %s278
      %p280 = scmp.eq.s32.totalorder %s39, 0
      %p281 = por %p279, %p280
      %s283 = sadd.s32 %s282, 1
      %p286 = scmp.eq.s32.totalorder %s33, 1
      %p287 = scmp.ne.s32.totalorder %s282, %s284
      %p288 = scmp.eq.s32.totalorder %s33, 0
      %p289 = por %p287, %p288
      %p290 = scmp.ne.s32.totalorder %s282, %s284
      %p291 = scmp.eq.s32.totalorder %s38, 1
      %p292 = por %p290, %p291
      %p293 = scmp.ne.s32.totalorder %s284, %s285
      %p294 = scmp.eq.s32.totalorder %s38, 0
      %p295 = por %p293, %p294
      %p296 = scmp.ne.s32.totalorder %s284, %s285
      %p297 = scmp.eq.s32.totalorder %s39, 1
      %p298 = por %p296, %p297
      %p300 = scmp.ne.s32.totalorder %s285, %s299
      %p301 = scmp.eq.s32.totalorder %s39, 0
      %p302 = por %p300, %p301
      %s304 = sadd.s32 %s303, 1
      %p307 = scmp.eq.s32.totalorder %s33, 1
      %p308 = scmp.ne.s32.totalorder %s303, %s305
      %p309 = scmp.eq.s32.totalorder %s33, 0
      %p310 = por %p308, %p309
      %p311 = scmp.ne.s32.totalorder %s303, %s305
      %p312 = scmp.eq.s32.totalorder %s38, 1
      %p313 = por %p311, %p312
      %p314 = scmp.ne.s32.totalorder %s305, %s306
      %p315 = scmp.eq.s32.totalorder %s38, 0
      %p316 = por %p314, %p315
      %p317 = scmp.ne.s32.totalorder %s305, %s306
      %p318 = scmp.eq.s32.totalorder %s39, 1
      %p319 = por %p317, %p318
      %p321 = scmp.ne.s32.totalorder %s306, %s320
      %p322 = scmp.eq.s32.totalorder %s39, 0
      %p323 = por %p321, %p322
      %s325 = sadd.s32 %s324, 1
      %p328 = scmp.eq.s32.totalorder %s33, 1
      %p329 = scmp.ne.s32.totalorder %s324, %s326
      %p330 = scmp.eq.s32.totalorder %s33, 0
      %p331 = por %p329, %p330
      %p332 = scmp.ne.s32.totalorder %s324, %s326
      %p333 = scmp.eq.s32.totalorder %s38, 1
      %p334 = por %p332, %p333
      %p335 = scmp.ne.s32.totalorder %s326, %s327
      %p336 = scmp.eq.s32.totalorder %s38, 0
      %p337 = por %p335, %p336
      %p338 = scmp.ne.s32.totalorder %s326, %s327
      %p339 = scmp.eq.s32.totalorder %s39, 1
      %p340 = por %p338, %p339
      %p342 = scmp.ne.s32.totalorder %s327, %s341
      %p343 = scmp.eq.s32.totalorder %s39, 0
      %p344 = por %p342, %p343
      %s346 = sadd.s32 %s345, 1
      %p349 = scmp.eq.s32.totalorder %s33, 1
      %p350 = scmp.ne.s32.totalorder %s345, %s347
      %p351 = scmp.eq.s32.totalorder %s33, 0
      %p352 = por %p350, %p351
      %p353 = scmp.ne.s32.totalorder %s345, %s347
      %p354 = scmp.eq.s32.totalorder %s38, 1
      %p355 = por %p353, %p354
      %p356 = scmp.ne.s32.totalorder %s347, %s348
      %p357 = scmp.eq.s32.totalorder %s38, 0
      %p358 = por %p356, %p357
      %p359 = scmp.ne.s32.totalorder %s347, %s348
      %p360 = scmp.eq.s32.totalorder %s39, 1
      %p361 = por %p359, %p360
      %p363 = scmp.ne.s32.totalorder %s348, %s362
      %p364 = scmp.eq.s32.totalorder %s39, 0
      %p365 = por %p363, %p364
      %s367 = sadd.s32 %s366, 1
      %p370 = scmp.eq.s32.totalorder %s33, 1
      %p371 = scmp.ne.s32.totalorder %s366, %s368
      %p372 = scmp.eq.s32.totalorder %s33, 0
      %p373 = por %p371, %p372
      %p374 = scmp.ne.s32.totalorder %s366, %s368
      %p375 = scmp.eq.s32.totalorder %s38, 1
      %p376 = por %p374, %p375
      %p377 = scmp.ne.s32.totalorder %s368, %s369
      %p378 = scmp.eq.s32.totalorder %s38, 0
      %p379 = por %p377, %p378
      %p380 = scmp.ne.s32.totalorder %s368, %s369
      %p381 = scmp.eq.s32.totalorder %s39, 1
      %p382 = por %p380, %p381
      %p384 = scmp.ne.s32.totalorder %s369, %s383
      %p385 = scmp.eq.s32.totalorder %s39, 0
      %p386 = por %p384, %p385
      %s388 = sadd.s32 %s387, 1
      %p391 = scmp.eq.s32.totalorder %s33, 1
      %p392 = scmp.ne.s32.totalorder %s387, %s389
      %p393 = scmp.eq.s32.totalorder %s33, 0
      %p394 = por %p392, %p393
      %p395 = scmp.ne.s32.totalorder %s387, %s389
      %p396 = scmp.eq.s32.totalorder %s38, 1
      %p397 = por %p395, %p396
      %p398 = scmp.ne.s32.totalorder %s389, %s390
      %p399 = scmp.eq.s32.totalorder %s38, 0
      %p400 = por %p398, %p399
      %p401 = scmp.ne.s32.totalorder %s389, %s390
      %p402 = scmp.eq.s32.totalorder %s39, 1
      %p403 = por %p401, %p402
      %p405 = scmp.ne.s32.totalorder %s390, %s404
      %p406 = scmp.eq.s32.totalorder %s39, 0
      %p407 = por %p405, %p406
      %s408 = ssub.s32 %s33, %s40
      %p409 = scmp.eq.s32.totalorder %s408, 0
      %s411 = sadd.s32 %s410, 1
      %s412 = scalar_select %p409, %s410, %s411
      %p415 = pneg %p409
      %p416 = scmp.eq.s32.totalorder %s33, 1
      %p417 = por %p415, %p416
      %p418 = scmp.ne.s32.totalorder %s410, %s413
      %p419 = scmp.eq.s32.totalorder %s33, 0
      %p420 = por %p418, %p419
      %p421 = scmp.ne.s32.totalorder %s410, %s413
      %p422 = scmp.eq.s32.totalorder %s38, 1
      %p423 = por %p421, %p422
      %p424 = scmp.ne.s32.totalorder %s413, %s414
      %p425 = scmp.eq.s32.totalorder %s38, 0
      %p426 = por %p424, %p425
      %p427 = scmp.ne.s32.totalorder %s413, %s414
      %p428 = scmp.eq.s32.totalorder %s39, 1
      %p429 = por %p427, %p428
      %p431 = scmp.ne.s32.totalorder %s414, %s430
      %p432 = scmp.eq.s32.totalorder %s39, 0
      %p433 = por %p431, %p432
      %p434 = scmp.le.s32.totalorder 1, %s33
      %p435 = scmp.lt.s32.totalorder %s33, 3
      %p436 = pnand %p434, %p435
      %p437 = pneg %p436
      // Predicated region
      $region9: #{tpu_custom_call.1} parent=5 // pred_check
        _
      $region10: #{tpu_custom_call.1} parent=5 // pred_check_branch
        %439 = sbr.rel (%p436) target = $region12
      $region11: #{tpu_custom_call.1} parent=5 // pred_region
        %s440 = ssub.s32 %s33, 1
        // Predicated region
        $region13: #{tpu_custom_call.1} parent=11 // pred_check
          %p441 = pneg %p106
        $region14: #{tpu_custom_call.1} parent=11 // pred_check_branch
          %443 = sbr.rel (%p441) target = $region16
        $region15: #{tpu_custom_call.1} parent=11 // pred_region
          _
        $region16: #{tpu_custom_call.1} parent=11 // pred_fallthru
          _
        // Predicated region
        $region17: #{tpu_custom_call.1} parent=11 // pred_check
          %p444 = pneg %p127
        $region18: #{tpu_custom_call.1} parent=11 // pred_check_branch
          %446 = sbr.rel (%p444) target = $region20
        $region19: #{tpu_custom_call.1} parent=11 // pred_region
          _
        $region20: #{tpu_custom_call.1} parent=11 // pred_fallthru
          _
        // Predicated region
        $region21: #{tpu_custom_call.1} parent=11 // pred_check
          %p447 = pneg %p148
        $region22: #{tpu_custom_call.1} parent=11 // pred_check_branch
          %449 = sbr.rel (%p447) target = $region24
        $region23: #{tpu_custom_call.1} parent=11 // pred_region
          _
        $region24: #{tpu_custom_call.1} parent=11 // pred_fallthru
          _
        // Predicated region
        $region25: #{tpu_custom_call.1} parent=11 // pred_check
          %p450 = pneg %p169
        $region26: #{tpu_custom_call.1} parent=11 // pred_check_branch
          %452 = sbr.rel (%p450) target = $region28
        $region27: #{tpu_custom_call.1} parent=11 // pred_region
          _
        $region28: #{tpu_custom_call.1} parent=11 // pred_fallthru
          _
        // Predicated region
        $region29: #{tpu_custom_call.1} parent=11 // pred_check
          %p453 = pneg %p190
        $region30: #{tpu_custom_call.1} parent=11 // pred_check_branch
          %455 = sbr.rel (%p453) target = $region32
        $region31: #{tpu_custom_call.1} parent=11 // pred_region
          _
        $region32: #{tpu_custom_call.1} parent=11 // pred_fallthru
          _
        // Predicated region
        $region33: #{tpu_custom_call.1} parent=11 // pred_check
          %p456 = pneg %p211
        $region34: #{tpu_custom_call.1} parent=11 // pred_check_branch
          %458 = sbr.rel (%p456) target = $region36
        $region35: #{tpu_custom_call.1} parent=11 // pred_region
          %460 = vsyncadd [#allocation8], 0
          %s461 = sshll.u32 %s7, 4
          %s462 = int_to_ptr.hbm [resolvable:$true] %s461
          %s463 = sshll.u32 [#allocation7], 4
          %s464 = int_to_ptr.vmem [resolvable:$true] %s463
          %469 = dma.hbm_to_vmem [thread:$0]  %s462, 2048, %s464, [#allocation8], 128, 128, 8
        $region36: #{tpu_custom_call.1} parent=11 // pred_fallthru
          _
        // Predicated region
        $region37: #{tpu_custom_call.1} parent=11 // pred_check
          %p470 = pneg %p232
        $region38: #{tpu_custom_call.1} parent=11 // pred_check_branch
          %472 = sbr.rel (%p470) target = $region40
        $region39: #{tpu_custom_call.1} parent=11 // pred_region
          _
        $region40: #{tpu_custom_call.1} parent=11 // pred_fallthru
          _
        // Predicated region
        $region41: #{tpu_custom_call.1} parent=11 // pred_check
          %p473 = pneg %p253
        $region42: #{tpu_custom_call.1} parent=11 // pred_check_branch
          %475 = sbr.rel (%p473) target = $region44
        $region43: #{tpu_custom_call.1} parent=11 // pred_region
          _
        $region44: #{tpu_custom_call.1} parent=11 // pred_fallthru
          _
        // Predicated region
        $region45: #{tpu_custom_call.1} parent=11 // pred_check
          %p476 = pneg %p274
        $region46: #{tpu_custom_call.1} parent=11 // pred_check_branch
          %478 = sbr.rel (%p476) target = $region48
        $region47: #{tpu_custom_call.1} parent=11 // pred_region
          _
        $region48: #{tpu_custom_call.1} parent=11 // pred_fallthru
          _
        // Predicated region
        $region49: #{tpu_custom_call.1} parent=11 // pred_check
          %p479 = pneg %p295
        $region50: #{tpu_custom_call.1} parent=11 // pred_check_branch
          %481 = sbr.rel (%p479) target = $region52
        $region51: #{tpu_custom_call.1} parent=11 // pred_region
          %483 = vsyncadd [#allocation8], 0
          %s484 = sshll.u32 %s11, 4
          %s485 = int_to_ptr.hbm [resolvable:$true] %s484
          %s486 = sshll.u32 [#allocation9], 4
          %s487 = int_to_ptr.vmem [resolvable:$true] %s486
          %492 = dma.hbm_to_vmem [thread:$0]  %s485, 9216, %s487, [#allocation8], 64, 64, 4
        $region52: #{tpu_custom_call.1} parent=11 // pred_fallthru
          _
        // Predicated region
        $region53: #{tpu_custom_call.1} parent=11 // pred_check
          %p493 = pneg %p316
        $region54: #{tpu_custom_call.1} parent=11 // pred_check_branch
          %495 = sbr.rel (%p493) target = $region56
        $region55: #{tpu_custom_call.1} parent=11 // pred_region
          _
        $region56: #{tpu_custom_call.1} parent=11 // pred_fallthru
          _
        // Predicated region
        $region57: #{tpu_custom_call.1} parent=11 // pred_check
          %p496 = pneg %p337
        $region58: #{tpu_custom_call.1} parent=11 // pred_check_branch
          %498 = sbr.rel (%p496) target = $region60
        $region59: #{tpu_custom_call.1} parent=11 // pred_region
          _
        $region60: #{tpu_custom_call.1} parent=11 // pred_fallthru
          _
        // Predicated region
        $region61: #{tpu_custom_call.1} parent=11 // pred_check
          %p499 = pneg %p358
        $region62: #{tpu_custom_call.1} parent=11 // pred_check_branch
          %501 = sbr.rel (%p499) target = $region64
        $region63: #{tpu_custom_call.1} parent=11 // pred_region
          _
        $region64: #{tpu_custom_call.1} parent=11 // pred_fallthru
          _
        // Predicated region
        $region65: #{tpu_custom_call.1} parent=11 // pred_check
          %p502 = pneg %p379
        $region66: #{tpu_custom_call.1} parent=11 // pred_check_branch
          %504 = sbr.rel (%p502) target = $region68
        $region67: #{tpu_custom_call.1} parent=11 // pred_region
          _
        $region68: #{tpu_custom_call.1} parent=11 // pred_fallthru
          _
        // Predicated region
        $region69: #{tpu_custom_call.1} parent=11 // pred_check
          %p505 = pneg %p400
        $region70: #{tpu_custom_call.1} parent=11 // pred_check_branch
          %507 = sbr.rel (%p505) target = $region72
        $region71: #{tpu_custom_call.1} parent=11 // pred_region
          %509 = vsyncadd [#allocation11], 0
          %s510 = sshll.u32 %s16, 4
          %s511 = int_to_ptr.hbm [resolvable:$true] %s510
          %s512 = sshll.u32 [#allocation10], 4
          %s513 = int_to_ptr.vmem [resolvable:$true] %s512
          %518 = dma.hbm_to_vmem [thread:$0]  %s511, 2048, %s513, [#allocation11], 128, 128, 8
        $region72: #{tpu_custom_call.1} parent=11 // pred_fallthru
          _
      $region12: #{tpu_custom_call.1} parent=5 // pred_fallthru
        _
      %p519 = scmp.lt.s32.totalorder %s33, 2
      // Predicated region
      $region73: #{tpu_custom_call.1} parent=5 // pred_check
        %p520 = pneg %p519
      $region74: #{tpu_custom_call.1} parent=5 // pred_check_branch
        %522 = sbr.rel (%p520) target = $region76
      $region75: #{tpu_custom_call.1} parent=5 // pred_region
        // Predicated region
        $region77: #{tpu_custom_call.1} parent=75 // pred_check
          %p523 = pneg %p53
        $region78: #{tpu_custom_call.1} parent=75 // pred_check_branch
          %525 = sbr.rel (%p523) target = $region80
        $region79: #{tpu_custom_call.1} parent=75 // pred_region
          %s526 = sand.u32 %s43, 1
          %s527 = scalar_lea.sflag [#allocation5], %s526
          %s528 = sand.u32 %s43, 1
          %s529 = smul.addr %s528, 128
          %s530 = scalar_lea.vmem [#allocation4], %s529
          %532 = vsyncadd %s527, 0
          %s533 = smul.addr %s33, 32
          %s534 = smul.addr %s533, 4
          %s535 = scalar_lea.hbm %s0, %s534
          %s536 = sshll.u32 %s535, 4
          %s537 = int_to_ptr.hbm [resolvable:$true] %s536
          %s538 = sshll.u32 %s530, 4
          %s539 = int_to_ptr.vmem [resolvable:$true] %s538
          %544 = dma.hbm_to_vmem [thread:$0]  %s537, 2048, %s539, %s527, 64, 64, 4
        $region80: #{tpu_custom_call.1} parent=75 // pred_fallthru
          _
        // Predicated region
        $region81: #{tpu_custom_call.1} parent=75 // pred_check
          %p545 = pneg %p79
        $region82: #{tpu_custom_call.1} parent=75 // pred_check_branch
          %547 = sbr.rel (%p545) target = $region84
        $region83: #{tpu_custom_call.1} parent=75 // pred_region
          %p548 = scmp.lt.s32.totalorder %s33, 1
          %s549 = scalar_select %p548, %s33, 1
          %s550 = smul.addr %s549, 32
          %s551 = smul.addr %s550, 8
          %s552 = scalar_lea.vmem %s1, %s551
        $region84: #{tpu_custom_call.1} parent=75 // pred_fallthru
          _
      $region76: #{tpu_custom_call.1} parent=5 // pred_fallthru
        _
      %p553 = scmp.le.s32.totalorder 1, %s33
      %p554 = scmp.lt.s32.totalorder %s33, 3
      %p555 = pnand %p553, %p554
      %p556 = pneg %p555
      // Predicated region
      $region85: #{tpu_custom_call.1} parent=5 // pred_check
        _
      $region86: #{tpu_custom_call.1} parent=5 // pred_check_branch
        %558 = sbr.rel (%p555) target = $region88
      $region87: #{tpu_custom_call.1} parent=5 // pred_region
        %s559 = ssub.s32 %s33, 1
        %s560 = sand.u32 %s46, 1
        %s561 = scalar_lea.sflag [#allocation5], %s560
        %s562 = sand.u32 %s46, 1
        %s563 = smul.addr %s562, 128
        %s564 = scalar_lea.vmem [#allocation4], %s563
        // Predicated region
        $region89: #{tpu_custom_call.1} parent=87 // pred_check
          %p565 = pneg %p59
        $region90: #{tpu_custom_call.1} parent=87 // pred_check_branch
          %567 = sbr.rel (%p565) target = $region92
        $region91: #{tpu_custom_call.1} parent=87 // pred_region
          %569 = dma.done %s561, 2048
        $region92: #{tpu_custom_call.1} parent=87 // pred_fallthru
          _
        // Predicated region
        $region93: #{tpu_custom_call.1} parent=87 // pred_check
          %p570 = pneg %p211
        $region94: #{tpu_custom_call.1} parent=87 // pred_check_branch
          %572 = sbr.rel (%p570) target = $region96
        $region95: #{tpu_custom_call.1} parent=87 // pred_region
          %574 = dma.done [#allocation8], 2048
        $region96: #{tpu_custom_call.1} parent=87 // pred_fallthru
          _
        // Predicated region
        $region97: #{tpu_custom_call.1} parent=87 // pred_check
          %p575 = pneg %p295
        $region98: #{tpu_custom_call.1} parent=87 // pred_check_branch
          %577 = sbr.rel (%p575) target = $region100
        $region99: #{tpu_custom_call.1} parent=87 // pred_region
          %579 = dma.done [#allocation8], 9216
        $region100: #{tpu_custom_call.1} parent=87 // pred_fallthru
          _
        // Predicated region
        $region101: #{tpu_custom_call.1} parent=87 // pred_check
          %p580 = pneg %p400
        $region102: #{tpu_custom_call.1} parent=87 // pred_check_branch
          %582 = sbr.rel (%p580) target = $region104
        $region103: #{tpu_custom_call.1} parent=87 // pred_region
          %584 = dma.done [#allocation11], 2048
        $region104: #{tpu_custom_call.1} parent=87 // pred_fallthru
          _
        %s585 = sand.u32 %s46, 1
        %s586 = scalar_lea.sflag [#allocation5], %s585
        %s587 = sand.u32 %s46, 1
        %s588 = smul.addr %s587, 128
        %s589 = scalar_lea.vmem [#allocation4], %s588
        %p590 = pneg %p59
        %p591 = pneg %p56
        %p592 = scmp.lt.s32.totalorder %s38, 1
        %s593 = scalar_select %p592, %s38, 1
        %s594 = smul.addr %s593, 32
        %s595 = smul.addr %s594, 8
        %s596 = scalar_lea.vmem %s1, %s595
        %p597 = pneg %p85
        %p598 = pneg %p82
        %p599 = pneg %p106
        %p600 = pneg %p103
        %p601 = pneg %p127
        %p602 = pneg %p124
        %p603 = pneg %p148
        %p604 = pneg %p145
        %p605 = pneg %p169
        %p606 = pneg %p166
        %p607 = pneg %p190
        %p608 = pneg %p187
        %p609 = pneg %p211
        %p610 = pneg %p208
        %p611 = pneg %p232
        %p612 = pneg %p229
        %p613 = pneg %p253
        %p614 = pneg %p250
        %p615 = pneg %p274
        %p616 = pneg %p271
        %p617 = pneg %p295
        %p618 = pneg %p292
        %p619 = pneg %p316
        %p620 = pneg %p313
        %p621 = pneg %p337
        %p622 = pneg %p334
        %p623 = pneg %p358
        %p624 = pneg %p355
        %p625 = pneg %p379
        %p626 = pneg %p376
        %p627 = pneg %p400
        %p628 = pneg %p397
        %p629 = pneg %p426
        %p630 = pneg %p423
        %s631 = sand.u32 %s413, 1
        %s632 = scalar_lea.sflag [#allocation6], %s631
        %s633 = sand.u32 %s413, 1
        %s634 = smul.addr %s633, 256
        %s635 = scalar_lea.vmem [#allocation12], %s634
        %p636 = scmp.lt.s32.totalorder %s38, 1
        %s637 = scalar_select %p636, %s38, 1
        %s638 = smul.addr %s637, 32
        %s639 = smul.addr %s638, 8
        %s640 = scalar_lea.vmem %s1, %s639
        %v641 = vld [vmem:[%s564] sm:$0xf]
        %v642 = vld [vmem:[%s564 + $0x4] sm:$0xf]
        %v643 = vld [vmem:[%s564 + $0x8] sm:$0xf]
        %v644 = vld [vmem:[%s564 + $0xc] sm:$0xf]
        %v645 = vld [vmem:[%s564 + $0x10] sm:$0xf]
        %v646 = vld [vmem:[%s564 + $0x14] sm:$0xf]
        %v647 = vld [vmem:[%s564 + $0x18] sm:$0xf]
        %v648 = vld [vmem:[%s564 + $0x1c] sm:$0xf]
        %v649 = vld [vmem:[%s564 + $0x20] sm:$0xf]
        %v650 = vld [vmem:[%s564 + $0x24] sm:$0xf]
        %v651 = vld [vmem:[%s564 + $0x28] sm:$0xf]
        %v652 = vld [vmem:[%s564 + $0x2c] sm:$0xf]
        %v653 = vld [vmem:[%s564 + $0x30] sm:$0xf]
        %v654 = vld [vmem:[%s564 + $0x34] sm:$0xf]
        %v655 = vld [vmem:[%s564 + $0x38] sm:$0xf]
        %v656 = vld [vmem:[%s564 + $0x3c] sm:$0xf]
        %v657 = vld [vmem:[%s564 + $0x40] sm:$0xf]
        %v658 = vld [vmem:[%s564 + $0x44] sm:$0xf]
        %v659 = vld [vmem:[%s564 + $0x48] sm:$0xf]
        %v660 = vld [vmem:[%s564 + $0x4c] sm:$0xf]
        %v661 = vld [vmem:[%s564 + $0x50] sm:$0xf]
        %v662 = vld [vmem:[%s564 + $0x54] sm:$0xf]
        %v663 = vld [vmem:[%s564 + $0x58] sm:$0xf]
        %v664 = vld [vmem:[%s564 + $0x5c] sm:$0xf]
        %v665 = vld [vmem:[%s564 + $0x60] sm:$0xf]
        %v666 = vld [vmem:[%s564 + $0x64] sm:$0xf]
        %v667 = vld [vmem:[%s564 + $0x68] sm:$0xf]
        %v668 = vld [vmem:[%s564 + $0x6c] sm:$0xf]
        %v669 = vld [vmem:[%s564 + $0x70] sm:$0xf]
        %v670 = vld [vmem:[%s564 + $0x74] sm:$0xf]
        %v671 = vld [vmem:[%s564 + $0x78] sm:$0xf]
        %v672 = vld [vmem:[%s564 + $0x7c] sm:$0xf]
        %v673 = vunpack.c.l.bf16 %v641
        %v674 = vunpack.c.l.bf16 %v642
        %v675 = vunpack.c.l.bf16 %v643
        %v676 = vunpack.c.l.bf16 %v644
        %v677 = vunpack.c.l.bf16 %v645
        %v678 = vunpack.c.l.bf16 %v646
        %v679 = vunpack.c.l.bf16 %v647
        %v680 = vunpack.c.l.bf16 %v648
        %v681 = vunpack.c.l.bf16 %v649
        %v682 = vunpack.c.l.bf16 %v650
        %v683 = vunpack.c.l.bf16 %v651
        %v684 = vunpack.c.l.bf16 %v652
        %v685 = vunpack.c.l.bf16 %v653
        %v686 = vunpack.c.l.bf16 %v654
        %v687 = vunpack.c.l.bf16 %v655
        %v688 = vunpack.c.l.bf16 %v656
        %v689 = vunpack.c.l.bf16 %v657
        %v690 = vunpack.c.l.bf16 %v658
        %v691 = vunpack.c.l.bf16 %v659
        %v692 = vunpack.c.l.bf16 %v660
        %v693 = vunpack.c.l.bf16 %v661
        %v694 = vunpack.c.l.bf16 %v662
        %v695 = vunpack.c.l.bf16 %v663
        %v696 = vunpack.c.l.bf16 %v664
        %v697 = vunpack.c.l.bf16 %v665
        %v698 = vunpack.c.l.bf16 %v666
        %v699 = vunpack.c.l.bf16 %v667
        %v700 = vunpack.c.l.bf16 %v668
        %v701 = vunpack.c.l.bf16 %v669
        %v702 = vunpack.c.l.bf16 %v670
        %v703 = vunpack.c.l.bf16 %v671
        %v704 = vunpack.c.l.bf16 %v672
        %v705 = vlaneseq
        %v706 = vshrl.u32 %v705, 7
        %v707 = vadd.s32 %v706, 8
        %v708 = vadd.s32 %v706, 16
        %v709 = vadd.s32 %v706, 24
        %v710 = vadd.s32 %v706, 32
        %v711 = vadd.s32 %v706, 40
        %v712 = vadd.s32 %v706, 48
        %v713 = vadd.s32 %v706, 56
        %v714 = vadd.s32 %v706, 64
        %v715 = vadd.s32 %v706, 72
        %v716 = vadd.s32 %v706, 80
        %v717 = vadd.s32 %v706, 88
        %v718 = vadd.s32 %v706, 96
        %v719 = vadd.s32 %v706, 104
        %v720 = vadd.s32 %v706, 112
        %v721 = vadd.s32 %v706, 120
        %v722 = vadd.s32 %v706, 128
        %v723 = vadd.s32 %v706, 136
        %v724 = vadd.s32 %v706, 144
        %v725 = vadd.s32 %v706, 152
        %v726 = vadd.s32 %v706, 160
        %v727 = vadd.s32 %v706, 168
        %v728 = vadd.s32 %v706, 176
        %v729 = vadd.s32 %v706, 184
        %v730 = vadd.s32 %v706, 192
        %v731 = vadd.s32 %v706, 200
        %v732 = vadd.s32 %v706, 208
        %v733 = vadd.s32 %v706, 216
        %v734 = vadd.s32 %v706, 224
        %v735 = vadd.s32 %v706, 232
        %v736 = vadd.s32 %v706, 240
        %v737 = vadd.s32 %v706, 248
        %vm738 = vcmp.lt.s32.totalorder %v706, 0
        %v739 = vsub.s32 0, %v706
        %v740 = vsel %vm738, %v739, %v706
        %v741 = vshrl.u32 %v740, 4
        %v742 = vand.u32 %v740, 15
        %v743 = vsub.s32 0, %v742
        %v744 = vsel %vm738, %v743, %v742
        %vm745 = vcmp.lt.s32.totalorder %v707, 0
        %v746 = vsub.s32 0, %v707
        %v747 = vsel %vm745, %v746, %v707
        %v748 = vshrl.u32 %v747, 4
        %v749 = vand.u32 %v747, 15
        %v750 = vsub.s32 0, %v749
        %v751 = vsel %vm745, %v750, %v749
        %vm752 = vcmp.lt.s32.totalorder %v708, 0
        %v753 = vsub.s32 0, %v708
        %v754 = vsel %vm752, %v753, %v708
        %v755 = vshrl.u32 %v754, 4
        %v756 = vand.u32 %v754, 15
        %v757 = vsub.s32 0, %v756
        %v758 = vsel %vm752, %v757, %v756
        %vm759 = vcmp.lt.s32.totalorder %v709, 0
        %v760 = vsub.s32 0, %v709
        %v761 = vsel %vm759, %v760, %v709
        %v762 = vshrl.u32 %v761, 4
        %v763 = vand.u32 %v761, 15
        %v764 = vsub.s32 0, %v763
        %v765 = vsel %vm759, %v764, %v763
        %vm766 = vcmp.lt.s32.totalorder %v710, 0
        %v767 = vsub.s32 0, %v710
        %v768 = vsel %vm766, %v767, %v710
        %v769 = vshrl.u32 %v768, 4
        %v770 = vand.u32 %v768, 15
        %v771 = vsub.s32 0, %v770
        %v772 = vsel %vm766, %v771, %v770
        %vm773 = vcmp.lt.s32.totalorder %v711, 0
        %v774 = vsub.s32 0, %v711
        %v775 = vsel %vm773, %v774, %v711
        %v776 = vshrl.u32 %v775, 4
        %v777 = vand.u32 %v775, 15
        %v778 = vsub.s32 0, %v777
        %v779 = vsel %vm773, %v778, %v777
        %vm780 = vcmp.lt.s32.totalorder %v712, 0
        %v781 = vsub.s32 0, %v712
        %v782 = vsel %vm780, %v781, %v712
        %v783 = vshrl.u32 %v782, 4
        %v784 = vand.u32 %v782, 15
        %v785 = vsub.s32 0, %v784
        %v786 = vsel %vm780, %v785, %v784
        %vm787 = vcmp.lt.s32.totalorder %v713, 0
        %v788 = vsub.s32 0, %v713
        %v789 = vsel %vm787, %v788, %v713
        %v790 = vshrl.u32 %v789, 4
        %v791 = vand.u32 %v789, 15
        %v792 = vsub.s32 0, %v791
        %v793 = vsel %vm787, %v792, %v791
        %vm794 = vcmp.lt.s32.totalorder %v714, 0
        %v795 = vsub.s32 0, %v714
        %v796 = vsel %vm794, %v795, %v714
        %v797 = vshrl.u32 %v796, 4
        %v798 = vand.u32 %v796, 15
        %v799 = vsub.s32 0, %v798
        %v800 = vsel %vm794, %v799, %v798
        %vm801 = vcmp.lt.s32.totalorder %v715, 0
        %v802 = vsub.s32 0, %v715
        %v803 = vsel %vm801, %v802, %v715
        %v804 = vshrl.u32 %v803, 4
        %v805 = vand.u32 %v803, 15
        %v806 = vsub.s32 0, %v805
        %v807 = vsel %vm801, %v806, %v805
        %vm808 = vcmp.lt.s32.totalorder %v716, 0
        %v809 = vsub.s32 0, %v716
        %v810 = vsel %vm808, %v809, %v716
        %v811 = vshrl.u32 %v810, 4
        %v812 = vand.u32 %v810, 15
        %v813 = vsub.s32 0, %v812
        %v814 = vsel %vm808, %v813, %v812
        %vm815 = vcmp.lt.s32.totalorder %v717, 0
        %v816 = vsub.s32 0, %v717
        %v817 = vsel %vm815, %v816, %v717
        %v818 = vshrl.u32 %v817, 4
        %v819 = vand.u32 %v817, 15
        %v820 = vsub.s32 0, %v819
        %v821 = vsel %vm815, %v820, %v819
        %vm822 = vcmp.lt.s32.totalorder %v718, 0
        %v823 = vsub.s32 0, %v718
        %v824 = vsel %vm822, %v823, %v718
        %v825 = vshrl.u32 %v824, 4
        %v826 = vand.u32 %v824, 15
        %v827 = vsub.s32 0, %v826
        %v828 = vsel %vm822, %v827, %v826
        %vm829 = vcmp.lt.s32.totalorder %v719, 0
        %v830 = vsub.s32 0, %v719
        %v831 = vsel %vm829, %v830, %v719
        %v832 = vshrl.u32 %v831, 4
        %v833 = vand.u32 %v831, 15
        %v834 = vsub.s32 0, %v833
        %v835 = vsel %vm829, %v834, %v833
        %vm836 = vcmp.lt.s32.totalorder %v720, 0
        %v837 = vsub.s32 0, %v720
        %v838 = vsel %vm836, %v837, %v720
        %v839 = vshrl.u32 %v838, 4
        %v840 = vand.u32 %v838, 15
        %v841 = vsub.s32 0, %v840
        %v842 = vsel %vm836, %v841, %v840
        %vm843 = vcmp.lt.s32.totalorder %v721, 0
        %v844 = vsub.s32 0, %v721
        %v845 = vsel %vm843, %v844, %v721
        %v846 = vshrl.u32 %v845, 4
        %v847 = vand.u32 %v845, 15
        %v848 = vsub.s32 0, %v847
        %v849 = vsel %vm843, %v848, %v847
        %vm850 = vcmp.lt.s32.totalorder %v722, 0
        %v851 = vsub.s32 0, %v722
        %v852 = vsel %vm850, %v851, %v722
        %v853 = vshrl.u32 %v852, 4
        %v854 = vand.u32 %v852, 15
        %v855 = vsub.s32 0, %v854
        %v856 = vsel %vm850, %v855, %v854
        %vm857 = vcmp.lt.s32.totalorder %v723, 0
        %v858 = vsub.s32 0, %v723
        %v859 = vsel %vm857, %v858, %v723
        %v860 = vshrl.u32 %v859, 4
        %v861 = vand.u32 %v859, 15
        %v862 = vsub.s32 0, %v861
        %v863 = vsel %vm857, %v862, %v861
        %vm864 = vcmp.lt.s32.totalorder %v724, 0
        %v865 = vsub.s32 0, %v724
        %v866 = vsel %vm864, %v865, %v724
        %v867 = vshrl.u32 %v866, 4
        %v868 = vand.u32 %v866, 15
        %v869 = vsub.s32 0, %v868
        %v870 = vsel %vm864, %v869, %v868
        %vm871 = vcmp.lt.s32.totalorder %v725, 0
        %v872 = vsub.s32 0, %v725
        %v873 = vsel %vm871, %v872, %v725
        %v874 = vshrl.u32 %v873, 4
        %v875 = vand.u32 %v873, 15
        %v876 = vsub.s32 0, %v875
        %v877 = vsel %vm871, %v876, %v875
        %vm878 = vcmp.lt.s32.totalorder %v726, 0
        %v879 = vsub.s32 0, %v726
        %v880 = vsel %vm878, %v879, %v726
        %v881 = vshrl.u32 %v880, 4
        %v882 = vand.u32 %v880, 15
        %v883 = vsub.s32 0, %v882
        %v884 = vsel %vm878, %v883, %v882
        %vm885 = vcmp.lt.s32.totalorder %v727, 0
        %v886 = vsub.s32 0, %v727
        %v887 = vsel %vm885, %v886, %v727
        %v888 = vshrl.u32 %v887, 4
        %v889 = vand.u32 %v887, 15
        %v890 = vsub.s32 0, %v889
        %v891 = vsel %vm885, %v890, %v889
        %vm892 = vcmp.lt.s32.totalorder %v728, 0
        %v893 = vsub.s32 0, %v728
        %v894 = vsel %vm892, %v893, %v728
        %v895 = vshrl.u32 %v894, 4
        %v896 = vand.u32 %v894, 15
        %v897 = vsub.s32 0, %v896
        %v898 = vsel %vm892, %v897, %v896
        %vm899 = vcmp.lt.s32.totalorder %v729, 0
        %v900 = vsub.s32 0, %v729
        %v901 = vsel %vm899, %v900, %v729
        %v902 = vshrl.u32 %v901, 4
        %v903 = vand.u32 %v901, 15
        %v904 = vsub.s32 0, %v903
        %v905 = vsel %vm899, %v904, %v903
        %vm906 = vcmp.lt.s32.totalorder %v730, 0
        %v907 = vsub.s32 0, %v730
        %v908 = vsel %vm906, %v907, %v730
        %v909 = vshrl.u32 %v908, 4
        %v910 = vand.u32 %v908, 15
        %v911 = vsub.s32 0, %v910
        %v912 = vsel %vm906, %v911, %v910
        %vm913 = vcmp.lt.s32.totalorder %v731, 0
        %v914 = vsub.s32 0, %v731
        %v915 = vsel %vm913, %v914, %v731
        %v916 = vshrl.u32 %v915, 4
        %v917 = vand.u32 %v915, 15
        %v918 = vsub.s32 0, %v917
        %v919 = vsel %vm913, %v918, %v917
        %vm920 = vcmp.lt.s32.totalorder %v732, 0
        %v921 = vsub.s32 0, %v732
        %v922 = vsel %vm920, %v921, %v732
        %v923 = vshrl.u32 %v922, 4
        %v924 = vand.u32 %v922, 15
        %v925 = vsub.s32 0, %v924
        %v926 = vsel %vm920, %v925, %v924
        %vm927 = vcmp.lt.s32.totalorder %v733, 0
        %v928 = vsub.s32 0, %v733
        %v929 = vsel %vm927, %v928, %v733
        %v930 = vshrl.u32 %v929, 4
        %v931 = vand.u32 %v929, 15
        %v932 = vsub.s32 0, %v931
        %v933 = vsel %vm927, %v932, %v931
        %vm934 = vcmp.lt.s32.totalorder %v734, 0
        %v935 = vsub.s32 0, %v734
        %v936 = vsel %vm934, %v935, %v734
        %v937 = vshrl.u32 %v936, 4
        %v938 = vand.u32 %v936, 15
        %v939 = vsub.s32 0, %v938
        %v940 = vsel %vm934, %v939, %v938
        %vm941 = vcmp.lt.s32.totalorder %v735, 0
        %v942 = vsub.s32 0, %v735
        %v943 = vsel %vm941, %v942, %v735
        %v944 = vshrl.u32 %v943, 4
        %v945 = vand.u32 %v943, 15
        %v946 = vsub.s32 0, %v945
        %v947 = vsel %vm941, %v946, %v945
        %vm948 = vcmp.lt.s32.totalorder %v736, 0
        %v949 = vsub.s32 0, %v736
        %v950 = vsel %vm948, %v949, %v736
        %v951 = vshrl.u32 %v950, 4
        %v952 = vand.u32 %v950, 15
        %v953 = vsub.s32 0, %v952
        %v954 = vsel %vm948, %v953, %v952
        %vm955 = vcmp.lt.s32.totalorder %v737, 0
        %v956 = vsub.s32 0, %v737
        %v957 = vsel %vm955, %v956, %v737
        %v958 = vshrl.u32 %v957, 4
        %v959 = vand.u32 %v957, 15
        %v960 = vsub.s32 0, %v959
        %v961 = vsel %vm955, %v960, %v959
        %vm962 = vcmp.ne.s32.totalorder %v744, 0
        %vm963 = vcmp.ne.s32.totalorder %v751, 0
        %vm964 = vcmp.ne.s32.totalorder %v758, 0
        %vm965 = vcmp.ne.s32.totalorder %v765, 0
        %vm966 = vcmp.ne.s32.totalorder %v772, 0
        %vm967 = vcmp.ne.s32.totalorder %v779, 0
        %vm968 = vcmp.ne.s32.totalorder %v786, 0
        %vm969 = vcmp.ne.s32.totalorder %v793, 0
        %vm970 = vcmp.ne.s32.totalorder %v800, 0
        %vm971 = vcmp.ne.s32.totalorder %v807, 0
        %vm972 = vcmp.ne.s32.totalorder %v814, 0
        %vm973 = vcmp.ne.s32.totalorder %v821, 0
        %vm974 = vcmp.ne.s32.totalorder %v828, 0
        %vm975 = vcmp.ne.s32.totalorder %v835, 0
        %vm976 = vcmp.ne.s32.totalorder %v842, 0
        %vm977 = vcmp.ne.s32.totalorder %v849, 0
        %vm978 = vcmp.ne.s32.totalorder %v856, 0
        %vm979 = vcmp.ne.s32.totalorder %v863, 0
        %vm980 = vcmp.ne.s32.totalorder %v870, 0
        %vm981 = vcmp.ne.s32.totalorder %v877, 0
        %vm982 = vcmp.ne.s32.totalorder %v884, 0
        %vm983 = vcmp.ne.s32.totalorder %v891, 0
        %vm984 = vcmp.ne.s32.totalorder %v898, 0
        %vm985 = vcmp.ne.s32.totalorder %v905, 0
        %vm986 = vcmp.ne.s32.totalorder %v912, 0
        %vm987 = vcmp.ne.s32.totalorder %v919, 0
        %vm988 = vcmp.ne.s32.totalorder %v926, 0
        %vm989 = vcmp.ne.s32.totalorder %v933, 0
        %vm990 = vcmp.ne.s32.totalorder %v940, 0
        %vm991 = vcmp.ne.s32.totalorder %v947, 0
        %vm992 = vcmp.ne.s32.totalorder %v954, 0
        %vm993 = vcmp.ne.s32.totalorder %v961, 0
        %vm994 = vcmp.lt.s32.totalorder %v744, 0
        %vm995 = vcmp.lt.s32.totalorder %v751, 0
        %vm996 = vcmp.lt.s32.totalorder %v758, 0
        %vm997 = vcmp.lt.s32.totalorder %v765, 0
        %vm998 = vcmp.lt.s32.totalorder %v772, 0
        %vm999 = vcmp.lt.s32.totalorder %v779, 0
        %vm1000 = vcmp.lt.s32.totalorder %v786, 0
        %vm1001 = vcmp.lt.s32.totalorder %v793, 0
        %vm1002 = vcmp.lt.s32.totalorder %v800, 0
        %vm1003 = vcmp.lt.s32.totalorder %v807, 0
        %vm1004 = vcmp.lt.s32.totalorder %v814, 0
        %vm1005 = vcmp.lt.s32.totalorder %v821, 0
        %vm1006 = vcmp.lt.s32.totalorder %v828, 0
        %vm1007 = vcmp.lt.s32.totalorder %v835, 0
        %vm1008 = vcmp.lt.s32.totalorder %v842, 0
        %vm1009 = vcmp.lt.s32.totalorder %v849, 0
        %vm1010 = vcmp.lt.s32.totalorder %v856, 0
        %vm1011 = vcmp.lt.s32.totalorder %v863, 0
        %vm1012 = vcmp.lt.s32.totalorder %v870, 0
        %vm1013 = vcmp.lt.s32.totalorder %v877, 0
        %vm1014 = vcmp.lt.s32.totalorder %v884, 0
        %vm1015 = vcmp.lt.s32.totalorder %v891, 0
        %vm1016 = vcmp.lt.s32.totalorder %v898, 0
        %vm1017 = vcmp.lt.s32.totalorder %v905, 0
        %vm1018 = vcmp.lt.s32.totalorder %v912, 0
        %vm1019 = vcmp.lt.s32.totalorder %v919, 0
        %vm1020 = vcmp.lt.s32.totalorder %v926, 0
        %vm1021 = vcmp.lt.s32.totalorder %v933, 0
        %vm1022 = vcmp.lt.s32.totalorder %v940, 0
        %vm1023 = vcmp.lt.s32.totalorder %v947, 0
        %vm1024 = vcmp.lt.s32.totalorder %v954, 0
        %vm1025 = vcmp.lt.s32.totalorder %v961, 0
        %vm1026 = vmand %vm994, %vm962
        %vm1027 = vmand %vm995, %vm963
        %vm1028 = vmand %vm996, %vm964
        %vm1029 = vmand %vm997, %vm965
        %vm1030 = vmand %vm998, %vm966
        %vm1031 = vmand %vm999, %vm967
        %vm1032 = vmand %vm1000, %vm968
        %vm1033 = vmand %vm1001, %vm969
        %vm1034 = vmand %vm1002, %vm970
        %vm1035 = vmand %vm1003, %vm971
        %vm1036 = vmand %vm1004, %vm972
        %vm1037 = vmand %vm1005, %vm973
        %vm1038 = vmand %vm1006, %vm974
        %vm1039 = vmand %vm1007, %vm975
        %vm1040 = vmand %vm1008, %vm976
        %vm1041 = vmand %vm1009, %vm977
        %vm1042 = vmand %vm1010, %vm978
        %vm1043 = vmand %vm1011, %vm979
        %vm1044 = vmand %vm1012, %vm980
        %vm1045 = vmand %vm1013, %vm981
        %vm1046 = vmand %vm1014, %vm982
        %vm1047 = vmand %vm1015, %vm983
        %vm1048 = vmand %vm1016, %vm984
        %vm1049 = vmand %vm1017, %vm985
        %vm1050 = vmand %vm1018, %vm986
        %vm1051 = vmand %vm1019, %vm987
        %vm1052 = vmand %vm1020, %vm988
        %vm1053 = vmand %vm1021, %vm989
        %vm1054 = vmand %vm1022, %vm990
        %vm1055 = vmand %vm1023, %vm991
        %vm1056 = vmand %vm1024, %vm992
        %vm1057 = vmand %vm1025, %vm993
        %v1058 = vadd.s32 %v744, 16
        %v1059 = vadd.s32 %v751, 16
        %v1060 = vadd.s32 %v758, 16
        %v1061 = vadd.s32 %v765, 16
        %v1062 = vadd.s32 %v772, 16
        %v1063 = vadd.s32 %v779, 16
        %v1064 = vadd.s32 %v786, 16
        %v1065 = vadd.s32 %v793, 16
        %v1066 = vadd.s32 %v800, 16
        %v1067 = vadd.s32 %v807, 16
        %v1068 = vadd.s32 %v814, 16
        %v1069 = vadd.s32 %v821, 16
        %v1070 = vadd.s32 %v828, 16
        %v1071 = vadd.s32 %v835, 16
        %v1072 = vadd.s32 %v842, 16
        %v1073 = vadd.s32 %v849, 16
        %v1074 = vadd.s32 %v856, 16
        %v1075 = vadd.s32 %v863, 16
        %v1076 = vadd.s32 %v870, 16
        %v1077 = vadd.s32 %v877, 16
        %v1078 = vadd.s32 %v884, 16
        %v1079 = vadd.s32 %v891, 16
        %v1080 = vadd.s32 %v898, 16
        %v1081 = vadd.s32 %v905, 16
        %v1082 = vadd.s32 %v912, 16
        %v1083 = vadd.s32 %v919, 16
        %v1084 = vadd.s32 %v926, 16
        %v1085 = vadd.s32 %v933, 16
        %v1086 = vadd.s32 %v940, 16
        %v1087 = vadd.s32 %v947, 16
        %v1088 = vadd.s32 %v954, 16
        %v1089 = vadd.s32 %v961, 16
        %v1090 = vsel %vm1026, %v1058, %v744
        %v1091 = vsel %vm1027, %v1059, %v751
        %v1092 = vsel %vm1028, %v1060, %v758
        %v1093 = vsel %vm1029, %v1061, %v765
        %v1094 = vsel %vm1030, %v1062, %v772
        %v1095 = vsel %vm1031, %v1063, %v779
        %v1096 = vsel %vm1032, %v1064, %v786
        %v1097 = vsel %vm1033, %v1065, %v793
        %v1098 = vsel %vm1034, %v1066, %v800
        %v1099 = vsel %vm1035, %v1067, %v807
        %v1100 = vsel %vm1036, %v1068, %v814
        %v1101 = vsel %vm1037, %v1069, %v821
        %v1102 = vsel %vm1038, %v1070, %v828
        %v1103 = vsel %vm1039, %v1071, %v835
        %v1104 = vsel %vm1040, %v1072, %v842
        %v1105 = vsel %vm1041, %v1073, %v849
        %v1106 = vsel %vm1042, %v1074, %v856
        %v1107 = vsel %vm1043, %v1075, %v863
        %v1108 = vsel %vm1044, %v1076, %v870
        %v1109 = vsel %vm1045, %v1077, %v877
        %v1110 = vsel %vm1046, %v1078, %v884
        %v1111 = vsel %vm1047, %v1079, %v891
        %v1112 = vsel %vm1048, %v1080, %v898
        %v1113 = vsel %vm1049, %v1081, %v905
        %v1114 = vsel %vm1050, %v1082, %v912
        %v1115 = vsel %vm1051, %v1083, %v919
        %v1116 = vsel %vm1052, %v1084, %v926
        %v1117 = vsel %vm1053, %v1085, %v933
        %v1118 = vsel %vm1054, %v1086, %v940
        %v1119 = vsel %vm1055, %v1087, %v947
        %v1120 = vsel %vm1056, %v1088, %v954
        %v1121 = vsel %vm1057, %v1089, %v961
        %vm1122 = vcmp.ge.s32.totalorder %v706, 16
        %vm1123 = vcmp.ge.s32.totalorder %v707, 16
        %vm1124 = vcmp.ge.s32.totalorder %v708, 16
        %vm1125 = vcmp.ge.s32.totalorder %v709, 16
        %vm1126 = vcmp.ge.s32.totalorder %v710, 16
        %vm1127 = vcmp.ge.s32.totalorder %v711, 16
        %vm1128 = vcmp.ge.s32.totalorder %v712, 16
        %vm1129 = vcmp.ge.s32.totalorder %v713, 16
        %vm1130 = vcmp.ge.s32.totalorder %v714, 16
        %vm1131 = vcmp.ge.s32.totalorder %v715, 16
        %vm1132 = vcmp.ge.s32.totalorder %v716, 16
        %vm1133 = vcmp.ge.s32.totalorder %v717, 16
        %vm1134 = vcmp.ge.s32.totalorder %v718, 16
        %vm1135 = vcmp.ge.s32.totalorder %v719, 16
        %vm1136 = vcmp.ge.s32.totalorder %v720, 16
        %vm1137 = vcmp.ge.s32.totalorder %v721, 16
        %vm1138 = vcmp.ge.s32.totalorder %v722, 16
        %vm1139 = vcmp.ge.s32.totalorder %v723, 16
        %vm1140 = vcmp.ge.s32.totalorder %v724, 16
        %vm1141 = vcmp.ge.s32.totalorder %v725, 16
        %vm1142 = vcmp.ge.s32.totalorder %v726, 16
        %vm1143 = vcmp.ge.s32.totalorder %v727, 16
        %vm1144 = vcmp.ge.s32.totalorder %v728, 16
        %vm1145 = vcmp.ge.s32.totalorder %v729, 16
        %vm1146 = vcmp.ge.s32.totalorder %v730, 16
        %vm1147 = vcmp.ge.s32.totalorder %v731, 16
        %vm1148 = vcmp.ge.s32.totalorder %v732, 16
        %vm1149 = vcmp.ge.s32.totalorder %v733, 16
        %vm1150 = vcmp.ge.s32.totalorder %v734, 16
        %vm1151 = vcmp.ge.s32.totalorder %v735, 16
        %vm1152 = vcmp.ge.s32.totalorder %v736, 16
        %vm1153 = vcmp.ge.s32.totalorder %v737, 16
        %v1154 = vsel %vm1122, 1, 0
        %v1155 = vsel %vm1123, 1, 0
        %v1156 = vsel %vm1124, 1, 0
        %v1157 = vsel %vm1125, 1, 0
        %v1158 = vsel %vm1126, 1, 0
        %v1159 = vsel %vm1127, 1, 0
        %v1160 = vsel %vm1128, 1, 0
        %v1161 = vsel %vm1129, 1, 0
        %v1162 = vsel %vm1130, 1, 0
        %v1163 = vsel %vm1131, 1, 0
        %v1164 = vsel %vm1132, 1, 0
        %v1165 = vsel %vm1133, 1, 0
        %v1166 = vsel %vm1134, 1, 0
        %v1167 = vsel %vm1135, 1, 0
        %v1168 = vsel %vm1136, 1, 0
        %v1169 = vsel %vm1137, 1, 0
        %v1170 = vsel %vm1138, 1, 0
        %v1171 = vsel %vm1139, 1, 0
        %v1172 = vsel %vm1140, 1, 0
        %v1173 = vsel %vm1141, 1, 0
        %v1174 = vsel %vm1142, 1, 0
        %v1175 = vsel %vm1143, 1, 0
        %v1176 = vsel %vm1144, 1, 0
        %v1177 = vsel %vm1145, 1, 0
        %v1178 = vsel %vm1146, 1, 0
        %v1179 = vsel %vm1147, 1, 0
        %v1180 = vsel %vm1148, 1, 0
        %v1181 = vsel %vm1149, 1, 0
        %v1182 = vsel %vm1150, 1, 0
        %v1183 = vsel %vm1151, 1, 0
        %v1184 = vsel %vm1152, 1, 0
        %v1185 = vsel %vm1153, 1, 0
        %v1186 = vcvt.s32.f32 %v1154
        %v1187 = vcvt.s32.f32 %v1155
        %v1188 = vcvt.s32.f32 %v1156
        %v1189 = vcvt.s32.f32 %v1157
        %v1190 = vcvt.s32.f32 %v1158
        %v1191 = vcvt.s32.f32 %v1159
        %v1192 = vcvt.s32.f32 %v1160
        %v1193 = vcvt.s32.f32 %v1161
        %v1194 = vcvt.s32.f32 %v1162
        %v1195 = vcvt.s32.f32 %v1163
        %v1196 = vcvt.s32.f32 %v1164
        %v1197 = vcvt.s32.f32 %v1165
        %v1198 = vcvt.s32.f32 %v1166
        %v1199 = vcvt.s32.f32 %v1167
        %v1200 = vcvt.s32.f32 %v1168
        %v1201 = vcvt.s32.f32 %v1169
        %v1202 = vcvt.s32.f32 %v1170
        %v1203 = vcvt.s32.f32 %v1171
        %v1204 = vcvt.s32.f32 %v1172
        %v1205 = vcvt.s32.f32 %v1173
        %v1206 = vcvt.s32.f32 %v1174
        %v1207 = vcvt.s32.f32 %v1175
        %v1208 = vcvt.s32.f32 %v1176
        %v1209 = vcvt.s32.f32 %v1177
        %v1210 = vcvt.s32.f32 %v1178
        %v1211 = vcvt.s32.f32 %v1179
        %v1212 = vcvt.s32.f32 %v1180
        %v1213 = vcvt.s32.f32 %v1181
        %v1214 = vcvt.s32.f32 %v1182
        %v1215 = vcvt.s32.f32 %v1183
        %v1216 = vcvt.s32.f32 %v1184
        %v1217 = vcvt.s32.f32 %v1185
        %vm1218 = vcmp.lt.s32.totalorder %v706, 240
        %vm1219 = vcmp.lt.s32.totalorder %v707, 240
        %vm1220 = vcmp.lt.s32.totalorder %v708, 240
        %vm1221 = vcmp.lt.s32.totalorder %v709, 240
        %vm1222 = vcmp.lt.s32.totalorder %v710, 240
        %vm1223 = vcmp.lt.s32.totalorder %v711, 240
        %vm1224 = vcmp.lt.s32.totalorder %v712, 240
        %vm1225 = vcmp.lt.s32.totalorder %v713, 240
        %vm1226 = vcmp.lt.s32.totalorder %v714, 240
        %vm1227 = vcmp.lt.s32.totalorder %v715, 240
        %vm1228 = vcmp.lt.s32.totalorder %v716, 240
        %vm1229 = vcmp.lt.s32.totalorder %v717, 240
        %vm1230 = vcmp.lt.s32.totalorder %v718, 240
        %vm1231 = vcmp.lt.s32.totalorder %v719, 240
        %vm1232 = vcmp.lt.s32.totalorder %v720, 240
        %vm1233 = vcmp.lt.s32.totalorder %v721, 240
        %vm1234 = vcmp.lt.s32.totalorder %v722, 240
        %vm1235 = vcmp.lt.s32.totalorder %v723, 240
        %vm1236 = vcmp.lt.s32.totalorder %v724, 240
        %vm1237 = vcmp.lt.s32.totalorder %v725, 240
        %vm1238 = vcmp.lt.s32.totalorder %v726, 240
        %vm1239 = vcmp.lt.s32.totalorder %v727, 240
        %vm1240 = vcmp.lt.s32.totalorder %v728, 240
        %vm1241 = vcmp.lt.s32.totalorder %v729, 240
        %vm1242 = vcmp.lt.s32.totalorder %v730, 240
        %vm1243 = vcmp.lt.s32.totalorder %v731, 240
        %vm1244 = vcmp.lt.s32.totalorder %v732, 240
        %vm1245 = vcmp.lt.s32.totalorder %v733, 240
        %vm1246 = vcmp.lt.s32.totalorder %v734, 240
        %vm1247 = vcmp.lt.s32.totalorder %v735, 240
        %vm1248 = vcmp.lt.s32.totalorder %v736, 240
        %vm1249 = vcmp.lt.s32.totalorder %v737, 240
        %v1250 = vsel %vm1218, 1, 0
        %v1251 = vsel %vm1219, 1, 0
        %v1252 = vsel %vm1220, 1, 0
        %v1253 = vsel %vm1221, 1, 0
        %v1254 = vsel %vm1222, 1, 0
        %v1255 = vsel %vm1223, 1, 0
        %v1256 = vsel %vm1224, 1, 0
        %v1257 = vsel %vm1225, 1, 0
        %v1258 = vsel %vm1226, 1, 0
        %v1259 = vsel %vm1227, 1, 0
        %v1260 = vsel %vm1228, 1, 0
        %v1261 = vsel %vm1229, 1, 0
        %v1262 = vsel %vm1230, 1, 0
        %v1263 = vsel %vm1231, 1, 0
        %v1264 = vsel %vm1232, 1, 0
        %v1265 = vsel %vm1233, 1, 0
        %v1266 = vsel %vm1234, 1, 0
        %v1267 = vsel %vm1235, 1, 0
        %v1268 = vsel %vm1236, 1, 0
        %v1269 = vsel %vm1237, 1, 0
        %v1270 = vsel %vm1238, 1, 0
        %v1271 = vsel %vm1239, 1, 0
        %v1272 = vsel %vm1240, 1, 0
        %v1273 = vsel %vm1241, 1, 0
        %v1274 = vsel %vm1242, 1, 0
        %v1275 = vsel %vm1243, 1, 0
        %v1276 = vsel %vm1244, 1, 0
        %v1277 = vsel %vm1245, 1, 0
        %v1278 = vsel %vm1246, 1, 0
        %v1279 = vsel %vm1247, 1, 0
        %v1280 = vsel %vm1248, 1, 0
        %v1281 = vsel %vm1249, 1, 0
        %v1282 = vcvt.s32.f32 %v1250
        %v1283 = vcvt.s32.f32 %v1251
        %v1284 = vcvt.s32.f32 %v1252
        %v1285 = vcvt.s32.f32 %v1253
        %v1286 = vcvt.s32.f32 %v1254
        %v1287 = vcvt.s32.f32 %v1255
        %v1288 = vcvt.s32.f32 %v1256
        %v1289 = vcvt.s32.f32 %v1257
        %v1290 = vcvt.s32.f32 %v1258
        %v1291 = vcvt.s32.f32 %v1259
        %v1292 = vcvt.s32.f32 %v1260
        %v1293 = vcvt.s32.f32 %v1261
        %v1294 = vcvt.s32.f32 %v1262
        %v1295 = vcvt.s32.f32 %v1263
        %v1296 = vcvt.s32.f32 %v1264
        %v1297 = vcvt.s32.f32 %v1265
        %v1298 = vcvt.s32.f32 %v1266
        %v1299 = vcvt.s32.f32 %v1267
        %v1300 = vcvt.s32.f32 %v1268
        %v1301 = vcvt.s32.f32 %v1269
        %v1302 = vcvt.s32.f32 %v1270
        %v1303 = vcvt.s32.f32 %v1271
        %v1304 = vcvt.s32.f32 %v1272
        %v1305 = vcvt.s32.f32 %v1273
        %v1306 = vcvt.s32.f32 %v1274
        %v1307 = vcvt.s32.f32 %v1275
        %v1308 = vcvt.s32.f32 %v1276
        %v1309 = vcvt.s32.f32 %v1277
        %v1310 = vcvt.s32.f32 %v1278
        %v1311 = vcvt.s32.f32 %v1279
        %v1312 = vcvt.s32.f32 %v1280
        %v1313 = vcvt.s32.f32 %v1281
        %vm1314 = vcmp.ge.s32.totalorder %v1090, 1
        %vm1315 = vcmp.ge.s32.totalorder %v1091, 1
        %vm1316 = vcmp.ge.s32.totalorder %v1092, 1
        %vm1317 = vcmp.ge.s32.totalorder %v1093, 1
        %vm1318 = vcmp.ge.s32.totalorder %v1094, 1
        %vm1319 = vcmp.ge.s32.totalorder %v1095, 1
        %vm1320 = vcmp.ge.s32.totalorder %v1096, 1
        %vm1321 = vcmp.ge.s32.totalorder %v1097, 1
        %vm1322 = vcmp.ge.s32.totalorder %v1098, 1
        %vm1323 = vcmp.ge.s32.totalorder %v1099, 1
        %vm1324 = vcmp.ge.s32.totalorder %v1100, 1
        %vm1325 = vcmp.ge.s32.totalorder %v1101, 1
        %vm1326 = vcmp.ge.s32.totalorder %v1102, 1
        %vm1327 = vcmp.ge.s32.totalorder %v1103, 1
        %vm1328 = vcmp.ge.s32.totalorder %v1104, 1
        %vm1329 = vcmp.ge.s32.totalorder %v1105, 1
        %vm1330 = vcmp.ge.s32.totalorder %v1106, 1
        %vm1331 = vcmp.ge.s32.totalorder %v1107, 1
        %vm1332 = vcmp.ge.s32.totalorder %v1108, 1
        %vm1333 = vcmp.ge.s32.totalorder %v1109, 1
        %vm1334 = vcmp.ge.s32.totalorder %v1110, 1
        %vm1335 = vcmp.ge.s32.totalorder %v1111, 1
        %vm1336 = vcmp.ge.s32.totalorder %v1112, 1
        %vm1337 = vcmp.ge.s32.totalorder %v1113, 1
        %vm1338 = vcmp.ge.s32.totalorder %v1114, 1
        %vm1339 = vcmp.ge.s32.totalorder %v1115, 1
        %vm1340 = vcmp.ge.s32.totalorder %v1116, 1
        %vm1341 = vcmp.ge.s32.totalorder %v1117, 1
        %vm1342 = vcmp.ge.s32.totalorder %v1118, 1
        %vm1343 = vcmp.ge.s32.totalorder %v1119, 1
        %vm1344 = vcmp.ge.s32.totalorder %v1120, 1
        %vm1345 = vcmp.ge.s32.totalorder %v1121, 1
        %v1346 = vsel %vm1314, 1, 0
        %v1347 = vsel %vm1315, 1, 0
        %v1348 = vsel %vm1316, 1, 0
        %v1349 = vsel %vm1317, 1, 0
        %v1350 = vsel %vm1318, 1, 0
        %v1351 = vsel %vm1319, 1, 0
        %v1352 = vsel %vm1320, 1, 0
        %v1353 = vsel %vm1321, 1, 0
        %v1354 = vsel %vm1322, 1, 0
        %v1355 = vsel %vm1323, 1, 0
        %v1356 = vsel %vm1324, 1, 0
        %v1357 = vsel %vm1325, 1, 0
        %v1358 = vsel %vm1326, 1, 0
        %v1359 = vsel %vm1327, 1, 0
        %v1360 = vsel %vm1328, 1, 0
        %v1361 = vsel %vm1329, 1, 0
        %v1362 = vsel %vm1330, 1, 0
        %v1363 = vsel %vm1331, 1, 0
        %v1364 = vsel %vm1332, 1, 0
        %v1365 = vsel %vm1333, 1, 0
        %v1366 = vsel %vm1334, 1, 0
        %v1367 = vsel %vm1335, 1, 0
        %v1368 = vsel %vm1336, 1, 0
        %v1369 = vsel %vm1337, 1, 0
        %v1370 = vsel %vm1338, 1, 0
        %v1371 = vsel %vm1339, 1, 0
        %v1372 = vsel %vm1340, 1, 0
        %v1373 = vsel %vm1341, 1, 0
        %v1374 = vsel %vm1342, 1, 0
        %v1375 = vsel %vm1343, 1, 0
        %v1376 = vsel %vm1344, 1, 0
        %v1377 = vsel %vm1345, 1, 0
        %v1378 = vcvt.s32.f32 %v1346
        %v1379 = vcvt.s32.f32 %v1347
        %v1380 = vcvt.s32.f32 %v1348
        %v1381 = vcvt.s32.f32 %v1349
        %v1382 = vcvt.s32.f32 %v1350
        %v1383 = vcvt.s32.f32 %v1351
        %v1384 = vcvt.s32.f32 %v1352
        %v1385 = vcvt.s32.f32 %v1353
        %v1386 = vcvt.s32.f32 %v1354
        %v1387 = vcvt.s32.f32 %v1355
        %v1388 = vcvt.s32.f32 %v1356
        %v1389 = vcvt.s32.f32 %v1357
        %v1390 = vcvt.s32.f32 %v1358
        %v1391 = vcvt.s32.f32 %v1359
        %v1392 = vcvt.s32.f32 %v1360
        %v1393 = vcvt.s32.f32 %v1361
        %v1394 = vcvt.s32.f32 %v1362
        %v1395 = vcvt.s32.f32 %v1363
        %v1396 = vcvt.s32.f32 %v1364
        %v1397 = vcvt.s32.f32 %v1365
        %v1398 = vcvt.s32.f32 %v1366
        %v1399 = vcvt.s32.f32 %v1367
        %v1400 = vcvt.s32.f32 %v1368
        %v1401 = vcvt.s32.f32 %v1369
        %v1402 = vcvt.s32.f32 %v1370
        %v1403 = vcvt.s32.f32 %v1371
        %v1404 = vcvt.s32.f32 %v1372
        %v1405 = vcvt.s32.f32 %v1373
        %v1406 = vcvt.s32.f32 %v1374
        %v1407 = vcvt.s32.f32 %v1375
        %v1408 = vcvt.s32.f32 %v1376
        %v1409 = vcvt.s32.f32 %v1377
        %vm1410 = vcmp.le.s32.totalorder %v1090, 14
        %vm1411 = vcmp.le.s32.totalorder %v1091, 14
        %vm1412 = vcmp.le.s32.totalorder %v1092, 14
        %vm1413 = vcmp.le.s32.totalorder %v1093, 14
        %vm1414 = vcmp.le.s32.totalorder %v1094, 14
        %vm1415 = vcmp.le.s32.totalorder %v1095, 14
        %vm1416 = vcmp.le.s32.totalorder %v1096, 14
        %vm1417 = vcmp.le.s32.totalorder %v1097, 14
        %vm1418 = vcmp.le.s32.totalorder %v1098, 14
        %vm1419 = vcmp.le.s32.totalorder %v1099, 14
        %vm1420 = vcmp.le.s32.totalorder %v1100, 14
        %vm1421 = vcmp.le.s32.totalorder %v1101, 14
        %vm1422 = vcmp.le.s32.totalorder %v1102, 14
        %vm1423 = vcmp.le.s32.totalorder %v1103, 14
        %vm1424 = vcmp.le.s32.totalorder %v1104, 14
        %vm1425 = vcmp.le.s32.totalorder %v1105, 14
        %vm1426 = vcmp.le.s32.totalorder %v1106, 14
        %vm1427 = vcmp.le.s32.totalorder %v1107, 14
        %vm1428 = vcmp.le.s32.totalorder %v1108, 14
        %vm1429 = vcmp.le.s32.totalorder %v1109, 14
        %vm1430 = vcmp.le.s32.totalorder %v1110, 14
        %vm1431 = vcmp.le.s32.totalorder %v1111, 14
        %vm1432 = vcmp.le.s32.totalorder %v1112, 14
        %vm1433 = vcmp.le.s32.totalorder %v1113, 14
        %vm1434 = vcmp.le.s32.totalorder %v1114, 14
        %vm1435 = vcmp.le.s32.totalorder %v1115, 14
        %vm1436 = vcmp.le.s32.totalorder %v1116, 14
        %vm1437 = vcmp.le.s32.totalorder %v1117, 14
        %vm1438 = vcmp.le.s32.totalorder %v1118, 14
        %vm1439 = vcmp.le.s32.totalorder %v1119, 14
        %vm1440 = vcmp.le.s32.totalorder %v1120, 14
        %vm1441 = vcmp.le.s32.totalorder %v1121, 14
        %v1442 = vsel %vm1410, 1, 0
        %v1443 = vsel %vm1411, 1, 0
        %v1444 = vsel %vm1412, 1, 0
        %v1445 = vsel %vm1413, 1, 0
        %v1446 = vsel %vm1414, 1, 0
        %v1447 = vsel %vm1415, 1, 0
        %v1448 = vsel %vm1416, 1, 0
        %v1449 = vsel %vm1417, 1, 0
        %v1450 = vsel %vm1418, 1, 0
        %v1451 = vsel %vm1419, 1, 0
        %v1452 = vsel %vm1420, 1, 0
        %v1453 = vsel %vm1421, 1, 0
        %v1454 = vsel %vm1422, 1, 0
        %v1455 = vsel %vm1423, 1, 0
        %v1456 = vsel %vm1424, 1, 0
        %v1457 = vsel %vm1425, 1, 0
        %v1458 = vsel %vm1426, 1, 0
        %v1459 = vsel %vm1427, 1, 0
        %v1460 = vsel %vm1428, 1, 0
        %v1461 = vsel %vm1429, 1, 0
        %v1462 = vsel %vm1430, 1, 0
        %v1463 = vsel %vm1431, 1, 0
        %v1464 = vsel %vm1432, 1, 0
        %v1465 = vsel %vm1433, 1, 0
        %v1466 = vsel %vm1434, 1, 0
        %v1467 = vsel %vm1435, 1, 0
        %v1468 = vsel %vm1436, 1, 0
        %v1469 = vsel %vm1437, 1, 0
        %v1470 = vsel %vm1438, 1, 0
        %v1471 = vsel %vm1439, 1, 0
        %v1472 = vsel %vm1440, 1, 0
        %v1473 = vsel %vm1441, 1, 0
        %v1474 = vcvt.s32.f32 %v1442
        %v1475 = vcvt.s32.f32 %v1443
        %v1476 = vcvt.s32.f32 %v1444
        %v1477 = vcvt.s32.f32 %v1445
        %v1478 = vcvt.s32.f32 %v1446
        %v1479 = vcvt.s32.f32 %v1447
        %v1480 = vcvt.s32.f32 %v1448
        %v1481 = vcvt.s32.f32 %v1449
        %v1482 = vcvt.s32.f32 %v1450
        %v1483 = vcvt.s32.f32 %v1451
        %v1484 = vcvt.s32.f32 %v1452
        %v1485 = vcvt.s32.f32 %v1453
        %v1486 = vcvt.s32.f32 %v1454
        %v1487 = vcvt.s32.f32 %v1455
        %v1488 = vcvt.s32.f32 %v1456
        %v1489 = vcvt.s32.f32 %v1457
        %v1490 = vcvt.s32.f32 %v1458
        %v1491 = vcvt.s32.f32 %v1459
        %v1492 = vcvt.s32.f32 %v1460
        %v1493 = vcvt.s32.f32 %v1461
        %v1494 = vcvt.s32.f32 %v1462
        %v1495 = vcvt.s32.f32 %v1463
        %v1496 = vcvt.s32.f32 %v1464
        %v1497 = vcvt.s32.f32 %v1465
        %v1498 = vcvt.s32.f32 %v1466
        %v1499 = vcvt.s32.f32 %v1467
        %v1500 = vcvt.s32.f32 %v1468
        %v1501 = vcvt.s32.f32 %v1469
        %v1502 = vcvt.s32.f32 %v1470
        %v1503 = vcvt.s32.f32 %v1471
        %v1504 = vcvt.s32.f32 %v1472
        %v1505 = vcvt.s32.f32 %v1473
        %v1506 = vrot.slane %v673, 7
        %v1507 = vrot.slane %v674, 7
        %v1508 = vrot.slane %v675, 7
        %v1509 = vrot.slane %v676, 7
        %v1510 = vrot.slane %v677, 7
        %v1511 = vrot.slane %v678, 7
        %v1512 = vrot.slane %v679, 7
        %v1513 = vrot.slane %v680, 7
        %v1514 = vrot.slane %v681, 7
        %v1515 = vrot.slane %v682, 7
        %v1516 = vrot.slane %v683, 7
        %v1517 = vrot.slane %v684, 7
        %v1518 = vrot.slane %v685, 7
        %v1519 = vrot.slane %v686, 7
        %v1520 = vrot.slane %v687, 7
        %v1521 = vrot.slane %v688, 7
        %v1522 = vrot.slane %v689, 7
        %v1523 = vrot.slane %v690, 7
        %v1524 = vrot.slane %v691, 7
        %v1525 = vrot.slane %v692, 7
        %v1526 = vrot.slane %v693, 7
        %v1527 = vrot.slane %v694, 7
        %v1528 = vrot.slane %v695, 7
        %v1529 = vrot.slane %v696, 7
        %v1530 = vrot.slane %v697, 7
        %v1531 = vrot.slane %v698, 7
        %v1532 = vrot.slane %v699, 7
        %v1533 = vrot.slane %v700, 7
        %v1534 = vrot.slane %v701, 7
        %v1535 = vrot.slane %v702, 7
        %v1536 = vrot.slane %v703, 7
        %v1537 = vrot.slane %v704, 7
        %vm1538 = vcmp.lt.s32.totalorder %v706, 1
        %v1539 = vsel %vm1538, %v1536, %v1537
        %v1540 = vsel %vm1538, %v1535, %v1536
        %v1541 = vsel %vm1538, %v1534, %v1535
        %v1542 = vsel %vm1538, %v1533, %v1534
        %v1543 = vsel %vm1538, %v1532, %v1533
        %v1544 = vsel %vm1538, %v1531, %v1532
        %v1545 = vsel %vm1538, %v1530, %v1531
        %v1546 = vsel %vm1538, %v1529, %v1530
        %v1547 = vsel %vm1538, %v1528, %v1529
        %v1548 = vsel %vm1538, %v1527, %v1528
        %v1549 = vsel %vm1538, %v1526, %v1527
        %v1550 = vsel %vm1538, %v1525, %v1526
        %v1551 = vsel %vm1538, %v1524, %v1525
        %v1552 = vsel %vm1538, %v1523, %v1524
        %v1553 = vsel %vm1538, %v1522, %v1523
        %v1554 = vsel %vm1538, %v1521, %v1522
        %v1555 = vsel %vm1538, %v1520, %v1521
        %v1556 = vsel %vm1538, %v1519, %v1520
        %v1557 = vsel %vm1538, %v1518, %v1519
        %v1558 = vsel %vm1538, %v1517, %v1518
        %v1559 = vsel %vm1538, %v1516, %v1517
        %v1560 = vsel %vm1538, %v1515, %v1516
        %v1561 = vsel %vm1538, %v1514, %v1515
        %v1562 = vsel %vm1538, %v1513, %v1514
        %v1563 = vsel %vm1538, %v1512, %v1513
        %v1564 = vsel %vm1538, %v1511, %v1512
        %v1565 = vsel %vm1538, %v1510, %v1511
        %v1566 = vsel %vm1538, %v1509, %v1510
        %v1567 = vsel %vm1538, %v1508, %v1509
        %v1568 = vsel %vm1538, %v1507, %v1508
        %v1569 = vsel %vm1538, %v1506, %v1507
        %v1570 = vsel %vm1538, %v1537, %v1506
        %v1571 = vmul.f32 %v1186, %v1378
        %v1572 = vmul.f32 %v1187, %v1379
        %v1573 = vmul.f32 %v1188, %v1380
        %v1574 = vmul.f32 %v1189, %v1381
        %v1575 = vmul.f32 %v1190, %v1382
        %v1576 = vmul.f32 %v1191, %v1383
        %v1577 = vmul.f32 %v1192, %v1384
        %v1578 = vmul.f32 %v1193, %v1385
        %v1579 = vmul.f32 %v1194, %v1386
        %v1580 = vmul.f32 %v1195, %v1387
        %v1581 = vmul.f32 %v1196, %v1388
        %v1582 = vmul.f32 %v1197, %v1389
        %v1583 = vmul.f32 %v1198, %v1390
        %v1584 = vmul.f32 %v1199, %v1391
        %v1585 = vmul.f32 %v1200, %v1392
        %v1586 = vmul.f32 %v1201, %v1393
        %v1587 = vmul.f32 %v1202, %v1394
        %v1588 = vmul.f32 %v1203, %v1395
        %v1589 = vmul.f32 %v1204, %v1396
        %v1590 = vmul.f32 %v1205, %v1397
        %v1591 = vmul.f32 %v1206, %v1398
        %v1592 = vmul.f32 %v1207, %v1399
        %v1593 = vmul.f32 %v1208, %v1400
        %v1594 = vmul.f32 %v1209, %v1401
        %v1595 = vmul.f32 %v1210, %v1402
        %v1596 = vmul.f32 %v1211, %v1403
        %v1597 = vmul.f32 %v1212, %v1404
        %v1598 = vmul.f32 %v1213, %v1405
        %v1599 = vmul.f32 %v1214, %v1406
        %v1600 = vmul.f32 %v1215, %v1407
        %v1601 = vmul.f32 %v1216, %v1408
        %v1602 = vmul.f32 %v1217, %v1409
        %v1603 = vmul.f32 %v1540, %v1571
        %v1604 = vmul.f32 %v1539, %v1572
        %v1605 = vmul.f32 %v1570, %v1573
        %v1606 = vmul.f32 %v1569, %v1574
        %v1607 = vmul.f32 %v1568, %v1575
        %v1608 = vmul.f32 %v1567, %v1576
        %v1609 = vmul.f32 %v1566, %v1577
        %v1610 = vmul.f32 %v1565, %v1578
        %v1611 = vmul.f32 %v1564, %v1579
        %v1612 = vmul.f32 %v1563, %v1580
        %v1613 = vmul.f32 %v1562, %v1581
        %v1614 = vmul.f32 %v1561, %v1582
        %v1615 = vmul.f32 %v1560, %v1583
        %v1616 = vmul.f32 %v1559, %v1584
        %v1617 = vmul.f32 %v1558, %v1585
        %v1618 = vmul.f32 %v1557, %v1586
        %v1619 = vmul.f32 %v1556, %v1587
        %v1620 = vmul.f32 %v1555, %v1588
        %v1621 = vmul.f32 %v1554, %v1589
        %v1622 = vmul.f32 %v1553, %v1590
        %v1623 = vmul.f32 %v1552, %v1591
        %v1624 = vmul.f32 %v1551, %v1592
        %v1625 = vmul.f32 %v1550, %v1593
        %v1626 = vmul.f32 %v1549, %v1594
        %v1627 = vmul.f32 %v1548, %v1595
        %v1628 = vmul.f32 %v1547, %v1596
        %v1629 = vmul.f32 %v1546, %v1597
        %v1630 = vmul.f32 %v1545, %v1598
        %v1631 = vmul.f32 %v1544, %v1599
        %v1632 = vmul.f32 %v1543, %v1600
        %v1633 = vmul.f32 %v1542, %v1601
        %v1634 = vmul.f32 %v1541, %v1602
        %v1635 = vpack.c.bf16 %v1603, %v1603
        %v1636 = vpack.c.bf16 %v1604, %v1604
        %v1637 = vpack.c.bf16 %v1605, %v1605
        %v1638 = vpack.c.bf16 %v1606, %v1606
        %v1639 = vpack.c.bf16 %v1607, %v1607
        %v1640 = vpack.c.bf16 %v1608, %v1608
        %v1641 = vpack.c.bf16 %v1609, %v1609
        %v1642 = vpack.c.bf16 %v1610, %v1610
        %v1643 = vpack.c.bf16 %v1611, %v1611
        %v1644 = vpack.c.bf16 %v1612, %v1612
        %v1645 = vpack.c.bf16 %v1613, %v1613
        %v1646 = vpack.c.bf16 %v1614, %v1614
        %v1647 = vpack.c.bf16 %v1615, %v1615
        %v1648 = vpack.c.bf16 %v1616, %v1616
        %v1649 = vpack.c.bf16 %v1617, %v1617
        %v1650 = vpack.c.bf16 %v1618, %v1618
        %v1651 = vpack.c.bf16 %v1619, %v1619
        %v1652 = vpack.c.bf16 %v1620, %v1620
        %v1653 = vpack.c.bf16 %v1621, %v1621
        %v1654 = vpack.c.bf16 %v1622, %v1622
        %v1655 = vpack.c.bf16 %v1623, %v1623
        %v1656 = vpack.c.bf16 %v1624, %v1624
        %v1657 = vpack.c.bf16 %v1625, %v1625
        %v1658 = vpack.c.bf16 %v1626, %v1626
        %v1659 = vpack.c.bf16 %v1627, %v1627
        %v1660 = vpack.c.bf16 %v1628, %v1628
        %v1661 = vpack.c.bf16 %v1629, %v1629
        %v1662 = vpack.c.bf16 %v1630, %v1630
        %v1663 = vpack.c.bf16 %v1631, %v1631
        %v1664 = vpack.c.bf16 %v1632, %v1632
        %v1665 = vpack.c.bf16 %v1633, %v1633
        %v1666 = vpack.c.bf16 %v1634, %v1634
        %1667 = vst [vmem:[#allocation2] sm:$0xf] %v1635
        %1668 = vst [vmem:[#allocation2 + $0x24] sm:$0xf] %v1636
        %1669 = vst [vmem:[#allocation2 + $0x48] sm:$0xf] %v1637
        %1670 = vst [vmem:[#allocation2 + $0x6c] sm:$0xf] %v1638
        %1671 = vst [vmem:[#allocation2 + $0x90] sm:$0xf] %v1639
        %1672 = vst [vmem:[#allocation2 + $0xb4] sm:$0xf] %v1640
        %1673 = vst [vmem:[#allocation2 + $0xd8] sm:$0xf] %v1641
        %1674 = vst [vmem:[#allocation2 + $0xfc] sm:$0xf] %v1642
        %1675 = vst [vmem:[#allocation2 + $0x120] sm:$0xf] %v1643
        %1676 = vst [vmem:[#allocation2 + $0x144] sm:$0xf] %v1644
        %1677 = vst [vmem:[#allocation2 + $0x168] sm:$0xf] %v1645
        %1678 = vst [vmem:[#allocation2 + $0x18c] sm:$0xf] %v1646
        %1679 = vst [vmem:[#allocation2 + $0x1b0] sm:$0xf] %v1647
        %1680 = vst [vmem:[#allocation2 + $0x1d4] sm:$0xf] %v1648
        %1681 = vst [vmem:[#allocation2 + $0x1f8] sm:$0xf] %v1649
        %1682 = vst [vmem:[#allocation2 + $0x21c] sm:$0xf] %v1650
        %1683 = vst [vmem:[#allocation2 + $0x240] sm:$0xf] %v1651
        %1684 = vst [vmem:[#allocation2 + $0x264] sm:$0xf] %v1652
        %1685 = vst [vmem:[#allocation2 + $0x288] sm:$0xf] %v1653
        %1686 = vst [vmem:[#allocation2 + $0x2ac] sm:$0xf] %v1654
        %1687 = vst [vmem:[#allocation2 + $0x2d0] sm:$0xf] %v1655
        %1688 = vst [vmem:[#allocation2 + $0x2f4] sm:$0xf] %v1656
        %1689 = vst [vmem:[#allocation2 + $0x318] sm:$0xf] %v1657
        %1690 = vst [vmem:[#allocation2 + $0x33c] sm:$0xf] %v1658
        %1691 = vst [vmem:[#allocation2 + $0x360] sm:$0xf] %v1659
        %1692 = vst [vmem:[#allocation2 + $0x384] sm:$0xf] %v1660
        %1693 = vst [vmem:[#allocation2 + $0x3a8] sm:$0xf] %v1661
        %1694 = vst [vmem:[#allocation2 + $0x3cc] sm:$0xf] %v1662
        %1695 = vst [vmem:[#allocation2 + $0x3f0] sm:$0xf] %v1663
        %1696 = vst [vmem:[#allocation2 + $0x414] sm:$0xf] %v1664
        %1697 = vst [vmem:[#allocation2 + $0x438] sm:$0xf] %v1665
        %1698 = vst [vmem:[#allocation2 + $0x45c] sm:$0xf] %v1666
        %v1699 = vmul.f32 %v703, %v1186
        %v1700 = vmul.f32 %v704, %v1187
        %v1701 = vmul.f32 %v673, %v1188
        %v1702 = vmul.f32 %v674, %v1189
        %v1703 = vmul.f32 %v675, %v1190
        %v1704 = vmul.f32 %v676, %v1191
        %v1705 = vmul.f32 %v677, %v1192
        %v1706 = vmul.f32 %v678, %v1193
        %v1707 = vmul.f32 %v679, %v1194
        %v1708 = vmul.f32 %v680, %v1195
        %v1709 = vmul.f32 %v681, %v1196
        %v1710 = vmul.f32 %v682, %v1197
        %v1711 = vmul.f32 %v683, %v1198
        %v1712 = vmul.f32 %v684, %v1199
        %v1713 = vmul.f32 %v685, %v1200
        %v1714 = vmul.f32 %v686, %v1201
        %v1715 = vmul.f32 %v687, %v1202
        %v1716 = vmul.f32 %v688, %v1203
        %v1717 = vmul.f32 %v689, %v1204
        %v1718 = vmul.f32 %v690, %v1205
        %v1719 = vmul.f32 %v691, %v1206
        %v1720 = vmul.f32 %v692, %v1207
        %v1721 = vmul.f32 %v693, %v1208
        %v1722 = vmul.f32 %v694, %v1209
        %v1723 = vmul.f32 %v695, %v1210
        %v1724 = vmul.f32 %v696, %v1211
        %v1725 = vmul.f32 %v697, %v1212
        %v1726 = vmul.f32 %v698, %v1213
        %v1727 = vmul.f32 %v699, %v1214
        %v1728 = vmul.f32 %v700, %v1215
        %v1729 = vmul.f32 %v701, %v1216
        %v1730 = vmul.f32 %v702, %v1217
        %v1731 = vpack.c.bf16 %v1699, %v1699
        %v1732 = vpack.c.bf16 %v1700, %v1700
        %v1733 = vpack.c.bf16 %v1701, %v1701
        %v1734 = vpack.c.bf16 %v1702, %v1702
        %v1735 = vpack.c.bf16 %v1703, %v1703
        %v1736 = vpack.c.bf16 %v1704, %v1704
        %v1737 = vpack.c.bf16 %v1705, %v1705
        %v1738 = vpack.c.bf16 %v1706, %v1706
        %v1739 = vpack.c.bf16 %v1707, %v1707
        %v1740 = vpack.c.bf16 %v1708, %v1708
        %v1741 = vpack.c.bf16 %v1709, %v1709
        %v1742 = vpack.c.bf16 %v1710, %v1710
        %v1743 = vpack.c.bf16 %v1711, %v1711
        %v1744 = vpack.c.bf16 %v1712, %v1712
        %v1745 = vpack.c.bf16 %v1713, %v1713
        %v1746 = vpack.c.bf16 %v1714, %v1714
        %v1747 = vpack.c.bf16 %v1715, %v1715
        %v1748 = vpack.c.bf16 %v1716, %v1716
        %v1749 = vpack.c.bf16 %v1717, %v1717
        %v1750 = vpack.c.bf16 %v1718, %v1718
        %v1751 = vpack.c.bf16 %v1719, %v1719
        %v1752 = vpack.c.bf16 %v1720, %v1720
        %v1753 = vpack.c.bf16 %v1721, %v1721
        %v1754 = vpack.c.bf16 %v1722, %v1722
        %v1755 = vpack.c.bf16 %v1723, %v1723
        %v1756 = vpack.c.bf16 %v1724, %v1724
        %v1757 = vpack.c.bf16 %v1725, %v1725
        %v1758 = vpack.c.bf16 %v1726, %v1726
        %v1759 = vpack.c.bf16 %v1727, %v1727
        %v1760 = vpack.c.bf16 %v1728, %v1728
        %v1761 = vpack.c.bf16 %v1729, %v1729
        %v1762 = vpack.c.bf16 %v1730, %v1730
        %1763 = vst [vmem:[#allocation2 + $0x4] sm:$0xf] %v1731
        %1764 = vst [vmem:[#allocation2 + $0x28] sm:$0xf] %v1732
        %1765 = vst [vmem:[#allocation2 + $0x4c] sm:$0xf] %v1733
        %1766 = vst [vmem:[#allocation2 + $0x70] sm:$0xf] %v1734
        %1767 = vst [vmem:[#allocation2 + $0x94] sm:$0xf] %v1735
        %1768 = vst [vmem:[#allocation2 + $0xb8] sm:$0xf] %v1736
        %1769 = vst [vmem:[#allocation2 + $0xdc] sm:$0xf] %v1737
        %1770 = vst [vmem:[#allocation2 + $0x100] sm:$0xf] %v1738
        %1771 = vst [vmem:[#allocation2 + $0x124] sm:$0xf] %v1739
        %1772 = vst [vmem:[#allocation2 + $0x148] sm:$0xf] %v1740
        %1773 = vst [vmem:[#allocation2 + $0x16c] sm:$0xf] %v1741
        %1774 = vst [vmem:[#allocation2 + $0x190] sm:$0xf] %v1742
        %1775 = vst [vmem:[#allocation2 + $0x1b4] sm:$0xf] %v1743
        %1776 = vst [vmem:[#allocation2 + $0x1d8] sm:$0xf] %v1744
        %1777 = vst [vmem:[#allocation2 + $0x1fc] sm:$0xf] %v1745
        %1778 = vst [vmem:[#allocation2 + $0x220] sm:$0xf] %v1746
        %1779 = vst [vmem:[#allocation2 + $0x244] sm:$0xf] %v1747
        %1780 = vst [vmem:[#allocation2 + $0x268] sm:$0xf] %v1748
        %1781 = vst [vmem:[#allocation2 + $0x28c] sm:$0xf] %v1749
        %1782 = vst [vmem:[#allocation2 + $0x2b0] sm:$0xf] %v1750
        %1783 = vst [vmem:[#allocation2 + $0x2d4] sm:$0xf] %v1751
        %1784 = vst [vmem:[#allocation2 + $0x2f8] sm:$0xf] %v1752
        %1785 = vst [vmem:[#allocation2 + $0x31c] sm:$0xf] %v1753
        %1786 = vst [vmem:[#allocation2 + $0x340] sm:$0xf] %v1754
        %1787 = vst [vmem:[#allocation2 + $0x364] sm:$0xf] %v1755
        %1788 = vst [vmem:[#allocation2 + $0x388] sm:$0xf] %v1756
        %1789 = vst [vmem:[#allocation2 + $0x3ac] sm:$0xf] %v1757
        %1790 = vst [vmem:[#allocation2 + $0x3d0] sm:$0xf] %v1758
        %1791 = vst [vmem:[#allocation2 + $0x3f4] sm:$0xf] %v1759
        %1792 = vst [vmem:[#allocation2 + $0x418] sm:$0xf] %v1760
        %1793 = vst [vmem:[#allocation2 + $0x43c] sm:$0xf] %v1761
        %1794 = vst [vmem:[#allocation2 + $0x460] sm:$0xf] %v1762
        %v1795 = vrot.slane %v673, 1
        %v1796 = vrot.slane %v674, 1
        %v1797 = vrot.slane %v675, 1
        %v1798 = vrot.slane %v676, 1
        %v1799 = vrot.slane %v677, 1
        %v1800 = vrot.slane %v678, 1
        %v1801 = vrot.slane %v679, 1
        %v1802 = vrot.slane %v680, 1
        %v1803 = vrot.slane %v681, 1
        %v1804 = vrot.slane %v682, 1
        %v1805 = vrot.slane %v683, 1
        %v1806 = vrot.slane %v684, 1
        %v1807 = vrot.slane %v685, 1
        %v1808 = vrot.slane %v686, 1
        %v1809 = vrot.slane %v687, 1
        %v1810 = vrot.slane %v688, 1
        %v1811 = vrot.slane %v689, 1
        %v1812 = vrot.slane %v690, 1
        %v1813 = vrot.slane %v691, 1
        %v1814 = vrot.slane %v692, 1
        %v1815 = vrot.slane %v693, 1
        %v1816 = vrot.slane %v694, 1
        %v1817 = vrot.slane %v695, 1
        %v1818 = vrot.slane %v696, 1
        %v1819 = vrot.slane %v697, 1
        %v1820 = vrot.slane %v698, 1
        %v1821 = vrot.slane %v699, 1
        %v1822 = vrot.slane %v700, 1
        %v1823 = vrot.slane %v701, 1
        %v1824 = vrot.slane %v702, 1
        %v1825 = vrot.slane %v703, 1
        %v1826 = vrot.slane %v704, 1
        %vm1827 = vcmp.lt.s32.totalorder %v706, 7
        %v1828 = vsel %vm1827, %v1825, %v1826
        %v1829 = vsel %vm1827, %v1824, %v1825
        %v1830 = vsel %vm1827, %v1823, %v1824
        %v1831 = vsel %vm1827, %v1822, %v1823
        %v1832 = vsel %vm1827, %v1821, %v1822
        %v1833 = vsel %vm1827, %v1820, %v1821
        %v1834 = vsel %vm1827, %v1819, %v1820
        %v1835 = vsel %vm1827, %v1818, %v1819
        %v1836 = vsel %vm1827, %v1817, %v1818
        %v1837 = vsel %vm1827, %v1816, %v1817
        %v1838 = vsel %vm1827, %v1815, %v1816
        %v1839 = vsel %vm1827, %v1814, %v1815
        %v1840 = vsel %vm1827, %v1813, %v1814
        %v1841 = vsel %vm1827, %v1812, %v1813
        %v1842 = vsel %vm1827, %v1811, %v1812
        %v1843 = vsel %vm1827, %v1810, %v1811
        %v1844 = vsel %vm1827, %v1809, %v1810
        %v1845 = vsel %vm1827, %v1808, %v1809
        %v1846 = vsel %vm1827, %v1807, %v1808
        %v1847 = vsel %vm1827, %v1806, %v1807
        %v1848 = vsel %vm1827, %v1805, %v1806
        %v1849 = vsel %vm1827, %v1804, %v1805
        %v1850 = vsel %vm1827, %v1803, %v1804
        %v1851 = vsel %vm1827, %v1802, %v1803
        %v1852 = vsel %vm1827, %v1801, %v1802
        %v1853 = vsel %vm1827, %v1800, %v1801
        %v1854 = vsel %vm1827, %v1799, %v1800
        %v1855 = vsel %vm1827, %v1798, %v1799
        %v1856 = vsel %vm1827, %v1797, %v1798
        %v1857 = vsel %vm1827, %v1796, %v1797
        %v1858 = vsel %vm1827, %v1795, %v1796
        %v1859 = vsel %vm1827, %v1826, %v1795
        %v1860 = vmul.f32 %v1186, %v1474
        %v1861 = vmul.f32 %v1187, %v1475
        %v1862 = vmul.f32 %v1188, %v1476
        %v1863 = vmul.f32 %v1189, %v1477
        %v1864 = vmul.f32 %v1190, %v1478
        %v1865 = vmul.f32 %v1191, %v1479
        %v1866 = vmul.f32 %v1192, %v1480
        %v1867 = vmul.f32 %v1193, %v1481
        %v1868 = vmul.f32 %v1194, %v1482
        %v1869 = vmul.f32 %v1195, %v1483
        %v1870 = vmul.f32 %v1196, %v1484
        %v1871 = vmul.f32 %v1197, %v1485
        %v1872 = vmul.f32 %v1198, %v1486
        %v1873 = vmul.f32 %v1199, %v1487
        %v1874 = vmul.f32 %v1200, %v1488
        %v1875 = vmul.f32 %v1201, %v1489
        %v1876 = vmul.f32 %v1202, %v1490
        %v1877 = vmul.f32 %v1203, %v1491
        %v1878 = vmul.f32 %v1204, %v1492
        %v1879 = vmul.f32 %v1205, %v1493
        %v1880 = vmul.f32 %v1206, %v1494
        %v1881 = vmul.f32 %v1207, %v1495
        %v1882 = vmul.f32 %v1208, %v1496
        %v1883 = vmul.f32 %v1209, %v1497
        %v1884 = vmul.f32 %v1210, %v1498
        %v1885 = vmul.f32 %v1211, %v1499
        %v1886 = vmul.f32 %v1212, %v1500
        %v1887 = vmul.f32 %v1213, %v1501
        %v1888 = vmul.f32 %v1214, %v1502
        %v1889 = vmul.f32 %v1215, %v1503
        %v1890 = vmul.f32 %v1216, %v1504
        %v1891 = vmul.f32 %v1217, %v1505
        %v1892 = vmul.f32 %v1828, %v1860
        %v1893 = vmul.f32 %v1859, %v1861
        %v1894 = vmul.f32 %v1858, %v1862
        %v1895 = vmul.f32 %v1857, %v1863
        %v1896 = vmul.f32 %v1856, %v1864
        %v1897 = vmul.f32 %v1855, %v1865
        %v1898 = vmul.f32 %v1854, %v1866
        %v1899 = vmul.f32 %v1853, %v1867
        %v1900 = vmul.f32 %v1852, %v1868
        %v1901 = vmul.f32 %v1851, %v1869
        %v1902 = vmul.f32 %v1850, %v1870
        %v1903 = vmul.f32 %v1849, %v1871
        %v1904 = vmul.f32 %v1848, %v1872
        %v1905 = vmul.f32 %v1847, %v1873
        %v1906 = vmul.f32 %v1846, %v1874
        %v1907 = vmul.f32 %v1845, %v1875
        %v1908 = vmul.f32 %v1844, %v1876
        %v1909 = vmul.f32 %v1843, %v1877
        %v1910 = vmul.f32 %v1842, %v1878
        %v1911 = vmul.f32 %v1841, %v1879
        %v1912 = vmul.f32 %v1840, %v1880
        %v1913 = vmul.f32 %v1839, %v1881
        %v1914 = vmul.f32 %v1838, %v1882
        %v1915 = vmul.f32 %v1837, %v1883
        %v1916 = vmul.f32 %v1836, %v1884
        %v1917 = vmul.f32 %v1835, %v1885
        %v1918 = vmul.f32 %v1834, %v1886
        %v1919 = vmul.f32 %v1833, %v1887
        %v1920 = vmul.f32 %v1832, %v1888
        %v1921 = vmul.f32 %v1831, %v1889
        %v1922 = vmul.f32 %v1830, %v1890
        %v1923 = vmul.f32 %v1829, %v1891
        %v1924 = vpack.c.bf16 %v1892, %v1892
        %v1925 = vpack.c.bf16 %v1893, %v1893
        %v1926 = vpack.c.bf16 %v1894, %v1894
        %v1927 = vpack.c.bf16 %v1895, %v1895
        %v1928 = vpack.c.bf16 %v1896, %v1896
        %v1929 = vpack.c.bf16 %v1897, %v1897
        %v1930 = vpack.c.bf16 %v1898, %v1898
        %v1931 = vpack.c.bf16 %v1899, %v1899
        %v1932 = vpack.c.bf16 %v1900, %v1900
        %v1933 = vpack.c.bf16 %v1901, %v1901
        %v1934 = vpack.c.bf16 %v1902, %v1902
        %v1935 = vpack.c.bf16 %v1903, %v1903
        %v1936 = vpack.c.bf16 %v1904, %v1904
        %v1937 = vpack.c.bf16 %v1905, %v1905
        %v1938 = vpack.c.bf16 %v1906, %v1906
        %v1939 = vpack.c.bf16 %v1907, %v1907
        %v1940 = vpack.c.bf16 %v1908, %v1908
        %v1941 = vpack.c.bf16 %v1909, %v1909
        %v1942 = vpack.c.bf16 %v1910, %v1910
        %v1943 = vpack.c.bf16 %v1911, %v1911
        %v1944 = vpack.c.bf16 %v1912, %v1912
        %v1945 = vpack.c.bf16 %v1913, %v1913
        %v1946 = vpack.c.bf16 %v1914, %v1914
        %v1947 = vpack.c.bf16 %v1915, %v1915
        %v1948 = vpack.c.bf16 %v1916, %v1916
        %v1949 = vpack.c.bf16 %v1917, %v1917
        %v1950 = vpack.c.bf16 %v1918, %v1918
        %v1951 = vpack.c.bf16 %v1919, %v1919
        %v1952 = vpack.c.bf16 %v1920, %v1920
        %v1953 = vpack.c.bf16 %v1921, %v1921
        %v1954 = vpack.c.bf16 %v1922, %v1922
        %v1955 = vpack.c.bf16 %v1923, %v1923
        %1956 = vst [vmem:[#allocation2 + $0x8] sm:$0xf] %v1924
        %1957 = vst [vmem:[#allocation2 + $0x2c] sm:$0xf] %v1925
        %1958 = vst [vmem:[#allocation2 + $0x50] sm:$0xf] %v1926
        %1959 = vst [vmem:[#allocation2 + $0x74] sm:$0xf] %v1927
        %1960 = vst [vmem:[#allocation2 + $0x98] sm:$0xf] %v1928
        %1961 = vst [vmem:[#allocation2 + $0xbc] sm:$0xf] %v1929
        %1962 = vst [vmem:[#allocation2 + $0xe0] sm:$0xf] %v1930
        %1963 = vst [vmem:[#allocation2 + $0x104] sm:$0xf] %v1931
        %1964 = vst [vmem:[#allocation2 + $0x128] sm:$0xf] %v1932
        %1965 = vst [vmem:[#allocation2 + $0x14c] sm:$0xf] %v1933
        %1966 = vst [vmem:[#allocation2 + $0x170] sm:$0xf] %v1934
        %1967 = vst [vmem:[#allocation2 + $0x194] sm:$0xf] %v1935
        %1968 = vst [vmem:[#allocation2 + $0x1b8] sm:$0xf] %v1936
        %1969 = vst [vmem:[#allocation2 + $0x1dc] sm:$0xf] %v1937
        %1970 = vst [vmem:[#allocation2 + $0x200] sm:$0xf] %v1938
        %1971 = vst [vmem:[#allocation2 + $0x224] sm:$0xf] %v1939
        %1972 = vst [vmem:[#allocation2 + $0x248] sm:$0xf] %v1940
        %1973 = vst [vmem:[#allocation2 + $0x26c] sm:$0xf] %v1941
        %1974 = vst [vmem:[#allocation2 + $0x290] sm:$0xf] %v1942
        %1975 = vst [vmem:[#allocation2 + $0x2b4] sm:$0xf] %v1943
        %1976 = vst [vmem:[#allocation2 + $0x2d8] sm:$0xf] %v1944
        %1977 = vst [vmem:[#allocation2 + $0x2fc] sm:$0xf] %v1945
        %1978 = vst [vmem:[#allocation2 + $0x320] sm:$0xf] %v1946
        %1979 = vst [vmem:[#allocation2 + $0x344] sm:$0xf] %v1947
        %1980 = vst [vmem:[#allocation2 + $0x368] sm:$0xf] %v1948
        %1981 = vst [vmem:[#allocation2 + $0x38c] sm:$0xf] %v1949
        %1982 = vst [vmem:[#allocation2 + $0x3b0] sm:$0xf] %v1950
        %1983 = vst [vmem:[#allocation2 + $0x3d4] sm:$0xf] %v1951
        %1984 = vst [vmem:[#allocation2 + $0x3f8] sm:$0xf] %v1952
        %1985 = vst [vmem:[#allocation2 + $0x41c] sm:$0xf] %v1953
        %1986 = vst [vmem:[#allocation2 + $0x440] sm:$0xf] %v1954
        %1987 = vst [vmem:[#allocation2 + $0x464] sm:$0xf] %v1955
        %v1988 = vmul.f32 %v1570, %v1378
        %v1989 = vmul.f32 %v1569, %v1379
        %v1990 = vmul.f32 %v1568, %v1380
        %v1991 = vmul.f32 %v1567, %v1381
        %v1992 = vmul.f32 %v1566, %v1382
        %v1993 = vmul.f32 %v1565, %v1383
        %v1994 = vmul.f32 %v1564, %v1384
        %v1995 = vmul.f32 %v1563, %v1385
        %v1996 = vmul.f32 %v1562, %v1386
        %v1997 = vmul.f32 %v1561, %v1387
        %v1998 = vmul.f32 %v1560, %v1388
        %v1999 = vmul.f32 %v1559, %v1389
        %v2000 = vmul.f32 %v1558, %v1390
        %v2001 = vmul.f32 %v1557, %v1391
        %v2002 = vmul.f32 %v1556, %v1392
        %v2003 = vmul.f32 %v1555, %v1393
        %v2004 = vmul.f32 %v1554, %v1394
        %v2005 = vmul.f32 %v1553, %v1395
        %v2006 = vmul.f32 %v1552, %v1396
        %v2007 = vmul.f32 %v1551, %v1397
        %v2008 = vmul.f32 %v1550, %v1398
        %v2009 = vmul.f32 %v1549, %v1399
        %v2010 = vmul.f32 %v1548, %v1400
        %v2011 = vmul.f32 %v1547, %v1401
        %v2012 = vmul.f32 %v1546, %v1402
        %v2013 = vmul.f32 %v1545, %v1403
        %v2014 = vmul.f32 %v1544, %v1404
        %v2015 = vmul.f32 %v1543, %v1405
        %v2016 = vmul.f32 %v1542, %v1406
        %v2017 = vmul.f32 %v1541, %v1407
        %v2018 = vmul.f32 %v1540, %v1408
        %v2019 = vmul.f32 %v1539, %v1409
        %v2020 = vpack.c.bf16 %v1988, %v1988
        %v2021 = vpack.c.bf16 %v1989, %v1989
        %v2022 = vpack.c.bf16 %v1990, %v1990
        %v2023 = vpack.c.bf16 %v1991, %v1991
        %v2024 = vpack.c.bf16 %v1992, %v1992
        %v2025 = vpack.c.bf16 %v1993, %v1993
        %v2026 = vpack.c.bf16 %v1994, %v1994
        %v2027 = vpack.c.bf16 %v1995, %v1995
        %v2028 = vpack.c.bf16 %v1996, %v1996
        %v2029 = vpack.c.bf16 %v1997, %v1997
        %v2030 = vpack.c.bf16 %v1998, %v1998
        %v2031 = vpack.c.bf16 %v1999, %v1999
        %v2032 = vpack.c.bf16 %v2000, %v2000
        %v2033 = vpack.c.bf16 %v2001, %v2001
        %v2034 = vpack.c.bf16 %v2002, %v2002
        %v2035 = vpack.c.bf16 %v2003, %v2003
        %v2036 = vpack.c.bf16 %v2004, %v2004
        %v2037 = vpack.c.bf16 %v2005, %v2005
        %v2038 = vpack.c.bf16 %v2006, %v2006
        %v2039 = vpack.c.bf16 %v2007, %v2007
        %v2040 = vpack.c.bf16 %v2008, %v2008
        %v2041 = vpack.c.bf16 %v2009, %v2009
        %v2042 = vpack.c.bf16 %v2010, %v2010
        %v2043 = vpack.c.bf16 %v2011, %v2011
        %v2044 = vpack.c.bf16 %v2012, %v2012
        %v2045 = vpack.c.bf16 %v2013, %v2013
        %v2046 = vpack.c.bf16 %v2014, %v2014
        %v2047 = vpack.c.bf16 %v2015, %v2015
        %v2048 = vpack.c.bf16 %v2016, %v2016
        %v2049 = vpack.c.bf16 %v2017, %v2017
        %v2050 = vpack.c.bf16 %v2018, %v2018
        %v2051 = vpack.c.bf16 %v2019, %v2019
        %2052 = vst [vmem:[#allocation2 + $0xc] sm:$0xf] %v2020
        %2053 = vst [vmem:[#allocation2 + $0x30] sm:$0xf] %v2021
        %2054 = vst [vmem:[#allocation2 + $0x54] sm:$0xf] %v2022
        %2055 = vst [vmem:[#allocation2 + $0x78] sm:$0xf] %v2023
        %2056 = vst [vmem:[#allocation2 + $0x9c] sm:$0xf] %v2024
        %2057 = vst [vmem:[#allocation2 + $0xc0] sm:$0xf] %v2025
        %2058 = vst [vmem:[#allocation2 + $0xe4] sm:$0xf] %v2026
        %2059 = vst [vmem:[#allocation2 + $0x108] sm:$0xf] %v2027
        %2060 = vst [vmem:[#allocation2 + $0x12c] sm:$0xf] %v2028
        %2061 = vst [vmem:[#allocation2 + $0x150] sm:$0xf] %v2029
        %2062 = vst [vmem:[#allocation2 + $0x174] sm:$0xf] %v2030
        %2063 = vst [vmem:[#allocation2 + $0x198] sm:$0xf] %v2031
        %2064 = vst [vmem:[#allocation2 + $0x1bc] sm:$0xf] %v2032
        %2065 = vst [vmem:[#allocation2 + $0x1e0] sm:$0xf] %v2033
        %2066 = vst [vmem:[#allocation2 + $0x204] sm:$0xf] %v2034
        %2067 = vst [vmem:[#allocation2 + $0x228] sm:$0xf] %v2035
        %2068 = vst [vmem:[#allocation2 + $0x24c] sm:$0xf] %v2036
        %2069 = vst [vmem:[#allocation2 + $0x270] sm:$0xf] %v2037
        %2070 = vst [vmem:[#allocation2 + $0x294] sm:$0xf] %v2038
        %2071 = vst [vmem:[#allocation2 + $0x2b8] sm:$0xf] %v2039
        %2072 = vst [vmem:[#allocation2 + $0x2dc] sm:$0xf] %v2040
        %2073 = vst [vmem:[#allocation2 + $0x300] sm:$0xf] %v2041
        %2074 = vst [vmem:[#allocation2 + $0x324] sm:$0xf] %v2042
        %2075 = vst [vmem:[#allocation2 + $0x348] sm:$0xf] %v2043
        %2076 = vst [vmem:[#allocation2 + $0x36c] sm:$0xf] %v2044
        %2077 = vst [vmem:[#allocation2 + $0x390] sm:$0xf] %v2045
        %2078 = vst [vmem:[#allocation2 + $0x3b4] sm:$0xf] %v2046
        %2079 = vst [vmem:[#allocation2 + $0x3d8] sm:$0xf] %v2047
        %2080 = vst [vmem:[#allocation2 + $0x3fc] sm:$0xf] %v2048
        %2081 = vst [vmem:[#allocation2 + $0x420] sm:$0xf] %v2049
        %2082 = vst [vmem:[#allocation2 + $0x444] sm:$0xf] %v2050
        %2083 = vst [vmem:[#allocation2 + $0x468] sm:$0xf] %v2051
        %2084 = vst [vmem:[#allocation2 + $0x10] sm:$0xf] %v641
        %2085 = vst [vmem:[#allocation2 + $0x34] sm:$0xf] %v642
        %2086 = vst [vmem:[#allocation2 + $0x58] sm:$0xf] %v643
        %2087 = vst [vmem:[#allocation2 + $0x7c] sm:$0xf] %v644
        %2088 = vst [vmem:[#allocation2 + $0xa0] sm:$0xf] %v645
        %2089 = vst [vmem:[#allocation2 + $0xc4] sm:$0xf] %v646
        %2090 = vst [vmem:[#allocation2 + $0xe8] sm:$0xf] %v647
        %2091 = vst [vmem:[#allocation2 + $0x10c] sm:$0xf] %v648
        %2092 = vst [vmem:[#allocation2 + $0x130] sm:$0xf] %v649
        %2093 = vst [vmem:[#allocation2 + $0x154] sm:$0xf] %v650
        %2094 = vst [vmem:[#allocation2 + $0x178] sm:$0xf] %v651
        %2095 = vst [vmem:[#allocation2 + $0x19c] sm:$0xf] %v652
        %2096 = vst [vmem:[#allocation2 + $0x1c0] sm:$0xf] %v653
        %2097 = vst [vmem:[#allocation2 + $0x1e4] sm:$0xf] %v654
        %2098 = vst [vmem:[#allocation2 + $0x208] sm:$0xf] %v655
        %2099 = vst [vmem:[#allocation2 + $0x22c] sm:$0xf] %v656
        %2100 = vst [vmem:[#allocation2 + $0x250] sm:$0xf] %v657
        %2101 = vst [vmem:[#allocation2 + $0x274] sm:$0xf] %v658
        %2102 = vst [vmem:[#allocation2 + $0x298] sm:$0xf] %v659
        %2103 = vst [vmem:[#allocation2 + $0x2bc] sm:$0xf] %v660
        %2104 = vst [vmem:[#allocation2 + $0x2e0] sm:$0xf] %v661
        %2105 = vst [vmem:[#allocation2 + $0x304] sm:$0xf] %v662
        %2106 = vst [vmem:[#allocation2 + $0x328] sm:$0xf] %v663
        %2107 = vst [vmem:[#allocation2 + $0x34c] sm:$0xf] %v664
        %2108 = vst [vmem:[#allocation2 + $0x370] sm:$0xf] %v665
        %2109 = vst [vmem:[#allocation2 + $0x394] sm:$0xf] %v666
        %2110 = vst [vmem:[#allocation2 + $0x3b8] sm:$0xf] %v667
        %2111 = vst [vmem:[#allocation2 + $0x3dc] sm:$0xf] %v668
        %2112 = vst [vmem:[#allocation2 + $0x400] sm:$0xf] %v669
        %2113 = vst [vmem:[#allocation2 + $0x424] sm:$0xf] %v670
        %2114 = vst [vmem:[#allocation2 + $0x448] sm:$0xf] %v671
        %2115 = vst [vmem:[#allocation2 + $0x46c] sm:$0xf] %v672
        %v2116 = vmul.f32 %v1858, %v1474
        %v2117 = vmul.f32 %v1857, %v1475
        %v2118 = vmul.f32 %v1856, %v1476
        %v2119 = vmul.f32 %v1855, %v1477
        %v2120 = vmul.f32 %v1854, %v1478
        %v2121 = vmul.f32 %v1853, %v1479
        %v2122 = vmul.f32 %v1852, %v1480
        %v2123 = vmul.f32 %v1851, %v1481
        %v2124 = vmul.f32 %v1850, %v1482
        %v2125 = vmul.f32 %v1849, %v1483
        %v2126 = vmul.f32 %v1848, %v1484
        %v2127 = vmul.f32 %v1847, %v1485
        %v2128 = vmul.f32 %v1846, %v1486
        %v2129 = vmul.f32 %v1845, %v1487
        %v2130 = vmul.f32 %v1844, %v1488
        %v2131 = vmul.f32 %v1843, %v1489
        %v2132 = vmul.f32 %v1842, %v1490
        %v2133 = vmul.f32 %v1841, %v1491
        %v2134 = vmul.f32 %v1840, %v1492
        %v2135 = vmul.f32 %v1839, %v1493
        %v2136 = vmul.f32 %v1838, %v1494
        %v2137 = vmul.f32 %v1837, %v1495
        %v2138 = vmul.f32 %v1836, %v1496
        %v2139 = vmul.f32 %v1835, %v1497
        %v2140 = vmul.f32 %v1834, %v1498
        %v2141 = vmul.f32 %v1833, %v1499
        %v2142 = vmul.f32 %v1832, %v1500
        %v2143 = vmul.f32 %v1831, %v1501
        %v2144 = vmul.f32 %v1830, %v1502
        %v2145 = vmul.f32 %v1829, %v1503
        %v2146 = vmul.f32 %v1828, %v1504
        %v2147 = vmul.f32 %v1859, %v1505
        %v2148 = vpack.c.bf16 %v2116, %v2116
        %v2149 = vpack.c.bf16 %v2117, %v2117
        %v2150 = vpack.c.bf16 %v2118, %v2118
        %v2151 = vpack.c.bf16 %v2119, %v2119
        %v2152 = vpack.c.bf16 %v2120, %v2120
        %v2153 = vpack.c.bf16 %v2121, %v2121
        %v2154 = vpack.c.bf16 %v2122, %v2122
        %v2155 = vpack.c.bf16 %v2123, %v2123
        %v2156 = vpack.c.bf16 %v2124, %v2124
        %v2157 = vpack.c.bf16 %v2125, %v2125
        %v2158 = vpack.c.bf16 %v2126, %v2126
        %v2159 = vpack.c.bf16 %v2127, %v2127
        %v2160 = vpack.c.bf16 %v2128, %v2128
        %v2161 = vpack.c.bf16 %v2129, %v2129
        %v2162 = vpack.c.bf16 %v2130, %v2130
        %v2163 = vpack.c.bf16 %v2131, %v2131
        %v2164 = vpack.c.bf16 %v2132, %v2132
        %v2165 = vpack.c.bf16 %v2133, %v2133
        %v2166 = vpack.c.bf16 %v2134, %v2134
        %v2167 = vpack.c.bf16 %v2135, %v2135
        %v2168 = vpack.c.bf16 %v2136, %v2136
        %v2169 = vpack.c.bf16 %v2137, %v2137
        %v2170 = vpack.c.bf16 %v2138, %v2138
        %v2171 = vpack.c.bf16 %v2139, %v2139
        %v2172 = vpack.c.bf16 %v2140, %v2140
        %v2173 = vpack.c.bf16 %v2141, %v2141
        %v2174 = vpack.c.bf16 %v2142, %v2142
        %v2175 = vpack.c.bf16 %v2143, %v2143
        %v2176 = vpack.c.bf16 %v2144, %v2144
        %v2177 = vpack.c.bf16 %v2145, %v2145
        %v2178 = vpack.c.bf16 %v2146, %v2146
        %v2179 = vpack.c.bf16 %v2147, %v2147
        %2180 = vst [vmem:[#allocation2 + $0x14] sm:$0xf] %v2148
        %2181 = vst [vmem:[#allocation2 + $0x38] sm:$0xf] %v2149
        %2182 = vst [vmem:[#allocation2 + $0x5c] sm:$0xf] %v2150
        %2183 = vst [vmem:[#allocation2 + $0x80] sm:$0xf] %v2151
        %2184 = vst [vmem:[#allocation2 + $0xa4] sm:$0xf] %v2152
        %2185 = vst [vmem:[#allocation2 + $0xc8] sm:$0xf] %v2153
        %2186 = vst [vmem:[#allocation2 + $0xec] sm:$0xf] %v2154
        %2187 = vst [vmem:[#allocation2 + $0x110] sm:$0xf] %v2155
        %2188 = vst [vmem:[#allocation2 + $0x134] sm:$0xf] %v2156
        %2189 = vst [vmem:[#allocation2 + $0x158] sm:$0xf] %v2157
        %2190 = vst [vmem:[#allocation2 + $0x17c] sm:$0xf] %v2158
        %2191 = vst [vmem:[#allocation2 + $0x1a0] sm:$0xf] %v2159
        %2192 = vst [vmem:[#allocation2 + $0x1c4] sm:$0xf] %v2160
        %2193 = vst [vmem:[#allocation2 + $0x1e8] sm:$0xf] %v2161
        %2194 = vst [vmem:[#allocation2 + $0x20c] sm:$0xf] %v2162
        %2195 = vst [vmem:[#allocation2 + $0x230] sm:$0xf] %v2163
        %2196 = vst [vmem:[#allocation2 + $0x254] sm:$0xf] %v2164
        %2197 = vst [vmem:[#allocation2 + $0x278] sm:$0xf] %v2165
        %2198 = vst [vmem:[#allocation2 + $0x29c] sm:$0xf] %v2166
        %2199 = vst [vmem:[#allocation2 + $0x2c0] sm:$0xf] %v2167
        %2200 = vst [vmem:[#allocation2 + $0x2e4] sm:$0xf] %v2168
        %2201 = vst [vmem:[#allocation2 + $0x308] sm:$0xf] %v2169
        %2202 = vst [vmem:[#allocation2 + $0x32c] sm:$0xf] %v2170
        %2203 = vst [vmem:[#allocation2 + $0x350] sm:$0xf] %v2171
        %2204 = vst [vmem:[#allocation2 + $0x374] sm:$0xf] %v2172
        %2205 = vst [vmem:[#allocation2 + $0x398] sm:$0xf] %v2173
        %2206 = vst [vmem:[#allocation2 + $0x3bc] sm:$0xf] %v2174
        %2207 = vst [vmem:[#allocation2 + $0x3e0] sm:$0xf] %v2175
        %2208 = vst [vmem:[#allocation2 + $0x404] sm:$0xf] %v2176
        %2209 = vst [vmem:[#allocation2 + $0x428] sm:$0xf] %v2177
        %2210 = vst [vmem:[#allocation2 + $0x44c] sm:$0xf] %v2178
        %2211 = vst [vmem:[#allocation2 + $0x470] sm:$0xf] %v2179
        %v2212 = vmul.f32 %v1282, %v1378
        %v2213 = vmul.f32 %v1283, %v1379
        %v2214 = vmul.f32 %v1284, %v1380
        %v2215 = vmul.f32 %v1285, %v1381
        %v2216 = vmul.f32 %v1286, %v1382
        %v2217 = vmul.f32 %v1287, %v1383
        %v2218 = vmul.f32 %v1288, %v1384
        %v2219 = vmul.f32 %v1289, %v1385
        %v2220 = vmul.f32 %v1290, %v1386
        %v2221 = vmul.f32 %v1291, %v1387
        %v2222 = vmul.f32 %v1292, %v1388
        %v2223 = vmul.f32 %v1293, %v1389
        %v2224 = vmul.f32 %v1294, %v1390
        %v2225 = vmul.f32 %v1295, %v1391
        %v2226 = vmul.f32 %v1296, %v1392
        %v2227 = vmul.f32 %v1297, %v1393
        %v2228 = vmul.f32 %v1298, %v1394
        %v2229 = vmul.f32 %v1299, %v1395
        %v2230 = vmul.f32 %v1300, %v1396
        %v2231 = vmul.f32 %v1301, %v1397
        %v2232 = vmul.f32 %v1302, %v1398
        %v2233 = vmul.f32 %v1303, %v1399
        %v2234 = vmul.f32 %v1304, %v1400
        %v2235 = vmul.f32 %v1305, %v1401
        %v2236 = vmul.f32 %v1306, %v1402
        %v2237 = vmul.f32 %v1307, %v1403
        %v2238 = vmul.f32 %v1308, %v1404
        %v2239 = vmul.f32 %v1309, %v1405
        %v2240 = vmul.f32 %v1310, %v1406
        %v2241 = vmul.f32 %v1311, %v1407
        %v2242 = vmul.f32 %v1312, %v1408
        %v2243 = vmul.f32 %v1313, %v1409
        %v2244 = vmul.f32 %v1568, %v2212
        %v2245 = vmul.f32 %v1567, %v2213
        %v2246 = vmul.f32 %v1566, %v2214
        %v2247 = vmul.f32 %v1565, %v2215
        %v2248 = vmul.f32 %v1564, %v2216
        %v2249 = vmul.f32 %v1563, %v2217
        %v2250 = vmul.f32 %v1562, %v2218
        %v2251 = vmul.f32 %v1561, %v2219
        %v2252 = vmul.f32 %v1560, %v2220
        %v2253 = vmul.f32 %v1559, %v2221
        %v2254 = vmul.f32 %v1558, %v2222
        %v2255 = vmul.f32 %v1557, %v2223
        %v2256 = vmul.f32 %v1556, %v2224
        %v2257 = vmul.f32 %v1555, %v2225
        %v2258 = vmul.f32 %v1554, %v2226
        %v2259 = vmul.f32 %v1553, %v2227
        %v2260 = vmul.f32 %v1552, %v2228
        %v2261 = vmul.f32 %v1551, %v2229
        %v2262 = vmul.f32 %v1550, %v2230
        %v2263 = vmul.f32 %v1549, %v2231
        %v2264 = vmul.f32 %v1548, %v2232
        %v2265 = vmul.f32 %v1547, %v2233
        %v2266 = vmul.f32 %v1546, %v2234
        %v2267 = vmul.f32 %v1545, %v2235
        %v2268 = vmul.f32 %v1544, %v2236
        %v2269 = vmul.f32 %v1543, %v2237
        %v2270 = vmul.f32 %v1542, %v2238
        %v2271 = vmul.f32 %v1541, %v2239
        %v2272 = vmul.f32 %v1540, %v2240
        %v2273 = vmul.f32 %v1539, %v2241
        %v2274 = vmul.f32 %v1570, %v2242
        %v2275 = vmul.f32 %v1569, %v2243
        %v2276 = vpack.c.bf16 %v2244, %v2244
        %v2277 = vpack.c.bf16 %v2245, %v2245
        %v2278 = vpack.c.bf16 %v2246, %v2246
        %v2279 = vpack.c.bf16 %v2247, %v2247
        %v2280 = vpack.c.bf16 %v2248, %v2248
        %v2281 = vpack.c.bf16 %v2249, %v2249
        %v2282 = vpack.c.bf16 %v2250, %v2250
        %v2283 = vpack.c.bf16 %v2251, %v2251
        %v2284 = vpack.c.bf16 %v2252, %v2252
        %v2285 = vpack.c.bf16 %v2253, %v2253
        %v2286 = vpack.c.bf16 %v2254, %v2254
        %v2287 = vpack.c.bf16 %v2255, %v2255
        %v2288 = vpack.c.bf16 %v2256, %v2256
        %v2289 = vpack.c.bf16 %v2257, %v2257
        %v2290 = vpack.c.bf16 %v2258, %v2258
        %v2291 = vpack.c.bf16 %v2259, %v2259
        %v2292 = vpack.c.bf16 %v2260, %v2260
        %v2293 = vpack.c.bf16 %v2261, %v2261
        %v2294 = vpack.c.bf16 %v2262, %v2262
        %v2295 = vpack.c.bf16 %v2263, %v2263
        %v2296 = vpack.c.bf16 %v2264, %v2264
        %v2297 = vpack.c.bf16 %v2265, %v2265
        %v2298 = vpack.c.bf16 %v2266, %v2266
        %v2299 = vpack.c.bf16 %v2267, %v2267
        %v2300 = vpack.c.bf16 %v2268, %v2268
        %v2301 = vpack.c.bf16 %v2269, %v2269
        %v2302 = vpack.c.bf16 %v2270, %v2270
        %v2303 = vpack.c.bf16 %v2271, %v2271
        %v2304 = vpack.c.bf16 %v2272, %v2272
        %v2305 = vpack.c.bf16 %v2273, %v2273
        %v2306 = vpack.c.bf16 %v2274, %v2274
        %v2307 = vpack.c.bf16 %v2275, %v2275
        %2308 = vst [vmem:[#allocation2 + $0x18] sm:$0xf] %v2276
        %2309 = vst [vmem:[#allocation2 + $0x3c] sm:$0xf] %v2277
        %2310 = vst [vmem:[#allocation2 + $0x60] sm:$0xf] %v2278
        %2311 = vst [vmem:[#allocation2 + $0x84] sm:$0xf] %v2279
        %2312 = vst [vmem:[#allocation2 + $0xa8] sm:$0xf] %v2280
        %2313 = vst [vmem:[#allocation2 + $0xcc] sm:$0xf] %v2281
        %2314 = vst [vmem:[#allocation2 + $0xf0] sm:$0xf] %v2282
        %2315 = vst [vmem:[#allocation2 + $0x114] sm:$0xf] %v2283
        %2316 = vst [vmem:[#allocation2 + $0x138] sm:$0xf] %v2284
        %2317 = vst [vmem:[#allocation2 + $0x15c] sm:$0xf] %v2285
        %2318 = vst [vmem:[#allocation2 + $0x180] sm:$0xf] %v2286
        %2319 = vst [vmem:[#allocation2 + $0x1a4] sm:$0xf] %v2287
        %2320 = vst [vmem:[#allocation2 + $0x1c8] sm:$0xf] %v2288
        %2321 = vst [vmem:[#allocation2 + $0x1ec] sm:$0xf] %v2289
        %2322 = vst [vmem:[#allocation2 + $0x210] sm:$0xf] %v2290
        %2323 = vst [vmem:[#allocation2 + $0x234] sm:$0xf] %v2291
        %2324 = vst [vmem:[#allocation2 + $0x258] sm:$0xf] %v2292
        %2325 = vst [vmem:[#allocation2 + $0x27c] sm:$0xf] %v2293
        %2326 = vst [vmem:[#allocation2 + $0x2a0] sm:$0xf] %v2294
        %2327 = vst [vmem:[#allocation2 + $0x2c4] sm:$0xf] %v2295
        %2328 = vst [vmem:[#allocation2 + $0x2e8] sm:$0xf] %v2296
        %2329 = vst [vmem:[#allocation2 + $0x30c] sm:$0xf] %v2297
        %2330 = vst [vmem:[#allocation2 + $0x330] sm:$0xf] %v2298
        %2331 = vst [vmem:[#allocation2 + $0x354] sm:$0xf] %v2299
        %2332 = vst [vmem:[#allocation2 + $0x378] sm:$0xf] %v2300
        %2333 = vst [vmem:[#allocation2 + $0x39c] sm:$0xf] %v2301
        %2334 = vst [vmem:[#allocation2 + $0x3c0] sm:$0xf] %v2302
        %2335 = vst [vmem:[#allocation2 + $0x3e4] sm:$0xf] %v2303
        %2336 = vst [vmem:[#allocation2 + $0x408] sm:$0xf] %v2304
        %2337 = vst [vmem:[#allocation2 + $0x42c] sm:$0xf] %v2305
        %2338 = vst [vmem:[#allocation2 + $0x450] sm:$0xf] %v2306
        %2339 = vst [vmem:[#allocation2 + $0x474] sm:$0xf] %v2307
        %v2340 = vmul.f32 %v675, %v1282
        %v2341 = vmul.f32 %v676, %v1283
        %v2342 = vmul.f32 %v677, %v1284
        %v2343 = vmul.f32 %v678, %v1285
        %v2344 = vmul.f32 %v679, %v1286
        %v2345 = vmul.f32 %v680, %v1287
        %v2346 = vmul.f32 %v681, %v1288
        %v2347 = vmul.f32 %v682, %v1289
        %v2348 = vmul.f32 %v683, %v1290
        %v2349 = vmul.f32 %v684, %v1291
        %v2350 = vmul.f32 %v685, %v1292
        %v2351 = vmul.f32 %v686, %v1293
        %v2352 = vmul.f32 %v687, %v1294
        %v2353 = vmul.f32 %v688, %v1295
        %v2354 = vmul.f32 %v689, %v1296
        %v2355 = vmul.f32 %v690, %v1297
        %v2356 = vmul.f32 %v691, %v1298
        %v2357 = vmul.f32 %v692, %v1299
        %v2358 = vmul.f32 %v693, %v1300
        %v2359 = vmul.f32 %v694, %v1301
        %v2360 = vmul.f32 %v695, %v1302
        %v2361 = vmul.f32 %v696, %v1303
        %v2362 = vmul.f32 %v697, %v1304
        %v2363 = vmul.f32 %v698, %v1305
        %v2364 = vmul.f32 %v699, %v1306
        %v2365 = vmul.f32 %v700, %v1307
        %v2366 = vmul.f32 %v701, %v1308
        %v2367 = vmul.f32 %v702, %v1309
        %v2368 = vmul.f32 %v703, %v1310
        %v2369 = vmul.f32 %v704, %v1311
        %v2370 = vmul.f32 %v673, %v1312
        %v2371 = vmul.f32 %v674, %v1313
        %v2372 = vpack.c.bf16 %v2340, %v2340
        %v2373 = vpack.c.bf16 %v2341, %v2341
        %v2374 = vpack.c.bf16 %v2342, %v2342
        %v2375 = vpack.c.bf16 %v2343, %v2343
        %v2376 = vpack.c.bf16 %v2344, %v2344
        %v2377 = vpack.c.bf16 %v2345, %v2345
        %v2378 = vpack.c.bf16 %v2346, %v2346
        %v2379 = vpack.c.bf16 %v2347, %v2347
        %v2380 = vpack.c.bf16 %v2348, %v2348
        %v2381 = vpack.c.bf16 %v2349, %v2349
        %v2382 = vpack.c.bf16 %v2350, %v2350
        %v2383 = vpack.c.bf16 %v2351, %v2351
        %v2384 = vpack.c.bf16 %v2352, %v2352
        %v2385 = vpack.c.bf16 %v2353, %v2353
        %v2386 = vpack.c.bf16 %v2354, %v2354
        %v2387 = vpack.c.bf16 %v2355, %v2355
        %v2388 = vpack.c.bf16 %v2356, %v2356
        %v2389 = vpack.c.bf16 %v2357, %v2357
        %v2390 = vpack.c.bf16 %v2358, %v2358
        %v2391 = vpack.c.bf16 %v2359, %v2359
        %v2392 = vpack.c.bf16 %v2360, %v2360
        %v2393 = vpack.c.bf16 %v2361, %v2361
        %v2394 = vpack.c.bf16 %v2362, %v2362
        %v2395 = vpack.c.bf16 %v2363, %v2363
        %v2396 = vpack.c.bf16 %v2364, %v2364
        %v2397 = vpack.c.bf16 %v2365, %v2365
        %v2398 = vpack.c.bf16 %v2366, %v2366
        %v2399 = vpack.c.bf16 %v2367, %v2367
        %v2400 = vpack.c.bf16 %v2368, %v2368
        %v2401 = vpack.c.bf16 %v2369, %v2369
        %v2402 = vpack.c.bf16 %v2370, %v2370
        %v2403 = vpack.c.bf16 %v2371, %v2371
        %2404 = vst [vmem:[#allocation2 + $0x1c] sm:$0xf] %v2372
        %2405 = vst [vmem:[#allocation2 + $0x40] sm:$0xf] %v2373
        %2406 = vst [vmem:[#allocation2 + $0x64] sm:$0xf] %v2374
        %2407 = vst [vmem:[#allocation2 + $0x88] sm:$0xf] %v2375
        %2408 = vst [vmem:[#allocation2 + $0xac] sm:$0xf] %v2376
        %2409 = vst [vmem:[#allocation2 + $0xd0] sm:$0xf] %v2377
        %2410 = vst [vmem:[#allocation2 + $0xf4] sm:$0xf] %v2378
        %2411 = vst [vmem:[#allocation2 + $0x118] sm:$0xf] %v2379
        %2412 = vst [vmem:[#allocation2 + $0x13c] sm:$0xf] %v2380
        %2413 = vst [vmem:[#allocation2 + $0x160] sm:$0xf] %v2381
        %2414 = vst [vmem:[#allocation2 + $0x184] sm:$0xf] %v2382
        %2415 = vst [vmem:[#allocation2 + $0x1a8] sm:$0xf] %v2383
        %2416 = vst [vmem:[#allocation2 + $0x1cc] sm:$0xf] %v2384
        %2417 = vst [vmem:[#allocation2 + $0x1f0] sm:$0xf] %v2385
        %2418 = vst [vmem:[#allocation2 + $0x214] sm:$0xf] %v2386
        %2419 = vst [vmem:[#allocation2 + $0x238] sm:$0xf] %v2387
        %2420 = vst [vmem:[#allocation2 + $0x25c] sm:$0xf] %v2388
        %2421 = vst [vmem:[#allocation2 + $0x280] sm:$0xf] %v2389
        %2422 = vst [vmem:[#allocation2 + $0x2a4] sm:$0xf] %v2390
        %2423 = vst [vmem:[#allocation2 + $0x2c8] sm:$0xf] %v2391
        %2424 = vst [vmem:[#allocation2 + $0x2ec] sm:$0xf] %v2392
        %2425 = vst [vmem:[#allocation2 + $0x310] sm:$0xf] %v2393
        %2426 = vst [vmem:[#allocation2 + $0x334] sm:$0xf] %v2394
        %2427 = vst [vmem:[#allocation2 + $0x358] sm:$0xf] %v2395
        %2428 = vst [vmem:[#allocation2 + $0x37c] sm:$0xf] %v2396
        %2429 = vst [vmem:[#allocation2 + $0x3a0] sm:$0xf] %v2397
        %2430 = vst [vmem:[#allocation2 + $0x3c4] sm:$0xf] %v2398
        %2431 = vst [vmem:[#allocation2 + $0x3e8] sm:$0xf] %v2399
        %2432 = vst [vmem:[#allocation2 + $0x40c] sm:$0xf] %v2400
        %2433 = vst [vmem:[#allocation2 + $0x430] sm:$0xf] %v2401
        %2434 = vst [vmem:[#allocation2 + $0x454] sm:$0xf] %v2402
        %2435 = vst [vmem:[#allocation2 + $0x478] sm:$0xf] %v2403
        %v2436 = vmul.f32 %v1282, %v1474
        %v2437 = vmul.f32 %v1283, %v1475
        %v2438 = vmul.f32 %v1284, %v1476
        %v2439 = vmul.f32 %v1285, %v1477
        %v2440 = vmul.f32 %v1286, %v1478
        %v2441 = vmul.f32 %v1287, %v1479
        %v2442 = vmul.f32 %v1288, %v1480
        %v2443 = vmul.f32 %v1289, %v1481
        %v2444 = vmul.f32 %v1290, %v1482
        %v2445 = vmul.f32 %v1291, %v1483
        %v2446 = vmul.f32 %v1292, %v1484
        %v2447 = vmul.f32 %v1293, %v1485
        %v2448 = vmul.f32 %v1294, %v1486
        %v2449 = vmul.f32 %v1295, %v1487
        %v2450 = vmul.f32 %v1296, %v1488
        %v2451 = vmul.f32 %v1297, %v1489
        %v2452 = vmul.f32 %v1298, %v1490
        %v2453 = vmul.f32 %v1299, %v1491
        %v2454 = vmul.f32 %v1300, %v1492
        %v2455 = vmul.f32 %v1301, %v1493
        %v2456 = vmul.f32 %v1302, %v1494
        %v2457 = vmul.f32 %v1303, %v1495
        %v2458 = vmul.f32 %v1304, %v1496
        %v2459 = vmul.f32 %v1305, %v1497
        %v2460 = vmul.f32 %v1306, %v1498
        %v2461 = vmul.f32 %v1307, %v1499
        %v2462 = vmul.f32 %v1308, %v1500
        %v2463 = vmul.f32 %v1309, %v1501
        %v2464 = vmul.f32 %v1310, %v1502
        %v2465 = vmul.f32 %v1311, %v1503
        %v2466 = vmul.f32 %v1312, %v1504
        %v2467 = vmul.f32 %v1313, %v1505
        %v2468 = vmul.f32 %v1856, %v2436
        %v2469 = vmul.f32 %v1855, %v2437
        %v2470 = vmul.f32 %v1854, %v2438
        %v2471 = vmul.f32 %v1853, %v2439
        %v2472 = vmul.f32 %v1852, %v2440
        %v2473 = vmul.f32 %v1851, %v2441
        %v2474 = vmul.f32 %v1850, %v2442
        %v2475 = vmul.f32 %v1849, %v2443
        %v2476 = vmul.f32 %v1848, %v2444
        %v2477 = vmul.f32 %v1847, %v2445
        %v2478 = vmul.f32 %v1846, %v2446
        %v2479 = vmul.f32 %v1845, %v2447
        %v2480 = vmul.f32 %v1844, %v2448
        %v2481 = vmul.f32 %v1843, %v2449
        %v2482 = vmul.f32 %v1842, %v2450
        %v2483 = vmul.f32 %v1841, %v2451
        %v2484 = vmul.f32 %v1840, %v2452
        %v2485 = vmul.f32 %v1839, %v2453
        %v2486 = vmul.f32 %v1838, %v2454
        %v2487 = vmul.f32 %v1837, %v2455
        %v2488 = vmul.f32 %v1836, %v2456
        %v2489 = vmul.f32 %v1835, %v2457
        %v2490 = vmul.f32 %v1834, %v2458
        %v2491 = vmul.f32 %v1833, %v2459
        %v2492 = vmul.f32 %v1832, %v2460
        %v2493 = vmul.f32 %v1831, %v2461
        %v2494 = vmul.f32 %v1830, %v2462
        %v2495 = vmul.f32 %v1829, %v2463
        %v2496 = vmul.f32 %v1828, %v2464
        %v2497 = vmul.f32 %v1859, %v2465
        %v2498 = vmul.f32 %v1858, %v2466
        %v2499 = vmul.f32 %v1857, %v2467
        %v2500 = vpack.c.bf16 %v2468, %v2468
        %v2501 = vpack.c.bf16 %v2469, %v2469
        %v2502 = vpack.c.bf16 %v2470, %v2470
        %v2503 = vpack.c.bf16 %v2471, %v2471
        %v2504 = vpack.c.bf16 %v2472, %v2472
        %v2505 = vpack.c.bf16 %v2473, %v2473
        %v2506 = vpack.c.bf16 %v2474, %v2474
        %v2507 = vpack.c.bf16 %v2475, %v2475
        %v2508 = vpack.c.bf16 %v2476, %v2476
        %v2509 = vpack.c.bf16 %v2477, %v2477
        %v2510 = vpack.c.bf16 %v2478, %v2478
        %v2511 = vpack.c.bf16 %v2479, %v2479
        %v2512 = vpack.c.bf16 %v2480, %v2480
        %v2513 = vpack.c.bf16 %v2481, %v2481
        %v2514 = vpack.c.bf16 %v2482, %v2482
        %v2515 = vpack.c.bf16 %v2483, %v2483
        %v2516 = vpack.c.bf16 %v2484, %v2484
        %v2517 = vpack.c.bf16 %v2485, %v2485
        %v2518 = vpack.c.bf16 %v2486, %v2486
        %v2519 = vpack.c.bf16 %v2487, %v2487
        %v2520 = vpack.c.bf16 %v2488, %v2488
        %v2521 = vpack.c.bf16 %v2489, %v2489
        %v2522 = vpack.c.bf16 %v2490, %v2490
        %v2523 = vpack.c.bf16 %v2491, %v2491
        %v2524 = vpack.c.bf16 %v2492, %v2492
        %v2525 = vpack.c.bf16 %v2493, %v2493
        %v2526 = vpack.c.bf16 %v2494, %v2494
        %v2527 = vpack.c.bf16 %v2495, %v2495
        %v2528 = vpack.c.bf16 %v2496, %v2496
        %v2529 = vpack.c.bf16 %v2497, %v2497
        %v2530 = vpack.c.bf16 %v2498, %v2498
        %v2531 = vpack.c.bf16 %v2499, %v2499
        %2532 = vst [vmem:[#allocation2 + $0x20] sm:$0xf] %v2500
        %2533 = vst [vmem:[#allocation2 + $0x44] sm:$0xf] %v2501
        %2534 = vst [vmem:[#allocation2 + $0x68] sm:$0xf] %v2502
        %2535 = vst [vmem:[#allocation2 + $0x8c] sm:$0xf] %v2503
        %2536 = vst [vmem:[#allocation2 + $0xb0] sm:$0xf] %v2504
        %2537 = vst [vmem:[#allocation2 + $0xd4] sm:$0xf] %v2505
        %2538 = vst [vmem:[#allocation2 + $0xf8] sm:$0xf] %v2506
        %2539 = vst [vmem:[#allocation2 + $0x11c] sm:$0xf] %v2507
        %2540 = vst [vmem:[#allocation2 + $0x140] sm:$0xf] %v2508
        %2541 = vst [vmem:[#allocation2 + $0x164] sm:$0xf] %v2509
        %2542 = vst [vmem:[#allocation2 + $0x188] sm:$0xf] %v2510
        %2543 = vst [vmem:[#allocation2 + $0x1ac] sm:$0xf] %v2511
        %2544 = vst [vmem:[#allocation2 + $0x1d0] sm:$0xf] %v2512
        %2545 = vst [vmem:[#allocation2 + $0x1f4] sm:$0xf] %v2513
        %2546 = vst [vmem:[#allocation2 + $0x218] sm:$0xf] %v2514
        %2547 = vst [vmem:[#allocation2 + $0x23c] sm:$0xf] %v2515
        %2548 = vst [vmem:[#allocation2 + $0x260] sm:$0xf] %v2516
        %2549 = vst [vmem:[#allocation2 + $0x284] sm:$0xf] %v2517
        %2550 = vst [vmem:[#allocation2 + $0x2a8] sm:$0xf] %v2518
        %2551 = vst [vmem:[#allocation2 + $0x2cc] sm:$0xf] %v2519
        %2552 = vst [vmem:[#allocation2 + $0x2f0] sm:$0xf] %v2520
        %2553 = vst [vmem:[#allocation2 + $0x314] sm:$0xf] %v2521
        %2554 = vst [vmem:[#allocation2 + $0x338] sm:$0xf] %v2522
        %2555 = vst [vmem:[#allocation2 + $0x35c] sm:$0xf] %v2523
        %2556 = vst [vmem:[#allocation2 + $0x380] sm:$0xf] %v2524
        %2557 = vst [vmem:[#allocation2 + $0x3a4] sm:$0xf] %v2525
        %2558 = vst [vmem:[#allocation2 + $0x3c8] sm:$0xf] %v2526
        %2559 = vst [vmem:[#allocation2 + $0x3ec] sm:$0xf] %v2527
        %2560 = vst [vmem:[#allocation2 + $0x410] sm:$0xf] %v2528
        %2561 = vst [vmem:[#allocation2 + $0x434] sm:$0xf] %v2529
        %2562 = vst [vmem:[#allocation2 + $0x458] sm:$0xf] %v2530
        %2563 = vst [vmem:[#allocation2 + $0x47c] sm:$0xf] %v2531
        %v2564 = vld [vmem:[#allocation2] sm:$0xff]
        %v2565 = vld [vmem:[#allocation2 + $0x8] sm:$0xff]
        %v2566 = vld [vmem:[#allocation2 + $0x10] sm:$0xff]
        %v2567 = vld [vmem:[#allocation2 + $0x18] sm:$0xff]
        %v2568 = vld [vmem:[#allocation2 + $0x20] sm:$0xf]
        %v2569 = vld [vmem:[#allocation2 + $0x24] sm:$0xff]
        %v2570 = vld [vmem:[#allocation2 + $0x2c] sm:$0xff]
        %v2571 = vld [vmem:[#allocation2 + $0x34] sm:$0xff]
        %v2572 = vld [vmem:[#allocation2 + $0x3c] sm:$0xff]
        %v2573 = vld [vmem:[#allocation2 + $0x44] sm:$0xf]
        %v2574 = vld [vmem:[#allocation2 + $0x48] sm:$0xff]
        %v2575 = vld [vmem:[#allocation2 + $0x50] sm:$0xff]
        %v2576 = vld [vmem:[#allocation2 + $0x58] sm:$0xff]
        %v2577 = vld [vmem:[#allocation2 + $0x60] sm:$0xff]
        %v2578 = vld [vmem:[#allocation2 + $0x68] sm:$0xf]
        %v2579 = vld [vmem:[#allocation2 + $0x6c] sm:$0xff]
        %v2580 = vld [vmem:[#allocation2 + $0x74] sm:$0xff]
        %v2581 = vld [vmem:[#allocation2 + $0x7c] sm:$0xff]
        %v2582 = vld [vmem:[#allocation2 + $0x84] sm:$0xff]
        %v2583 = vld [vmem:[#allocation2 + $0x8c] sm:$0xf]
        %v2584 = vld [vmem:[#allocation2 + $0x90] sm:$0xff]
        %v2585 = vld [vmem:[#allocation2 + $0x98] sm:$0xff]
        %v2586 = vld [vmem:[#allocation2 + $0xa0] sm:$0xff]
        %v2587 = vld [vmem:[#allocation2 + $0xa8] sm:$0xff]
        %v2588 = vld [vmem:[#allocation2 + $0xb0] sm:$0xf]
        %v2589 = vld [vmem:[#allocation2 + $0xb4] sm:$0xff]
        %v2590 = vld [vmem:[#allocation2 + $0xbc] sm:$0xff]
        %v2591 = vld [vmem:[#allocation2 + $0xc4] sm:$0xff]
        %v2592 = vld [vmem:[#allocation2 + $0xcc] sm:$0xff]
        %v2593 = vld [vmem:[#allocation2 + $0xd4] sm:$0xf]
        %v2594 = vld [vmem:[#allocation2 + $0xd8] sm:$0xff]
        %v2595 = vld [vmem:[#allocation2 + $0xe0] sm:$0xff]
        %v2596 = vld [vmem:[#allocation2 + $0xe8] sm:$0xff]
        %v2597 = vld [vmem:[#allocation2 + $0xf0] sm:$0xff]
        %v2598 = vld [vmem:[#allocation2 + $0xf8] sm:$0xf]
        %v2599 = vld [vmem:[#allocation2 + $0xfc] sm:$0xff]
        %v2600 = vld [vmem:[#allocation2 + $0x104] sm:$0xff]
        %v2601 = vld [vmem:[#allocation2 + $0x10c] sm:$0xff]
        %v2602 = vld [vmem:[#allocation2 + $0x114] sm:$0xff]
        %v2603 = vld [vmem:[#allocation2 + $0x11c] sm:$0xf]
        %v2604 = vld [vmem:[#allocation2 + $0x120] sm:$0xff]
        %v2605 = vld [vmem:[#allocation2 + $0x128] sm:$0xff]
        %v2606 = vld [vmem:[#allocation2 + $0x130] sm:$0xff]
        %v2607 = vld [vmem:[#allocation2 + $0x138] sm:$0xff]
        %v2608 = vld [vmem:[#allocation2 + $0x140] sm:$0xf]
        %v2609 = vld [vmem:[#allocation2 + $0x144] sm:$0xff]
        %v2610 = vld [vmem:[#allocation2 + $0x14c] sm:$0xff]
        %v2611 = vld [vmem:[#allocation2 + $0x154] sm:$0xff]
        %v2612 = vld [vmem:[#allocation2 + $0x15c] sm:$0xff]
        %v2613 = vld [vmem:[#allocation2 + $0x164] sm:$0xf]
        %v2614 = vld [vmem:[#allocation2 + $0x168] sm:$0xff]
        %v2615 = vld [vmem:[#allocation2 + $0x170] sm:$0xff]
        %v2616 = vld [vmem:[#allocation2 + $0x178] sm:$0xff]
        %v2617 = vld [vmem:[#allocation2 + $0x180] sm:$0xff]
        %v2618 = vld [vmem:[#allocation2 + $0x188] sm:$0xf]
        %v2619 = vld [vmem:[#allocation2 + $0x18c] sm:$0xff]
        %v2620 = vld [vmem:[#allocation2 + $0x194] sm:$0xff]
        %v2621 = vld [vmem:[#allocation2 + $0x19c] sm:$0xff]
        %v2622 = vld [vmem:[#allocation2 + $0x1a4] sm:$0xff]
        %v2623 = vld [vmem:[#allocation2 + $0x1ac] sm:$0xf]
        %v2624 = vld [vmem:[#allocation2 + $0x1b0] sm:$0xff]
        %v2625 = vld [vmem:[#allocation2 + $0x1b8] sm:$0xff]
        %v2626 = vld [vmem:[#allocation2 + $0x1c0] sm:$0xff]
        %v2627 = vld [vmem:[#allocation2 + $0x1c8] sm:$0xff]
        %v2628 = vld [vmem:[#allocation2 + $0x1d0] sm:$0xf]
        %v2629 = vld [vmem:[#allocation2 + $0x1d4] sm:$0xff]
        %v2630 = vld [vmem:[#allocation2 + $0x1dc] sm:$0xff]
        %v2631 = vld [vmem:[#allocation2 + $0x1e4] sm:$0xff]
        %v2632 = vld [vmem:[#allocation2 + $0x1ec] sm:$0xff]
        %v2633 = vld [vmem:[#allocation2 + $0x1f4] sm:$0xf]
        %v2634 = vld [vmem:[#allocation2 + $0x1f8] sm:$0xff]
        %v2635 = vld [vmem:[#allocation2 + $0x200] sm:$0xff]
        %v2636 = vld [vmem:[#allocation2 + $0x208] sm:$0xff]
        %v2637 = vld [vmem:[#allocation2 + $0x210] sm:$0xff]
        %v2638 = vld [vmem:[#allocation2 + $0x218] sm:$0xf]
        %v2639 = vld [vmem:[#allocation2 + $0x21c] sm:$0xff]
        %v2640 = vld [vmem:[#allocation2 + $0x224] sm:$0xff]
        %v2641 = vld [vmem:[#allocation2 + $0x22c] sm:$0xff]
        %v2642 = vld [vmem:[#allocation2 + $0x234] sm:$0xff]
        %v2643 = vld [vmem:[#allocation2 + $0x23c] sm:$0xf]
        %v2644 = vld [vmem:[#allocation2 + $0x240] sm:$0xff]
        %v2645 = vld [vmem:[#allocation2 + $0x248] sm:$0xff]
        %v2646 = vld [vmem:[#allocation2 + $0x250] sm:$0xff]
        %v2647 = vld [vmem:[#allocation2 + $0x258] sm:$0xff]
        %v2648 = vld [vmem:[#allocation2 + $0x260] sm:$0xf]
        %v2649 = vld [vmem:[#allocation2 + $0x264] sm:$0xff]
        %v2650 = vld [vmem:[#allocation2 + $0x26c] sm:$0xff]
        %v2651 = vld [vmem:[#allocation2 + $0x274] sm:$0xff]
        %v2652 = vld [vmem:[#allocation2 + $0x27c] sm:$0xff]
        %v2653 = vld [vmem:[#allocation2 + $0x284] sm:$0xf]
        %v2654 = vld [vmem:[#allocation2 + $0x288] sm:$0xff]
        %v2655 = vld [vmem:[#allocation2 + $0x290] sm:$0xff]
        %v2656 = vld [vmem:[#allocation2 + $0x298] sm:$0xff]
        %v2657 = vld [vmem:[#allocation2 + $0x2a0] sm:$0xff]
        %v2658 = vld [vmem:[#allocation2 + $0x2a8] sm:$0xf]
        %v2659 = vld [vmem:[#allocation2 + $0x2ac] sm:$0xff]
        %v2660 = vld [vmem:[#allocation2 + $0x2b4] sm:$0xff]
        %v2661 = vld [vmem:[#allocation2 + $0x2bc] sm:$0xff]
        %v2662 = vld [vmem:[#allocation2 + $0x2c4] sm:$0xff]
        %v2663 = vld [vmem:[#allocation2 + $0x2cc] sm:$0xf]
        %v2664 = vld [vmem:[#allocation2 + $0x2d0] sm:$0xff]
        %v2665 = vld [vmem:[#allocation2 + $0x2d8] sm:$0xff]
        %v2666 = vld [vmem:[#allocation2 + $0x2e0] sm:$0xff]
        %v2667 = vld [vmem:[#allocation2 + $0x2e8] sm:$0xff]
        %v2668 = vld [vmem:[#allocation2 + $0x2f0] sm:$0xf]
        %v2669 = vld [vmem:[#allocation2 + $0x2f4] sm:$0xff]
        %v2670 = vld [vmem:[#allocation2 + $0x2fc] sm:$0xff]
        %v2671 = vld [vmem:[#allocation2 + $0x304] sm:$0xff]
        %v2672 = vld [vmem:[#allocation2 + $0x30c] sm:$0xff]
        %v2673 = vld [vmem:[#allocation2 + $0x314] sm:$0xf]
        %v2674 = vld [vmem:[#allocation2 + $0x318] sm:$0xff]
        %v2675 = vld [vmem:[#allocation2 + $0x320] sm:$0xff]
        %v2676 = vld [vmem:[#allocation2 + $0x328] sm:$0xff]
        %v2677 = vld [vmem:[#allocation2 + $0x330] sm:$0xff]
        %v2678 = vld [vmem:[#allocation2 + $0x338] sm:$0xf]
        %v2679 = vld [vmem:[#allocation2 + $0x33c] sm:$0xff]
        %v2680 = vld [vmem:[#allocation2 + $0x344] sm:$0xff]
        %v2681 = vld [vmem:[#allocation2 + $0x34c] sm:$0xff]
        %v2682 = vld [vmem:[#allocation2 + $0x354] sm:$0xff]
        %v2683 = vld [vmem:[#allocation2 + $0x35c] sm:$0xf]
        %v2684 = vld [vmem:[#allocation2 + $0x360] sm:$0xff]
        %v2685 = vld [vmem:[#allocation2 + $0x368] sm:$0xff]
        %v2686 = vld [vmem:[#allocation2 + $0x370] sm:$0xff]
        %v2687 = vld [vmem:[#allocation2 + $0x378] sm:$0xff]
        %v2688 = vld [vmem:[#allocation2 + $0x380] sm:$0xf]
        %v2689 = vld [vmem:[#allocation2 + $0x384] sm:$0xff]
        %v2690 = vld [vmem:[#allocation2 + $0x38c] sm:$0xff]
        %v2691 = vld [vmem:[#allocation2 + $0x394] sm:$0xff]
        %v2692 = vld [vmem:[#allocation2 + $0x39c] sm:$0xff]
        %v2693 = vld [vmem:[#allocation2 + $0x3a4] sm:$0xf]
        %v2694 = vld [vmem:[#allocation2 + $0x3a8] sm:$0xff]
        %v2695 = vld [vmem:[#allocation2 + $0x3b0] sm:$0xff]
        %v2696 = vld [vmem:[#allocation2 + $0x3b8] sm:$0xff]
        %v2697 = vld [vmem:[#allocation2 + $0x3c0] sm:$0xff]
        %v2698 = vld [vmem:[#allocation2 + $0x3c8] sm:$0xf]
        %v2699 = vld [vmem:[#allocation2 + $0x3cc] sm:$0xff]
        %v2700 = vld [vmem:[#allocation2 + $0x3d4] sm:$0xff]
        %v2701 = vld [vmem:[#allocation2 + $0x3dc] sm:$0xff]
        %v2702 = vld [vmem:[#allocation2 + $0x3e4] sm:$0xff]
        %v2703 = vld [vmem:[#allocation2 + $0x3ec] sm:$0xf]
        %v2704 = vld [vmem:[#allocation2 + $0x3f0] sm:$0xff]
        %v2705 = vld [vmem:[#allocation2 + $0x3f8] sm:$0xff]
        %v2706 = vld [vmem:[#allocation2 + $0x400] sm:$0xff]
        %v2707 = vld [vmem:[#allocation2 + $0x408] sm:$0xff]
        %v2708 = vld [vmem:[#allocation2 + $0x410] sm:$0xf]
        %v2709 = vld [vmem:[#allocation2 + $0x414] sm:$0xff]
        %v2710 = vld [vmem:[#allocation2 + $0x41c] sm:$0xff]
        %v2711 = vld [vmem:[#allocation2 + $0x424] sm:$0xff]
        %v2712 = vld [vmem:[#allocation2 + $0x42c] sm:$0xff]
        %v2713 = vld [vmem:[#allocation2 + $0x434] sm:$0xf]
        %v2714 = vld [vmem:[#allocation2 + $0x438] sm:$0xff]
        %v2715 = vld [vmem:[#allocation2 + $0x440] sm:$0xff]
        %v2716 = vld [vmem:[#allocation2 + $0x448] sm:$0xff]
        %v2717 = vld [vmem:[#allocation2 + $0x450] sm:$0xff]
        %v2718 = vld [vmem:[#allocation2 + $0x458] sm:$0xf]
        %v2719 = vld [vmem:[#allocation2 + $0x45c] sm:$0xff]
        %v2720 = vld [vmem:[#allocation2 + $0x464] sm:$0xff]
        %v2721 = vld [vmem:[#allocation2 + $0x46c] sm:$0xff]
        %v2722 = vld [vmem:[#allocation2 + $0x474] sm:$0xff]
        %v2723 = vld [vmem:[#allocation2 + $0x47c] sm:$0xf]
        %v2724 = vld [vmem:[%s2] sm:$0xf]
        %v2725 = vld [vmem:[%s2 + $0x4] sm:$0xf]
        %v2726 = vld [vmem:[%s2 + $0x8] sm:$0xf]
        %v2727 = vld [vmem:[%s2 + $0xc] sm:$0xf]
        %v2728 = vld [vmem:[%s2 + $0x10] sm:$0xf]
        %v2729 = vld [vmem:[%s2 + $0x14] sm:$0xf]
        %v2730 = vld [vmem:[%s2 + $0x18] sm:$0xf]
        %v2731 = vld [vmem:[%s2 + $0x1c] sm:$0xf]
        %v2732 = vld [vmem:[%s2 + $0x20] sm:$0xf]
        %v2733 = vld [vmem:[%s2 + $0x24] sm:$0xf]
        %v2734 = vld [vmem:[%s2 + $0x28] sm:$0xf]
        %v2735 = vld [vmem:[%s2 + $0x2c] sm:$0xf]
        %v2736 = vld [vmem:[%s2 + $0x30] sm:$0xf]
        %v2737 = vld [vmem:[%s2 + $0x34] sm:$0xf]
        %v2738 = vld [vmem:[%s2 + $0x38] sm:$0xf]
        %v2739 = vld [vmem:[%s2 + $0x3c] sm:$0xf]
        %v2740 = vld [vmem:[%s2 + $0x40] sm:$0xf]
        %v2741 = vld [vmem:[%s2 + $0x44] sm:$0xf]
        %v2742 = vld [vmem:[%s2 + $0x48] sm:$0xf]
        %v2743 = vld [vmem:[%s2 + $0x4c] sm:$0xf]
        %v2744 = vld [vmem:[%s2 + $0x50] sm:$0xf]
        %v2745 = vld [vmem:[%s2 + $0x54] sm:$0xf]
        %v2746 = vld [vmem:[%s2 + $0x58] sm:$0xf]
        %v2747 = vld [vmem:[%s2 + $0x5c] sm:$0xf]
        %v2748 = vld [vmem:[%s2 + $0x60] sm:$0xf]
        %v2749 = vld [vmem:[%s2 + $0x64] sm:$0xf]
        %v2750 = vld [vmem:[%s2 + $0x68] sm:$0xf]
        %v2751 = vld [vmem:[%s2 + $0x6c] sm:$0xf]
        %v2752 = vld [vmem:[%s2 + $0x70] sm:$0xf]
        %v2753 = vld [vmem:[%s2 + $0x74] sm:$0xf]
        %v2754 = vld [vmem:[%s2 + $0x78] sm:$0xf]
        %v2755 = vld [vmem:[%s2 + $0x7c] sm:$0xf]
        %v2756 = vld [vmem:[%s2 + $0x80] sm:$0xf]
        %v2757 = vld [vmem:[%s2 + $0x84] sm:$0xf]
        %v2758 = vld [vmem:[%s2 + $0x88] sm:$0xf]
        %v2759 = vld [vmem:[%s2 + $0x8c] sm:$0xf]
        %v2760 = vld [vmem:[%s2 + $0x90] sm:$0xf]
        %v2761 = vld [vmem:[%s2 + $0x94] sm:$0xf]
        %v2762 = vld [vmem:[%s2 + $0x98] sm:$0xf]
        %v2763 = vld [vmem:[%s2 + $0x9c] sm:$0xf]
        %v2764 = vld [vmem:[%s2 + $0xa0] sm:$0xf]
        %v2765 = vld [vmem:[%s2 + $0xa4] sm:$0xf]
        %v2766 = vld [vmem:[%s2 + $0xa8] sm:$0xf]
        %v2767 = vld [vmem:[%s2 + $0xac] sm:$0xf]
        %v2768 = vld [vmem:[%s2 + $0xb0] sm:$0xf]
        %v2769 = vld [vmem:[%s2 + $0xb4] sm:$0xf]
        %v2770 = vld [vmem:[%s2 + $0xb8] sm:$0xf]
        %v2771 = vld [vmem:[%s2 + $0xbc] sm:$0xf]
        %v2772 = vld [vmem:[%s2 + $0xc0] sm:$0xf]
        %v2773 = vld [vmem:[%s2 + $0xc4] sm:$0xf]
        %v2774 = vld [vmem:[%s2 + $0xc8] sm:$0xf]
        %v2775 = vld [vmem:[%s2 + $0xcc] sm:$0xf]
        %v2776 = vld [vmem:[%s2 + $0xd0] sm:$0xf]
        %v2777 = vld [vmem:[%s2 + $0xd4] sm:$0xf]
        %v2778 = vld [vmem:[%s2 + $0xd8] sm:$0xf]
        %v2779 = vld [vmem:[%s2 + $0xdc] sm:$0xf]
        %v2780 = vld [vmem:[%s2 + $0xe0] sm:$0xf]
        %v2781 = vld [vmem:[%s2 + $0xe4] sm:$0xf]
        %v2782 = vld [vmem:[%s2 + $0xe8] sm:$0xf]
        %v2783 = vld [vmem:[%s2 + $0xec] sm:$0xf]
        %v2784 = vld [vmem:[%s2 + $0xf0] sm:$0xf]
        %v2785 = vld [vmem:[%s2 + $0xf4] sm:$0xf]
        %v2786 = vld [vmem:[%s2 + $0xf8] sm:$0xf]
        %v2787 = vld [vmem:[%s2 + $0xfc] sm:$0xf]
        %v2788 = vld [vmem:[%s2 + $0x100] sm:$0xf]
        %v2789 = vld [vmem:[%s2 + $0x104] sm:$0xf]
        %v2790 = vld [vmem:[%s2 + $0x108] sm:$0xf]
        %v2791 = vld [vmem:[%s2 + $0x10c] sm:$0xf]
        %v2792 = vld [vmem:[%s2 + $0x110] sm:$0xf]
        %v2793 = vld [vmem:[%s2 + $0x114] sm:$0xf]
        %v2794 = vld [vmem:[%s2 + $0x118] sm:$0xf]
        %v2795 = vld [vmem:[%s2 + $0x11c] sm:$0xf]
        %v2796 = vld [vmem:[%s2 + $0x120] sm:$0xf]
        %v2797 = vld [vmem:[%s2 + $0x124] sm:$0xf]
        %v2798 = vld [vmem:[%s2 + $0x128] sm:$0xf]
        %v2799 = vld [vmem:[%s2 + $0x12c] sm:$0xf]
        %v2800 = vld [vmem:[%s2 + $0x130] sm:$0xf]
        %v2801 = vld [vmem:[%s2 + $0x134] sm:$0xf]
        %v2802 = vld [vmem:[%s2 + $0x138] sm:$0xf]
        %v2803 = vld [vmem:[%s2 + $0x13c] sm:$0xf]
        %v2804 = vld [vmem:[%s2 + $0x140] sm:$0xf]
        %v2805 = vld [vmem:[%s2 + $0x144] sm:$0xf]
        %v2806 = vld [vmem:[%s2 + $0x148] sm:$0xf]
        %v2807 = vld [vmem:[%s2 + $0x14c] sm:$0xf]
        %v2808 = vld [vmem:[%s2 + $0x150] sm:$0xf]
        %v2809 = vld [vmem:[%s2 + $0x154] sm:$0xf]
        %v2810 = vld [vmem:[%s2 + $0x158] sm:$0xf]
        %v2811 = vld [vmem:[%s2 + $0x15c] sm:$0xf]
        %v2812 = vld [vmem:[%s2 + $0x160] sm:$0xf]
        %v2813 = vld [vmem:[%s2 + $0x164] sm:$0xf]
        %v2814 = vld [vmem:[%s2 + $0x168] sm:$0xf]
        %v2815 = vld [vmem:[%s2 + $0x16c] sm:$0xf]
        %v2816 = vld [vmem:[%s2 + $0x170] sm:$0xf]
        %v2817 = vld [vmem:[%s2 + $0x174] sm:$0xf]
        %v2818 = vld [vmem:[%s2 + $0x178] sm:$0xf]
        %v2819 = vld [vmem:[%s2 + $0x17c] sm:$0xf]
        %v2820 = vld [vmem:[%s2 + $0x180] sm:$0xf]
        %v2821 = vld [vmem:[%s2 + $0x184] sm:$0xf]
        %v2822 = vld [vmem:[%s2 + $0x188] sm:$0xf]
        %v2823 = vld [vmem:[%s2 + $0x18c] sm:$0xf]
        %v2824 = vld [vmem:[%s2 + $0x190] sm:$0xf]
        %v2825 = vld [vmem:[%s2 + $0x194] sm:$0xf]
        %v2826 = vld [vmem:[%s2 + $0x198] sm:$0xf]
        %v2827 = vld [vmem:[%s2 + $0x19c] sm:$0xf]
        %v2828 = vld [vmem:[%s2 + $0x1a0] sm:$0xf]
        %v2829 = vld [vmem:[%s2 + $0x1a4] sm:$0xf]
        %v2830 = vld [vmem:[%s2 + $0x1a8] sm:$0xf]
        %v2831 = vld [vmem:[%s2 + $0x1ac] sm:$0xf]
        %v2832 = vld [vmem:[%s2 + $0x1b0] sm:$0xf]
        %v2833 = vld [vmem:[%s2 + $0x1b4] sm:$0xf]
        %v2834 = vld [vmem:[%s2 + $0x1b8] sm:$0xf]
        %v2835 = vld [vmem:[%s2 + $0x1bc] sm:$0xf]
        %v2836 = vld [vmem:[%s2 + $0x1c0] sm:$0xf]
        %v2837 = vld [vmem:[%s2 + $0x1c4] sm:$0xf]
        %v2838 = vld [vmem:[%s2 + $0x1c8] sm:$0xf]
        %v2839 = vld [vmem:[%s2 + $0x1cc] sm:$0xf]
        %v2840 = vld [vmem:[%s2 + $0x1d0] sm:$0xf]
        %v2841 = vld [vmem:[%s2 + $0x1d4] sm:$0xf]
        %v2842 = vld [vmem:[%s2 + $0x1d8] sm:$0xf]
        %v2843 = vld [vmem:[%s2 + $0x1dc] sm:$0xf]
        %v2844 = vld [vmem:[%s2 + $0x1e0] sm:$0xf]
        %v2845 = vld [vmem:[%s2 + $0x1e4] sm:$0xf]
        %v2846 = vld [vmem:[%s2 + $0x1e8] sm:$0xf]
        %v2847 = vld [vmem:[%s2 + $0x1ec] sm:$0xf]
        %v2848 = vld [vmem:[%s2 + $0x1f0] sm:$0xf]
        %v2849 = vld [vmem:[%s2 + $0x1f4] sm:$0xf]
        %v2850 = vld [vmem:[%s2 + $0x1f8] sm:$0xf]
        %v2851 = vld [vmem:[%s2 + $0x1fc] sm:$0xf]
        %v2852 = vld [vmem:[%s2 + $0x200] sm:$0xf]
        %v2853 = vld [vmem:[%s2 + $0x204] sm:$0xf]
        %v2854 = vld [vmem:[%s2 + $0x208] sm:$0xf]
        %v2855 = vld [vmem:[%s2 + $0x20c] sm:$0xf]
        %v2856 = vld [vmem:[%s2 + $0x210] sm:$0xf]
        %v2857 = vld [vmem:[%s2 + $0x214] sm:$0xf]
        %v2858 = vld [vmem:[%s2 + $0x218] sm:$0xf]
        %v2859 = vld [vmem:[%s2 + $0x21c] sm:$0xf]
        %v2860 = vld [vmem:[%s2 + $0x220] sm:$0xf]
        %v2861 = vld [vmem:[%s2 + $0x224] sm:$0xf]
        %v2862 = vld [vmem:[%s2 + $0x228] sm:$0xf]
        %v2863 = vld [vmem:[%s2 + $0x22c] sm:$0xf]
        %v2864 = vld [vmem:[%s2 + $0x230] sm:$0xf]
        %v2865 = vld [vmem:[%s2 + $0x234] sm:$0xf]
        %v2866 = vld [vmem:[%s2 + $0x238] sm:$0xf]
        %v2867 = vld [vmem:[%s2 + $0x23c] sm:$0xf]
        %v2868 = vld [vmem:[%s3] sm:$0x1]
        %v2870 = vperm.slane %v2868, 0
        %v3032 = vunpack.c.l.b16 %v2564
        %v3033 = vunpack.c.h.b16 %v2564
        %v3034 = vunpack.c.l.b16 %v2565
        %v3035 = vunpack.c.h.b16 %v2565
        %v3036 = vunpack.c.l.b16 %v2566
        %v3037 = vunpack.c.h.b16 %v2566
        %v3038 = vunpack.c.l.b16 %v2567
        %v3039 = vunpack.c.h.b16 %v2567
        %v3040 = vunpack.c.l.b16 %v2568
        %v3041 = vunpack.c.l.b16 %v2569
        %v3042 = vunpack.c.h.b16 %v2569
        %v3043 = vunpack.c.l.b16 %v2570
        %v3044 = vunpack.c.h.b16 %v2570
        %v3045 = vunpack.c.l.b16 %v2571
        %v3046 = vunpack.c.h.b16 %v2571
        %v3047 = vunpack.c.l.b16 %v2572
        %v3048 = vunpack.c.h.b16 %v2572
        %v3049 = vunpack.c.l.b16 %v2573
        %v3050 = vunpack.c.l.b16 %v2574
        %v3051 = vunpack.c.h.b16 %v2574
        %v3052 = vunpack.c.l.b16 %v2575
        %v3053 = vunpack.c.h.b16 %v2575
        %v3054 = vunpack.c.l.b16 %v2576
        %v3055 = vunpack.c.h.b16 %v2576
        %v3056 = vunpack.c.l.b16 %v2577
        %v3057 = vunpack.c.h.b16 %v2577
        %v3058 = vunpack.c.l.b16 %v2578
        %v3059 = vunpack.c.l.b16 %v2579
        %v3060 = vunpack.c.h.b16 %v2579
        %v3061 = vunpack.c.l.b16 %v2580
        %v3062 = vunpack.c.h.b16 %v2580
        %v3063 = vunpack.c.l.b16 %v2581
        %v3064 = vunpack.c.h.b16 %v2581
        %v3065 = vunpack.c.l.b16 %v2582
        %v3066 = vunpack.c.h.b16 %v2582
        %v3067 = vunpack.c.l.b16 %v2583
        %v3068 = vunpack.c.l.b16 %v2584
        %v3069 = vunpack.c.h.b16 %v2584
        %v3070 = vunpack.c.l.b16 %v2585
        %v3071 = vunpack.c.h.b16 %v2585
        %v3072 = vunpack.c.l.b16 %v2586
        %v3073 = vunpack.c.h.b16 %v2586
        %v3074 = vunpack.c.l.b16 %v2587
        %v3075 = vunpack.c.h.b16 %v2587
        %v3076 = vunpack.c.l.b16 %v2588
        %v3077 = vunpack.c.l.b16 %v2589
        %v3078 = vunpack.c.h.b16 %v2589
        %v3079 = vunpack.c.l.b16 %v2590
        %v3080 = vunpack.c.h.b16 %v2590
        %v3081 = vunpack.c.l.b16 %v2591
        %v3082 = vunpack.c.h.b16 %v2591
        %v3083 = vunpack.c.l.b16 %v2592
        %v3084 = vunpack.c.h.b16 %v2592
        %v3085 = vunpack.c.l.b16 %v2593
        %v3086 = vunpack.c.l.b16 %v2594
        %v3087 = vunpack.c.h.b16 %v2594
        %v3088 = vunpack.c.l.b16 %v2595
        %v3089 = vunpack.c.h.b16 %v2595
        %v3090 = vunpack.c.l.b16 %v2596
        %v3091 = vunpack.c.h.b16 %v2596
        %v3092 = vunpack.c.l.b16 %v2597
        %v3093 = vunpack.c.h.b16 %v2597
        %v3094 = vunpack.c.l.b16 %v2598
        %v3095 = vunpack.c.l.b16 %v2599
        %v3096 = vunpack.c.h.b16 %v2599
        %v3097 = vunpack.c.l.b16 %v2600
        %v3098 = vunpack.c.h.b16 %v2600
        %v3099 = vunpack.c.l.b16 %v2601
        %v3100 = vunpack.c.h.b16 %v2601
        %v3101 = vunpack.c.l.b16 %v2602
        %v3102 = vunpack.c.h.b16 %v2602
        %v3103 = vunpack.c.l.b16 %v2603
        %v3104 = vunpack.c.l.b16 %v2604
        %v3105 = vunpack.c.h.b16 %v2604
        %v3106 = vunpack.c.l.b16 %v2605
        %v3107 = vunpack.c.h.b16 %v2605
        %v3108 = vunpack.c.l.b16 %v2606
        %v3109 = vunpack.c.h.b16 %v2606
        %v3110 = vunpack.c.l.b16 %v2607
        %v3111 = vunpack.c.h.b16 %v2607
        %v3112 = vunpack.c.l.b16 %v2608
        %v3113 = vunpack.c.l.b16 %v2609
        %v3114 = vunpack.c.h.b16 %v2609
        %v3115 = vunpack.c.l.b16 %v2610
        %v3116 = vunpack.c.h.b16 %v2610
        %v3117 = vunpack.c.l.b16 %v2611
        %v3118 = vunpack.c.h.b16 %v2611
        %v3119 = vunpack.c.l.b16 %v2612
        %v3120 = vunpack.c.h.b16 %v2612
        %v3121 = vunpack.c.l.b16 %v2613
        %v3122 = vunpack.c.l.b16 %v2614
        %v3123 = vunpack.c.h.b16 %v2614
        %v3124 = vunpack.c.l.b16 %v2615
        %v3125 = vunpack.c.h.b16 %v2615
        %v3126 = vunpack.c.l.b16 %v2616
        %v3127 = vunpack.c.h.b16 %v2616
        %v3128 = vunpack.c.l.b16 %v2617
        %v3129 = vunpack.c.h.b16 %v2617
        %v3130 = vunpack.c.l.b16 %v2618
        %v3131 = vunpack.c.l.b16 %v2619
        %v3132 = vunpack.c.h.b16 %v2619
        %v3133 = vunpack.c.l.b16 %v2620
        %v3134 = vunpack.c.h.b16 %v2620
        %v3135 = vunpack.c.l.b16 %v2621
        %v3136 = vunpack.c.h.b16 %v2621
        %v3137 = vunpack.c.l.b16 %v2622
        %v3138 = vunpack.c.h.b16 %v2622
        %v3139 = vunpack.c.l.b16 %v2623
        %v3140 = vunpack.c.l.b16 %v2624
        %v3141 = vunpack.c.h.b16 %v2624
        %v3142 = vunpack.c.l.b16 %v2625
        %v3143 = vunpack.c.h.b16 %v2625
        %v3144 = vunpack.c.l.b16 %v2626
        %v3145 = vunpack.c.h.b16 %v2626
        %v3146 = vunpack.c.l.b16 %v2627
        %v3147 = vunpack.c.h.b16 %v2627
        %v3148 = vunpack.c.l.b16 %v2628
        %v3149 = vunpack.c.l.b16 %v2629
        %v3150 = vunpack.c.h.b16 %v2629
        %v3151 = vunpack.c.l.b16 %v2630
        %v3152 = vunpack.c.h.b16 %v2630
        %v3153 = vunpack.c.l.b16 %v2631
        %v3154 = vunpack.c.h.b16 %v2631
        %v3155 = vunpack.c.l.b16 %v2632
        %v3156 = vunpack.c.h.b16 %v2632
        %v3157 = vunpack.c.l.b16 %v2633
        %v3158 = vunpack.c.l.b16 %v2634
        %v3159 = vunpack.c.h.b16 %v2634
        %v3160 = vunpack.c.l.b16 %v2635
        %v3161 = vunpack.c.h.b16 %v2635
        %v3162 = vunpack.c.l.b16 %v2636
        %v3163 = vunpack.c.h.b16 %v2636
        %v3164 = vunpack.c.l.b16 %v2637
        %v3165 = vunpack.c.h.b16 %v2637
        %v3166 = vunpack.c.l.b16 %v2638
        %v3167 = vunpack.c.l.b16 %v2639
        %v3168 = vunpack.c.h.b16 %v2639
        %v3169 = vunpack.c.l.b16 %v2640
        %v3170 = vunpack.c.h.b16 %v2640
        %v3171 = vunpack.c.l.b16 %v2641
        %v3172 = vunpack.c.h.b16 %v2641
        %v3173 = vunpack.c.l.b16 %v2642
        %v3174 = vunpack.c.h.b16 %v2642
        %v3175 = vunpack.c.l.b16 %v2643
        %v3176 = vunpack.c.l.b16 %v2644
        %v3177 = vunpack.c.h.b16 %v2644
        %v3178 = vunpack.c.l.b16 %v2645
        %v3179 = vunpack.c.h.b16 %v2645
        %v3180 = vunpack.c.l.b16 %v2646
        %v3181 = vunpack.c.h.b16 %v2646
        %v3182 = vunpack.c.l.b16 %v2647
        %v3183 = vunpack.c.h.b16 %v2647
        %v3184 = vunpack.c.l.b16 %v2648
        %v3185 = vunpack.c.l.b16 %v2649
        %v3186 = vunpack.c.h.b16 %v2649
        %v3187 = vunpack.c.l.b16 %v2650
        %v3188 = vunpack.c.h.b16 %v2650
        %v3189 = vunpack.c.l.b16 %v2651
        %v3190 = vunpack.c.h.b16 %v2651
        %v3191 = vunpack.c.l.b16 %v2652
        %v3192 = vunpack.c.h.b16 %v2652
        %v3193 = vunpack.c.l.b16 %v2653
        %v3194 = vunpack.c.l.b16 %v2654
        %v3195 = vunpack.c.h.b16 %v2654
        %v3196 = vunpack.c.l.b16 %v2655
        %v3197 = vunpack.c.h.b16 %v2655
        %v3198 = vunpack.c.l.b16 %v2656
        %v3199 = vunpack.c.h.b16 %v2656
        %v3200 = vunpack.c.l.b16 %v2657
        %v3201 = vunpack.c.h.b16 %v2657
        %v3202 = vunpack.c.l.b16 %v2658
        %v3203 = vunpack.c.l.b16 %v2659
        %v3204 = vunpack.c.h.b16 %v2659
        %v3205 = vunpack.c.l.b16 %v2660
        %v3206 = vunpack.c.h.b16 %v2660
        %v3207 = vunpack.c.l.b16 %v2661
        %v3208 = vunpack.c.h.b16 %v2661
        %v3209 = vunpack.c.l.b16 %v2662
        %v3210 = vunpack.c.h.b16 %v2662
        %v3211 = vunpack.c.l.b16 %v2663
        %v3212 = vunpack.c.l.b16 %v2664
        %v3213 = vunpack.c.h.b16 %v2664
        %v3214 = vunpack.c.l.b16 %v2665
        %v3215 = vunpack.c.h.b16 %v2665
        %v3216 = vunpack.c.l.b16 %v2666
        %v3217 = vunpack.c.h.b16 %v2666
        %v3218 = vunpack.c.l.b16 %v2667
        %v3219 = vunpack.c.h.b16 %v2667
        %v3220 = vunpack.c.l.b16 %v2668
        %v3221 = vunpack.c.l.b16 %v2669
        %v3222 = vunpack.c.h.b16 %v2669
        %v3223 = vunpack.c.l.b16 %v2670
        %v3224 = vunpack.c.h.b16 %v2670
        %v3225 = vunpack.c.l.b16 %v2671
        %v3226 = vunpack.c.h.b16 %v2671
        %v3227 = vunpack.c.l.b16 %v2672
        %v3228 = vunpack.c.h.b16 %v2672
        %v3229 = vunpack.c.l.b16 %v2673
        %v3230 = vunpack.c.l.b16 %v2674
        %v3231 = vunpack.c.h.b16 %v2674
        %v3232 = vunpack.c.l.b16 %v2675
        %v3233 = vunpack.c.h.b16 %v2675
        %v3234 = vunpack.c.l.b16 %v2676
        %v3235 = vunpack.c.h.b16 %v2676
        %v3236 = vunpack.c.l.b16 %v2677
        %v3237 = vunpack.c.h.b16 %v2677
        %v3238 = vunpack.c.l.b16 %v2678
        %v3239 = vunpack.c.l.b16 %v2679
        %v3240 = vunpack.c.h.b16 %v2679
        %v3241 = vunpack.c.l.b16 %v2680
        %v3242 = vunpack.c.h.b16 %v2680
        %v3243 = vunpack.c.l.b16 %v2681
        %v3244 = vunpack.c.h.b16 %v2681
        %v3245 = vunpack.c.l.b16 %v2682
        %v3246 = vunpack.c.h.b16 %v2682
        %v3247 = vunpack.c.l.b16 %v2683
        %v3248 = vunpack.c.l.b16 %v2684
        %v3249 = vunpack.c.h.b16 %v2684
        %v3250 = vunpack.c.l.b16 %v2685
        %v3251 = vunpack.c.h.b16 %v2685
        %v3252 = vunpack.c.l.b16 %v2686
        %v3253 = vunpack.c.h.b16 %v2686
        %v3254 = vunpack.c.l.b16 %v2687
        %v3255 = vunpack.c.h.b16 %v2687
        %v3256 = vunpack.c.l.b16 %v2688
        %v3257 = vunpack.c.l.b16 %v2689
        %v3258 = vunpack.c.h.b16 %v2689
        %v3259 = vunpack.c.l.b16 %v2690
        %v3260 = vunpack.c.h.b16 %v2690
        %v3261 = vunpack.c.l.b16 %v2691
        %v3262 = vunpack.c.h.b16 %v2691
        %v3263 = vunpack.c.l.b16 %v2692
        %v3264 = vunpack.c.h.b16 %v2692
        %v3265 = vunpack.c.l.b16 %v2693
        %v3266 = vunpack.c.l.b16 %v2694
        %v3267 = vunpack.c.h.b16 %v2694
        %v3268 = vunpack.c.l.b16 %v2695
        %v3269 = vunpack.c.h.b16 %v2695
        %v3270 = vunpack.c.l.b16 %v2696
        %v3271 = vunpack.c.h.b16 %v2696
        %v3272 = vunpack.c.l.b16 %v2697
        %v3273 = vunpack.c.h.b16 %v2697
        %v3274 = vunpack.c.l.b16 %v2698
        %v3275 = vunpack.c.l.b16 %v2699
        %v3276 = vunpack.c.h.b16 %v2699
        %v3277 = vunpack.c.l.b16 %v2700
        %v3278 = vunpack.c.h.b16 %v2700
        %v3279 = vunpack.c.l.b16 %v2701
        %v3280 = vunpack.c.h.b16 %v2701
        %v3281 = vunpack.c.l.b16 %v2702
        %v3282 = vunpack.c.h.b16 %v2702
        %v3283 = vunpack.c.l.b16 %v2703
        %v3284 = vunpack.c.l.b16 %v2704
        %v3285 = vunpack.c.h.b16 %v2704
        %v3286 = vunpack.c.l.b16 %v2705
        %v3287 = vunpack.c.h.b16 %v2705
        %v3288 = vunpack.c.l.b16 %v2706
        %v3289 = vunpack.c.h.b16 %v2706
        %v3290 = vunpack.c.l.b16 %v2707
        %v3291 = vunpack.c.h.b16 %v2707
        %v3292 = vunpack.c.l.b16 %v2708
        %v3293 = vunpack.c.l.b16 %v2709
        %v3294 = vunpack.c.h.b16 %v2709
        %v3295 = vunpack.c.l.b16 %v2710
        %v3296 = vunpack.c.h.b16 %v2710
        %v3297 = vunpack.c.l.b16 %v2711
        %v3298 = vunpack.c.h.b16 %v2711
        %v3299 = vunpack.c.l.b16 %v2712
        %v3300 = vunpack.c.h.b16 %v2712
        %v3301 = vunpack.c.l.b16 %v2713
        %v3302 = vunpack.c.l.b16 %v2714
        %v3303 = vunpack.c.h.b16 %v2714
        %v3304 = vunpack.c.l.b16 %v2715
        %v3305 = vunpack.c.h.b16 %v2715
        %v3306 = vunpack.c.l.b16 %v2716
        %v3307 = vunpack.c.h.b16 %v2716
        %v3308 = vunpack.c.l.b16 %v2717
        %v3309 = vunpack.c.h.b16 %v2717
        %v3310 = vunpack.c.l.b16 %v2718
        %v3311 = vunpack.c.l.b16 %v2719
        %v3312 = vunpack.c.h.b16 %v2719
        %v3313 = vunpack.c.l.b16 %v2720
        %v3314 = vunpack.c.h.b16 %v2720
        %v3315 = vunpack.c.l.b16 %v2721
        %v3316 = vunpack.c.h.b16 %v2721
        %v3317 = vunpack.c.l.b16 %v2722
        %v3318 = vunpack.c.h.b16 %v2722
        %v3319 = vunpack.c.l.b16 %v2723
        %v3320 = vpack.c.b16 %v3041, %v3032
        %v3321 = vpack.c.b16 %v3042, %v3033
        %v3322 = vpack.c.b16 %v3043, %v3034
        %v3323 = vpack.c.b16 %v3044, %v3035
        %v3324 = vpack.c.b16 %v3045, %v3036
        %v3325 = vpack.c.b16 %v3046, %v3037
        %v3326 = vpack.c.b16 %v3047, %v3038
        %v3327 = vpack.c.b16 %v3048, %v3039
        %v3328 = vpack.c.b16 %v3049, %v3040
        %v3329 = vpack.c.b16 %v3059, %v3050
        %v3330 = vpack.c.b16 %v3060, %v3051
        %v3331 = vpack.c.b16 %v3061, %v3052
        %v3332 = vpack.c.b16 %v3062, %v3053
        %v3333 = vpack.c.b16 %v3063, %v3054
        %v3334 = vpack.c.b16 %v3064, %v3055
        %v3335 = vpack.c.b16 %v3065, %v3056
        %v3336 = vpack.c.b16 %v3066, %v3057
        %v3337 = vpack.c.b16 %v3067, %v3058
        %v3338 = vpack.c.b16 %v3077, %v3068
        %v3339 = vpack.c.b16 %v3078, %v3069
        %v3340 = vpack.c.b16 %v3079, %v3070
        %v3341 = vpack.c.b16 %v3080, %v3071
        %v3342 = vpack.c.b16 %v3081, %v3072
        %v3343 = vpack.c.b16 %v3082, %v3073
        %v3344 = vpack.c.b16 %v3083, %v3074
        %v3345 = vpack.c.b16 %v3084, %v3075
        %v3346 = vpack.c.b16 %v3085, %v3076
        %v3347 = vpack.c.b16 %v3095, %v3086
        %v3348 = vpack.c.b16 %v3096, %v3087
        %v3349 = vpack.c.b16 %v3097, %v3088
        %v3350 = vpack.c.b16 %v3098, %v3089
        %v3351 = vpack.c.b16 %v3099, %v3090
        %v3352 = vpack.c.b16 %v3100, %v3091
        %v3353 = vpack.c.b16 %v3101, %v3092
        %v3354 = vpack.c.b16 %v3102, %v3093
        %v3355 = vpack.c.b16 %v3103, %v3094
        %v3356 = vpack.c.b16 %v3113, %v3104
        %v3357 = vpack.c.b16 %v3114, %v3105
        %v3358 = vpack.c.b16 %v3115, %v3106
        %v3359 = vpack.c.b16 %v3116, %v3107
        %v3360 = vpack.c.b16 %v3117, %v3108
        %v3361 = vpack.c.b16 %v3118, %v3109
        %v3362 = vpack.c.b16 %v3119, %v3110
        %v3363 = vpack.c.b16 %v3120, %v3111
        %v3364 = vpack.c.b16 %v3121, %v3112
        %v3365 = vpack.c.b16 %v3131, %v3122
        %v3366 = vpack.c.b16 %v3132, %v3123
        %v3367 = vpack.c.b16 %v3133, %v3124
        %v3368 = vpack.c.b16 %v3134, %v3125
        %v3369 = vpack.c.b16 %v3135, %v3126
        %v3370 = vpack.c.b16 %v3136, %v3127
        %v3371 = vpack.c.b16 %v3137, %v3128
        %v3372 = vpack.c.b16 %v3138, %v3129
        %v3373 = vpack.c.b16 %v3139, %v3130
        %v3374 = vpack.c.b16 %v3149, %v3140
        %v3375 = vpack.c.b16 %v3150, %v3141
        %v3376 = vpack.c.b16 %v3151, %v3142
        %v3377 = vpack.c.b16 %v3152, %v3143
        %v3378 = vpack.c.b16 %v3153, %v3144
        %v3379 = vpack.c.b16 %v3154, %v3145
        %v3380 = vpack.c.b16 %v3155, %v3146
        %v3381 = vpack.c.b16 %v3156, %v3147
        %v3382 = vpack.c.b16 %v3157, %v3148
        %v3383 = vpack.c.b16 %v3167, %v3158
        %v3384 = vpack.c.b16 %v3168, %v3159
        %v3385 = vpack.c.b16 %v3169, %v3160
        %v3386 = vpack.c.b16 %v3170, %v3161
        %v3387 = vpack.c.b16 %v3171, %v3162
        %v3388 = vpack.c.b16 %v3172, %v3163
        %v3389 = vpack.c.b16 %v3173, %v3164
        %v3390 = vpack.c.b16 %v3174, %v3165
        %v3391 = vpack.c.b16 %v3175, %v3166
        %v3392 = vpack.c.b16 %v3185, %v3176
        %v3393 = vpack.c.b16 %v3186, %v3177
        %v3394 = vpack.c.b16 %v3187, %v3178
        %v3395 = vpack.c.b16 %v3188, %v3179
        %v3396 = vpack.c.b16 %v3189, %v3180
        %v3397 = vpack.c.b16 %v3190, %v3181
        %v3398 = vpack.c.b16 %v3191, %v3182
        %v3399 = vpack.c.b16 %v3192, %v3183
        %v3400 = vpack.c.b16 %v3193, %v3184
        %v3401 = vpack.c.b16 %v3203, %v3194
        %v3402 = vpack.c.b16 %v3204, %v3195
        %v3403 = vpack.c.b16 %v3205, %v3196
        %v3404 = vpack.c.b16 %v3206, %v3197
        %v3405 = vpack.c.b16 %v3207, %v3198
        %v3406 = vpack.c.b16 %v3208, %v3199
        %v3407 = vpack.c.b16 %v3209, %v3200
        %v3408 = vpack.c.b16 %v3210, %v3201
        %v3409 = vpack.c.b16 %v3211, %v3202
        %v3410 = vpack.c.b16 %v3221, %v3212
        %v3411 = vpack.c.b16 %v3222, %v3213
        %v3412 = vpack.c.b16 %v3223, %v3214
        %v3413 = vpack.c.b16 %v3224, %v3215
        %v3414 = vpack.c.b16 %v3225, %v3216
        %v3415 = vpack.c.b16 %v3226, %v3217
        %v3416 = vpack.c.b16 %v3227, %v3218
        %v3417 = vpack.c.b16 %v3228, %v3219
        %v3418 = vpack.c.b16 %v3229, %v3220
        %v3419 = vpack.c.b16 %v3239, %v3230
        %v3420 = vpack.c.b16 %v3240, %v3231
        %v3421 = vpack.c.b16 %v3241, %v3232
        %v3422 = vpack.c.b16 %v3242, %v3233
        %v3423 = vpack.c.b16 %v3243, %v3234
        %v3424 = vpack.c.b16 %v3244, %v3235
        %v3425 = vpack.c.b16 %v3245, %v3236
        %v3426 = vpack.c.b16 %v3246, %v3237
        %v3427 = vpack.c.b16 %v3247, %v3238
        %v3428 = vpack.c.b16 %v3257, %v3248
        %v3429 = vpack.c.b16 %v3258, %v3249
        %v3430 = vpack.c.b16 %v3259, %v3250
        %v3431 = vpack.c.b16 %v3260, %v3251
        %v3432 = vpack.c.b16 %v3261, %v3252
        %v3433 = vpack.c.b16 %v3262, %v3253
        %v3434 = vpack.c.b16 %v3263, %v3254
        %v3435 = vpack.c.b16 %v3264, %v3255
        %v3436 = vpack.c.b16 %v3265, %v3256
        %v3437 = vpack.c.b16 %v3275, %v3266
        %v3438 = vpack.c.b16 %v3276, %v3267
        %v3439 = vpack.c.b16 %v3277, %v3268
        %v3440 = vpack.c.b16 %v3278, %v3269
        %v3441 = vpack.c.b16 %v3279, %v3270
        %v3442 = vpack.c.b16 %v3280, %v3271
        %v3443 = vpack.c.b16 %v3281, %v3272
        %v3444 = vpack.c.b16 %v3282, %v3273
        %v3445 = vpack.c.b16 %v3283, %v3274
        %v3446 = vpack.c.b16 %v3293, %v3284
        %v3447 = vpack.c.b16 %v3294, %v3285
        %v3448 = vpack.c.b16 %v3295, %v3286
        %v3449 = vpack.c.b16 %v3296, %v3287
        %v3450 = vpack.c.b16 %v3297, %v3288
        %v3451 = vpack.c.b16 %v3298, %v3289
        %v3452 = vpack.c.b16 %v3299, %v3290
        %v3453 = vpack.c.b16 %v3300, %v3291
        %v3454 = vpack.c.b16 %v3301, %v3292
        %v3455 = vpack.c.b16 %v3311, %v3302
        %v3456 = vpack.c.b16 %v3312, %v3303
        %v3457 = vpack.c.b16 %v3313, %v3304
        %v3458 = vpack.c.b16 %v3314, %v3305
        %v3459 = vpack.c.b16 %v3315, %v3306
        %v3460 = vpack.c.b16 %v3316, %v3307
        %v3461 = vpack.c.b16 %v3317, %v3308
        %v3462 = vpack.c.b16 %v3318, %v3309
        %v3463 = vpack.c.b16 %v3319, %v3310
        %v3752 = vunpack.c.l.b16 %v2724
        %v3753 = vunpack.c.l.b16 %v2725
        %v3754 = vunpack.c.l.b16 %v2726
        %v3755 = vunpack.c.l.b16 %v2727
        %v3756 = vunpack.c.l.b16 %v2728
        %v3757 = vunpack.c.l.b16 %v2729
        %v3758 = vunpack.c.l.b16 %v2730
        %v3759 = vunpack.c.l.b16 %v2731
        %v3760 = vunpack.c.l.b16 %v2732
        %v3761 = vunpack.c.l.b16 %v2733
        %v3762 = vunpack.c.l.b16 %v2734
        %v3763 = vunpack.c.l.b16 %v2735
        %v3764 = vunpack.c.l.b16 %v2736
        %v3765 = vunpack.c.l.b16 %v2737
        %v3766 = vunpack.c.l.b16 %v2738
        %v3767 = vunpack.c.l.b16 %v2739
        %v3768 = vunpack.c.l.b16 %v2740
        %v3769 = vunpack.c.l.b16 %v2741
        %v3770 = vunpack.c.l.b16 %v2742
        %v3771 = vunpack.c.l.b16 %v2743
        %v3772 = vunpack.c.l.b16 %v2744
        %v3773 = vunpack.c.l.b16 %v2745
        %v3774 = vunpack.c.l.b16 %v2746
        %v3775 = vunpack.c.l.b16 %v2747
        %v3776 = vunpack.c.l.b16 %v2748
        %v3777 = vunpack.c.l.b16 %v2749
        %v3778 = vunpack.c.l.b16 %v2750
        %v3779 = vunpack.c.l.b16 %v2751
        %v3780 = vunpack.c.l.b16 %v2752
        %v3781 = vunpack.c.l.b16 %v2753
        %v3782 = vunpack.c.l.b16 %v2754
        %v3783 = vunpack.c.l.b16 %v2755
        %v3784 = vunpack.c.l.b16 %v2756
        %v3785 = vunpack.c.l.b16 %v2757
        %v3786 = vunpack.c.l.b16 %v2758
        %v3787 = vunpack.c.l.b16 %v2759
        %v3788 = vunpack.c.l.b16 %v2760
        %v3789 = vunpack.c.l.b16 %v2761
        %v3790 = vunpack.c.l.b16 %v2762
        %v3791 = vunpack.c.l.b16 %v2763
        %v3792 = vunpack.c.l.b16 %v2764
        %v3793 = vunpack.c.l.b16 %v2765
        %v3794 = vunpack.c.l.b16 %v2766
        %v3795 = vunpack.c.l.b16 %v2767
        %v3796 = vunpack.c.l.b16 %v2768
        %v3797 = vunpack.c.l.b16 %v2769
        %v3798 = vunpack.c.l.b16 %v2770
        %v3799 = vunpack.c.l.b16 %v2771
        %v3800 = vunpack.c.l.b16 %v2772
        %v3801 = vunpack.c.l.b16 %v2773
        %v3802 = vunpack.c.l.b16 %v2774
        %v3803 = vunpack.c.l.b16 %v2775
        %v3804 = vunpack.c.l.b16 %v2776
        %v3805 = vunpack.c.l.b16 %v2777
        %v3806 = vunpack.c.l.b16 %v2778
        %v3807 = vunpack.c.l.b16 %v2779
        %v3808 = vunpack.c.l.b16 %v2780
        %v3809 = vunpack.c.l.b16 %v2781
        %v3810 = vunpack.c.l.b16 %v2782
        %v3811 = vunpack.c.l.b16 %v2783
        %v3812 = vunpack.c.l.b16 %v2784
        %v3813 = vunpack.c.l.b16 %v2785
        %v3814 = vunpack.c.l.b16 %v2786
        %v3815 = vunpack.c.l.b16 %v2787
        %v3816 = vunpack.c.l.b16 %v2788
        %v3817 = vunpack.c.l.b16 %v2789
        %v3818 = vunpack.c.l.b16 %v2790
        %v3819 = vunpack.c.l.b16 %v2791
        %v3820 = vunpack.c.l.b16 %v2792
        %v3821 = vunpack.c.l.b16 %v2793
        %v3822 = vunpack.c.l.b16 %v2794
        %v3823 = vunpack.c.l.b16 %v2795
        %v3824 = vunpack.c.l.b16 %v2796
        %v3825 = vunpack.c.l.b16 %v2797
        %v3826 = vunpack.c.l.b16 %v2798
        %v3827 = vunpack.c.l.b16 %v2799
        %v3828 = vunpack.c.l.b16 %v2800
        %v3829 = vunpack.c.l.b16 %v2801
        %v3830 = vunpack.c.l.b16 %v2802
        %v3831 = vunpack.c.l.b16 %v2803
        %v3832 = vunpack.c.l.b16 %v2804
        %v3833 = vunpack.c.l.b16 %v2805
        %v3834 = vunpack.c.l.b16 %v2806
        %v3835 = vunpack.c.l.b16 %v2807
        %v3836 = vunpack.c.l.b16 %v2808
        %v3837 = vunpack.c.l.b16 %v2809
        %v3838 = vunpack.c.l.b16 %v2810
        %v3839 = vunpack.c.l.b16 %v2811
        %v3840 = vunpack.c.l.b16 %v2812
        %v3841 = vunpack.c.l.b16 %v2813
        %v3842 = vunpack.c.l.b16 %v2814
        %v3843 = vunpack.c.l.b16 %v2815
        %v3844 = vunpack.c.l.b16 %v2816
        %v3845 = vunpack.c.l.b16 %v2817
        %v3846 = vunpack.c.l.b16 %v2818
        %v3847 = vunpack.c.l.b16 %v2819
        %v3848 = vunpack.c.l.b16 %v2820
        %v3849 = vunpack.c.l.b16 %v2821
        %v3850 = vunpack.c.l.b16 %v2822
        %v3851 = vunpack.c.l.b16 %v2823
        %v3852 = vunpack.c.l.b16 %v2824
        %v3853 = vunpack.c.l.b16 %v2825
        %v3854 = vunpack.c.l.b16 %v2826
        %v3855 = vunpack.c.l.b16 %v2827
        %v3856 = vunpack.c.l.b16 %v2828
        %v3857 = vunpack.c.l.b16 %v2829
        %v3858 = vunpack.c.l.b16 %v2830
        %v3859 = vunpack.c.l.b16 %v2831
        %v3860 = vunpack.c.l.b16 %v2832
        %v3861 = vunpack.c.l.b16 %v2833
        %v3862 = vunpack.c.l.b16 %v2834
        %v3863 = vunpack.c.l.b16 %v2835
        %v3864 = vunpack.c.l.b16 %v2836
        %v3865 = vunpack.c.l.b16 %v2837
        %v3866 = vunpack.c.l.b16 %v2838
        %v3867 = vunpack.c.l.b16 %v2839
        %v3868 = vunpack.c.l.b16 %v2840
        %v3869 = vunpack.c.l.b16 %v2841
        %v3870 = vunpack.c.l.b16 %v2842
        %v3871 = vunpack.c.l.b16 %v2843
        %v3872 = vunpack.c.l.b16 %v2844
        %v3873 = vunpack.c.l.b16 %v2845
        %v3874 = vunpack.c.l.b16 %v2846
        %v3875 = vunpack.c.l.b16 %v2847
        %v3876 = vunpack.c.l.b16 %v2848
        %v3877 = vunpack.c.l.b16 %v2849
        %v3878 = vunpack.c.l.b16 %v2850
        %v3879 = vunpack.c.l.b16 %v2851
        %v3880 = vunpack.c.l.b16 %v2852
        %v3881 = vunpack.c.l.b16 %v2853
        %v3882 = vunpack.c.l.b16 %v2854
        %v3883 = vunpack.c.l.b16 %v2855
        %v3884 = vunpack.c.l.b16 %v2856
        %v3885 = vunpack.c.l.b16 %v2857
        %v3886 = vunpack.c.l.b16 %v2858
        %v3887 = vunpack.c.l.b16 %v2859
        %v3888 = vunpack.c.l.b16 %v2860
        %v3889 = vunpack.c.l.b16 %v2861
        %v3890 = vunpack.c.l.b16 %v2862
        %v3891 = vunpack.c.l.b16 %v2863
        %v3892 = vunpack.c.l.b16 %v2864
        %v3893 = vunpack.c.l.b16 %v2865
        %v3894 = vunpack.c.l.b16 %v2866
        %v3895 = vunpack.c.l.b16 %v2867
        %v3896 = vpack.c.b16 %v3753, %v3752
        %v3897 = vpack.c.b16 %v3755, %v3754
        %v3898 = vpack.c.b16 %v3757, %v3756
        %v3899 = vpack.c.b16 %v3759, %v3758
        %v3900 = vpack.c.b16 %v3761, %v3760
        %v3901 = vpack.c.b16 %v3763, %v3762
        %v3902 = vpack.c.b16 %v3765, %v3764
        %v3903 = vpack.c.b16 %v3767, %v3766
        %v3904 = vpack.c.b16 %v3769, %v3768
        %v3905 = vpack.c.b16 %v3771, %v3770
        %v3906 = vpack.c.b16 %v3773, %v3772
        %v3907 = vpack.c.b16 %v3775, %v3774
        %v3908 = vpack.c.b16 %v3777, %v3776
        %v3909 = vpack.c.b16 %v3779, %v3778
        %v3910 = vpack.c.b16 %v3781, %v3780
        %v3911 = vpack.c.b16 %v3783, %v3782
        %v3912 = vpack.c.b16 %v3785, %v3784
        %v3913 = vpack.c.b16 %v3787, %v3786
        %v3914 = vpack.c.b16 %v3789, %v3788
        %v3915 = vpack.c.b16 %v3791, %v3790
        %v3916 = vpack.c.b16 %v3793, %v3792
        %v3917 = vpack.c.b16 %v3795, %v3794
        %v3918 = vpack.c.b16 %v3797, %v3796
        %v3919 = vpack.c.b16 %v3799, %v3798
        %v3920 = vpack.c.b16 %v3801, %v3800
        %v3921 = vpack.c.b16 %v3803, %v3802
        %v3922 = vpack.c.b16 %v3805, %v3804
        %v3923 = vpack.c.b16 %v3807, %v3806
        %v3924 = vpack.c.b16 %v3809, %v3808
        %v3925 = vpack.c.b16 %v3811, %v3810
        %v3926 = vpack.c.b16 %v3813, %v3812
        %v3927 = vpack.c.b16 %v3815, %v3814
        %v3928 = vpack.c.b16 %v3817, %v3816
        %v3929 = vpack.c.b16 %v3819, %v3818
        %v3930 = vpack.c.b16 %v3821, %v3820
        %v3931 = vpack.c.b16 %v3823, %v3822
        %v3932 = vpack.c.b16 %v3825, %v3824
        %v3933 = vpack.c.b16 %v3827, %v3826
        %v3934 = vpack.c.b16 %v3829, %v3828
        %v3935 = vpack.c.b16 %v3831, %v3830
        %v3936 = vpack.c.b16 %v3833, %v3832
        %v3937 = vpack.c.b16 %v3835, %v3834
        %v3938 = vpack.c.b16 %v3837, %v3836
        %v3939 = vpack.c.b16 %v3839, %v3838
        %v3940 = vpack.c.b16 %v3841, %v3840
        %v3941 = vpack.c.b16 %v3843, %v3842
        %v3942 = vpack.c.b16 %v3845, %v3844
        %v3943 = vpack.c.b16 %v3847, %v3846
        %v3944 = vpack.c.b16 %v3849, %v3848
        %v3945 = vpack.c.b16 %v3851, %v3850
        %v3946 = vpack.c.b16 %v3853, %v3852
        %v3947 = vpack.c.b16 %v3855, %v3854
        %v3948 = vpack.c.b16 %v3857, %v3856
        %v3949 = vpack.c.b16 %v3859, %v3858
        %v3950 = vpack.c.b16 %v3861, %v3860
        %v3951 = vpack.c.b16 %v3863, %v3862
        %v3952 = vpack.c.b16 %v3865, %v3864
        %v3953 = vpack.c.b16 %v3867, %v3866
        %v3954 = vpack.c.b16 %v3869, %v3868
        %v3955 = vpack.c.b16 %v3871, %v3870
        %v3956 = vpack.c.b16 %v3873, %v3872
        %v3957 = vpack.c.b16 %v3875, %v3874
        %v3958 = vpack.c.b16 %v3877, %v3876
        %v3959 = vpack.c.b16 %v3879, %v3878
        %v3960 = vpack.c.b16 %v3881, %v3880
        %v3961 = vpack.c.b16 %v3883, %v3882
        %v3962 = vpack.c.b16 %v3885, %v3884
        %v3963 = vpack.c.b16 %v3887, %v3886
        %v3964 = vpack.c.b16 %v3889, %v3888
        %v3965 = vpack.c.b16 %v3891, %v3890
        %v3966 = vpack.c.b16 %v3893, %v3892
        %v3967 = vpack.c.b16 %v3895, %v3894
        %4040 = vmatpush.bf16.msra.mxu0 %v3903
        %4041 = vmatpush.bf16.msra.mxu0 %v3902
        %4042 = vmatpush.bf16.msra.mxu0 %v3901
        %4043 = vmatpush.bf16.msra.mxu0 %v3900
        %4044 = vmatpush.bf16.msra.mxu0 %v3899
        %4045 = vmatpush.bf16.msra.mxu0 %v3898
        %4046 = vmatpush.bf16.msra.mxu0 %v3897
        %4047 = vmatpush.bf16.msra.mxu0 %v3896
        %4048 = vmatmul.bf16.gmra.mxu0 %v3320
        %v4049 = vpop.f32.mrf.mxu0
        %v4050 = vadd.f32 %v2870, %v4049
        %v4051 = vpop.f32.mrf.mxu0
        %v4052 = vadd.f32 %v2870, %v4051
        %4053 = vmatmul.bf16.gmra.mxu0 %v3329
        %v4054 = vpop.f32.mrf.mxu0
        %v4055 = vadd.f32 %v2870, %v4054
        %v4056 = vpop.f32.mrf.mxu0
        %v4057 = vadd.f32 %v2870, %v4056
        %4058 = vmatmul.bf16.gmra.mxu0 %v3338
        %v4059 = vpop.f32.mrf.mxu0
        %v4060 = vadd.f32 %v2870, %v4059
        %v4061 = vpop.f32.mrf.mxu0
        %v4062 = vadd.f32 %v2870, %v4061
        %4063 = vmatmul.bf16.gmra.mxu0 %v3347
        %v4064 = vpop.f32.mrf.mxu0
        %v4065 = vadd.f32 %v2870, %v4064
        %v4066 = vpop.f32.mrf.mxu0
        %v4067 = vadd.f32 %v2870, %v4066
        %4068 = vmatmul.bf16.gmra.mxu0 %v3356
        %v4069 = vpop.f32.mrf.mxu0
        %v4070 = vadd.f32 %v2870, %v4069
        %v4071 = vpop.f32.mrf.mxu0
        %v4072 = vadd.f32 %v2870, %v4071
        %4073 = vmatmul.bf16.gmra.mxu0 %v3365
        %v4074 = vpop.f32.mrf.mxu0
        %v4075 = vadd.f32 %v2870, %v4074
        %v4076 = vpop.f32.mrf.mxu0
        %v4077 = vadd.f32 %v2870, %v4076
        %4078 = vmatmul.bf16.gmra.mxu0 %v3374
        %v4079 = vpop.f32.mrf.mxu0
        %v4080 = vadd.f32 %v2870, %v4079
        %v4081 = vpop.f32.mrf.mxu0
        %v4082 = vadd.f32 %v2870, %v4081
        %4083 = vmatmul.bf16.gmra.mxu0 %v3383
        %v4084 = vpop.f32.mrf.mxu0
        %v4085 = vadd.f32 %v2870, %v4084
        %v4086 = vpop.f32.mrf.mxu0
        %v4087 = vadd.f32 %v2870, %v4086
        %4088 = vmatmul.bf16.gmra.mxu0 %v3392
        %v4089 = vpop.f32.mrf.mxu0
        %v4090 = vadd.f32 %v2870, %v4089
        %v4091 = vpop.f32.mrf.mxu0
        %v4092 = vadd.f32 %v2870, %v4091
        %4093 = vmatmul.bf16.gmra.mxu0 %v3401
        %v4094 = vpop.f32.mrf.mxu0
        %v4095 = vadd.f32 %v2870, %v4094
        %v4096 = vpop.f32.mrf.mxu0
        %v4097 = vadd.f32 %v2870, %v4096
        %4098 = vmatmul.bf16.gmra.mxu0 %v3410
        %v4099 = vpop.f32.mrf.mxu0
        %v4100 = vadd.f32 %v2870, %v4099
        %v4101 = vpop.f32.mrf.mxu0
        %v4102 = vadd.f32 %v2870, %v4101
        %4103 = vmatmul.bf16.gmra.mxu0 %v3419
        %v4104 = vpop.f32.mrf.mxu0
        %v4105 = vadd.f32 %v2870, %v4104
        %v4106 = vpop.f32.mrf.mxu0
        %v4107 = vadd.f32 %v2870, %v4106
        %4108 = vmatmul.bf16.gmra.mxu0 %v3428
        %v4109 = vpop.f32.mrf.mxu0
        %v4110 = vadd.f32 %v2870, %v4109
        %v4111 = vpop.f32.mrf.mxu0
        %v4112 = vadd.f32 %v2870, %v4111
        %4113 = vmatmul.bf16.gmra.mxu0 %v3437
        %v4114 = vpop.f32.mrf.mxu0
        %v4115 = vadd.f32 %v2870, %v4114
        %v4116 = vpop.f32.mrf.mxu0
        %v4117 = vadd.f32 %v2870, %v4116
        %4118 = vmatmul.bf16.gmra.mxu0 %v3446
        %v4119 = vpop.f32.mrf.mxu0
        %v4120 = vadd.f32 %v2870, %v4119
        %v4121 = vpop.f32.mrf.mxu0
        %v4122 = vadd.f32 %v2870, %v4121
        %4123 = vmatmul.bf16.gmra.mxu0 %v3455
        %v4124 = vpop.f32.mrf.mxu0
        %v4125 = vadd.f32 %v2870, %v4124
        %v4126 = vpop.f32.mrf.mxu0
        %v4127 = vadd.f32 %v2870, %v4126
        %4128 = vdwg.mxu0
        %4129 = vmatpush.bf16.msra.mxu0 %v3911
        %4130 = vmatpush.bf16.msra.mxu0 %v3910
        %4131 = vmatpush.bf16.msra.mxu0 %v3909
        %4132 = vmatpush.bf16.msra.mxu0 %v3908
        %4133 = vmatpush.bf16.msra.mxu0 %v3907
        %4134 = vmatpush.bf16.msra.mxu0 %v3906
        %4135 = vmatpush.bf16.msra.mxu0 %v3905
        %4136 = vmatpush.bf16.msra.mxu0 %v3904
        %4137 = vmatmul.bf16.gmra.mxu0 %v3321
        %v4138 = vpop.f32.mrf.mxu0
        %v4139 = vadd.f32 %v4050, %v4138
        %v4140 = vpop.f32.mrf.mxu0
        %v4141 = vadd.f32 %v4052, %v4140
        %4142 = vmatmul.bf16.gmra.mxu0 %v3330
        %v4143 = vpop.f32.mrf.mxu0
        %v4144 = vadd.f32 %v4055, %v4143
        %v4145 = vpop.f32.mrf.mxu0
        %v4146 = vadd.f32 %v4057, %v4145
        %4147 = vmatmul.bf16.gmra.mxu0 %v3339
        %v4148 = vpop.f32.mrf.mxu0
        %v4149 = vadd.f32 %v4060, %v4148
        %v4150 = vpop.f32.mrf.mxu0
        %v4151 = vadd.f32 %v4062, %v4150
        %4152 = vmatmul.bf16.gmra.mxu0 %v3348
        %v4153 = vpop.f32.mrf.mxu0
        %v4154 = vadd.f32 %v4065, %v4153
        %v4155 = vpop.f32.mrf.mxu0
        %v4156 = vadd.f32 %v4067, %v4155
        %4157 = vmatmul.bf16.gmra.mxu0 %v3357
        %v4158 = vpop.f32.mrf.mxu0
        %v4159 = vadd.f32 %v4070, %v4158
        %v4160 = vpop.f32.mrf.mxu0
        %v4161 = vadd.f32 %v4072, %v4160
        %4162 = vmatmul.bf16.gmra.mxu0 %v3366
        %v4163 = vpop.f32.mrf.mxu0
        %v4164 = vadd.f32 %v4075, %v4163
        %v4165 = vpop.f32.mrf.mxu0
        %v4166 = vadd.f32 %v4077, %v4165
        %4167 = vmatmul.bf16.gmra.mxu0 %v3375
        %v4168 = vpop.f32.mrf.mxu0
        %v4169 = vadd.f32 %v4080, %v4168
        %v4170 = vpop.f32.mrf.mxu0
        %v4171 = vadd.f32 %v4082, %v4170
        %4172 = vmatmul.bf16.gmra.mxu0 %v3384
        %v4173 = vpop.f32.mrf.mxu0
        %v4174 = vadd.f32 %v4085, %v4173
        %v4175 = vpop.f32.mrf.mxu0
        %v4176 = vadd.f32 %v4087, %v4175
        %4177 = vmatmul.bf16.gmra.mxu0 %v3393
        %v4178 = vpop.f32.mrf.mxu0
        %v4179 = vadd.f32 %v4090, %v4178
        %v4180 = vpop.f32.mrf.mxu0
        %v4181 = vadd.f32 %v4092, %v4180
        %4182 = vmatmul.bf16.gmra.mxu0 %v3402
        %v4183 = vpop.f32.mrf.mxu0
        %v4184 = vadd.f32 %v4095, %v4183
        %v4185 = vpop.f32.mrf.mxu0
        %v4186 = vadd.f32 %v4097, %v4185
        %4187 = vmatmul.bf16.gmra.mxu0 %v3411
        %v4188 = vpop.f32.mrf.mxu0
        %v4189 = vadd.f32 %v4100, %v4188
        %v4190 = vpop.f32.mrf.mxu0
        %v4191 = vadd.f32 %v4102, %v4190
        %4192 = vmatmul.bf16.gmra.mxu0 %v3420
        %v4193 = vpop.f32.mrf.mxu0
        %v4194 = vadd.f32 %v4105, %v4193
        %v4195 = vpop.f32.mrf.mxu0
        %v4196 = vadd.f32 %v4107, %v4195
        %4197 = vmatmul.bf16.gmra.mxu0 %v3429
        %v4198 = vpop.f32.mrf.mxu0
        %v4199 = vadd.f32 %v4110, %v4198
        %v4200 = vpop.f32.mrf.mxu0
        %v4201 = vadd.f32 %v4112, %v4200
        %4202 = vmatmul.bf16.gmra.mxu0 %v3438
        %v4203 = vpop.f32.mrf.mxu0
        %v4204 = vadd.f32 %v4115, %v4203
        %v4205 = vpop.f32.mrf.mxu0
        %v4206 = vadd.f32 %v4117, %v4205
        %4207 = vmatmul.bf16.gmra.mxu0 %v3447
        %v4208 = vpop.f32.mrf.mxu0
        %v4209 = vadd.f32 %v4120, %v4208
        %v4210 = vpop.f32.mrf.mxu0
        %v4211 = vadd.f32 %v4122, %v4210
        %4212 = vmatmul.bf16.gmra.mxu0 %v3456
        %v4213 = vpop.f32.mrf.mxu0
        %v4214 = vadd.f32 %v4125, %v4213
        %v4215 = vpop.f32.mrf.mxu0
        %v4216 = vadd.f32 %v4127, %v4215
        %4217 = vdwg.mxu0
        %4218 = vmatpush.bf16.msra.mxu0 %v3919
        %4219 = vmatpush.bf16.msra.mxu0 %v3918
        %4220 = vmatpush.bf16.msra.mxu0 %v3917
        %4221 = vmatpush.bf16.msra.mxu0 %v3916
        %4222 = vmatpush.bf16.msra.mxu0 %v3915
        %4223 = vmatpush.bf16.msra.mxu0 %v3914
        %4224 = vmatpush.bf16.msra.mxu0 %v3913
        %4225 = vmatpush.bf16.msra.mxu0 %v3912
        %4226 = vmatmul.bf16.gmra.mxu0 %v3322
        %v4227 = vpop.f32.mrf.mxu0
        %v4228 = vadd.f32 %v4139, %v4227
        %v4229 = vpop.f32.mrf.mxu0
        %v4230 = vadd.f32 %v4141, %v4229
        %4231 = vmatmul.bf16.gmra.mxu0 %v3331
        %v4232 = vpop.f32.mrf.mxu0
        %v4233 = vadd.f32 %v4144, %v4232
        %v4234 = vpop.f32.mrf.mxu0
        %v4235 = vadd.f32 %v4146, %v4234
        %4236 = vmatmul.bf16.gmra.mxu0 %v3340
        %v4237 = vpop.f32.mrf.mxu0
        %v4238 = vadd.f32 %v4149, %v4237
        %v4239 = vpop.f32.mrf.mxu0
        %v4240 = vadd.f32 %v4151, %v4239
        %4241 = vmatmul.bf16.gmra.mxu0 %v3349
        %v4242 = vpop.f32.mrf.mxu0
        %v4243 = vadd.f32 %v4154, %v4242
        %v4244 = vpop.f32.mrf.mxu0
        %v4245 = vadd.f32 %v4156, %v4244
        %4246 = vmatmul.bf16.gmra.mxu0 %v3358
        %v4247 = vpop.f32.mrf.mxu0
        %v4248 = vadd.f32 %v4159, %v4247
        %v4249 = vpop.f32.mrf.mxu0
        %v4250 = vadd.f32 %v4161, %v4249
        %4251 = vmatmul.bf16.gmra.mxu0 %v3367
        %v4252 = vpop.f32.mrf.mxu0
        %v4253 = vadd.f32 %v4164, %v4252
        %v4254 = vpop.f32.mrf.mxu0
        %v4255 = vadd.f32 %v4166, %v4254
        %4256 = vmatmul.bf16.gmra.mxu0 %v3376
        %v4257 = vpop.f32.mrf.mxu0
        %v4258 = vadd.f32 %v4169, %v4257
        %v4259 = vpop.f32.mrf.mxu0
        %v4260 = vadd.f32 %v4171, %v4259
        %4261 = vmatmul.bf16.gmra.mxu0 %v3385
        %v4262 = vpop.f32.mrf.mxu0
        %v4263 = vadd.f32 %v4174, %v4262
        %v4264 = vpop.f32.mrf.mxu0
        %v4265 = vadd.f32 %v4176, %v4264
        %4266 = vmatmul.bf16.gmra.mxu0 %v3394
        %v4267 = vpop.f32.mrf.mxu0
        %v4268 = vadd.f32 %v4179, %v4267
        %v4269 = vpop.f32.mrf.mxu0
        %v4270 = vadd.f32 %v4181, %v4269
        %4271 = vmatmul.bf16.gmra.mxu0 %v3403
        %v4272 = vpop.f32.mrf.mxu0
        %v4273 = vadd.f32 %v4184, %v4272
        %v4274 = vpop.f32.mrf.mxu0
        %v4275 = vadd.f32 %v4186, %v4274
        %4276 = vmatmul.bf16.gmra.mxu0 %v3412
        %v4277 = vpop.f32.mrf.mxu0
        %v4278 = vadd.f32 %v4189, %v4277
        %v4279 = vpop.f32.mrf.mxu0
        %v4280 = vadd.f32 %v4191, %v4279
        %4281 = vmatmul.bf16.gmra.mxu0 %v3421
        %v4282 = vpop.f32.mrf.mxu0
        %v4283 = vadd.f32 %v4194, %v4282
        %v4284 = vpop.f32.mrf.mxu0
        %v4285 = vadd.f32 %v4196, %v4284
        %4286 = vmatmul.bf16.gmra.mxu0 %v3430
        %v4287 = vpop.f32.mrf.mxu0
        %v4288 = vadd.f32 %v4199, %v4287
        %v4289 = vpop.f32.mrf.mxu0
        %v4290 = vadd.f32 %v4201, %v4289
        %4291 = vmatmul.bf16.gmra.mxu0 %v3439
        %v4292 = vpop.f32.mrf.mxu0
        %v4293 = vadd.f32 %v4204, %v4292
        %v4294 = vpop.f32.mrf.mxu0
        %v4295 = vadd.f32 %v4206, %v4294
        %4296 = vmatmul.bf16.gmra.mxu0 %v3448
        %v4297 = vpop.f32.mrf.mxu0
        %v4298 = vadd.f32 %v4209, %v4297
        %v4299 = vpop.f32.mrf.mxu0
        %v4300 = vadd.f32 %v4211, %v4299
        %4301 = vmatmul.bf16.gmra.mxu0 %v3457
        %v4302 = vpop.f32.mrf.mxu0
        %v4303 = vadd.f32 %v4214, %v4302
        %v4304 = vpop.f32.mrf.mxu0
        %v4305 = vadd.f32 %v4216, %v4304
        %4306 = vdwg.mxu0
        %4307 = vmatpush.bf16.msra.mxu0 %v3927
        %4308 = vmatpush.bf16.msra.mxu0 %v3926
        %4309 = vmatpush.bf16.msra.mxu0 %v3925
        %4310 = vmatpush.bf16.msra.mxu0 %v3924
        %4311 = vmatpush.bf16.msra.mxu0 %v3923
        %4312 = vmatpush.bf16.msra.mxu0 %v3922
        %4313 = vmatpush.bf16.msra.mxu0 %v3921
        %4314 = vmatpush.bf16.msra.mxu0 %v3920
        %4315 = vmatmul.bf16.gmra.mxu0 %v3323
        %v4316 = vpop.f32.mrf.mxu0
        %v4317 = vadd.f32 %v4228, %v4316
        %v4318 = vpop.f32.mrf.mxu0
        %v4319 = vadd.f32 %v4230, %v4318
        %4320 = vmatmul.bf16.gmra.mxu0 %v3332
        %v4321 = vpop.f32.mrf.mxu0
        %v4322 = vadd.f32 %v4233, %v4321
        %v4323 = vpop.f32.mrf.mxu0
        %v4324 = vadd.f32 %v4235, %v4323
        %4325 = vmatmul.bf16.gmra.mxu0 %v3341
        %v4326 = vpop.f32.mrf.mxu0
        %v4327 = vadd.f32 %v4238, %v4326
        %v4328 = vpop.f32.mrf.mxu0
        %v4329 = vadd.f32 %v4240, %v4328
        %4330 = vmatmul.bf16.gmra.mxu0 %v3350
        %v4331 = vpop.f32.mrf.mxu0
        %v4332 = vadd.f32 %v4243, %v4331
        %v4333 = vpop.f32.mrf.mxu0
        %v4334 = vadd.f32 %v4245, %v4333
        %4335 = vmatmul.bf16.gmra.mxu0 %v3359
        %v4336 = vpop.f32.mrf.mxu0
        %v4337 = vadd.f32 %v4248, %v4336
        %v4338 = vpop.f32.mrf.mxu0
        %v4339 = vadd.f32 %v4250, %v4338
        %4340 = vmatmul.bf16.gmra.mxu0 %v3368
        %v4341 = vpop.f32.mrf.mxu0
        %v4342 = vadd.f32 %v4253, %v4341
        %v4343 = vpop.f32.mrf.mxu0
        %v4344 = vadd.f32 %v4255, %v4343
        %4345 = vmatmul.bf16.gmra.mxu0 %v3377
        %v4346 = vpop.f32.mrf.mxu0
        %v4347 = vadd.f32 %v4258, %v4346
        %v4348 = vpop.f32.mrf.mxu0
        %v4349 = vadd.f32 %v4260, %v4348
        %4350 = vmatmul.bf16.gmra.mxu0 %v3386
        %v4351 = vpop.f32.mrf.mxu0
        %v4352 = vadd.f32 %v4263, %v4351
        %v4353 = vpop.f32.mrf.mxu0
        %v4354 = vadd.f32 %v4265, %v4353
        %4355 = vmatmul.bf16.gmra.mxu0 %v3395
        %v4356 = vpop.f32.mrf.mxu0
        %v4357 = vadd.f32 %v4268, %v4356
        %v4358 = vpop.f32.mrf.mxu0
        %v4359 = vadd.f32 %v4270, %v4358
        %4360 = vmatmul.bf16.gmra.mxu0 %v3404
        %v4361 = vpop.f32.mrf.mxu0
        %v4362 = vadd.f32 %v4273, %v4361
        %v4363 = vpop.f32.mrf.mxu0
        %v4364 = vadd.f32 %v4275, %v4363
        %4365 = vmatmul.bf16.gmra.mxu0 %v3413
        %v4366 = vpop.f32.mrf.mxu0
        %v4367 = vadd.f32 %v4278, %v4366
        %v4368 = vpop.f32.mrf.mxu0
        %v4369 = vadd.f32 %v4280, %v4368
        %4370 = vmatmul.bf16.gmra.mxu0 %v3422
        %v4371 = vpop.f32.mrf.mxu0
        %v4372 = vadd.f32 %v4283, %v4371
        %v4373 = vpop.f32.mrf.mxu0
        %v4374 = vadd.f32 %v4285, %v4373
        %4375 = vmatmul.bf16.gmra.mxu0 %v3431
        %v4376 = vpop.f32.mrf.mxu0
        %v4377 = vadd.f32 %v4288, %v4376
        %v4378 = vpop.f32.mrf.mxu0
        %v4379 = vadd.f32 %v4290, %v4378
        %4380 = vmatmul.bf16.gmra.mxu0 %v3440
        %v4381 = vpop.f32.mrf.mxu0
        %v4382 = vadd.f32 %v4293, %v4381
        %v4383 = vpop.f32.mrf.mxu0
        %v4384 = vadd.f32 %v4295, %v4383
        %4385 = vmatmul.bf16.gmra.mxu0 %v3449
        %v4386 = vpop.f32.mrf.mxu0
        %v4387 = vadd.f32 %v4298, %v4386
        %v4388 = vpop.f32.mrf.mxu0
        %v4389 = vadd.f32 %v4300, %v4388
        %4390 = vmatmul.bf16.gmra.mxu0 %v3458
        %v4391 = vpop.f32.mrf.mxu0
        %v4392 = vadd.f32 %v4303, %v4391
        %v4393 = vpop.f32.mrf.mxu0
        %v4394 = vadd.f32 %v4305, %v4393
        %4395 = vdwg.mxu0
        %4396 = vmatpush.bf16.msra.mxu0 %v3935
        %4397 = vmatpush.bf16.msra.mxu0 %v3934
        %4398 = vmatpush.bf16.msra.mxu0 %v3933
        %4399 = vmatpush.bf16.msra.mxu0 %v3932
        %4400 = vmatpush.bf16.msra.mxu0 %v3931
        %4401 = vmatpush.bf16.msra.mxu0 %v3930
        %4402 = vmatpush.bf16.msra.mxu0 %v3929
        %4403 = vmatpush.bf16.msra.mxu0 %v3928
        %4404 = vmatmul.bf16.gmra.mxu0 %v3324
        %v4405 = vpop.f32.mrf.mxu0
        %v4406 = vadd.f32 %v4317, %v4405
        %v4407 = vpop.f32.mrf.mxu0
        %v4408 = vadd.f32 %v4319, %v4407
        %4409 = vmatmul.bf16.gmra.mxu0 %v3333
        %v4410 = vpop.f32.mrf.mxu0
        %v4411 = vadd.f32 %v4322, %v4410
        %v4412 = vpop.f32.mrf.mxu0
        %v4413 = vadd.f32 %v4324, %v4412
        %4414 = vmatmul.bf16.gmra.mxu0 %v3342
        %v4415 = vpop.f32.mrf.mxu0
        %v4416 = vadd.f32 %v4327, %v4415
        %v4417 = vpop.f32.mrf.mxu0
        %v4418 = vadd.f32 %v4329, %v4417
        %4419 = vmatmul.bf16.gmra.mxu0 %v3351
        %v4420 = vpop.f32.mrf.mxu0
        %v4421 = vadd.f32 %v4332, %v4420
        %v4422 = vpop.f32.mrf.mxu0
        %v4423 = vadd.f32 %v4334, %v4422
        %4424 = vmatmul.bf16.gmra.mxu0 %v3360
        %v4425 = vpop.f32.mrf.mxu0
        %v4426 = vadd.f32 %v4337, %v4425
        %v4427 = vpop.f32.mrf.mxu0
        %v4428 = vadd.f32 %v4339, %v4427
        %4429 = vmatmul.bf16.gmra.mxu0 %v3369
        %v4430 = vpop.f32.mrf.mxu0
        %v4431 = vadd.f32 %v4342, %v4430
        %v4432 = vpop.f32.mrf.mxu0
        %v4433 = vadd.f32 %v4344, %v4432
        %4434 = vmatmul.bf16.gmra.mxu0 %v3378
        %v4435 = vpop.f32.mrf.mxu0
        %v4436 = vadd.f32 %v4347, %v4435
        %v4437 = vpop.f32.mrf.mxu0
        %v4438 = vadd.f32 %v4349, %v4437
        %4439 = vmatmul.bf16.gmra.mxu0 %v3387
        %v4440 = vpop.f32.mrf.mxu0
        %v4441 = vadd.f32 %v4352, %v4440
        %v4442 = vpop.f32.mrf.mxu0
        %v4443 = vadd.f32 %v4354, %v4442
        %4444 = vmatmul.bf16.gmra.mxu0 %v3396
        %v4445 = vpop.f32.mrf.mxu0
        %v4446 = vadd.f32 %v4357, %v4445
        %v4447 = vpop.f32.mrf.mxu0
        %v4448 = vadd.f32 %v4359, %v4447
        %4449 = vmatmul.bf16.gmra.mxu0 %v3405
        %v4450 = vpop.f32.mrf.mxu0
        %v4451 = vadd.f32 %v4362, %v4450
        %v4452 = vpop.f32.mrf.mxu0
        %v4453 = vadd.f32 %v4364, %v4452
        %4454 = vmatmul.bf16.gmra.mxu0 %v3414
        %v4455 = vpop.f32.mrf.mxu0
        %v4456 = vadd.f32 %v4367, %v4455
        %v4457 = vpop.f32.mrf.mxu0
        %v4458 = vadd.f32 %v4369, %v4457
        %4459 = vmatmul.bf16.gmra.mxu0 %v3423
        %v4460 = vpop.f32.mrf.mxu0
        %v4461 = vadd.f32 %v4372, %v4460
        %v4462 = vpop.f32.mrf.mxu0
        %v4463 = vadd.f32 %v4374, %v4462
        %4464 = vmatmul.bf16.gmra.mxu0 %v3432
        %v4465 = vpop.f32.mrf.mxu0
        %v4466 = vadd.f32 %v4377, %v4465
        %v4467 = vpop.f32.mrf.mxu0
        %v4468 = vadd.f32 %v4379, %v4467
        %4469 = vmatmul.bf16.gmra.mxu0 %v3441
        %v4470 = vpop.f32.mrf.mxu0
        %v4471 = vadd.f32 %v4382, %v4470
        %v4472 = vpop.f32.mrf.mxu0
        %v4473 = vadd.f32 %v4384, %v4472
        %4474 = vmatmul.bf16.gmra.mxu0 %v3450
        %v4475 = vpop.f32.mrf.mxu0
        %v4476 = vadd.f32 %v4387, %v4475
        %v4477 = vpop.f32.mrf.mxu0
        %v4478 = vadd.f32 %v4389, %v4477
        %4479 = vmatmul.bf16.gmra.mxu0 %v3459
        %v4480 = vpop.f32.mrf.mxu0
        %v4481 = vadd.f32 %v4392, %v4480
        %v4482 = vpop.f32.mrf.mxu0
        %v4483 = vadd.f32 %v4394, %v4482
        %4484 = vdwg.mxu0
        %4485 = vmatpush.bf16.msra.mxu0 %v3943
        %4486 = vmatpush.bf16.msra.mxu0 %v3942
        %4487 = vmatpush.bf16.msra.mxu0 %v3941
        %4488 = vmatpush.bf16.msra.mxu0 %v3940
        %4489 = vmatpush.bf16.msra.mxu0 %v3939
        %4490 = vmatpush.bf16.msra.mxu0 %v3938
        %4491 = vmatpush.bf16.msra.mxu0 %v3937
        %4492 = vmatpush.bf16.msra.mxu0 %v3936
        %4493 = vmatmul.bf16.gmra.mxu0 %v3325
        %v4494 = vpop.f32.mrf.mxu0
        %v4495 = vadd.f32 %v4406, %v4494
        %v4496 = vpop.f32.mrf.mxu0
        %v4497 = vadd.f32 %v4408, %v4496
        %4498 = vmatmul.bf16.gmra.mxu0 %v3334
        %v4499 = vpop.f32.mrf.mxu0
        %v4500 = vadd.f32 %v4411, %v4499
        %v4501 = vpop.f32.mrf.mxu0
        %v4502 = vadd.f32 %v4413, %v4501
        %4503 = vmatmul.bf16.gmra.mxu0 %v3343
        %v4504 = vpop.f32.mrf.mxu0
        %v4505 = vadd.f32 %v4416, %v4504
        %v4506 = vpop.f32.mrf.mxu0
        %v4507 = vadd.f32 %v4418, %v4506
        %4508 = vmatmul.bf16.gmra.mxu0 %v3352
        %v4509 = vpop.f32.mrf.mxu0
        %v4510 = vadd.f32 %v4421, %v4509
        %v4511 = vpop.f32.mrf.mxu0
        %v4512 = vadd.f32 %v4423, %v4511
        %4513 = vmatmul.bf16.gmra.mxu0 %v3361
        %v4514 = vpop.f32.mrf.mxu0
        %v4515 = vadd.f32 %v4426, %v4514
        %v4516 = vpop.f32.mrf.mxu0
        %v4517 = vadd.f32 %v4428, %v4516
        %4518 = vmatmul.bf16.gmra.mxu0 %v3370
        %v4519 = vpop.f32.mrf.mxu0
        %v4520 = vadd.f32 %v4431, %v4519
        %v4521 = vpop.f32.mrf.mxu0
        %v4522 = vadd.f32 %v4433, %v4521
        %4523 = vmatmul.bf16.gmra.mxu0 %v3379
        %v4524 = vpop.f32.mrf.mxu0
        %v4525 = vadd.f32 %v4436, %v4524
        %v4526 = vpop.f32.mrf.mxu0
        %v4527 = vadd.f32 %v4438, %v4526
        %4528 = vmatmul.bf16.gmra.mxu0 %v3388
        %v4529 = vpop.f32.mrf.mxu0
        %v4530 = vadd.f32 %v4441, %v4529
        %v4531 = vpop.f32.mrf.mxu0
        %v4532 = vadd.f32 %v4443, %v4531
        %4533 = vmatmul.bf16.gmra.mxu0 %v3397
        %v4534 = vpop.f32.mrf.mxu0
        %v4535 = vadd.f32 %v4446, %v4534
        %v4536 = vpop.f32.mrf.mxu0
        %v4537 = vadd.f32 %v4448, %v4536
        %4538 = vmatmul.bf16.gmra.mxu0 %v3406
        %v4539 = vpop.f32.mrf.mxu0
        %v4540 = vadd.f32 %v4451, %v4539
        %v4541 = vpop.f32.mrf.mxu0
        %v4542 = vadd.f32 %v4453, %v4541
        %4543 = vmatmul.bf16.gmra.mxu0 %v3415
        %v4544 = vpop.f32.mrf.mxu0
        %v4545 = vadd.f32 %v4456, %v4544
        %v4546 = vpop.f32.mrf.mxu0
        %v4547 = vadd.f32 %v4458, %v4546
        %4548 = vmatmul.bf16.gmra.mxu0 %v3424
        %v4549 = vpop.f32.mrf.mxu0
        %v4550 = vadd.f32 %v4461, %v4549
        %v4551 = vpop.f32.mrf.mxu0
        %v4552 = vadd.f32 %v4463, %v4551
        %4553 = vmatmul.bf16.gmra.mxu0 %v3433
        %v4554 = vpop.f32.mrf.mxu0
        %v4555 = vadd.f32 %v4466, %v4554
        %v4556 = vpop.f32.mrf.mxu0
        %v4557 = vadd.f32 %v4468, %v4556
        %4558 = vmatmul.bf16.gmra.mxu0 %v3442
        %v4559 = vpop.f32.mrf.mxu0
        %v4560 = vadd.f32 %v4471, %v4559
        %v4561 = vpop.f32.mrf.mxu0
        %v4562 = vadd.f32 %v4473, %v4561
        %4563 = vmatmul.bf16.gmra.mxu0 %v3451
        %v4564 = vpop.f32.mrf.mxu0
        %v4565 = vadd.f32 %v4476, %v4564
        %v4566 = vpop.f32.mrf.mxu0
        %v4567 = vadd.f32 %v4478, %v4566
        %4568 = vmatmul.bf16.gmra.mxu0 %v3460
        %v4569 = vpop.f32.mrf.mxu0
        %v4570 = vadd.f32 %v4481, %v4569
        %v4571 = vpop.f32.mrf.mxu0
        %v4572 = vadd.f32 %v4483, %v4571
        %4573 = vdwg.mxu0
        %4574 = vmatpush.bf16.msra.mxu0 %v3951
        %4575 = vmatpush.bf16.msra.mxu0 %v3950
        %4576 = vmatpush.bf16.msra.mxu0 %v3949
        %4577 = vmatpush.bf16.msra.mxu0 %v3948
        %4578 = vmatpush.bf16.msra.mxu0 %v3947
        %4579 = vmatpush.bf16.msra.mxu0 %v3946
        %4580 = vmatpush.bf16.msra.mxu0 %v3945
        %4581 = vmatpush.bf16.msra.mxu0 %v3944
        %4582 = vmatmul.bf16.gmra.mxu0 %v3326
        %v4583 = vpop.f32.mrf.mxu0
        %v4584 = vadd.f32 %v4495, %v4583
        %v4585 = vpop.f32.mrf.mxu0
        %v4586 = vadd.f32 %v4497, %v4585
        %4587 = vmatmul.bf16.gmra.mxu0 %v3335
        %v4588 = vpop.f32.mrf.mxu0
        %v4589 = vadd.f32 %v4500, %v4588
        %v4590 = vpop.f32.mrf.mxu0
        %v4591 = vadd.f32 %v4502, %v4590
        %4592 = vmatmul.bf16.gmra.mxu0 %v3344
        %v4593 = vpop.f32.mrf.mxu0
        %v4594 = vadd.f32 %v4505, %v4593
        %v4595 = vpop.f32.mrf.mxu0
        %v4596 = vadd.f32 %v4507, %v4595
        %4597 = vmatmul.bf16.gmra.mxu0 %v3353
        %v4598 = vpop.f32.mrf.mxu0
        %v4599 = vadd.f32 %v4510, %v4598
        %v4600 = vpop.f32.mrf.mxu0
        %v4601 = vadd.f32 %v4512, %v4600
        %4602 = vmatmul.bf16.gmra.mxu0 %v3362
        %v4603 = vpop.f32.mrf.mxu0
        %v4604 = vadd.f32 %v4515, %v4603
        %v4605 = vpop.f32.mrf.mxu0
        %v4606 = vadd.f32 %v4517, %v4605
        %4607 = vmatmul.bf16.gmra.mxu0 %v3371
        %v4608 = vpop.f32.mrf.mxu0
        %v4609 = vadd.f32 %v4520, %v4608
        %v4610 = vpop.f32.mrf.mxu0
        %v4611 = vadd.f32 %v4522, %v4610
        %4612 = vmatmul.bf16.gmra.mxu0 %v3380
        %v4613 = vpop.f32.mrf.mxu0
        %v4614 = vadd.f32 %v4525, %v4613
        %v4615 = vpop.f32.mrf.mxu0
        %v4616 = vadd.f32 %v4527, %v4615
        %4617 = vmatmul.bf16.gmra.mxu0 %v3389
        %v4618 = vpop.f32.mrf.mxu0
        %v4619 = vadd.f32 %v4530, %v4618
        %v4620 = vpop.f32.mrf.mxu0
        %v4621 = vadd.f32 %v4532, %v4620
        %4622 = vmatmul.bf16.gmra.mxu0 %v3398
        %v4623 = vpop.f32.mrf.mxu0
        %v4624 = vadd.f32 %v4535, %v4623
        %v4625 = vpop.f32.mrf.mxu0
        %v4626 = vadd.f32 %v4537, %v4625
        %4627 = vmatmul.bf16.gmra.mxu0 %v3407
        %v4628 = vpop.f32.mrf.mxu0
        %v4629 = vadd.f32 %v4540, %v4628
        %v4630 = vpop.f32.mrf.mxu0
        %v4631 = vadd.f32 %v4542, %v4630
        %4632 = vmatmul.bf16.gmra.mxu0 %v3416
        %v4633 = vpop.f32.mrf.mxu0
        %v4634 = vadd.f32 %v4545, %v4633
        %v4635 = vpop.f32.mrf.mxu0
        %v4636 = vadd.f32 %v4547, %v4635
        %4637 = vmatmul.bf16.gmra.mxu0 %v3425
        %v4638 = vpop.f32.mrf.mxu0
        %v4639 = vadd.f32 %v4550, %v4638
        %v4640 = vpop.f32.mrf.mxu0
        %v4641 = vadd.f32 %v4552, %v4640
        %4642 = vmatmul.bf16.gmra.mxu0 %v3434
        %v4643 = vpop.f32.mrf.mxu0
        %v4644 = vadd.f32 %v4555, %v4643
        %v4645 = vpop.f32.mrf.mxu0
        %v4646 = vadd.f32 %v4557, %v4645
        %4647 = vmatmul.bf16.gmra.mxu0 %v3443
        %v4648 = vpop.f32.mrf.mxu0
        %v4649 = vadd.f32 %v4560, %v4648
        %v4650 = vpop.f32.mrf.mxu0
        %v4651 = vadd.f32 %v4562, %v4650
        %4652 = vmatmul.bf16.gmra.mxu0 %v3452
        %v4653 = vpop.f32.mrf.mxu0
        %v4654 = vadd.f32 %v4565, %v4653
        %v4655 = vpop.f32.mrf.mxu0
        %v4656 = vadd.f32 %v4567, %v4655
        %4657 = vmatmul.bf16.gmra.mxu0 %v3461
        %v4658 = vpop.f32.mrf.mxu0
        %v4659 = vadd.f32 %v4570, %v4658
        %v4660 = vpop.f32.mrf.mxu0
        %v4661 = vadd.f32 %v4572, %v4660
        %4662 = vdwg.mxu0
        %4663 = vmatpush.bf16.msra.mxu0 %v3959
        %4664 = vmatpush.bf16.msra.mxu0 %v3958
        %4665 = vmatpush.bf16.msra.mxu0 %v3957
        %4666 = vmatpush.bf16.msra.mxu0 %v3956
        %4667 = vmatpush.bf16.msra.mxu0 %v3955
        %4668 = vmatpush.bf16.msra.mxu0 %v3954
        %4669 = vmatpush.bf16.msra.mxu0 %v3953
        %4670 = vmatpush.bf16.msra.mxu0 %v3952
        %4671 = vmatmul.bf16.gmra.mxu0 %v3327
        %v4672 = vpop.f32.mrf.mxu0
        %v4673 = vadd.f32 %v4584, %v4672
        %v4674 = vpop.f32.mrf.mxu0
        %v4675 = vadd.f32 %v4586, %v4674
        %4676 = vmatmul.bf16.gmra.mxu0 %v3336
        %v4677 = vpop.f32.mrf.mxu0
        %v4678 = vadd.f32 %v4589, %v4677
        %v4679 = vpop.f32.mrf.mxu0
        %v4680 = vadd.f32 %v4591, %v4679
        %4681 = vmatmul.bf16.gmra.mxu0 %v3345
        %v4682 = vpop.f32.mrf.mxu0
        %v4683 = vadd.f32 %v4594, %v4682
        %v4684 = vpop.f32.mrf.mxu0
        %v4685 = vadd.f32 %v4596, %v4684
        %4686 = vmatmul.bf16.gmra.mxu0 %v3354
        %v4687 = vpop.f32.mrf.mxu0
        %v4688 = vadd.f32 %v4599, %v4687
        %v4689 = vpop.f32.mrf.mxu0
        %v4690 = vadd.f32 %v4601, %v4689
        %4691 = vmatmul.bf16.gmra.mxu0 %v3363
        %v4692 = vpop.f32.mrf.mxu0
        %v4693 = vadd.f32 %v4604, %v4692
        %v4694 = vpop.f32.mrf.mxu0
        %v4695 = vadd.f32 %v4606, %v4694
        %4696 = vmatmul.bf16.gmra.mxu0 %v3372
        %v4697 = vpop.f32.mrf.mxu0
        %v4698 = vadd.f32 %v4609, %v4697
        %v4699 = vpop.f32.mrf.mxu0
        %v4700 = vadd.f32 %v4611, %v4699
        %4701 = vmatmul.bf16.gmra.mxu0 %v3381
        %v4702 = vpop.f32.mrf.mxu0
        %v4703 = vadd.f32 %v4614, %v4702
        %v4704 = vpop.f32.mrf.mxu0
        %v4705 = vadd.f32 %v4616, %v4704
        %4706 = vmatmul.bf16.gmra.mxu0 %v3390
        %v4707 = vpop.f32.mrf.mxu0
        %v4708 = vadd.f32 %v4619, %v4707
        %v4709 = vpop.f32.mrf.mxu0
        %v4710 = vadd.f32 %v4621, %v4709
        %4711 = vmatmul.bf16.gmra.mxu0 %v3399
        %v4712 = vpop.f32.mrf.mxu0
        %v4713 = vadd.f32 %v4624, %v4712
        %v4714 = vpop.f32.mrf.mxu0
        %v4715 = vadd.f32 %v4626, %v4714
        %4716 = vmatmul.bf16.gmra.mxu0 %v3408
        %v4717 = vpop.f32.mrf.mxu0
        %v4718 = vadd.f32 %v4629, %v4717
        %v4719 = vpop.f32.mrf.mxu0
        %v4720 = vadd.f32 %v4631, %v4719
        %4721 = vmatmul.bf16.gmra.mxu0 %v3417
        %v4722 = vpop.f32.mrf.mxu0
        %v4723 = vadd.f32 %v4634, %v4722
        %v4724 = vpop.f32.mrf.mxu0
        %v4725 = vadd.f32 %v4636, %v4724
        %4726 = vmatmul.bf16.gmra.mxu0 %v3426
        %v4727 = vpop.f32.mrf.mxu0
        %v4728 = vadd.f32 %v4639, %v4727
        %v4729 = vpop.f32.mrf.mxu0
        %v4730 = vadd.f32 %v4641, %v4729
        %4731 = vmatmul.bf16.gmra.mxu0 %v3435
        %v4732 = vpop.f32.mrf.mxu0
        %v4733 = vadd.f32 %v4644, %v4732
        %v4734 = vpop.f32.mrf.mxu0
        %v4735 = vadd.f32 %v4646, %v4734
        %4736 = vmatmul.bf16.gmra.mxu0 %v3444
        %v4737 = vpop.f32.mrf.mxu0
        %v4738 = vadd.f32 %v4649, %v4737
        %v4739 = vpop.f32.mrf.mxu0
        %v4740 = vadd.f32 %v4651, %v4739
        %4741 = vmatmul.bf16.gmra.mxu0 %v3453
        %v4742 = vpop.f32.mrf.mxu0
        %v4743 = vadd.f32 %v4654, %v4742
        %v4744 = vpop.f32.mrf.mxu0
        %v4745 = vadd.f32 %v4656, %v4744
        %4746 = vmatmul.bf16.gmra.mxu0 %v3462
        %v4747 = vpop.f32.mrf.mxu0
        %v4748 = vadd.f32 %v4659, %v4747
        %v4749 = vpop.f32.mrf.mxu0
        %v4750 = vadd.f32 %v4661, %v4749
        %4751 = vdwg.mxu0
        %4752 = vmatpush.bf16.msra.mxu0 %v3967
        %4753 = vmatpush.bf16.msra.mxu0 %v3966
        %4754 = vmatpush.bf16.msra.mxu0 %v3965
        %4755 = vmatpush.bf16.msra.mxu0 %v3964
        %4756 = vmatpush.bf16.msra.mxu0 %v3963
        %4757 = vmatpush.bf16.msra.mxu0 %v3962
        %4758 = vmatpush.bf16.msra.mxu0 %v3961
        %4759 = vmatpush.bf16.msra.mxu0 %v3960
        %4760 = vmatmul.bf16.gmra.mxu0 %v3328
        %v4761 = vpop.f32.mrf.mxu0
        %v4762 = vadd.f32 %v4673, %v4761
        %v4763 = vpop.f32.mrf.mxu0
        %v4764 = vadd.f32 %v4675, %v4763
        %4765 = vmatmul.bf16.gmra.mxu0 %v3337
        %v4766 = vpop.f32.mrf.mxu0
        %v4767 = vadd.f32 %v4678, %v4766
        %v4768 = vpop.f32.mrf.mxu0
        %v4769 = vadd.f32 %v4680, %v4768
        %4770 = vmatmul.bf16.gmra.mxu0 %v3346
        %v4771 = vpop.f32.mrf.mxu0
        %v4772 = vadd.f32 %v4683, %v4771
        %v4773 = vpop.f32.mrf.mxu0
        %v4774 = vadd.f32 %v4685, %v4773
        %4775 = vmatmul.bf16.gmra.mxu0 %v3355
        %v4776 = vpop.f32.mrf.mxu0
        %v4777 = vadd.f32 %v4688, %v4776
        %v4778 = vpop.f32.mrf.mxu0
        %v4779 = vadd.f32 %v4690, %v4778
        %4780 = vmatmul.bf16.gmra.mxu0 %v3364
        %v4781 = vpop.f32.mrf.mxu0
        %v4782 = vadd.f32 %v4693, %v4781
        %v4783 = vpop.f32.mrf.mxu0
        %v4784 = vadd.f32 %v4695, %v4783
        %4785 = vmatmul.bf16.gmra.mxu0 %v3373
        %v4786 = vpop.f32.mrf.mxu0
        %v4787 = vadd.f32 %v4698, %v4786
        %v4788 = vpop.f32.mrf.mxu0
        %v4789 = vadd.f32 %v4700, %v4788
        %4790 = vmatmul.bf16.gmra.mxu0 %v3382
        %v4791 = vpop.f32.mrf.mxu0
        %v4792 = vadd.f32 %v4703, %v4791
        %v4793 = vpop.f32.mrf.mxu0
        %v4794 = vadd.f32 %v4705, %v4793
        %4795 = vmatmul.bf16.gmra.mxu0 %v3391
        %v4796 = vpop.f32.mrf.mxu0
        %v4797 = vadd.f32 %v4708, %v4796
        %v4798 = vpop.f32.mrf.mxu0
        %v4799 = vadd.f32 %v4710, %v4798
        %4800 = vmatmul.bf16.gmra.mxu0 %v3400
        %v4801 = vpop.f32.mrf.mxu0
        %v4802 = vadd.f32 %v4713, %v4801
        %v4803 = vpop.f32.mrf.mxu0
        %v4804 = vadd.f32 %v4715, %v4803
        %4805 = vmatmul.bf16.gmra.mxu0 %v3409
        %v4806 = vpop.f32.mrf.mxu0
        %v4807 = vadd.f32 %v4718, %v4806
        %v4808 = vpop.f32.mrf.mxu0
        %v4809 = vadd.f32 %v4720, %v4808
        %4810 = vmatmul.bf16.gmra.mxu0 %v3418
        %v4811 = vpop.f32.mrf.mxu0
        %v4812 = vadd.f32 %v4723, %v4811
        %v4813 = vpop.f32.mrf.mxu0
        %v4814 = vadd.f32 %v4725, %v4813
        %4815 = vmatmul.bf16.gmra.mxu0 %v3427
        %v4816 = vpop.f32.mrf.mxu0
        %v4817 = vadd.f32 %v4728, %v4816
        %v4818 = vpop.f32.mrf.mxu0
        %v4819 = vadd.f32 %v4730, %v4818
        %4820 = vmatmul.bf16.gmra.mxu0 %v3436
        %v4821 = vpop.f32.mrf.mxu0
        %v4822 = vadd.f32 %v4733, %v4821
        %v4823 = vpop.f32.mrf.mxu0
        %v4824 = vadd.f32 %v4735, %v4823
        %4825 = vmatmul.bf16.gmra.mxu0 %v3445
        %v4826 = vpop.f32.mrf.mxu0
        %v4827 = vadd.f32 %v4738, %v4826
        %v4828 = vpop.f32.mrf.mxu0
        %v4829 = vadd.f32 %v4740, %v4828
        %4830 = vmatmul.bf16.gmra.mxu0 %v3454
        %v4831 = vpop.f32.mrf.mxu0
        %v4832 = vadd.f32 %v4743, %v4831
        %v4833 = vpop.f32.mrf.mxu0
        %v4834 = vadd.f32 %v4745, %v4833
        %4835 = vmatmul.bf16.gmra.mxu0 %v3463
        %v4836 = vpop.f32.mrf.mxu0
        %v4837 = vadd.f32 %v4748, %v4836
        %v4838 = vpop.f32.mrf.mxu0
        %v4839 = vadd.f32 %v4750, %v4838
        %4840 = vdwg.mxu0
        %v4841 = vld [vmem:[#allocation7] sm:$0xff]
        %v4842 = vld [vmem:[#allocation7 + $0x8] sm:$0xff]
        %v4843 = vld [vmem:[#allocation7 + $0x10] sm:$0xff]
        %v4844 = vld [vmem:[#allocation7 + $0x18] sm:$0xff]
        %v4845 = vld [vmem:[#allocation7 + $0x20] sm:$0xff]
        %v4846 = vld [vmem:[#allocation7 + $0x28] sm:$0xff]
        %v4847 = vld [vmem:[#allocation7 + $0x30] sm:$0xff]
        %v4848 = vld [vmem:[#allocation7 + $0x38] sm:$0xff]
        %v4849 = vld [vmem:[#allocation7 + $0x40] sm:$0xff]
        %v4850 = vld [vmem:[#allocation7 + $0x48] sm:$0xff]
        %v4851 = vld [vmem:[#allocation7 + $0x50] sm:$0xff]
        %v4852 = vld [vmem:[#allocation7 + $0x58] sm:$0xff]
        %v4853 = vld [vmem:[#allocation7 + $0x60] sm:$0xff]
        %v4854 = vld [vmem:[#allocation7 + $0x68] sm:$0xff]
        %v4855 = vld [vmem:[#allocation7 + $0x70] sm:$0xff]
        %v4856 = vld [vmem:[#allocation7 + $0x78] sm:$0xff]
        %v4857 = vld [vmem:[%s4] sm:$0x1]
        %v4858 = vld [vmem:[%s5] sm:$0x1]
        %v4859 = vld [vmem:[%s6] sm:$0x1]
        %4860 = vmatpush.msra.mxu0 %v4799
        %4861 = vmatpush.msra.mxu0 %v4797
        %4862 = vmatpush.msra.mxu0 %v4794
        %4863 = vmatpush.msra.mxu0 %v4792
        %4864 = vmatpush.msra.mxu0 %v4789
        %4865 = vmatpush.msra.mxu0 %v4787
        %4866 = vmatpush.msra.mxu0 %v4784
        %4867 = vmatpush.msra.mxu0 %v4782
        %4868 = vmatpush.msra.mxu0 %v4779
        %4869 = vmatpush.msra.mxu0 %v4777
        %4870 = vmatpush.msra.mxu0 %v4774
        %4871 = vmatpush.msra.mxu0 %v4772
        %4872 = vmatpush.msra.mxu0 %v4769
        %4873 = vmatpush.msra.mxu0 %v4767
        %4874 = vmatpush.msra.mxu0 %v4764
        %4875 = vmatpush.msra.mxu0 %v4762
        %4876 = vmatmul.f32.gmra.mxu0 1.0
        %v4877 = vpop.f32.mrf.mxu0
        %v4878 = vadd.f32 0.0, %v4877
        %4879 = vdwg.mxu0
        %4880 = vmatpush.msra.mxu0 %v4839
        %4881 = vmatpush.msra.mxu0 %v4837
        %4882 = vmatpush.msra.mxu0 %v4834
        %4883 = vmatpush.msra.mxu0 %v4832
        %4884 = vmatpush.msra.mxu0 %v4829
        %4885 = vmatpush.msra.mxu0 %v4827
        %4886 = vmatpush.msra.mxu0 %v4824
        %4887 = vmatpush.msra.mxu0 %v4822
        %4888 = vmatpush.msra.mxu0 %v4819
        %4889 = vmatpush.msra.mxu0 %v4817
        %4890 = vmatpush.msra.mxu0 %v4814
        %4891 = vmatpush.msra.mxu0 %v4812
        %4892 = vmatpush.msra.mxu0 %v4809
        %4893 = vmatpush.msra.mxu0 %v4807
        %4894 = vmatpush.msra.mxu0 %v4804
        %4895 = vmatpush.msra.mxu0 %v4802
        %4896 = vmatmul.f32.gmra.mxu0 1.0
        %v4897 = vpop.f32.mrf.mxu0
        %v4898 = vadd.f32 %v4878, %v4897
        %4899 = vdwg.mxu0
        %v4900 = vmul.f32 %v4898, 0.00390625
        %v4901 = vmul.f32 %v4762, %v4762
        %v4902 = vmul.f32 %v4764, %v4764
        %v4903 = vmul.f32 %v4767, %v4767
        %v4904 = vmul.f32 %v4769, %v4769
        %v4905 = vmul.f32 %v4772, %v4772
        %v4906 = vmul.f32 %v4774, %v4774
        %v4907 = vmul.f32 %v4777, %v4777
        %v4908 = vmul.f32 %v4779, %v4779
        %v4909 = vmul.f32 %v4782, %v4782
        %v4910 = vmul.f32 %v4784, %v4784
        %v4911 = vmul.f32 %v4787, %v4787
        %v4912 = vmul.f32 %v4789, %v4789
        %v4913 = vmul.f32 %v4792, %v4792
        %v4914 = vmul.f32 %v4794, %v4794
        %v4915 = vmul.f32 %v4797, %v4797
        %v4916 = vmul.f32 %v4799, %v4799
        %v4917 = vmul.f32 %v4802, %v4802
        %v4918 = vmul.f32 %v4804, %v4804
        %v4919 = vmul.f32 %v4807, %v4807
        %v4920 = vmul.f32 %v4809, %v4809
        %v4921 = vmul.f32 %v4812, %v4812
        %v4922 = vmul.f32 %v4814, %v4814
        %v4923 = vmul.f32 %v4817, %v4817
        %v4924 = vmul.f32 %v4819, %v4819
        %v4925 = vmul.f32 %v4822, %v4822
        %v4926 = vmul.f32 %v4824, %v4824
        %v4927 = vmul.f32 %v4827, %v4827
        %v4928 = vmul.f32 %v4829, %v4829
        %v4929 = vmul.f32 %v4832, %v4832
        %v4930 = vmul.f32 %v4834, %v4834
        %v4931 = vmul.f32 %v4837, %v4837
        %v4932 = vmul.f32 %v4839, %v4839
        %4933 = vmatpush.msra.mxu0 %v4916
        %4934 = vmatpush.msra.mxu0 %v4915
        %4935 = vmatpush.msra.mxu0 %v4914
        %4936 = vmatpush.msra.mxu0 %v4913
        %4937 = vmatpush.msra.mxu0 %v4912
        %4938 = vmatpush.msra.mxu0 %v4911
        %4939 = vmatpush.msra.mxu0 %v4910
        %4940 = vmatpush.msra.mxu0 %v4909
        %4941 = vmatpush.msra.mxu0 %v4908
        %4942 = vmatpush.msra.mxu0 %v4907
        %4943 = vmatpush.msra.mxu0 %v4906
        %4944 = vmatpush.msra.mxu0 %v4905
        %4945 = vmatpush.msra.mxu0 %v4904
        %4946 = vmatpush.msra.mxu0 %v4903
        %4947 = vmatpush.msra.mxu0 %v4902
        %4948 = vmatpush.msra.mxu0 %v4901
        %4949 = vmatmul.f32.gmra.mxu0 1.0
        %v4950 = vpop.f32.mrf.mxu0
        %v4951 = vadd.f32 0.0, %v4950
        %4952 = vdwg.mxu0
        %4953 = vmatpush.msra.mxu0 %v4932
        %4954 = vmatpush.msra.mxu0 %v4931
        %4955 = vmatpush.msra.mxu0 %v4930
        %4956 = vmatpush.msra.mxu0 %v4929
        %4957 = vmatpush.msra.mxu0 %v4928
        %4958 = vmatpush.msra.mxu0 %v4927
        %4959 = vmatpush.msra.mxu0 %v4926
        %4960 = vmatpush.msra.mxu0 %v4925
        %4961 = vmatpush.msra.mxu0 %v4924
        %4962 = vmatpush.msra.mxu0 %v4923
        %4963 = vmatpush.msra.mxu0 %v4922
        %4964 = vmatpush.msra.mxu0 %v4921
        %4965 = vmatpush.msra.mxu0 %v4920
        %4966 = vmatpush.msra.mxu0 %v4919
        %4967 = vmatpush.msra.mxu0 %v4918
        %4968 = vmatpush.msra.mxu0 %v4917
        %4969 = vmatmul.f32.gmra.mxu0 1.0
        %v4970 = vpop.f32.mrf.mxu0
        %v4971 = vadd.f32 %v4951, %v4970
        %4972 = vdwg.mxu0
        %v4973 = vmul.f32 %v4971, 0.00390625
        %4974 = vmatpush.msra.mxu0 %v4856
        %4975 = vmatpush.msra.mxu0 %v4855
        %4976 = vmatpush.msra.mxu0 %v4854
        %4977 = vmatpush.msra.mxu0 %v4853
        %4978 = vmatpush.msra.mxu0 %v4852
        %4979 = vmatpush.msra.mxu0 %v4851
        %4980 = vmatpush.msra.mxu0 %v4850
        %4981 = vmatpush.msra.mxu0 %v4849
        %4982 = vmatpush.msra.mxu0 %v4848
        %4983 = vmatpush.msra.mxu0 %v4847
        %4984 = vmatpush.msra.mxu0 %v4846
        %4985 = vmatpush.msra.mxu0 %v4845
        %4986 = vmatpush.msra.mxu0 %v4844
        %4987 = vmatpush.msra.mxu0 %v4843
        %4988 = vmatpush.msra.mxu0 %v4842
        %4989 = vmatpush.msra.mxu0 %v4841
        %4990 = vmatmul.f32.gmra.mxu0 %v4900
        %v4991 = vpop.f32.mrf.mxu0
        %v4992 = vadd.f32 0.0, %v4991
        %4993 = vdwg.mxu0
        %4994 = vmatpush.msra.mxu0 %v4856
        %4995 = vmatpush.msra.mxu0 %v4855
        %4996 = vmatpush.msra.mxu0 %v4854
        %4997 = vmatpush.msra.mxu0 %v4853
        %4998 = vmatpush.msra.mxu0 %v4852
        %4999 = vmatpush.msra.mxu0 %v4851
        %5000 = vmatpush.msra.mxu0 %v4850
        %5001 = vmatpush.msra.mxu0 %v4849
        %5002 = vmatpush.msra.mxu0 %v4848
        %5003 = vmatpush.msra.mxu0 %v4847
        %5004 = vmatpush.msra.mxu0 %v4846
        %5005 = vmatpush.msra.mxu0 %v4845
        %5006 = vmatpush.msra.mxu0 %v4844
        %5007 = vmatpush.msra.mxu0 %v4843
        %5008 = vmatpush.msra.mxu0 %v4842
        %5009 = vmatpush.msra.mxu0 %v4841
        %5010 = vmatmul.f32.gmra.mxu0 %v4973
        %v5011 = vpop.f32.mrf.mxu0
        %v5012 = vadd.f32 0.0, %v5011
        %5013 = vdwg.mxu0
        %v5014 = vperm.slane %v4992, 0
        %v5015 = vsub.f32 %v4762, %v5014
        %v5016 = vsub.f32 %v4764, %v5014
        %v5017 = vsub.f32 %v4767, %v5014
        %v5018 = vsub.f32 %v4769, %v5014
        %v5019 = vsub.f32 %v4772, %v5014
        %v5020 = vsub.f32 %v4774, %v5014
        %v5021 = vsub.f32 %v4777, %v5014
        %v5022 = vsub.f32 %v4779, %v5014
        %v5023 = vsub.f32 %v4782, %v5014
        %v5024 = vsub.f32 %v4784, %v5014
        %v5025 = vsub.f32 %v4787, %v5014
        %v5026 = vsub.f32 %v4789, %v5014
        %v5027 = vsub.f32 %v4792, %v5014
        %v5028 = vsub.f32 %v4794, %v5014
        %v5029 = vsub.f32 %v4797, %v5014
        %v5030 = vsub.f32 %v4799, %v5014
        %v5031 = vsub.f32 %v4802, %v5014
        %v5032 = vsub.f32 %v4804, %v5014
        %v5033 = vsub.f32 %v4807, %v5014
        %v5034 = vsub.f32 %v4809, %v5014
        %v5035 = vsub.f32 %v4812, %v5014
        %v5036 = vsub.f32 %v4814, %v5014
        %v5037 = vsub.f32 %v4817, %v5014
        %v5038 = vsub.f32 %v4819, %v5014
        %v5039 = vsub.f32 %v4822, %v5014
        %v5040 = vsub.f32 %v4824, %v5014
        %v5041 = vsub.f32 %v4827, %v5014
        %v5042 = vsub.f32 %v4829, %v5014
        %v5043 = vsub.f32 %v4832, %v5014
        %v5044 = vsub.f32 %v4834, %v5014
        %v5045 = vsub.f32 %v4837, %v5014
        %v5046 = vsub.f32 %v4839, %v5014
        %v5047 = vmul.f32 %v4992, %v4992
        %v5048 = vsub.f32 %v5012, %v5047
        %v5049 = vadd.f32 %v5048, 1e-05
        %v5050 = vrsqrt.pop %v5049
        %v5051 = vmul.f32 %v5050, %v5049
        %v5052 = vmul.f32 %v5051, %v5050
        %v5053 = vmul.f32 0.5, %v5052
        %v5054 = vsub.f32 1.5, %v5053
        %v5055 = vmul.f32 %v5050, %v5054
        %vm5056 = vweird.f32 %v5049
        %vm5057 = vweird.f32 %v5050
        %vm5058 = vmor %vm5056, %vm5057
        %v5059 = vsel %vm5058, %v5050, %v5055
        %v5060 = vperm.slane %v5059, 0
        %v5061 = vmul.f32 %v5015, %v5060
        %v5062 = vmul.f32 %v5016, %v5060
        %v5063 = vmul.f32 %v5017, %v5060
        %v5064 = vmul.f32 %v5018, %v5060
        %v5065 = vmul.f32 %v5019, %v5060
        %v5066 = vmul.f32 %v5020, %v5060
        %v5067 = vmul.f32 %v5021, %v5060
        %v5068 = vmul.f32 %v5022, %v5060
        %v5069 = vmul.f32 %v5023, %v5060
        %v5070 = vmul.f32 %v5024, %v5060
        %v5071 = vmul.f32 %v5025, %v5060
        %v5072 = vmul.f32 %v5026, %v5060
        %v5073 = vmul.f32 %v5027, %v5060
        %v5074 = vmul.f32 %v5028, %v5060
        %v5075 = vmul.f32 %v5029, %v5060
        %v5076 = vmul.f32 %v5030, %v5060
        %v5077 = vmul.f32 %v5031, %v5060
        %v5078 = vmul.f32 %v5032, %v5060
        %v5079 = vmul.f32 %v5033, %v5060
        %v5080 = vmul.f32 %v5034, %v5060
        %v5081 = vmul.f32 %v5035, %v5060
        %v5082 = vmul.f32 %v5036, %v5060
        %v5083 = vmul.f32 %v5037, %v5060
        %v5084 = vmul.f32 %v5038, %v5060
        %v5085 = vmul.f32 %v5039, %v5060
        %v5086 = vmul.f32 %v5040, %v5060
        %v5087 = vmul.f32 %v5041, %v5060
        %v5088 = vmul.f32 %v5042, %v5060
        %v5089 = vmul.f32 %v5043, %v5060
        %v5090 = vmul.f32 %v5044, %v5060
        %v5091 = vmul.f32 %v5045, %v5060
        %v5092 = vmul.f32 %v5046, %v5060
        %v5094 = vperm.slane %v4857, 0
        %v5096 = vmul.f32 %v5061, %v5094
        %v5097 = vmul.f32 %v5062, %v5094
        %v5098 = vmul.f32 %v5063, %v5094
        %v5099 = vmul.f32 %v5064, %v5094
        %v5100 = vmul.f32 %v5065, %v5094
        %v5101 = vmul.f32 %v5066, %v5094
        %v5102 = vmul.f32 %v5067, %v5094
        %v5103 = vmul.f32 %v5068, %v5094
        %v5104 = vmul.f32 %v5069, %v5094
        %v5105 = vmul.f32 %v5070, %v5094
        %v5106 = vmul.f32 %v5071, %v5094
        %v5107 = vmul.f32 %v5072, %v5094
        %v5108 = vmul.f32 %v5073, %v5094
        %v5109 = vmul.f32 %v5074, %v5094
        %v5110 = vmul.f32 %v5075, %v5094
        %v5111 = vmul.f32 %v5076, %v5094
        %v5112 = vmul.f32 %v5077, %v5094
        %v5113 = vmul.f32 %v5078, %v5094
        %v5114 = vmul.f32 %v5079, %v5094
        %v5115 = vmul.f32 %v5080, %v5094
        %v5116 = vmul.f32 %v5081, %v5094
        %v5117 = vmul.f32 %v5082, %v5094
        %v5118 = vmul.f32 %v5083, %v5094
        %v5119 = vmul.f32 %v5084, %v5094
        %v5120 = vmul.f32 %v5085, %v5094
        %v5121 = vmul.f32 %v5086, %v5094
        %v5122 = vmul.f32 %v5087, %v5094
        %v5123 = vmul.f32 %v5088, %v5094
        %v5124 = vmul.f32 %v5089, %v5094
        %v5125 = vmul.f32 %v5090, %v5094
        %v5126 = vmul.f32 %v5091, %v5094
        %v5127 = vmul.f32 %v5092, %v5094
        %v5129 = vperm.slane %v4858, 0
        %v5131 = vadd.f32 %v5096, %v5129
        %v5132 = vadd.f32 %v5097, %v5129
        %v5133 = vadd.f32 %v5098, %v5129
        %v5134 = vadd.f32 %v5099, %v5129
        %v5135 = vadd.f32 %v5100, %v5129
        %v5136 = vadd.f32 %v5101, %v5129
        %v5137 = vadd.f32 %v5102, %v5129
        %v5138 = vadd.f32 %v5103, %v5129
        %v5139 = vadd.f32 %v5104, %v5129
        %v5140 = vadd.f32 %v5105, %v5129
        %v5141 = vadd.f32 %v5106, %v5129
        %v5142 = vadd.f32 %v5107, %v5129
        %v5143 = vadd.f32 %v5108, %v5129
        %v5144 = vadd.f32 %v5109, %v5129
        %v5145 = vadd.f32 %v5110, %v5129
        %v5146 = vadd.f32 %v5111, %v5129
        %v5147 = vadd.f32 %v5112, %v5129
        %v5148 = vadd.f32 %v5113, %v5129
        %v5149 = vadd.f32 %v5114, %v5129
        %v5150 = vadd.f32 %v5115, %v5129
        %v5151 = vadd.f32 %v5116, %v5129
        %v5152 = vadd.f32 %v5117, %v5129
        %v5153 = vadd.f32 %v5118, %v5129
        %v5154 = vadd.f32 %v5119, %v5129
        %v5155 = vadd.f32 %v5120, %v5129
        %v5156 = vadd.f32 %v5121, %v5129
        %v5157 = vadd.f32 %v5122, %v5129
        %v5158 = vadd.f32 %v5123, %v5129
        %v5159 = vadd.f32 %v5124, %v5129
        %v5160 = vadd.f32 %v5125, %v5129
        %v5161 = vadd.f32 %v5126, %v5129
        %v5162 = vadd.f32 %v5127, %v5129
        %vm5163 = vcmp.ge.f32.partialorder %v5131, 0.0
        %vm5164 = vcmp.ge.f32.partialorder %v5132, 0.0
        %vm5165 = vcmp.ge.f32.partialorder %v5133, 0.0
        %vm5166 = vcmp.ge.f32.partialorder %v5134, 0.0
        %vm5167 = vcmp.ge.f32.partialorder %v5135, 0.0
        %vm5168 = vcmp.ge.f32.partialorder %v5136, 0.0
        %vm5169 = vcmp.ge.f32.partialorder %v5137, 0.0
        %vm5170 = vcmp.ge.f32.partialorder %v5138, 0.0
        %vm5171 = vcmp.ge.f32.partialorder %v5139, 0.0
        %vm5172 = vcmp.ge.f32.partialorder %v5140, 0.0
        %vm5173 = vcmp.ge.f32.partialorder %v5141, 0.0
        %vm5174 = vcmp.ge.f32.partialorder %v5142, 0.0
        %vm5175 = vcmp.ge.f32.partialorder %v5143, 0.0
        %vm5176 = vcmp.ge.f32.partialorder %v5144, 0.0
        %vm5177 = vcmp.ge.f32.partialorder %v5145, 0.0
        %vm5178 = vcmp.ge.f32.partialorder %v5146, 0.0
        %vm5179 = vcmp.ge.f32.partialorder %v5147, 0.0
        %vm5180 = vcmp.ge.f32.partialorder %v5148, 0.0
        %vm5181 = vcmp.ge.f32.partialorder %v5149, 0.0
        %vm5182 = vcmp.ge.f32.partialorder %v5150, 0.0
        %vm5183 = vcmp.ge.f32.partialorder %v5151, 0.0
        %vm5184 = vcmp.ge.f32.partialorder %v5152, 0.0
        %vm5185 = vcmp.ge.f32.partialorder %v5153, 0.0
        %vm5186 = vcmp.ge.f32.partialorder %v5154, 0.0
        %vm5187 = vcmp.ge.f32.partialorder %v5155, 0.0
        %vm5188 = vcmp.ge.f32.partialorder %v5156, 0.0
        %vm5189 = vcmp.ge.f32.partialorder %v5157, 0.0
        %vm5190 = vcmp.ge.f32.partialorder %v5158, 0.0
        %vm5191 = vcmp.ge.f32.partialorder %v5159, 0.0
        %vm5192 = vcmp.ge.f32.partialorder %v5160, 0.0
        %vm5193 = vcmp.ge.f32.partialorder %v5161, 0.0
        %vm5194 = vcmp.ge.f32.partialorder %v5162, 0.0
        %v5196 = vperm.slane %v4859, 0
        %v5198 = vmul.f32 %v5196, %v5131
        %v5199 = vmul.f32 %v5196, %v5132
        %v5200 = vmul.f32 %v5196, %v5133
        %v5201 = vmul.f32 %v5196, %v5134
        %v5202 = vmul.f32 %v5196, %v5135
        %v5203 = vmul.f32 %v5196, %v5136
        %v5204 = vmul.f32 %v5196, %v5137
        %v5205 = vmul.f32 %v5196, %v5138
        %v5206 = vmul.f32 %v5196, %v5139
        %v5207 = vmul.f32 %v5196, %v5140
        %v5208 = vmul.f32 %v5196, %v5141
        %v5209 = vmul.f32 %v5196, %v5142
        %v5210 = vmul.f32 %v5196, %v5143
        %v5211 = vmul.f32 %v5196, %v5144
        %v5212 = vmul.f32 %v5196, %v5145
        %v5213 = vmul.f32 %v5196, %v5146
        %v5214 = vmul.f32 %v5196, %v5147
        %v5215 = vmul.f32 %v5196, %v5148
        %v5216 = vmul.f32 %v5196, %v5149
        %v5217 = vmul.f32 %v5196, %v5150
        %v5218 = vmul.f32 %v5196, %v5151
        %v5219 = vmul.f32 %v5196, %v5152
        %v5220 = vmul.f32 %v5196, %v5153
        %v5221 = vmul.f32 %v5196, %v5154
        %v5222 = vmul.f32 %v5196, %v5155
        %v5223 = vmul.f32 %v5196, %v5156
        %v5224 = vmul.f32 %v5196, %v5157
        %v5225 = vmul.f32 %v5196, %v5158
        %v5226 = vmul.f32 %v5196, %v5159
        %v5227 = vmul.f32 %v5196, %v5160
        %v5228 = vmul.f32 %v5196, %v5161
        %v5229 = vmul.f32 %v5196, %v5162
        %v5230 = vsel %vm5163, %v5131, %v5198
        %v5231 = vsel %vm5164, %v5132, %v5199
        %v5232 = vsel %vm5165, %v5133, %v5200
        %v5233 = vsel %vm5166, %v5134, %v5201
        %v5234 = vsel %vm5167, %v5135, %v5202
        %v5235 = vsel %vm5168, %v5136, %v5203
        %v5236 = vsel %vm5169, %v5137, %v5204
        %v5237 = vsel %vm5170, %v5138, %v5205
        %v5238 = vsel %vm5171, %v5139, %v5206
        %v5239 = vsel %vm5172, %v5140, %v5207
        %v5240 = vsel %vm5173, %v5141, %v5208
        %v5241 = vsel %vm5174, %v5142, %v5209
        %v5242 = vsel %vm5175, %v5143, %v5210
        %v5243 = vsel %vm5176, %v5144, %v5211
        %v5244 = vsel %vm5177, %v5145, %v5212
        %v5245 = vsel %vm5178, %v5146, %v5213
        %v5246 = vsel %vm5179, %v5147, %v5214
        %v5247 = vsel %vm5180, %v5148, %v5215
        %v5248 = vsel %vm5181, %v5149, %v5216
        %v5249 = vsel %vm5182, %v5150, %v5217
        %v5250 = vsel %vm5183, %v5151, %v5218
        %v5251 = vsel %vm5184, %v5152, %v5219
        %v5252 = vsel %vm5185, %v5153, %v5220
        %v5253 = vsel %vm5186, %v5154, %v5221
        %v5254 = vsel %vm5187, %v5155, %v5222
        %v5255 = vsel %vm5188, %v5156, %v5223
        %v5256 = vsel %vm5189, %v5157, %v5224
        %v5257 = vsel %vm5190, %v5158, %v5225
        %v5258 = vsel %vm5191, %v5159, %v5226
        %v5259 = vsel %vm5192, %v5160, %v5227
        %v5260 = vsel %vm5193, %v5161, %v5228
        %v5261 = vsel %vm5194, %v5162, %v5229
        %v5262 = vld [vmem:[%s8] sm:$0xff]
        %v5263 = vld [vmem:[%s8 + $0x8] sm:$0xff]
        %v5264 = vld [vmem:[%s8 + $0x10] sm:$0xff]
        %v5265 = vld [vmem:[%s8 + $0x18] sm:$0xff]
        %v5266 = vld [vmem:[%s8 + $0x20] sm:$0xff]
        %v5267 = vld [vmem:[%s8 + $0x28] sm:$0xff]
        %v5268 = vld [vmem:[%s8 + $0x30] sm:$0xff]
        %v5269 = vld [vmem:[%s8 + $0x38] sm:$0xff]
        %v5270 = vld [vmem:[%s8 + $0x40] sm:$0xff]
        %v5271 = vld [vmem:[%s8 + $0x48] sm:$0xff]
        %v5272 = vld [vmem:[%s8 + $0x50] sm:$0xff]
        %v5273 = vld [vmem:[%s8 + $0x58] sm:$0xff]
        %v5274 = vld [vmem:[%s8 + $0x60] sm:$0xff]
        %v5275 = vld [vmem:[%s8 + $0x68] sm:$0xff]
        %v5276 = vld [vmem:[%s8 + $0x70] sm:$0xff]
        %v5277 = vld [vmem:[%s8 + $0x78] sm:$0xff]
        %v5278 = vld [vmem:[%s9] sm:$0x1]
        %v5280 = vperm.slane %v5278, 0
        %5282 = vmatpush.msra.mxu0 %v5277
        %5283 = vmatpush.msra.mxu0 %v5276
        %5284 = vmatpush.msra.mxu0 %v5275
        %5285 = vmatpush.msra.mxu0 %v5274
        %5286 = vmatpush.msra.mxu0 %v5273
        %5287 = vmatpush.msra.mxu0 %v5272
        %5288 = vmatpush.msra.mxu0 %v5271
        %5289 = vmatpush.msra.mxu0 %v5270
        %5290 = vmatpush.msra.mxu0 %v5269
        %5291 = vmatpush.msra.mxu0 %v5268
        %5292 = vmatpush.msra.mxu0 %v5267
        %5293 = vmatpush.msra.mxu0 %v5266
        %5294 = vmatpush.msra.mxu0 %v5265
        %5295 = vmatpush.msra.mxu0 %v5264
        %5296 = vmatpush.msra.mxu0 %v5263
        %5297 = vmatpush.msra.mxu0 %v5262
        %5298 = vmatmul.f32.gmra.mxu0 %v5230
        %v5299 = vpop.f32.mrf.mxu0
        %v5300 = vadd.f32 %v5280, %v5299
        %5301 = vmatmul.f32.gmra.mxu0 %v5231
        %v5302 = vpop.f32.mrf.mxu0
        %v5303 = vadd.f32 %v5280, %v5302
        %5304 = vmatmul.f32.gmra.mxu0 %v5232
        %v5305 = vpop.f32.mrf.mxu0
        %v5306 = vadd.f32 %v5280, %v5305
        %5307 = vmatmul.f32.gmra.mxu0 %v5233
        %v5308 = vpop.f32.mrf.mxu0
        %v5309 = vadd.f32 %v5280, %v5308
        %5310 = vmatmul.f32.gmra.mxu0 %v5234
        %v5311 = vpop.f32.mrf.mxu0
        %v5312 = vadd.f32 %v5280, %v5311
        %5313 = vmatmul.f32.gmra.mxu0 %v5235
        %v5314 = vpop.f32.mrf.mxu0
        %v5315 = vadd.f32 %v5280, %v5314
        %5316 = vmatmul.f32.gmra.mxu0 %v5236
        %v5317 = vpop.f32.mrf.mxu0
        %v5318 = vadd.f32 %v5280, %v5317
        %5319 = vmatmul.f32.gmra.mxu0 %v5237
        %v5320 = vpop.f32.mrf.mxu0
        %v5321 = vadd.f32 %v5280, %v5320
        %5322 = vmatmul.f32.gmra.mxu0 %v5238
        %v5323 = vpop.f32.mrf.mxu0
        %v5324 = vadd.f32 %v5280, %v5323
        %5325 = vmatmul.f32.gmra.mxu0 %v5239
        %v5326 = vpop.f32.mrf.mxu0
        %v5327 = vadd.f32 %v5280, %v5326
        %5328 = vmatmul.f32.gmra.mxu0 %v5240
        %v5329 = vpop.f32.mrf.mxu0
        %v5330 = vadd.f32 %v5280, %v5329
        %5331 = vmatmul.f32.gmra.mxu0 %v5241
        %v5332 = vpop.f32.mrf.mxu0
        %v5333 = vadd.f32 %v5280, %v5332
        %5334 = vmatmul.f32.gmra.mxu0 %v5242
        %v5335 = vpop.f32.mrf.mxu0
        %v5336 = vadd.f32 %v5280, %v5335
        %5337 = vmatmul.f32.gmra.mxu0 %v5243
        %v5338 = vpop.f32.mrf.mxu0
        %v5339 = vadd.f32 %v5280, %v5338
        %5340 = vmatmul.f32.gmra.mxu0 %v5244
        %v5341 = vpop.f32.mrf.mxu0
        %v5342 = vadd.f32 %v5280, %v5341
        %5343 = vmatmul.f32.gmra.mxu0 %v5245
        %v5344 = vpop.f32.mrf.mxu0
        %v5345 = vadd.f32 %v5280, %v5344
        %5346 = vmatmul.f32.gmra.mxu0 %v5246
        %v5347 = vpop.f32.mrf.mxu0
        %v5348 = vadd.f32 %v5280, %v5347
        %5349 = vmatmul.f32.gmra.mxu0 %v5247
        %v5350 = vpop.f32.mrf.mxu0
        %v5351 = vadd.f32 %v5280, %v5350
        %5352 = vmatmul.f32.gmra.mxu0 %v5248
        %v5353 = vpop.f32.mrf.mxu0
        %v5354 = vadd.f32 %v5280, %v5353
        %5355 = vmatmul.f32.gmra.mxu0 %v5249
        %v5356 = vpop.f32.mrf.mxu0
        %v5357 = vadd.f32 %v5280, %v5356
        %5358 = vmatmul.f32.gmra.mxu0 %v5250
        %v5359 = vpop.f32.mrf.mxu0
        %v5360 = vadd.f32 %v5280, %v5359
        %5361 = vmatmul.f32.gmra.mxu0 %v5251
        %v5362 = vpop.f32.mrf.mxu0
        %v5363 = vadd.f32 %v5280, %v5362
        %5364 = vmatmul.f32.gmra.mxu0 %v5252
        %v5365 = vpop.f32.mrf.mxu0
        %v5366 = vadd.f32 %v5280, %v5365
        %5367 = vmatmul.f32.gmra.mxu0 %v5253
        %v5368 = vpop.f32.mrf.mxu0
        %v5369 = vadd.f32 %v5280, %v5368
        %5370 = vmatmul.f32.gmra.mxu0 %v5254
        %v5371 = vpop.f32.mrf.mxu0
        %v5372 = vadd.f32 %v5280, %v5371
        %5373 = vmatmul.f32.gmra.mxu0 %v5255
        %v5374 = vpop.f32.mrf.mxu0
        %v5375 = vadd.f32 %v5280, %v5374
        %5376 = vmatmul.f32.gmra.mxu0 %v5256
        %v5377 = vpop.f32.mrf.mxu0
        %v5378 = vadd.f32 %v5280, %v5377
        %5379 = vmatmul.f32.gmra.mxu0 %v5257
        %v5380 = vpop.f32.mrf.mxu0
        %v5381 = vadd.f32 %v5280, %v5380
        %5382 = vmatmul.f32.gmra.mxu0 %v5258
        %v5383 = vpop.f32.mrf.mxu0
        %v5384 = vadd.f32 %v5280, %v5383
        %5385 = vmatmul.f32.gmra.mxu0 %v5259
        %v5386 = vpop.f32.mrf.mxu0
        %v5387 = vadd.f32 %v5280, %v5386
        %5388 = vmatmul.f32.gmra.mxu0 %v5260
        %v5389 = vpop.f32.mrf.mxu0
        %v5390 = vadd.f32 %v5280, %v5389
        %5391 = vmatmul.f32.gmra.mxu0 %v5261
        %v5392 = vpop.f32.mrf.mxu0
        %v5393 = vadd.f32 %v5280, %v5392
        %5394 = vdwg.mxu0
        %v5395 = vxor.u32 %v5300, 2147483648
        %v5396 = vxor.u32 %v5303, 2147483648
        %v5397 = vxor.u32 %v5306, 2147483648
        %v5398 = vxor.u32 %v5309, 2147483648
        %v5399 = vxor.u32 %v5312, 2147483648
        %v5400 = vxor.u32 %v5315, 2147483648
        %v5401 = vxor.u32 %v5318, 2147483648
        %v5402 = vxor.u32 %v5321, 2147483648
        %v5403 = vxor.u32 %v5324, 2147483648
        %v5404 = vxor.u32 %v5327, 2147483648
        %v5405 = vxor.u32 %v5330, 2147483648
        %v5406 = vxor.u32 %v5333, 2147483648
        %v5407 = vxor.u32 %v5336, 2147483648
        %v5408 = vxor.u32 %v5339, 2147483648
        %v5409 = vxor.u32 %v5342, 2147483648
        %v5410 = vxor.u32 %v5345, 2147483648
        %v5411 = vxor.u32 %v5348, 2147483648
        %v5412 = vxor.u32 %v5351, 2147483648
        %v5413 = vxor.u32 %v5354, 2147483648
        %v5414 = vxor.u32 %v5357, 2147483648
        %v5415 = vxor.u32 %v5360, 2147483648
        %v5416 = vxor.u32 %v5363, 2147483648
        %v5417 = vxor.u32 %v5366, 2147483648
        %v5418 = vxor.u32 %v5369, 2147483648
        %v5419 = vxor.u32 %v5372, 2147483648
        %v5420 = vxor.u32 %v5375, 2147483648
        %v5421 = vxor.u32 %v5378, 2147483648
        %v5422 = vxor.u32 %v5381, 2147483648
        %v5423 = vxor.u32 %v5384, 2147483648
        %v5424 = vxor.u32 %v5387, 2147483648
        %v5425 = vxor.u32 %v5390, 2147483648
        %v5426 = vxor.u32 %v5393, 2147483648
        %v5427 = vmul.f32 %v5395, 1.442695
        %v5428 = vpow.pop %v5427
        %v5429 = vmul.f32 %v5396, 1.442695
        %v5430 = vpow.pop %v5429
        %v5431 = vmul.f32 %v5397, 1.442695
        %v5432 = vpow.pop %v5431
        %v5433 = vmul.f32 %v5398, 1.442695
        %v5434 = vpow.pop %v5433
        %v5435 = vmul.f32 %v5399, 1.442695
        %v5436 = vpow.pop %v5435
        %v5437 = vmul.f32 %v5400, 1.442695
        %v5438 = vpow.pop %v5437
        %v5439 = vmul.f32 %v5401, 1.442695
        %v5440 = vpow.pop %v5439
        %v5441 = vmul.f32 %v5402, 1.442695
        %v5442 = vpow.pop %v5441
        %v5443 = vmul.f32 %v5403, 1.442695
        %v5444 = vpow.pop %v5443
        %v5445 = vmul.f32 %v5404, 1.442695
        %v5446 = vpow.pop %v5445
        %v5447 = vmul.f32 %v5405, 1.442695
        %v5448 = vpow.pop %v5447
        %v5449 = vmul.f32 %v5406, 1.442695
        %v5450 = vpow.pop %v5449
        %v5451 = vmul.f32 %v5407, 1.442695
        %v5452 = vpow.pop %v5451
        %v5453 = vmul.f32 %v5408, 1.442695
        %v5454 = vpow.pop %v5453
        %v5455 = vmul.f32 %v5409, 1.442695
        %v5456 = vpow.pop %v5455
        %v5457 = vmul.f32 %v5410, 1.442695
        %v5458 = vpow.pop %v5457
        %v5459 = vmul.f32 %v5411, 1.442695
        %v5460 = vpow.pop %v5459
        %v5461 = vmul.f32 %v5412, 1.442695
        %v5462 = vpow.pop %v5461
        %v5463 = vmul.f32 %v5413, 1.442695
        %v5464 = vpow.pop %v5463
        %v5465 = vmul.f32 %v5414, 1.442695
        %v5466 = vpow.pop %v5465
        %v5467 = vmul.f32 %v5415, 1.442695
        %v5468 = vpow.pop %v5467
        %v5469 = vmul.f32 %v5416, 1.442695
        %v5470 = vpow.pop %v5469
        %v5471 = vmul.f32 %v5417, 1.442695
        %v5472 = vpow.pop %v5471
        %v5473 = vmul.f32 %v5418, 1.442695
        %v5474 = vpow.pop %v5473
        %v5475 = vmul.f32 %v5419, 1.442695
        %v5476 = vpow.pop %v5475
        %v5477 = vmul.f32 %v5420, 1.442695
        %v5478 = vpow.pop %v5477
        %v5479 = vmul.f32 %v5421, 1.442695
        %v5480 = vpow.pop %v5479
        %v5481 = vmul.f32 %v5422, 1.442695
        %v5482 = vpow.pop %v5481
        %v5483 = vmul.f32 %v5423, 1.442695
        %v5484 = vpow.pop %v5483
        %v5485 = vmul.f32 %v5424, 1.442695
        %v5486 = vpow.pop %v5485
        %v5487 = vmul.f32 %v5425, 1.442695
        %v5488 = vpow.pop %v5487
        %v5489 = vmul.f32 %v5426, 1.442695
        %v5490 = vpow.pop %v5489
        %v5491 = vadd.f32 %v5428, 1.0
        %v5492 = vadd.f32 %v5430, 1.0
        %v5493 = vadd.f32 %v5432, 1.0
        %v5494 = vadd.f32 %v5434, 1.0
        %v5495 = vadd.f32 %v5436, 1.0
        %v5496 = vadd.f32 %v5438, 1.0
        %v5497 = vadd.f32 %v5440, 1.0
        %v5498 = vadd.f32 %v5442, 1.0
        %v5499 = vadd.f32 %v5444, 1.0
        %v5500 = vadd.f32 %v5446, 1.0
        %v5501 = vadd.f32 %v5448, 1.0
        %v5502 = vadd.f32 %v5450, 1.0
        %v5503 = vadd.f32 %v5452, 1.0
        %v5504 = vadd.f32 %v5454, 1.0
        %v5505 = vadd.f32 %v5456, 1.0
        %v5506 = vadd.f32 %v5458, 1.0
        %v5507 = vadd.f32 %v5460, 1.0
        %v5508 = vadd.f32 %v5462, 1.0
        %v5509 = vadd.f32 %v5464, 1.0
        %v5510 = vadd.f32 %v5466, 1.0
        %v5511 = vadd.f32 %v5468, 1.0
        %v5512 = vadd.f32 %v5470, 1.0
        %v5513 = vadd.f32 %v5472, 1.0
        %v5514 = vadd.f32 %v5474, 1.0
        %v5515 = vadd.f32 %v5476, 1.0
        %v5516 = vadd.f32 %v5478, 1.0
        %v5517 = vadd.f32 %v5480, 1.0
        %v5518 = vadd.f32 %v5482, 1.0
        %v5519 = vadd.f32 %v5484, 1.0
        %v5520 = vadd.f32 %v5486, 1.0
        %v5521 = vadd.f32 %v5488, 1.0
        %v5522 = vadd.f32 %v5490, 1.0
        %v5523 = vrcp.pop %v5491
        %v5524 = vmul.f32 %v5491, %v5523
        %v5525 = vsub.f32 1.0, %v5524
        %v5526 = vmul.f32 %v5523, %v5525
        %v5527 = vadd.f32 %v5523, %v5526
        %vm5528 = vweird.f32 %v5491
        %vm5529 = vweird.f32 %v5523
        %vm5530 = vmor %vm5528, %vm5529
        %v5531 = vsel %vm5530, %v5523, %v5527
        %v5532 = vand.u32 2147483647, %v5491
        %vm5533 = vcmp.eq.f32.partialorder %v5532, 8.507059e+37
        %v5534 = vand.u32 %v5491, 2147483648
        %v5535 = vor.u32 1.1754944e-38, %v5534
        %v5536 = vsel %vm5533, %v5535, %v5531
        %v5537 = vmul.f32 1.0, %v5536
        %v5538 = vrcp.pop %v5492
        %v5539 = vmul.f32 %v5492, %v5538
        %v5540 = vsub.f32 1.0, %v5539
        %v5541 = vmul.f32 %v5538, %v5540
        %v5542 = vadd.f32 %v5538, %v5541
        %vm5543 = vweird.f32 %v5492
        %vm5544 = vweird.f32 %v5538
        %vm5545 = vmor %vm5543, %vm5544
        %v5546 = vsel %vm5545, %v5538, %v5542
        %v5547 = vand.u32 2147483647, %v5492
        %vm5548 = vcmp.eq.f32.partialorder %v5547, 8.507059e+37
        %v5549 = vand.u32 %v5492, 2147483648
        %v5550 = vor.u32 1.1754944e-38, %v5549
        %v5551 = vsel %vm5548, %v5550, %v5546
        %v5552 = vmul.f32 1.0, %v5551
        %v5553 = vrcp.pop %v5493
        %v5554 = vmul.f32 %v5493, %v5553
        %v5555 = vsub.f32 1.0, %v5554
        %v5556 = vmul.f32 %v5553, %v5555
        %v5557 = vadd.f32 %v5553, %v5556
        %vm5558 = vweird.f32 %v5493
        %vm5559 = vweird.f32 %v5553
        %vm5560 = vmor %vm5558, %vm5559
        %v5561 = vsel %vm5560, %v5553, %v5557
        %v5562 = vand.u32 2147483647, %v5493
        %vm5563 = vcmp.eq.f32.partialorder %v5562, 8.507059e+37
        %v5564 = vand.u32 %v5493, 2147483648
        %v5565 = vor.u32 1.1754944e-38, %v5564
        %v5566 = vsel %vm5563, %v5565, %v5561
        %v5567 = vmul.f32 1.0, %v5566
        %v5568 = vrcp.pop %v5494
        %v5569 = vmul.f32 %v5494, %v5568
        %v5570 = vsub.f32 1.0, %v5569
        %v5571 = vmul.f32 %v5568, %v5570
        %v5572 = vadd.f32 %v5568, %v5571
        %vm5573 = vweird.f32 %v5494
        %vm5574 = vweird.f32 %v5568
        %vm5575 = vmor %vm5573, %vm5574
        %v5576 = vsel %vm5575, %v5568, %v5572
        %v5577 = vand.u32 2147483647, %v5494
        %vm5578 = vcmp.eq.f32.partialorder %v5577, 8.507059e+37
        %v5579 = vand.u32 %v5494, 2147483648
        %v5580 = vor.u32 1.1754944e-38, %v5579
        %v5581 = vsel %vm5578, %v5580, %v5576
        %v5582 = vmul.f32 1.0, %v5581
        %v5583 = vrcp.pop %v5495
        %v5584 = vmul.f32 %v5495, %v5583
        %v5585 = vsub.f32 1.0, %v5584
        %v5586 = vmul.f32 %v5583, %v5585
        %v5587 = vadd.f32 %v5583, %v5586
        %vm5588 = vweird.f32 %v5495
        %vm5589 = vweird.f32 %v5583
        %vm5590 = vmor %vm5588, %vm5589
        %v5591 = vsel %vm5590, %v5583, %v5587
        %v5592 = vand.u32 2147483647, %v5495
        %vm5593 = vcmp.eq.f32.partialorder %v5592, 8.507059e+37
        %v5594 = vand.u32 %v5495, 2147483648
        %v5595 = vor.u32 1.1754944e-38, %v5594
        %v5596 = vsel %vm5593, %v5595, %v5591
        %v5597 = vmul.f32 1.0, %v5596
        %v5598 = vrcp.pop %v5496
        %v5599 = vmul.f32 %v5496, %v5598
        %v5600 = vsub.f32 1.0, %v5599
        %v5601 = vmul.f32 %v5598, %v5600
        %v5602 = vadd.f32 %v5598, %v5601
        %vm5603 = vweird.f32 %v5496
        %vm5604 = vweird.f32 %v5598
        %vm5605 = vmor %vm5603, %vm5604
        %v5606 = vsel %vm5605, %v5598, %v5602
        %v5607 = vand.u32 2147483647, %v5496
        %vm5608 = vcmp.eq.f32.partialorder %v5607, 8.507059e+37
        %v5609 = vand.u32 %v5496, 2147483648
        %v5610 = vor.u32 1.1754944e-38, %v5609
        %v5611 = vsel %vm5608, %v5610, %v5606
        %v5612 = vmul.f32 1.0, %v5611
        %v5613 = vrcp.pop %v5497
        %v5614 = vmul.f32 %v5497, %v5613
        %v5615 = vsub.f32 1.0, %v5614
        %v5616 = vmul.f32 %v5613, %v5615
        %v5617 = vadd.f32 %v5613, %v5616
        %vm5618 = vweird.f32 %v5497
        %vm5619 = vweird.f32 %v5613
        %vm5620 = vmor %vm5618, %vm5619
        %v5621 = vsel %vm5620, %v5613, %v5617
        %v5622 = vand.u32 2147483647, %v5497
        %vm5623 = vcmp.eq.f32.partialorder %v5622, 8.507059e+37
        %v5624 = vand.u32 %v5497, 2147483648
        %v5625 = vor.u32 1.1754944e-38, %v5624
        %v5626 = vsel %vm5623, %v5625, %v5621
        %v5627 = vmul.f32 1.0, %v5626
        %v5628 = vrcp.pop %v5498
        %v5629 = vmul.f32 %v5498, %v5628
        %v5630 = vsub.f32 1.0, %v5629
        %v5631 = vmul.f32 %v5628, %v5630
        %v5632 = vadd.f32 %v5628, %v5631
        %vm5633 = vweird.f32 %v5498
        %vm5634 = vweird.f32 %v5628
        %vm5635 = vmor %vm5633, %vm5634
        %v5636 = vsel %vm5635, %v5628, %v5632
        %v5637 = vand.u32 2147483647, %v5498
        %vm5638 = vcmp.eq.f32.partialorder %v5637, 8.507059e+37
        %v5639 = vand.u32 %v5498, 2147483648
        %v5640 = vor.u32 1.1754944e-38, %v5639
        %v5641 = vsel %vm5638, %v5640, %v5636
        %v5642 = vmul.f32 1.0, %v5641
        %v5643 = vrcp.pop %v5499
        %v5644 = vmul.f32 %v5499, %v5643
        %v5645 = vsub.f32 1.0, %v5644
        %v5646 = vmul.f32 %v5643, %v5645
        %v5647 = vadd.f32 %v5643, %v5646
        %vm5648 = vweird.f32 %v5499
        %vm5649 = vweird.f32 %v5643
        %vm5650 = vmor %vm5648, %vm5649
        %v5651 = vsel %vm5650, %v5643, %v5647
        %v5652 = vand.u32 2147483647, %v5499
        %vm5653 = vcmp.eq.f32.partialorder %v5652, 8.507059e+37
        %v5654 = vand.u32 %v5499, 2147483648
        %v5655 = vor.u32 1.1754944e-38, %v5654
        %v5656 = vsel %vm5653, %v5655, %v5651
        %v5657 = vmul.f32 1.0, %v5656
        %v5658 = vrcp.pop %v5500
        %v5659 = vmul.f32 %v5500, %v5658
        %v5660 = vsub.f32 1.0, %v5659
        %v5661 = vmul.f32 %v5658, %v5660
        %v5662 = vadd.f32 %v5658, %v5661
        %vm5663 = vweird.f32 %v5500
        %vm5664 = vweird.f32 %v5658
        %vm5665 = vmor %vm5663, %vm5664
        %v5666 = vsel %vm5665, %v5658, %v5662
        %v5667 = vand.u32 2147483647, %v5500
        %vm5668 = vcmp.eq.f32.partialorder %v5667, 8.507059e+37
        %v5669 = vand.u32 %v5500, 2147483648
        %v5670 = vor.u32 1.1754944e-38, %v5669
        %v5671 = vsel %vm5668, %v5670, %v5666
        %v5672 = vmul.f32 1.0, %v5671
        %v5673 = vrcp.pop %v5501
        %v5674 = vmul.f32 %v5501, %v5673
        %v5675 = vsub.f32 1.0, %v5674
        %v5676 = vmul.f32 %v5673, %v5675
        %v5677 = vadd.f32 %v5673, %v5676
        %vm5678 = vweird.f32 %v5501
        %vm5679 = vweird.f32 %v5673
        %vm5680 = vmor %vm5678, %vm5679
        %v5681 = vsel %vm5680, %v5673, %v5677
        %v5682 = vand.u32 2147483647, %v5501
        %vm5683 = vcmp.eq.f32.partialorder %v5682, 8.507059e+37
        %v5684 = vand.u32 %v5501, 2147483648
        %v5685 = vor.u32 1.1754944e-38, %v5684
        %v5686 = vsel %vm5683, %v5685, %v5681
        %v5687 = vmul.f32 1.0, %v5686
        %v5688 = vrcp.pop %v5502
        %v5689 = vmul.f32 %v5502, %v5688
        %v5690 = vsub.f32 1.0, %v5689
        %v5691 = vmul.f32 %v5688, %v5690
        %v5692 = vadd.f32 %v5688, %v5691
        %vm5693 = vweird.f32 %v5502
        %vm5694 = vweird.f32 %v5688
        %vm5695 = vmor %vm5693, %vm5694
        %v5696 = vsel %vm5695, %v5688, %v5692
        %v5697 = vand.u32 2147483647, %v5502
        %vm5698 = vcmp.eq.f32.partialorder %v5697, 8.507059e+37
        %v5699 = vand.u32 %v5502, 2147483648
        %v5700 = vor.u32 1.1754944e-38, %v5699
        %v5701 = vsel %vm5698, %v5700, %v5696
        %v5702 = vmul.f32 1.0, %v5701
        %v5703 = vrcp.pop %v5503
        %v5704 = vmul.f32 %v5503, %v5703
        %v5705 = vsub.f32 1.0, %v5704
        %v5706 = vmul.f32 %v5703, %v5705
        %v5707 = vadd.f32 %v5703, %v5706
        %vm5708 = vweird.f32 %v5503
        %vm5709 = vweird.f32 %v5703
        %vm5710 = vmor %vm5708, %vm5709
        %v5711 = vsel %vm5710, %v5703, %v5707
        %v5712 = vand.u32 2147483647, %v5503
        %vm5713 = vcmp.eq.f32.partialorder %v5712, 8.507059e+37
        %v5714 = vand.u32 %v5503, 2147483648
        %v5715 = vor.u32 1.1754944e-38, %v5714
        %v5716 = vsel %vm5713, %v5715, %v5711
        %v5717 = vmul.f32 1.0, %v5716
        %v5718 = vrcp.pop %v5504
        %v5719 = vmul.f32 %v5504, %v5718
        %v5720 = vsub.f32 1.0, %v5719
        %v5721 = vmul.f32 %v5718, %v5720
        %v5722 = vadd.f32 %v5718, %v5721
        %vm5723 = vweird.f32 %v5504
        %vm5724 = vweird.f32 %v5718
        %vm5725 = vmor %vm5723, %vm5724
        %v5726 = vsel %vm5725, %v5718, %v5722
        %v5727 = vand.u32 2147483647, %v5504
        %vm5728 = vcmp.eq.f32.partialorder %v5727, 8.507059e+37
        %v5729 = vand.u32 %v5504, 2147483648
        %v5730 = vor.u32 1.1754944e-38, %v5729
        %v5731 = vsel %vm5728, %v5730, %v5726
        %v5732 = vmul.f32 1.0, %v5731
        %v5733 = vrcp.pop %v5505
        %v5734 = vmul.f32 %v5505, %v5733
        %v5735 = vsub.f32 1.0, %v5734
        %v5736 = vmul.f32 %v5733, %v5735
        %v5737 = vadd.f32 %v5733, %v5736
        %vm5738 = vweird.f32 %v5505
        %vm5739 = vweird.f32 %v5733
        %vm5740 = vmor %vm5738, %vm5739
        %v5741 = vsel %vm5740, %v5733, %v5737
        %v5742 = vand.u32 2147483647, %v5505
        %vm5743 = vcmp.eq.f32.partialorder %v5742, 8.507059e+37
        %v5744 = vand.u32 %v5505, 2147483648
        %v5745 = vor.u32 1.1754944e-38, %v5744
        %v5746 = vsel %vm5743, %v5745, %v5741
        %v5747 = vmul.f32 1.0, %v5746
        %v5748 = vrcp.pop %v5506
        %v5749 = vmul.f32 %v5506, %v5748
        %v5750 = vsub.f32 1.0, %v5749
        %v5751 = vmul.f32 %v5748, %v5750
        %v5752 = vadd.f32 %v5748, %v5751
        %vm5753 = vweird.f32 %v5506
        %vm5754 = vweird.f32 %v5748
        %vm5755 = vmor %vm5753, %vm5754
        %v5756 = vsel %vm5755, %v5748, %v5752
        %v5757 = vand.u32 2147483647, %v5506
        %vm5758 = vcmp.eq.f32.partialorder %v5757, 8.507059e+37
        %v5759 = vand.u32 %v5506, 2147483648
        %v5760 = vor.u32 1.1754944e-38, %v5759
        %v5761 = vsel %vm5758, %v5760, %v5756
        %v5762 = vmul.f32 1.0, %v5761
        %v5763 = vrcp.pop %v5507
        %v5764 = vmul.f32 %v5507, %v5763
        %v5765 = vsub.f32 1.0, %v5764
        %v5766 = vmul.f32 %v5763, %v5765
        %v5767 = vadd.f32 %v5763, %v5766
        %vm5768 = vweird.f32 %v5507
        %vm5769 = vweird.f32 %v5763
        %vm5770 = vmor %vm5768, %vm5769
        %v5771 = vsel %vm5770, %v5763, %v5767
        %v5772 = vand.u32 2147483647, %v5507
        %vm5773 = vcmp.eq.f32.partialorder %v5772, 8.507059e+37
        %v5774 = vand.u32 %v5507, 2147483648
        %v5775 = vor.u32 1.1754944e-38, %v5774
        %v5776 = vsel %vm5773, %v5775, %v5771
        %v5777 = vmul.f32 1.0, %v5776
        %v5778 = vrcp.pop %v5508
        %v5779 = vmul.f32 %v5508, %v5778
        %v5780 = vsub.f32 1.0, %v5779
        %v5781 = vmul.f32 %v5778, %v5780
        %v5782 = vadd.f32 %v5778, %v5781
        %vm5783 = vweird.f32 %v5508
        %vm5784 = vweird.f32 %v5778
        %vm5785 = vmor %vm5783, %vm5784
        %v5786 = vsel %vm5785, %v5778, %v5782
        %v5787 = vand.u32 2147483647, %v5508
        %vm5788 = vcmp.eq.f32.partialorder %v5787, 8.507059e+37
        %v5789 = vand.u32 %v5508, 2147483648
        %v5790 = vor.u32 1.1754944e-38, %v5789
        %v5791 = vsel %vm5788, %v5790, %v5786
        %v5792 = vmul.f32 1.0, %v5791
        %v5793 = vrcp.pop %v5509
        %v5794 = vmul.f32 %v5509, %v5793
        %v5795 = vsub.f32 1.0, %v5794
        %v5796 = vmul.f32 %v5793, %v5795
        %v5797 = vadd.f32 %v5793, %v5796
        %vm5798 = vweird.f32 %v5509
        %vm5799 = vweird.f32 %v5793
        %vm5800 = vmor %vm5798, %vm5799
        %v5801 = vsel %vm5800, %v5793, %v5797
        %v5802 = vand.u32 2147483647, %v5509
        %vm5803 = vcmp.eq.f32.partialorder %v5802, 8.507059e+37
        %v5804 = vand.u32 %v5509, 2147483648
        %v5805 = vor.u32 1.1754944e-38, %v5804
        %v5806 = vsel %vm5803, %v5805, %v5801
        %v5807 = vmul.f32 1.0, %v5806
        %v5808 = vrcp.pop %v5510
        %v5809 = vmul.f32 %v5510, %v5808
        %v5810 = vsub.f32 1.0, %v5809
        %v5811 = vmul.f32 %v5808, %v5810
        %v5812 = vadd.f32 %v5808, %v5811
        %vm5813 = vweird.f32 %v5510
        %vm5814 = vweird.f32 %v5808
        %vm5815 = vmor %vm5813, %vm5814
        %v5816 = vsel %vm5815, %v5808, %v5812
        %v5817 = vand.u32 2147483647, %v5510
        %vm5818 = vcmp.eq.f32.partialorder %v5817, 8.507059e+37
        %v5819 = vand.u32 %v5510, 2147483648
        %v5820 = vor.u32 1.1754944e-38, %v5819
        %v5821 = vsel %vm5818, %v5820, %v5816
        %v5822 = vmul.f32 1.0, %v5821
        %v5823 = vrcp.pop %v5511
        %v5824 = vmul.f32 %v5511, %v5823
        %v5825 = vsub.f32 1.0, %v5824
        %v5826 = vmul.f32 %v5823, %v5825
        %v5827 = vadd.f32 %v5823, %v5826
        %vm5828 = vweird.f32 %v5511
        %vm5829 = vweird.f32 %v5823
        %vm5830 = vmor %vm5828, %vm5829
        %v5831 = vsel %vm5830, %v5823, %v5827
        %v5832 = vand.u32 2147483647, %v5511
        %vm5833 = vcmp.eq.f32.partialorder %v5832, 8.507059e+37
        %v5834 = vand.u32 %v5511, 2147483648
        %v5835 = vor.u32 1.1754944e-38, %v5834
        %v5836 = vsel %vm5833, %v5835, %v5831
        %v5837 = vmul.f32 1.0, %v5836
        %v5838 = vrcp.pop %v5512
        %v5839 = vmul.f32 %v5512, %v5838
        %v5840 = vsub.f32 1.0, %v5839
        %v5841 = vmul.f32 %v5838, %v5840
        %v5842 = vadd.f32 %v5838, %v5841
        %vm5843 = vweird.f32 %v5512
        %vm5844 = vweird.f32 %v5838
        %vm5845 = vmor %vm5843, %vm5844
        %v5846 = vsel %vm5845, %v5838, %v5842
        %v5847 = vand.u32 2147483647, %v5512
        %vm5848 = vcmp.eq.f32.partialorder %v5847, 8.507059e+37
        %v5849 = vand.u32 %v5512, 2147483648
        %v5850 = vor.u32 1.1754944e-38, %v5849
        %v5851 = vsel %vm5848, %v5850, %v5846
        %v5852 = vmul.f32 1.0, %v5851
        %v5853 = vrcp.pop %v5513
        %v5854 = vmul.f32 %v5513, %v5853
        %v5855 = vsub.f32 1.0, %v5854
        %v5856 = vmul.f32 %v5853, %v5855
        %v5857 = vadd.f32 %v5853, %v5856
        %vm5858 = vweird.f32 %v5513
        %vm5859 = vweird.f32 %v5853
        %vm5860 = vmor %vm5858, %vm5859
        %v5861 = vsel %vm5860, %v5853, %v5857
        %v5862 = vand.u32 2147483647, %v5513
        %vm5863 = vcmp.eq.f32.partialorder %v5862, 8.507059e+37
        %v5864 = vand.u32 %v5513, 2147483648
        %v5865 = vor.u32 1.1754944e-38, %v5864
        %v5866 = vsel %vm5863, %v5865, %v5861
        %v5867 = vmul.f32 1.0, %v5866
        %v5868 = vrcp.pop %v5514
        %v5869 = vmul.f32 %v5514, %v5868
        %v5870 = vsub.f32 1.0, %v5869
        %v5871 = vmul.f32 %v5868, %v5870
        %v5872 = vadd.f32 %v5868, %v5871
        %vm5873 = vweird.f32 %v5514
        %vm5874 = vweird.f32 %v5868
        %vm5875 = vmor %vm5873, %vm5874
        %v5876 = vsel %vm5875, %v5868, %v5872
        %v5877 = vand.u32 2147483647, %v5514
        %vm5878 = vcmp.eq.f32.partialorder %v5877, 8.507059e+37
        %v5879 = vand.u32 %v5514, 2147483648
        %v5880 = vor.u32 1.1754944e-38, %v5879
        %v5881 = vsel %vm5878, %v5880, %v5876
        %v5882 = vmul.f32 1.0, %v5881
        %v5883 = vrcp.pop %v5515
        %v5884 = vmul.f32 %v5515, %v5883
        %v5885 = vsub.f32 1.0, %v5884
        %v5886 = vmul.f32 %v5883, %v5885
        %v5887 = vadd.f32 %v5883, %v5886
        %vm5888 = vweird.f32 %v5515
        %vm5889 = vweird.f32 %v5883
        %vm5890 = vmor %vm5888, %vm5889
        %v5891 = vsel %vm5890, %v5883, %v5887
        %v5892 = vand.u32 2147483647, %v5515
        %vm5893 = vcmp.eq.f32.partialorder %v5892, 8.507059e+37
        %v5894 = vand.u32 %v5515, 2147483648
        %v5895 = vor.u32 1.1754944e-38, %v5894
        %v5896 = vsel %vm5893, %v5895, %v5891
        %v5897 = vmul.f32 1.0, %v5896
        %v5898 = vrcp.pop %v5516
        %v5899 = vmul.f32 %v5516, %v5898
        %v5900 = vsub.f32 1.0, %v5899
        %v5901 = vmul.f32 %v5898, %v5900
        %v5902 = vadd.f32 %v5898, %v5901
        %vm5903 = vweird.f32 %v5516
        %vm5904 = vweird.f32 %v5898
        %vm5905 = vmor %vm5903, %vm5904
        %v5906 = vsel %vm5905, %v5898, %v5902
        %v5907 = vand.u32 2147483647, %v5516
        %vm5908 = vcmp.eq.f32.partialorder %v5907, 8.507059e+37
        %v5909 = vand.u32 %v5516, 2147483648
        %v5910 = vor.u32 1.1754944e-38, %v5909
        %v5911 = vsel %vm5908, %v5910, %v5906
        %v5912 = vmul.f32 1.0, %v5911
        %v5913 = vrcp.pop %v5517
        %v5914 = vmul.f32 %v5517, %v5913
        %v5915 = vsub.f32 1.0, %v5914
        %v5916 = vmul.f32 %v5913, %v5915
        %v5917 = vadd.f32 %v5913, %v5916
        %vm5918 = vweird.f32 %v5517
        %vm5919 = vweird.f32 %v5913
        %vm5920 = vmor %vm5918, %vm5919
        %v5921 = vsel %vm5920, %v5913, %v5917
        %v5922 = vand.u32 2147483647, %v5517
        %vm5923 = vcmp.eq.f32.partialorder %v5922, 8.507059e+37
        %v5924 = vand.u32 %v5517, 2147483648
        %v5925 = vor.u32 1.1754944e-38, %v5924
        %v5926 = vsel %vm5923, %v5925, %v5921
        %v5927 = vmul.f32 1.0, %v5926
        %v5928 = vrcp.pop %v5518
        %v5929 = vmul.f32 %v5518, %v5928
        %v5930 = vsub.f32 1.0, %v5929
        %v5931 = vmul.f32 %v5928, %v5930
        %v5932 = vadd.f32 %v5928, %v5931
        %vm5933 = vweird.f32 %v5518
        %vm5934 = vweird.f32 %v5928
        %vm5935 = vmor %vm5933, %vm5934
        %v5936 = vsel %vm5935, %v5928, %v5932
        %v5937 = vand.u32 2147483647, %v5518
        %vm5938 = vcmp.eq.f32.partialorder %v5937, 8.507059e+37
        %v5939 = vand.u32 %v5518, 2147483648
        %v5940 = vor.u32 1.1754944e-38, %v5939
        %v5941 = vsel %vm5938, %v5940, %v5936
        %v5942 = vmul.f32 1.0, %v5941
        %v5943 = vrcp.pop %v5519
        %v5944 = vmul.f32 %v5519, %v5943
        %v5945 = vsub.f32 1.0, %v5944
        %v5946 = vmul.f32 %v5943, %v5945
        %v5947 = vadd.f32 %v5943, %v5946
        %vm5948 = vweird.f32 %v5519
        %vm5949 = vweird.f32 %v5943
        %vm5950 = vmor %vm5948, %vm5949
        %v5951 = vsel %vm5950, %v5943, %v5947
        %v5952 = vand.u32 2147483647, %v5519
        %vm5953 = vcmp.eq.f32.partialorder %v5952, 8.507059e+37
        %v5954 = vand.u32 %v5519, 2147483648
        %v5955 = vor.u32 1.1754944e-38, %v5954
        %v5956 = vsel %vm5953, %v5955, %v5951
        %v5957 = vmul.f32 1.0, %v5956
        %v5958 = vrcp.pop %v5520
        %v5959 = vmul.f32 %v5520, %v5958
        %v5960 = vsub.f32 1.0, %v5959
        %v5961 = vmul.f32 %v5958, %v5960
        %v5962 = vadd.f32 %v5958, %v5961
        %vm5963 = vweird.f32 %v5520
        %vm5964 = vweird.f32 %v5958
        %vm5965 = vmor %vm5963, %vm5964
        %v5966 = vsel %vm5965, %v5958, %v5962
        %v5967 = vand.u32 2147483647, %v5520
        %vm5968 = vcmp.eq.f32.partialorder %v5967, 8.507059e+37
        %v5969 = vand.u32 %v5520, 2147483648
        %v5970 = vor.u32 1.1754944e-38, %v5969
        %v5971 = vsel %vm5968, %v5970, %v5966
        %v5972 = vmul.f32 1.0, %v5971
        %v5973 = vrcp.pop %v5521
        %v5974 = vmul.f32 %v5521, %v5973
        %v5975 = vsub.f32 1.0, %v5974
        %v5976 = vmul.f32 %v5973, %v5975
        %v5977 = vadd.f32 %v5973, %v5976
        %vm5978 = vweird.f32 %v5521
        %vm5979 = vweird.f32 %v5973
        %vm5980 = vmor %vm5978, %vm5979
        %v5981 = vsel %vm5980, %v5973, %v5977
        %v5982 = vand.u32 2147483647, %v5521
        %vm5983 = vcmp.eq.f32.partialorder %v5982, 8.507059e+37
        %v5984 = vand.u32 %v5521, 2147483648
        %v5985 = vor.u32 1.1754944e-38, %v5984
        %v5986 = vsel %vm5983, %v5985, %v5981
        %v5987 = vmul.f32 1.0, %v5986
        %v5988 = vrcp.pop %v5522
        %v5989 = vmul.f32 %v5522, %v5988
        %v5990 = vsub.f32 1.0, %v5989
        %v5991 = vmul.f32 %v5988, %v5990
        %v5992 = vadd.f32 %v5988, %v5991
        %vm5993 = vweird.f32 %v5522
        %vm5994 = vweird.f32 %v5988
        %vm5995 = vmor %vm5993, %vm5994
        %v5996 = vsel %vm5995, %v5988, %v5992
        %v5997 = vand.u32 2147483647, %v5522
        %vm5998 = vcmp.eq.f32.partialorder %v5997, 8.507059e+37
        %v5999 = vand.u32 %v5522, 2147483648
        %v6000 = vor.u32 1.1754944e-38, %v5999
        %v6001 = vsel %vm5998, %v6000, %v5996
        %v6002 = vmul.f32 1.0, %v6001
        %v6003 = vld [vmem:[%s640] sm:$0xff]
        %v6004 = vld [vmem:[%s640 + $0x8] sm:$0xff]
        %v6005 = vld [vmem:[%s640 + $0x10] sm:$0xff]
        %v6006 = vld [vmem:[%s640 + $0x18] sm:$0xff]
        %v6007 = vld [vmem:[%s640 + $0x20] sm:$0xff]
        %v6008 = vld [vmem:[%s640 + $0x28] sm:$0xff]
        %v6009 = vld [vmem:[%s640 + $0x30] sm:$0xff]
        %v6010 = vld [vmem:[%s640 + $0x38] sm:$0xff]
        %v6011 = vld [vmem:[%s640 + $0x40] sm:$0xff]
        %v6012 = vld [vmem:[%s640 + $0x48] sm:$0xff]
        %v6013 = vld [vmem:[%s640 + $0x50] sm:$0xff]
        %v6014 = vld [vmem:[%s640 + $0x58] sm:$0xff]
        %v6015 = vld [vmem:[%s640 + $0x60] sm:$0xff]
        %v6016 = vld [vmem:[%s640 + $0x68] sm:$0xff]
        %v6017 = vld [vmem:[%s640 + $0x70] sm:$0xff]
        %v6018 = vld [vmem:[%s640 + $0x78] sm:$0xff]
        %v6019 = vld [vmem:[%s640 + $0x80] sm:$0xff]
        %v6020 = vld [vmem:[%s640 + $0x88] sm:$0xff]
        %v6021 = vld [vmem:[%s640 + $0x90] sm:$0xff]
        %v6022 = vld [vmem:[%s640 + $0x98] sm:$0xff]
        %v6023 = vld [vmem:[%s640 + $0xa0] sm:$0xff]
        %v6024 = vld [vmem:[%s640 + $0xa8] sm:$0xff]
        %v6025 = vld [vmem:[%s640 + $0xb0] sm:$0xff]
        %v6026 = vld [vmem:[%s640 + $0xb8] sm:$0xff]
        %v6027 = vld [vmem:[%s640 + $0xc0] sm:$0xff]
        %v6028 = vld [vmem:[%s640 + $0xc8] sm:$0xff]
        %v6029 = vld [vmem:[%s640 + $0xd0] sm:$0xff]
        %v6030 = vld [vmem:[%s640 + $0xd8] sm:$0xff]
        %v6031 = vld [vmem:[%s640 + $0xe0] sm:$0xff]
        %v6032 = vld [vmem:[%s640 + $0xe8] sm:$0xff]
        %v6033 = vld [vmem:[%s640 + $0xf0] sm:$0xff]
        %v6034 = vld [vmem:[%s640 + $0xf8] sm:$0xff]
        %v6035 = vxor.u32 %v6003, 2147483648
        %v6036 = vxor.u32 %v6004, 2147483648
        %v6037 = vxor.u32 %v6005, 2147483648
        %v6038 = vxor.u32 %v6006, 2147483648
        %v6039 = vxor.u32 %v6007, 2147483648
        %v6040 = vxor.u32 %v6008, 2147483648
        %v6041 = vxor.u32 %v6009, 2147483648
        %v6042 = vxor.u32 %v6010, 2147483648
        %v6043 = vxor.u32 %v6011, 2147483648
        %v6044 = vxor.u32 %v6012, 2147483648
        %v6045 = vxor.u32 %v6013, 2147483648
        %v6046 = vxor.u32 %v6014, 2147483648
        %v6047 = vxor.u32 %v6015, 2147483648
        %v6048 = vxor.u32 %v6016, 2147483648
        %v6049 = vxor.u32 %v6017, 2147483648
        %v6050 = vxor.u32 %v6018, 2147483648
        %v6051 = vxor.u32 %v6019, 2147483648
        %v6052 = vxor.u32 %v6020, 2147483648
        %v6053 = vxor.u32 %v6021, 2147483648
        %v6054 = vxor.u32 %v6022, 2147483648
        %v6055 = vxor.u32 %v6023, 2147483648
        %v6056 = vxor.u32 %v6024, 2147483648
        %v6057 = vxor.u32 %v6025, 2147483648
        %v6058 = vxor.u32 %v6026, 2147483648
        %v6059 = vxor.u32 %v6027, 2147483648
        %v6060 = vxor.u32 %v6028, 2147483648
        %v6061 = vxor.u32 %v6029, 2147483648
        %v6062 = vxor.u32 %v6030, 2147483648
        %v6063 = vxor.u32 %v6031, 2147483648
        %v6064 = vxor.u32 %v6032, 2147483648
        %v6065 = vxor.u32 %v6033, 2147483648
        %v6066 = vxor.u32 %v6034, 2147483648
        %v6067 = vmul.f32 %v6035, 1.442695
        %v6068 = vpow.pop %v6067
        %v6069 = vmul.f32 %v6036, 1.442695
        %v6070 = vpow.pop %v6069
        %v6071 = vmul.f32 %v6037, 1.442695
        %v6072 = vpow.pop %v6071
        %v6073 = vmul.f32 %v6038, 1.442695
        %v6074 = vpow.pop %v6073
        %v6075 = vmul.f32 %v6039, 1.442695
        %v6076 = vpow.pop %v6075
        %v6077 = vmul.f32 %v6040, 1.442695
        %v6078 = vpow.pop %v6077
        %v6079 = vmul.f32 %v6041, 1.442695
        %v6080 = vpow.pop %v6079
        %v6081 = vmul.f32 %v6042, 1.442695
        %v6082 = vpow.pop %v6081
        %v6083 = vmul.f32 %v6043, 1.442695
        %v6084 = vpow.pop %v6083
        %v6085 = vmul.f32 %v6044, 1.442695
        %v6086 = vpow.pop %v6085
        %v6087 = vmul.f32 %v6045, 1.442695
        %v6088 = vpow.pop %v6087
        %v6089 = vmul.f32 %v6046, 1.442695
        %v6090 = vpow.pop %v6089
        %v6091 = vmul.f32 %v6047, 1.442695
        %v6092 = vpow.pop %v6091
        %v6093 = vmul.f32 %v6048, 1.442695
        %v6094 = vpow.pop %v6093
        %v6095 = vmul.f32 %v6049, 1.442695
        %v6096 = vpow.pop %v6095
        %v6097 = vmul.f32 %v6050, 1.442695
        %v6098 = vpow.pop %v6097
        %v6099 = vmul.f32 %v6051, 1.442695
        %v6100 = vpow.pop %v6099
        %v6101 = vmul.f32 %v6052, 1.442695
        %v6102 = vpow.pop %v6101
        %v6103 = vmul.f32 %v6053, 1.442695
        %v6104 = vpow.pop %v6103
        %v6105 = vmul.f32 %v6054, 1.442695
        %v6106 = vpow.pop %v6105
        %v6107 = vmul.f32 %v6055, 1.442695
        %v6108 = vpow.pop %v6107
        %v6109 = vmul.f32 %v6056, 1.442695
        %v6110 = vpow.pop %v6109
        %v6111 = vmul.f32 %v6057, 1.442695
        %v6112 = vpow.pop %v6111
        %v6113 = vmul.f32 %v6058, 1.442695
        %v6114 = vpow.pop %v6113
        %v6115 = vmul.f32 %v6059, 1.442695
        %v6116 = vpow.pop %v6115
        %v6117 = vmul.f32 %v6060, 1.442695
        %v6118 = vpow.pop %v6117
        %v6119 = vmul.f32 %v6061, 1.442695
        %v6120 = vpow.pop %v6119
        %v6121 = vmul.f32 %v6062, 1.442695
        %v6122 = vpow.pop %v6121
        %v6123 = vmul.f32 %v6063, 1.442695
        %v6124 = vpow.pop %v6123
        %v6125 = vmul.f32 %v6064, 1.442695
        %v6126 = vpow.pop %v6125
        %v6127 = vmul.f32 %v6065, 1.442695
        %v6128 = vpow.pop %v6127
        %v6129 = vmul.f32 %v6066, 1.442695
        %v6130 = vpow.pop %v6129
        %v6131 = vadd.f32 %v6068, 1.0
        %v6132 = vadd.f32 %v6070, 1.0
        %v6133 = vadd.f32 %v6072, 1.0
        %v6134 = vadd.f32 %v6074, 1.0
        %v6135 = vadd.f32 %v6076, 1.0
        %v6136 = vadd.f32 %v6078, 1.0
        %v6137 = vadd.f32 %v6080, 1.0
        %v6138 = vadd.f32 %v6082, 1.0
        %v6139 = vadd.f32 %v6084, 1.0
        %v6140 = vadd.f32 %v6086, 1.0
        %v6141 = vadd.f32 %v6088, 1.0
        %v6142 = vadd.f32 %v6090, 1.0
        %v6143 = vadd.f32 %v6092, 1.0
        %v6144 = vadd.f32 %v6094, 1.0
        %v6145 = vadd.f32 %v6096, 1.0
        %v6146 = vadd.f32 %v6098, 1.0
        %v6147 = vadd.f32 %v6100, 1.0
        %v6148 = vadd.f32 %v6102, 1.0
        %v6149 = vadd.f32 %v6104, 1.0
        %v6150 = vadd.f32 %v6106, 1.0
        %v6151 = vadd.f32 %v6108, 1.0
        %v6152 = vadd.f32 %v6110, 1.0
        %v6153 = vadd.f32 %v6112, 1.0
        %v6154 = vadd.f32 %v6114, 1.0
        %v6155 = vadd.f32 %v6116, 1.0
        %v6156 = vadd.f32 %v6118, 1.0
        %v6157 = vadd.f32 %v6120, 1.0
        %v6158 = vadd.f32 %v6122, 1.0
        %v6159 = vadd.f32 %v6124, 1.0
        %v6160 = vadd.f32 %v6126, 1.0
        %v6161 = vadd.f32 %v6128, 1.0
        %v6162 = vadd.f32 %v6130, 1.0
        %v6163 = vrcp.pop %v6131
        %v6164 = vmul.f32 %v6131, %v6163
        %v6165 = vsub.f32 1.0, %v6164
        %v6166 = vmul.f32 %v6163, %v6165
        %v6167 = vadd.f32 %v6163, %v6166
        %vm6168 = vweird.f32 %v6131
        %vm6169 = vweird.f32 %v6163
        %vm6170 = vmor %vm6168, %vm6169
        %v6171 = vsel %vm6170, %v6163, %v6167
        %v6172 = vand.u32 2147483647, %v6131
        %vm6173 = vcmp.eq.f32.partialorder %v6172, 8.507059e+37
        %v6174 = vand.u32 %v6131, 2147483648
        %v6175 = vor.u32 1.1754944e-38, %v6174
        %v6176 = vsel %vm6173, %v6175, %v6171
        %v6177 = vmul.f32 1.0, %v6176
        %v6178 = vrcp.pop %v6132
        %v6179 = vmul.f32 %v6132, %v6178
        %v6180 = vsub.f32 1.0, %v6179
        %v6181 = vmul.f32 %v6178, %v6180
        %v6182 = vadd.f32 %v6178, %v6181
        %vm6183 = vweird.f32 %v6132
        %vm6184 = vweird.f32 %v6178
        %vm6185 = vmor %vm6183, %vm6184
        %v6186 = vsel %vm6185, %v6178, %v6182
        %v6187 = vand.u32 2147483647, %v6132
        %vm6188 = vcmp.eq.f32.partialorder %v6187, 8.507059e+37
        %v6189 = vand.u32 %v6132, 2147483648
        %v6190 = vor.u32 1.1754944e-38, %v6189
        %v6191 = vsel %vm6188, %v6190, %v6186
        %v6192 = vmul.f32 1.0, %v6191
        %v6193 = vrcp.pop %v6133
        %v6194 = vmul.f32 %v6133, %v6193
        %v6195 = vsub.f32 1.0, %v6194
        %v6196 = vmul.f32 %v6193, %v6195
        %v6197 = vadd.f32 %v6193, %v6196
        %vm6198 = vweird.f32 %v6133
        %vm6199 = vweird.f32 %v6193
        %vm6200 = vmor %vm6198, %vm6199
        %v6201 = vsel %vm6200, %v6193, %v6197
        %v6202 = vand.u32 2147483647, %v6133
        %vm6203 = vcmp.eq.f32.partialorder %v6202, 8.507059e+37
        %v6204 = vand.u32 %v6133, 2147483648
        %v6205 = vor.u32 1.1754944e-38, %v6204
        %v6206 = vsel %vm6203, %v6205, %v6201
        %v6207 = vmul.f32 1.0, %v6206
        %v6208 = vrcp.pop %v6134
        %v6209 = vmul.f32 %v6134, %v6208
        %v6210 = vsub.f32 1.0, %v6209
        %v6211 = vmul.f32 %v6208, %v6210
        %v6212 = vadd.f32 %v6208, %v6211
        %vm6213 = vweird.f32 %v6134
        %vm6214 = vweird.f32 %v6208
        %vm6215 = vmor %vm6213, %vm6214
        %v6216 = vsel %vm6215, %v6208, %v6212
        %v6217 = vand.u32 2147483647, %v6134
        %vm6218 = vcmp.eq.f32.partialorder %v6217, 8.507059e+37
        %v6219 = vand.u32 %v6134, 2147483648
        %v6220 = vor.u32 1.1754944e-38, %v6219
        %v6221 = vsel %vm6218, %v6220, %v6216
        %v6222 = vmul.f32 1.0, %v6221
        %v6223 = vrcp.pop %v6135
        %v6224 = vmul.f32 %v6135, %v6223
        %v6225 = vsub.f32 1.0, %v6224
        %v6226 = vmul.f32 %v6223, %v6225
        %v6227 = vadd.f32 %v6223, %v6226
        %vm6228 = vweird.f32 %v6135
        %vm6229 = vweird.f32 %v6223
        %vm6230 = vmor %vm6228, %vm6229
        %v6231 = vsel %vm6230, %v6223, %v6227
        %v6232 = vand.u32 2147483647, %v6135
        %vm6233 = vcmp.eq.f32.partialorder %v6232, 8.507059e+37
        %v6234 = vand.u32 %v6135, 2147483648
        %v6235 = vor.u32 1.1754944e-38, %v6234
        %v6236 = vsel %vm6233, %v6235, %v6231
        %v6237 = vmul.f32 1.0, %v6236
        %v6238 = vrcp.pop %v6136
        %v6239 = vmul.f32 %v6136, %v6238
        %v6240 = vsub.f32 1.0, %v6239
        %v6241 = vmul.f32 %v6238, %v6240
        %v6242 = vadd.f32 %v6238, %v6241
        %vm6243 = vweird.f32 %v6136
        %vm6244 = vweird.f32 %v6238
        %vm6245 = vmor %vm6243, %vm6244
        %v6246 = vsel %vm6245, %v6238, %v6242
        %v6247 = vand.u32 2147483647, %v6136
        %vm6248 = vcmp.eq.f32.partialorder %v6247, 8.507059e+37
        %v6249 = vand.u32 %v6136, 2147483648
        %v6250 = vor.u32 1.1754944e-38, %v6249
        %v6251 = vsel %vm6248, %v6250, %v6246
        %v6252 = vmul.f32 1.0, %v6251
        %v6253 = vrcp.pop %v6137
        %v6254 = vmul.f32 %v6137, %v6253
        %v6255 = vsub.f32 1.0, %v6254
        %v6256 = vmul.f32 %v6253, %v6255
        %v6257 = vadd.f32 %v6253, %v6256
        %vm6258 = vweird.f32 %v6137
        %vm6259 = vweird.f32 %v6253
        %vm6260 = vmor %vm6258, %vm6259
        %v6261 = vsel %vm6260, %v6253, %v6257
        %v6262 = vand.u32 2147483647, %v6137
        %vm6263 = vcmp.eq.f32.partialorder %v6262, 8.507059e+37
        %v6264 = vand.u32 %v6137, 2147483648
        %v6265 = vor.u32 1.1754944e-38, %v6264
        %v6266 = vsel %vm6263, %v6265, %v6261
        %v6267 = vmul.f32 1.0, %v6266
        %v6268 = vrcp.pop %v6138
        %v6269 = vmul.f32 %v6138, %v6268
        %v6270 = vsub.f32 1.0, %v6269
        %v6271 = vmul.f32 %v6268, %v6270
        %v6272 = vadd.f32 %v6268, %v6271
        %vm6273 = vweird.f32 %v6138
        %vm6274 = vweird.f32 %v6268
        %vm6275 = vmor %vm6273, %vm6274
        %v6276 = vsel %vm6275, %v6268, %v6272
        %v6277 = vand.u32 2147483647, %v6138
        %vm6278 = vcmp.eq.f32.partialorder %v6277, 8.507059e+37
        %v6279 = vand.u32 %v6138, 2147483648
        %v6280 = vor.u32 1.1754944e-38, %v6279
        %v6281 = vsel %vm6278, %v6280, %v6276
        %v6282 = vmul.f32 1.0, %v6281
        %v6283 = vrcp.pop %v6139
        %v6284 = vmul.f32 %v6139, %v6283
        %v6285 = vsub.f32 1.0, %v6284
        %v6286 = vmul.f32 %v6283, %v6285
        %v6287 = vadd.f32 %v6283, %v6286
        %vm6288 = vweird.f32 %v6139
        %vm6289 = vweird.f32 %v6283
        %vm6290 = vmor %vm6288, %vm6289
        %v6291 = vsel %vm6290, %v6283, %v6287
        %v6292 = vand.u32 2147483647, %v6139
        %vm6293 = vcmp.eq.f32.partialorder %v6292, 8.507059e+37
        %v6294 = vand.u32 %v6139, 2147483648
        %v6295 = vor.u32 1.1754944e-38, %v6294
        %v6296 = vsel %vm6293, %v6295, %v6291
        %v6297 = vmul.f32 1.0, %v6296
        %v6298 = vrcp.pop %v6140
        %v6299 = vmul.f32 %v6140, %v6298
        %v6300 = vsub.f32 1.0, %v6299
        %v6301 = vmul.f32 %v6298, %v6300
        %v6302 = vadd.f32 %v6298, %v6301
        %vm6303 = vweird.f32 %v6140
        %vm6304 = vweird.f32 %v6298
        %vm6305 = vmor %vm6303, %vm6304
        %v6306 = vsel %vm6305, %v6298, %v6302
        %v6307 = vand.u32 2147483647, %v6140
        %vm6308 = vcmp.eq.f32.partialorder %v6307, 8.507059e+37
        %v6309 = vand.u32 %v6140, 2147483648
        %v6310 = vor.u32 1.1754944e-38, %v6309
        %v6311 = vsel %vm6308, %v6310, %v6306
        %v6312 = vmul.f32 1.0, %v6311
        %v6313 = vrcp.pop %v6141
        %v6314 = vmul.f32 %v6141, %v6313
        %v6315 = vsub.f32 1.0, %v6314
        %v6316 = vmul.f32 %v6313, %v6315
        %v6317 = vadd.f32 %v6313, %v6316
        %vm6318 = vweird.f32 %v6141
        %vm6319 = vweird.f32 %v6313
        %vm6320 = vmor %vm6318, %vm6319
        %v6321 = vsel %vm6320, %v6313, %v6317
        %v6322 = vand.u32 2147483647, %v6141
        %vm6323 = vcmp.eq.f32.partialorder %v6322, 8.507059e+37
        %v6324 = vand.u32 %v6141, 2147483648
        %v6325 = vor.u32 1.1754944e-38, %v6324
        %v6326 = vsel %vm6323, %v6325, %v6321
        %v6327 = vmul.f32 1.0, %v6326
        %v6328 = vrcp.pop %v6142
        %v6329 = vmul.f32 %v6142, %v6328
        %v6330 = vsub.f32 1.0, %v6329
        %v6331 = vmul.f32 %v6328, %v6330
        %v6332 = vadd.f32 %v6328, %v6331
        %vm6333 = vweird.f32 %v6142
        %vm6334 = vweird.f32 %v6328
        %vm6335 = vmor %vm6333, %vm6334
        %v6336 = vsel %vm6335, %v6328, %v6332
        %v6337 = vand.u32 2147483647, %v6142
        %vm6338 = vcmp.eq.f32.partialorder %v6337, 8.507059e+37
        %v6339 = vand.u32 %v6142, 2147483648
        %v6340 = vor.u32 1.1754944e-38, %v6339
        %v6341 = vsel %vm6338, %v6340, %v6336
        %v6342 = vmul.f32 1.0, %v6341
        %v6343 = vrcp.pop %v6143
        %v6344 = vmul.f32 %v6143, %v6343
        %v6345 = vsub.f32 1.0, %v6344
        %v6346 = vmul.f32 %v6343, %v6345
        %v6347 = vadd.f32 %v6343, %v6346
        %vm6348 = vweird.f32 %v6143
        %vm6349 = vweird.f32 %v6343
        %vm6350 = vmor %vm6348, %vm6349
        %v6351 = vsel %vm6350, %v6343, %v6347
        %v6352 = vand.u32 2147483647, %v6143
        %vm6353 = vcmp.eq.f32.partialorder %v6352, 8.507059e+37
        %v6354 = vand.u32 %v6143, 2147483648
        %v6355 = vor.u32 1.1754944e-38, %v6354
        %v6356 = vsel %vm6353, %v6355, %v6351
        %v6357 = vmul.f32 1.0, %v6356
        %v6358 = vrcp.pop %v6144
        %v6359 = vmul.f32 %v6144, %v6358
        %v6360 = vsub.f32 1.0, %v6359
        %v6361 = vmul.f32 %v6358, %v6360
        %v6362 = vadd.f32 %v6358, %v6361
        %vm6363 = vweird.f32 %v6144
        %vm6364 = vweird.f32 %v6358
        %vm6365 = vmor %vm6363, %vm6364
        %v6366 = vsel %vm6365, %v6358, %v6362
        %v6367 = vand.u32 2147483647, %v6144
        %vm6368 = vcmp.eq.f32.partialorder %v6367, 8.507059e+37
        %v6369 = vand.u32 %v6144, 2147483648
        %v6370 = vor.u32 1.1754944e-38, %v6369
        %v6371 = vsel %vm6368, %v6370, %v6366
        %v6372 = vmul.f32 1.0, %v6371
        %v6373 = vrcp.pop %v6145
        %v6374 = vmul.f32 %v6145, %v6373
        %v6375 = vsub.f32 1.0, %v6374
        %v6376 = vmul.f32 %v6373, %v6375
        %v6377 = vadd.f32 %v6373, %v6376
        %vm6378 = vweird.f32 %v6145
        %vm6379 = vweird.f32 %v6373
        %vm6380 = vmor %vm6378, %vm6379
        %v6381 = vsel %vm6380, %v6373, %v6377
        %v6382 = vand.u32 2147483647, %v6145
        %vm6383 = vcmp.eq.f32.partialorder %v6382, 8.507059e+37
        %v6384 = vand.u32 %v6145, 2147483648
        %v6385 = vor.u32 1.1754944e-38, %v6384
        %v6386 = vsel %vm6383, %v6385, %v6381
        %v6387 = vmul.f32 1.0, %v6386
        %v6388 = vrcp.pop %v6146
        %v6389 = vmul.f32 %v6146, %v6388
        %v6390 = vsub.f32 1.0, %v6389
        %v6391 = vmul.f32 %v6388, %v6390
        %v6392 = vadd.f32 %v6388, %v6391
        %vm6393 = vweird.f32 %v6146
        %vm6394 = vweird.f32 %v6388
        %vm6395 = vmor %vm6393, %vm6394
        %v6396 = vsel %vm6395, %v6388, %v6392
        %v6397 = vand.u32 2147483647, %v6146
        %vm6398 = vcmp.eq.f32.partialorder %v6397, 8.507059e+37
        %v6399 = vand.u32 %v6146, 2147483648
        %v6400 = vor.u32 1.1754944e-38, %v6399
        %v6401 = vsel %vm6398, %v6400, %v6396
        %v6402 = vmul.f32 1.0, %v6401
        %v6403 = vrcp.pop %v6147
        %v6404 = vmul.f32 %v6147, %v6403
        %v6405 = vsub.f32 1.0, %v6404
        %v6406 = vmul.f32 %v6403, %v6405
        %v6407 = vadd.f32 %v6403, %v6406
        %vm6408 = vweird.f32 %v6147
        %vm6409 = vweird.f32 %v6403
        %vm6410 = vmor %vm6408, %vm6409
        %v6411 = vsel %vm6410, %v6403, %v6407
        %v6412 = vand.u32 2147483647, %v6147
        %vm6413 = vcmp.eq.f32.partialorder %v6412, 8.507059e+37
        %v6414 = vand.u32 %v6147, 2147483648
        %v6415 = vor.u32 1.1754944e-38, %v6414
        %v6416 = vsel %vm6413, %v6415, %v6411
        %v6417 = vmul.f32 1.0, %v6416
        %v6418 = vrcp.pop %v6148
        %v6419 = vmul.f32 %v6148, %v6418
        %v6420 = vsub.f32 1.0, %v6419
        %v6421 = vmul.f32 %v6418, %v6420
        %v6422 = vadd.f32 %v6418, %v6421
        %vm6423 = vweird.f32 %v6148
        %vm6424 = vweird.f32 %v6418
        %vm6425 = vmor %vm6423, %vm6424
        %v6426 = vsel %vm6425, %v6418, %v6422
        %v6427 = vand.u32 2147483647, %v6148
        %vm6428 = vcmp.eq.f32.partialorder %v6427, 8.507059e+37
        %v6429 = vand.u32 %v6148, 2147483648
        %v6430 = vor.u32 1.1754944e-38, %v6429
        %v6431 = vsel %vm6428, %v6430, %v6426
        %v6432 = vmul.f32 1.0, %v6431
        %v6433 = vrcp.pop %v6149
        %v6434 = vmul.f32 %v6149, %v6433
        %v6435 = vsub.f32 1.0, %v6434
        %v6436 = vmul.f32 %v6433, %v6435
        %v6437 = vadd.f32 %v6433, %v6436
        %vm6438 = vweird.f32 %v6149
        %vm6439 = vweird.f32 %v6433
        %vm6440 = vmor %vm6438, %vm6439
        %v6441 = vsel %vm6440, %v6433, %v6437
        %v6442 = vand.u32 2147483647, %v6149
        %vm6443 = vcmp.eq.f32.partialorder %v6442, 8.507059e+37
        %v6444 = vand.u32 %v6149, 2147483648
        %v6445 = vor.u32 1.1754944e-38, %v6444
        %v6446 = vsel %vm6443, %v6445, %v6441
        %v6447 = vmul.f32 1.0, %v6446
        %v6448 = vrcp.pop %v6150
        %v6449 = vmul.f32 %v6150, %v6448
        %v6450 = vsub.f32 1.0, %v6449
        %v6451 = vmul.f32 %v6448, %v6450
        %v6452 = vadd.f32 %v6448, %v6451
        %vm6453 = vweird.f32 %v6150
        %vm6454 = vweird.f32 %v6448
        %vm6455 = vmor %vm6453, %vm6454
        %v6456 = vsel %vm6455, %v6448, %v6452
        %v6457 = vand.u32 2147483647, %v6150
        %vm6458 = vcmp.eq.f32.partialorder %v6457, 8.507059e+37
        %v6459 = vand.u32 %v6150, 2147483648
        %v6460 = vor.u32 1.1754944e-38, %v6459
        %v6461 = vsel %vm6458, %v6460, %v6456
        %v6462 = vmul.f32 1.0, %v6461
        %v6463 = vrcp.pop %v6151
        %v6464 = vmul.f32 %v6151, %v6463
        %v6465 = vsub.f32 1.0, %v6464
        %v6466 = vmul.f32 %v6463, %v6465
        %v6467 = vadd.f32 %v6463, %v6466
        %vm6468 = vweird.f32 %v6151
        %vm6469 = vweird.f32 %v6463
        %vm6470 = vmor %vm6468, %vm6469
        %v6471 = vsel %vm6470, %v6463, %v6467
        %v6472 = vand.u32 2147483647, %v6151
        %vm6473 = vcmp.eq.f32.partialorder %v6472, 8.507059e+37
        %v6474 = vand.u32 %v6151, 2147483648
        %v6475 = vor.u32 1.1754944e-38, %v6474
        %v6476 = vsel %vm6473, %v6475, %v6471
        %v6477 = vmul.f32 1.0, %v6476
        %v6478 = vrcp.pop %v6152
        %v6479 = vmul.f32 %v6152, %v6478
        %v6480 = vsub.f32 1.0, %v6479
        %v6481 = vmul.f32 %v6478, %v6480
        %v6482 = vadd.f32 %v6478, %v6481
        %vm6483 = vweird.f32 %v6152
        %vm6484 = vweird.f32 %v6478
        %vm6485 = vmor %vm6483, %vm6484
        %v6486 = vsel %vm6485, %v6478, %v6482
        %v6487 = vand.u32 2147483647, %v6152
        %vm6488 = vcmp.eq.f32.partialorder %v6487, 8.507059e+37
        %v6489 = vand.u32 %v6152, 2147483648
        %v6490 = vor.u32 1.1754944e-38, %v6489
        %v6491 = vsel %vm6488, %v6490, %v6486
        %v6492 = vmul.f32 1.0, %v6491
        %v6493 = vrcp.pop %v6153
        %v6494 = vmul.f32 %v6153, %v6493
        %v6495 = vsub.f32 1.0, %v6494
        %v6496 = vmul.f32 %v6493, %v6495
        %v6497 = vadd.f32 %v6493, %v6496
        %vm6498 = vweird.f32 %v6153
        %vm6499 = vweird.f32 %v6493
        %vm6500 = vmor %vm6498, %vm6499
        %v6501 = vsel %vm6500, %v6493, %v6497
        %v6502 = vand.u32 2147483647, %v6153
        %vm6503 = vcmp.eq.f32.partialorder %v6502, 8.507059e+37
        %v6504 = vand.u32 %v6153, 2147483648
        %v6505 = vor.u32 1.1754944e-38, %v6504
        %v6506 = vsel %vm6503, %v6505, %v6501
        %v6507 = vmul.f32 1.0, %v6506
        %v6508 = vrcp.pop %v6154
        %v6509 = vmul.f32 %v6154, %v6508
        %v6510 = vsub.f32 1.0, %v6509
        %v6511 = vmul.f32 %v6508, %v6510
        %v6512 = vadd.f32 %v6508, %v6511
        %vm6513 = vweird.f32 %v6154
        %vm6514 = vweird.f32 %v6508
        %vm6515 = vmor %vm6513, %vm6514
        %v6516 = vsel %vm6515, %v6508, %v6512
        %v6517 = vand.u32 2147483647, %v6154
        %vm6518 = vcmp.eq.f32.partialorder %v6517, 8.507059e+37
        %v6519 = vand.u32 %v6154, 2147483648
        %v6520 = vor.u32 1.1754944e-38, %v6519
        %v6521 = vsel %vm6518, %v6520, %v6516
        %v6522 = vmul.f32 1.0, %v6521
        %v6523 = vrcp.pop %v6155
        %v6524 = vmul.f32 %v6155, %v6523
        %v6525 = vsub.f32 1.0, %v6524
        %v6526 = vmul.f32 %v6523, %v6525
        %v6527 = vadd.f32 %v6523, %v6526
        %vm6528 = vweird.f32 %v6155
        %vm6529 = vweird.f32 %v6523
        %vm6530 = vmor %vm6528, %vm6529
        %v6531 = vsel %vm6530, %v6523, %v6527
        %v6532 = vand.u32 2147483647, %v6155
        %vm6533 = vcmp.eq.f32.partialorder %v6532, 8.507059e+37
        %v6534 = vand.u32 %v6155, 2147483648
        %v6535 = vor.u32 1.1754944e-38, %v6534
        %v6536 = vsel %vm6533, %v6535, %v6531
        %v6537 = vmul.f32 1.0, %v6536
        %v6538 = vrcp.pop %v6156
        %v6539 = vmul.f32 %v6156, %v6538
        %v6540 = vsub.f32 1.0, %v6539
        %v6541 = vmul.f32 %v6538, %v6540
        %v6542 = vadd.f32 %v6538, %v6541
        %vm6543 = vweird.f32 %v6156
        %vm6544 = vweird.f32 %v6538
        %vm6545 = vmor %vm6543, %vm6544
        %v6546 = vsel %vm6545, %v6538, %v6542
        %v6547 = vand.u32 2147483647, %v6156
        %vm6548 = vcmp.eq.f32.partialorder %v6547, 8.507059e+37
        %v6549 = vand.u32 %v6156, 2147483648
        %v6550 = vor.u32 1.1754944e-38, %v6549
        %v6551 = vsel %vm6548, %v6550, %v6546
        %v6552 = vmul.f32 1.0, %v6551
        %v6553 = vrcp.pop %v6157
        %v6554 = vmul.f32 %v6157, %v6553
        %v6555 = vsub.f32 1.0, %v6554
        %v6556 = vmul.f32 %v6553, %v6555
        %v6557 = vadd.f32 %v6553, %v6556
        %vm6558 = vweird.f32 %v6157
        %vm6559 = vweird.f32 %v6553
        %vm6560 = vmor %vm6558, %vm6559
        %v6561 = vsel %vm6560, %v6553, %v6557
        %v6562 = vand.u32 2147483647, %v6157
        %vm6563 = vcmp.eq.f32.partialorder %v6562, 8.507059e+37
        %v6564 = vand.u32 %v6157, 2147483648
        %v6565 = vor.u32 1.1754944e-38, %v6564
        %v6566 = vsel %vm6563, %v6565, %v6561
        %v6567 = vmul.f32 1.0, %v6566
        %v6568 = vrcp.pop %v6158
        %v6569 = vmul.f32 %v6158, %v6568
        %v6570 = vsub.f32 1.0, %v6569
        %v6571 = vmul.f32 %v6568, %v6570
        %v6572 = vadd.f32 %v6568, %v6571
        %vm6573 = vweird.f32 %v6158
        %vm6574 = vweird.f32 %v6568
        %vm6575 = vmor %vm6573, %vm6574
        %v6576 = vsel %vm6575, %v6568, %v6572
        %v6577 = vand.u32 2147483647, %v6158
        %vm6578 = vcmp.eq.f32.partialorder %v6577, 8.507059e+37
        %v6579 = vand.u32 %v6158, 2147483648
        %v6580 = vor.u32 1.1754944e-38, %v6579
        %v6581 = vsel %vm6578, %v6580, %v6576
        %v6582 = vmul.f32 1.0, %v6581
        %v6583 = vrcp.pop %v6159
        %v6584 = vmul.f32 %v6159, %v6583
        %v6585 = vsub.f32 1.0, %v6584
        %v6586 = vmul.f32 %v6583, %v6585
        %v6587 = vadd.f32 %v6583, %v6586
        %vm6588 = vweird.f32 %v6159
        %vm6589 = vweird.f32 %v6583
        %vm6590 = vmor %vm6588, %vm6589
        %v6591 = vsel %vm6590, %v6583, %v6587
        %v6592 = vand.u32 2147483647, %v6159
        %vm6593 = vcmp.eq.f32.partialorder %v6592, 8.507059e+37
        %v6594 = vand.u32 %v6159, 2147483648
        %v6595 = vor.u32 1.1754944e-38, %v6594
        %v6596 = vsel %vm6593, %v6595, %v6591
        %v6597 = vmul.f32 1.0, %v6596
        %v6598 = vrcp.pop %v6160
        %v6599 = vmul.f32 %v6160, %v6598
        %v6600 = vsub.f32 1.0, %v6599
        %v6601 = vmul.f32 %v6598, %v6600
        %v6602 = vadd.f32 %v6598, %v6601
        %vm6603 = vweird.f32 %v6160
        %vm6604 = vweird.f32 %v6598
        %vm6605 = vmor %vm6603, %vm6604
        %v6606 = vsel %vm6605, %v6598, %v6602
        %v6607 = vand.u32 2147483647, %v6160
        %vm6608 = vcmp.eq.f32.partialorder %v6607, 8.507059e+37
        %v6609 = vand.u32 %v6160, 2147483648
        %v6610 = vor.u32 1.1754944e-38, %v6609
        %v6611 = vsel %vm6608, %v6610, %v6606
        %v6612 = vmul.f32 1.0, %v6611
        %v6613 = vrcp.pop %v6161
        %v6614 = vmul.f32 %v6161, %v6613
        %v6615 = vsub.f32 1.0, %v6614
        %v6616 = vmul.f32 %v6613, %v6615
        %v6617 = vadd.f32 %v6613, %v6616
        %vm6618 = vweird.f32 %v6161
        %vm6619 = vweird.f32 %v6613
        %vm6620 = vmor %vm6618, %vm6619
        %v6621 = vsel %vm6620, %v6613, %v6617
        %v6622 = vand.u32 2147483647, %v6161
        %vm6623 = vcmp.eq.f32.partialorder %v6622, 8.507059e+37
        %v6624 = vand.u32 %v6161, 2147483648
        %v6625 = vor.u32 1.1754944e-38, %v6624
        %v6626 = vsel %vm6623, %v6625, %v6621
        %v6627 = vmul.f32 1.0, %v6626
        %v6628 = vrcp.pop %v6162
        %v6629 = vmul.f32 %v6162, %v6628
        %v6630 = vsub.f32 1.0, %v6629
        %v6631 = vmul.f32 %v6628, %v6630
        %v6632 = vadd.f32 %v6628, %v6631
        %vm6633 = vweird.f32 %v6162
        %vm6634 = vweird.f32 %v6628
        %vm6635 = vmor %vm6633, %vm6634
        %v6636 = vsel %vm6635, %v6628, %v6632
        %v6637 = vand.u32 2147483647, %v6162
        %vm6638 = vcmp.eq.f32.partialorder %v6637, 8.507059e+37
        %v6639 = vand.u32 %v6162, 2147483648
        %v6640 = vor.u32 1.1754944e-38, %v6639
        %v6641 = vsel %vm6638, %v6640, %v6636
        %v6642 = vmul.f32 1.0, %v6641
        %6644 = vset.pattern.permute.xlu0 0
        %6645 = vperm.xlu0 %6644, %v6177
        %v6646 = vpop.permute.xlu0 %6645
        %6649 = vset.pattern.permute.xlu0 0
        %6650 = vperm.xlu0 %6649, %v6192
        %v6651 = vpop.permute.xlu0 %6650
        %6654 = vset.pattern.permute.xlu0 0
        %6655 = vperm.xlu0 %6654, %v6207
        %v6656 = vpop.permute.xlu0 %6655
        %6659 = vset.pattern.permute.xlu0 0
        %6660 = vperm.xlu0 %6659, %v6222
        %v6661 = vpop.permute.xlu0 %6660
        %6664 = vset.pattern.permute.xlu0 0
        %6665 = vperm.xlu0 %6664, %v6237
        %v6666 = vpop.permute.xlu0 %6665
        %6669 = vset.pattern.permute.xlu0 0
        %6670 = vperm.xlu0 %6669, %v6252
        %v6671 = vpop.permute.xlu0 %6670
        %6674 = vset.pattern.permute.xlu0 0
        %6675 = vperm.xlu0 %6674, %v6267
        %v6676 = vpop.permute.xlu0 %6675
        %6679 = vset.pattern.permute.xlu0 0
        %6680 = vperm.xlu0 %6679, %v6282
        %v6681 = vpop.permute.xlu0 %6680
        %6684 = vset.pattern.permute.xlu0 0
        %6685 = vperm.xlu0 %6684, %v6297
        %v6686 = vpop.permute.xlu0 %6685
        %6689 = vset.pattern.permute.xlu0 0
        %6690 = vperm.xlu0 %6689, %v6312
        %v6691 = vpop.permute.xlu0 %6690
        %6694 = vset.pattern.permute.xlu0 0
        %6695 = vperm.xlu0 %6694, %v6327
        %v6696 = vpop.permute.xlu0 %6695
        %6699 = vset.pattern.permute.xlu0 0
        %6700 = vperm.xlu0 %6699, %v6342
        %v6701 = vpop.permute.xlu0 %6700
        %6704 = vset.pattern.permute.xlu0 0
        %6705 = vperm.xlu0 %6704, %v6357
        %v6706 = vpop.permute.xlu0 %6705
        %6709 = vset.pattern.permute.xlu0 0
        %6710 = vperm.xlu0 %6709, %v6372
        %v6711 = vpop.permute.xlu0 %6710
        %6714 = vset.pattern.permute.xlu0 0
        %6715 = vperm.xlu0 %6714, %v6387
        %v6716 = vpop.permute.xlu0 %6715
        %6719 = vset.pattern.permute.xlu0 0
        %6720 = vperm.xlu0 %6719, %v6402
        %v6721 = vpop.permute.xlu0 %6720
        %6724 = vset.pattern.permute.xlu0 0
        %6725 = vperm.xlu0 %6724, %v6417
        %v6726 = vpop.permute.xlu0 %6725
        %6729 = vset.pattern.permute.xlu0 0
        %6730 = vperm.xlu0 %6729, %v6432
        %v6731 = vpop.permute.xlu0 %6730
        %6734 = vset.pattern.permute.xlu0 0
        %6735 = vperm.xlu0 %6734, %v6447
        %v6736 = vpop.permute.xlu0 %6735
        %6739 = vset.pattern.permute.xlu0 0
        %6740 = vperm.xlu0 %6739, %v6462
        %v6741 = vpop.permute.xlu0 %6740
        %6744 = vset.pattern.permute.xlu0 0
        %6745 = vperm.xlu0 %6744, %v6477
        %v6746 = vpop.permute.xlu0 %6745
        %6749 = vset.pattern.permute.xlu0 0
        %6750 = vperm.xlu0 %6749, %v6492
        %v6751 = vpop.permute.xlu0 %6750
        %6754 = vset.pattern.permute.xlu0 0
        %6755 = vperm.xlu0 %6754, %v6507
        %v6756 = vpop.permute.xlu0 %6755
        %6759 = vset.pattern.permute.xlu0 0
        %6760 = vperm.xlu0 %6759, %v6522
        %v6761 = vpop.permute.xlu0 %6760
        %6764 = vset.pattern.permute.xlu0 0
        %6765 = vperm.xlu0 %6764, %v6537
        %v6766 = vpop.permute.xlu0 %6765
        %6769 = vset.pattern.permute.xlu0 0
        %6770 = vperm.xlu0 %6769, %v6552
        %v6771 = vpop.permute.xlu0 %6770
        %6774 = vset.pattern.permute.xlu0 0
        %6775 = vperm.xlu0 %6774, %v6567
        %v6776 = vpop.permute.xlu0 %6775
        %6779 = vset.pattern.permute.xlu0 0
        %6780 = vperm.xlu0 %6779, %v6582
        %v6781 = vpop.permute.xlu0 %6780
        %6784 = vset.pattern.permute.xlu0 0
        %6785 = vperm.xlu0 %6784, %v6597
        %v6786 = vpop.permute.xlu0 %6785
        %6789 = vset.pattern.permute.xlu0 0
        %6790 = vperm.xlu0 %6789, %v6612
        %v6791 = vpop.permute.xlu0 %6790
        %6794 = vset.pattern.permute.xlu0 0
        %6795 = vperm.xlu0 %6794, %v6627
        %v6796 = vpop.permute.xlu0 %6795
        %6799 = vset.pattern.permute.xlu0 0
        %6800 = vperm.xlu0 %6799, %v6642
        %v6801 = vpop.permute.xlu0 %6800
        %v6803 = vmul.f32 %v5537, %v6646
        %v6804 = vmul.f32 %v5552, %v6651
        %v6805 = vmul.f32 %v5567, %v6656
        %v6806 = vmul.f32 %v5582, %v6661
        %v6807 = vmul.f32 %v5597, %v6666
        %v6808 = vmul.f32 %v5612, %v6671
        %v6809 = vmul.f32 %v5627, %v6676
        %v6810 = vmul.f32 %v5642, %v6681
        %v6811 = vmul.f32 %v5657, %v6686
        %v6812 = vmul.f32 %v5672, %v6691
        %v6813 = vmul.f32 %v5687, %v6696
        %v6814 = vmul.f32 %v5702, %v6701
        %v6815 = vmul.f32 %v5717, %v6706
        %v6816 = vmul.f32 %v5732, %v6711
        %v6817 = vmul.f32 %v5747, %v6716
        %v6818 = vmul.f32 %v5762, %v6721
        %v6819 = vmul.f32 %v5777, %v6726
        %v6820 = vmul.f32 %v5792, %v6731
        %v6821 = vmul.f32 %v5807, %v6736
        %v6822 = vmul.f32 %v5822, %v6741
        %v6823 = vmul.f32 %v5837, %v6746
        %v6824 = vmul.f32 %v5852, %v6751
        %v6825 = vmul.f32 %v5867, %v6756
        %v6826 = vmul.f32 %v5882, %v6761
        %v6827 = vmul.f32 %v5897, %v6766
        %v6828 = vmul.f32 %v5912, %v6771
        %v6829 = vmul.f32 %v5927, %v6776
        %v6830 = vmul.f32 %v5942, %v6781
        %v6831 = vmul.f32 %v5957, %v6786
        %v6832 = vmul.f32 %v5972, %v6791
        %v6833 = vmul.f32 %v5987, %v6796
        %v6834 = vmul.f32 %v6002, %v6801
        %6835 = vmatpush.msra.mxu0 %v6818
        %6836 = vmatpush.msra.mxu0 %v6817
        %6837 = vmatpush.msra.mxu0 %v6816
        %6838 = vmatpush.msra.mxu0 %v6815
        %6839 = vmatpush.msra.mxu0 %v6814
        %6840 = vmatpush.msra.mxu0 %v6813
        %6841 = vmatpush.msra.mxu0 %v6812
        %6842 = vmatpush.msra.mxu0 %v6811
        %6843 = vmatpush.msra.mxu0 %v6810
        %6844 = vmatpush.msra.mxu0 %v6809
        %6845 = vmatpush.msra.mxu0 %v6808
        %6846 = vmatpush.msra.mxu0 %v6807
        %6847 = vmatpush.msra.mxu0 %v6806
        %6848 = vmatpush.msra.mxu0 %v6805
        %6849 = vmatpush.msra.mxu0 %v6804
        %6850 = vmatpush.msra.mxu0 %v6803
        %6851 = vmatmul.f32.gmra.mxu0 1.0
        %v6852 = vpop.f32.mrf.mxu0
        %v6853 = vadd.f32 0.0, %v6852
        %6854 = vdwg.mxu0
        %6855 = vmatpush.msra.mxu0 %v6834
        %6856 = vmatpush.msra.mxu0 %v6833
        %6857 = vmatpush.msra.mxu0 %v6832
        %6858 = vmatpush.msra.mxu0 %v6831
        %6859 = vmatpush.msra.mxu0 %v6830
        %6860 = vmatpush.msra.mxu0 %v6829
        %6861 = vmatpush.msra.mxu0 %v6828
        %6862 = vmatpush.msra.mxu0 %v6827
        %6863 = vmatpush.msra.mxu0 %v6826
        %6864 = vmatpush.msra.mxu0 %v6825
        %6865 = vmatpush.msra.mxu0 %v6824
        %6866 = vmatpush.msra.mxu0 %v6823
        %6867 = vmatpush.msra.mxu0 %v6822
        %6868 = vmatpush.msra.mxu0 %v6821
        %6869 = vmatpush.msra.mxu0 %v6820
        %6870 = vmatpush.msra.mxu0 %v6819
        %6871 = vmatmul.f32.gmra.mxu0 1.0
        %v6872 = vpop.f32.mrf.mxu0
        %v6873 = vadd.f32 %v6853, %v6872
        %6874 = vdwg.mxu0
        %v6875 = vmul.f32 %v6873, 0.00390625
        %vm6876 = vcmask 24576
        %v6877 = vsel %vm6876, %v6875, -inf
        %6878 = vmax.xlane.f32.xlu0 %v6877
        %v6879 = vpop.xlane.xlu0 %6878
        %v6880 = vsub.f32 %v6875, %v6879
        %v6881 = vmul.f32 %v6880, 1.442695
        %v6882 = vpow.pop %v6881
        %v6883 = vsel %vm6876, %v6882, 0.0
        %6884 = vadd.xlane.f32.xlu0 %v6883
        %v6885 = vpop.xlane.xlu0 %6884
        %v6886 = vrcp.pop %v6885
        %v6887 = vmul.f32 %v6885, %v6886
        %v6888 = vsub.f32 1.0, %v6887
        %v6889 = vmul.f32 %v6886, %v6888
        %v6890 = vadd.f32 %v6886, %v6889
        %vm6891 = vweird.f32 %v6885
        %vm6892 = vweird.f32 %v6886
        %vm6893 = vmor %vm6891, %vm6892
        %v6894 = vsel %vm6893, %v6886, %v6890
        %v6895 = vand.u32 2147483647, %v6885
        %vm6896 = vcmp.eq.f32.partialorder %v6895, 8.507059e+37
        %v6897 = vand.u32 %v6885, 2147483648
        %v6898 = vor.u32 1.1754944e-38, %v6897
        %v6899 = vsel %vm6896, %v6898, %v6894
        %v6900 = vmul.f32 %v6882, %v6899
        %v6901 = vld [vmem:[%s10] sm:$0xff]
        %v6902 = vld [vmem:[%s10 + $0x8] sm:$0xff]
        %v6903 = vld [vmem:[%s10 + $0x10] sm:$0xff]
        %v6904 = vld [vmem:[%s10 + $0x18] sm:$0xff]
        %v6905 = vld [vmem:[%s10 + $0x20] sm:$0xf]
        %6911 = vst [vmem:[#allocation1] ss:$2 sm:$0xff] %v6901
        %s6912 = scalar_lea.vmem [#allocation1], 16
        %6913 = vst [vmem:[%s6912] ss:$2 sm:$0xff] %v6902
        %s6914 = scalar_lea.vmem [#allocation1], 32
        %6915 = vst [vmem:[%s6914] ss:$2 sm:$0xff] %v6903
        %s6916 = scalar_lea.vmem [#allocation1], 48
        %6917 = vst [vmem:[%s6916] ss:$2 sm:$0xff] %v6904
        %v6918 = vld.sshfl [vmem:[#allocation1] sm:$0xff pattern:$0x75316420]
        %v6919 = vld.sshfl [vmem:[#allocation1 + $0x8] sm:$0xff pattern:$0x75316420]
        %v6920 = vld.sshfl [vmem:[#allocation1 + $0x10] sm:$0xff pattern:$0x75316420]
        %v6921 = vld.sshfl [vmem:[#allocation1 + $0x18] sm:$0xff pattern:$0x75316420]
        %v6922 = vld.sshfl [vmem:[#allocation1 + $0x20] sm:$0xff pattern:$0x75316420]
        %v6923 = vld.sshfl [vmem:[#allocation1 + $0x28] sm:$0xff pattern:$0x75316420]
        %v6924 = vld.sshfl [vmem:[#allocation1 + $0x30] sm:$0xff pattern:$0x75316420]
        %v6925 = vld.sshfl [vmem:[#allocation1 + $0x38] sm:$0xff pattern:$0x75316420]
        %6926 = vst [vmem:[#allocation1] ss:$2 sm:$0xff] %v6905
        %v6927 = vld.sshfl [vmem:[#allocation1] sm:$0xff pattern:$0x75316420]
        %vm6928 = vcmask 31744
        %v6930 = vsel %vm6928, %v6900, 0
        %vm6932 = vcmask 1043456
        %v6933 = vsel %vm6932, %v6918, 0
        %v6935 = vsel %vm6932, %v6919, 0
        %v6937 = vsel %vm6932, %v6920, 0
        %v6939 = vsel %vm6932, %v6921, 0
        %v6941 = vsel %vm6932, %v6922, 0
        %v6943 = vsel %vm6932, %v6923, 0
        %v6945 = vsel %vm6932, %v6924, 0
        %v6947 = vsel %vm6932, %v6925, 0
        %v6949 = vsel %vm6932, %v6927, 0
        %6951 = vmatpush.msra.mxu0 0.0
        %6952 = vmatpush.msra.mxu0 0.0
        %6953 = vmatpush.msra.mxu0 0.0
        %6954 = vmatpush.msra.mxu0 0.0
        %6955 = vmatpush.msra.mxu0 0.0
        %6956 = vmatpush.msra.mxu0 0.0
        %6957 = vmatpush.msra.mxu0 0.0
        %6958 = vmatpush.msra.mxu0 0.0
        %6959 = vmatpush.msra.mxu0 0.0
        %6960 = vmatpush.msra.mxu0 0.0
        %6961 = vmatpush.msra.mxu0 0.0
        %6962 = vmatpush.msra.mxu0 0.0
        %6963 = vmatpush.msra.mxu0 0.0
        %6964 = vmatpush.msra.mxu0 0.0
        %6965 = vmatpush.msra.mxu0 0.0
        %6966 = vmatpush.msra.mxu0 %v6933
        %6967 = vmatmul.f32.gmra.mxu0 %v6930
        %v6968 = vpop.f32.mrf.mxu0
        %v6969 = vadd.f32 0.0, %v6968
        %6970 = vdwg.mxu0
        %6971 = vmatpush.msra.mxu0 0.0
        %6972 = vmatpush.msra.mxu0 0.0
        %6973 = vmatpush.msra.mxu0 0.0
        %6974 = vmatpush.msra.mxu0 0.0
        %6975 = vmatpush.msra.mxu0 0.0
        %6976 = vmatpush.msra.mxu0 0.0
        %6977 = vmatpush.msra.mxu0 0.0
        %6978 = vmatpush.msra.mxu0 0.0
        %6979 = vmatpush.msra.mxu0 0.0
        %6980 = vmatpush.msra.mxu0 0.0
        %6981 = vmatpush.msra.mxu0 0.0
        %6982 = vmatpush.msra.mxu0 0.0
        %6983 = vmatpush.msra.mxu0 0.0
        %6984 = vmatpush.msra.mxu0 0.0
        %6985 = vmatpush.msra.mxu0 0.0
        %6986 = vmatpush.msra.mxu0 %v6935
        %6987 = vmatmul.f32.gmra.mxu0 %v6930
        %v6988 = vpop.f32.mrf.mxu0
        %v6989 = vadd.f32 0.0, %v6988
        %6990 = vdwg.mxu0
        %6991 = vmatpush.msra.mxu0 0.0
        %6992 = vmatpush.msra.mxu0 0.0
        %6993 = vmatpush.msra.mxu0 0.0
        %6994 = vmatpush.msra.mxu0 0.0
        %6995 = vmatpush.msra.mxu0 0.0
        %6996 = vmatpush.msra.mxu0 0.0
        %6997 = vmatpush.msra.mxu0 0.0
        %6998 = vmatpush.msra.mxu0 0.0
        %6999 = vmatpush.msra.mxu0 0.0
        %7000 = vmatpush.msra.mxu0 0.0
        %7001 = vmatpush.msra.mxu0 0.0
        %7002 = vmatpush.msra.mxu0 0.0
        %7003 = vmatpush.msra.mxu0 0.0
        %7004 = vmatpush.msra.mxu0 0.0
        %7005 = vmatpush.msra.mxu0 0.0
        %7006 = vmatpush.msra.mxu0 %v6937
        %7007 = vmatmul.f32.gmra.mxu0 %v6930
        %v7008 = vpop.f32.mrf.mxu0
        %v7009 = vadd.f32 0.0, %v7008
        %7010 = vdwg.mxu0
        %7011 = vmatpush.msra.mxu0 0.0
        %7012 = vmatpush.msra.mxu0 0.0
        %7013 = vmatpush.msra.mxu0 0.0
        %7014 = vmatpush.msra.mxu0 0.0
        %7015 = vmatpush.msra.mxu0 0.0
        %7016 = vmatpush.msra.mxu0 0.0
        %7017 = vmatpush.msra.mxu0 0.0
        %7018 = vmatpush.msra.mxu0 0.0
        %7019 = vmatpush.msra.mxu0 0.0
        %7020 = vmatpush.msra.mxu0 0.0
        %7021 = vmatpush.msra.mxu0 0.0
        %7022 = vmatpush.msra.mxu0 0.0
        %7023 = vmatpush.msra.mxu0 0.0
        %7024 = vmatpush.msra.mxu0 0.0
        %7025 = vmatpush.msra.mxu0 0.0
        %7026 = vmatpush.msra.mxu0 %v6939
        %7027 = vmatmul.f32.gmra.mxu0 %v6930
        %v7028 = vpop.f32.mrf.mxu0
        %v7029 = vadd.f32 0.0, %v7028
        %7030 = vdwg.mxu0
        %7031 = vmatpush.msra.mxu0 0.0
        %7032 = vmatpush.msra.mxu0 0.0
        %7033 = vmatpush.msra.mxu0 0.0
        %7034 = vmatpush.msra.mxu0 0.0
        %7035 = vmatpush.msra.mxu0 0.0
        %7036 = vmatpush.msra.mxu0 0.0
        %7037 = vmatpush.msra.mxu0 0.0
        %7038 = vmatpush.msra.mxu0 0.0
        %7039 = vmatpush.msra.mxu0 0.0
        %7040 = vmatpush.msra.mxu0 0.0
        %7041 = vmatpush.msra.mxu0 0.0
        %7042 = vmatpush.msra.mxu0 0.0
        %7043 = vmatpush.msra.mxu0 0.0
        %7044 = vmatpush.msra.mxu0 0.0
        %7045 = vmatpush.msra.mxu0 0.0
        %7046 = vmatpush.msra.mxu0 %v6941
        %7047 = vmatmul.f32.gmra.mxu0 %v6930
        %v7048 = vpop.f32.mrf.mxu0
        %v7049 = vadd.f32 0.0, %v7048
        %7050 = vdwg.mxu0
        %7051 = vmatpush.msra.mxu0 0.0
        %7052 = vmatpush.msra.mxu0 0.0
        %7053 = vmatpush.msra.mxu0 0.0
        %7054 = vmatpush.msra.mxu0 0.0
        %7055 = vmatpush.msra.mxu0 0.0
        %7056 = vmatpush.msra.mxu0 0.0
        %7057 = vmatpush.msra.mxu0 0.0
        %7058 = vmatpush.msra.mxu0 0.0
        %7059 = vmatpush.msra.mxu0 0.0
        %7060 = vmatpush.msra.mxu0 0.0
        %7061 = vmatpush.msra.mxu0 0.0
        %7062 = vmatpush.msra.mxu0 0.0
        %7063 = vmatpush.msra.mxu0 0.0
        %7064 = vmatpush.msra.mxu0 0.0
        %7065 = vmatpush.msra.mxu0 0.0
        %7066 = vmatpush.msra.mxu0 %v6943
        %7067 = vmatmul.f32.gmra.mxu0 %v6930
        %v7068 = vpop.f32.mrf.mxu0
        %v7069 = vadd.f32 0.0, %v7068
        %7070 = vdwg.mxu0
        %7071 = vmatpush.msra.mxu0 0.0
        %7072 = vmatpush.msra.mxu0 0.0
        %7073 = vmatpush.msra.mxu0 0.0
        %7074 = vmatpush.msra.mxu0 0.0
        %7075 = vmatpush.msra.mxu0 0.0
        %7076 = vmatpush.msra.mxu0 0.0
        %7077 = vmatpush.msra.mxu0 0.0
        %7078 = vmatpush.msra.mxu0 0.0
        %7079 = vmatpush.msra.mxu0 0.0
        %7080 = vmatpush.msra.mxu0 0.0
        %7081 = vmatpush.msra.mxu0 0.0
        %7082 = vmatpush.msra.mxu0 0.0
        %7083 = vmatpush.msra.mxu0 0.0
        %7084 = vmatpush.msra.mxu0 0.0
        %7085 = vmatpush.msra.mxu0 0.0
        %7086 = vmatpush.msra.mxu0 %v6945
        %7087 = vmatmul.f32.gmra.mxu0 %v6930
        %v7088 = vpop.f32.mrf.mxu0
        %v7089 = vadd.f32 0.0, %v7088
        %7090 = vdwg.mxu0
        %7091 = vmatpush.msra.mxu0 0.0
        %7092 = vmatpush.msra.mxu0 0.0
        %7093 = vmatpush.msra.mxu0 0.0
        %7094 = vmatpush.msra.mxu0 0.0
        %7095 = vmatpush.msra.mxu0 0.0
        %7096 = vmatpush.msra.mxu0 0.0
        %7097 = vmatpush.msra.mxu0 0.0
        %7098 = vmatpush.msra.mxu0 0.0
        %7099 = vmatpush.msra.mxu0 0.0
        %7100 = vmatpush.msra.mxu0 0.0
        %7101 = vmatpush.msra.mxu0 0.0
        %7102 = vmatpush.msra.mxu0 0.0
        %7103 = vmatpush.msra.mxu0 0.0
        %7104 = vmatpush.msra.mxu0 0.0
        %7105 = vmatpush.msra.mxu0 0.0
        %7106 = vmatpush.msra.mxu0 %v6947
        %7107 = vmatmul.f32.gmra.mxu0 %v6930
        %v7108 = vpop.f32.mrf.mxu0
        %v7109 = vadd.f32 0.0, %v7108
        %7110 = vdwg.mxu0
        %7111 = vmatpush.msra.mxu0 0.0
        %7112 = vmatpush.msra.mxu0 0.0
        %7113 = vmatpush.msra.mxu0 0.0
        %7114 = vmatpush.msra.mxu0 0.0
        %7115 = vmatpush.msra.mxu0 0.0
        %7116 = vmatpush.msra.mxu0 0.0
        %7117 = vmatpush.msra.mxu0 0.0
        %7118 = vmatpush.msra.mxu0 0.0
        %7119 = vmatpush.msra.mxu0 0.0
        %7120 = vmatpush.msra.mxu0 0.0
        %7121 = vmatpush.msra.mxu0 0.0
        %7122 = vmatpush.msra.mxu0 0.0
        %7123 = vmatpush.msra.mxu0 0.0
        %7124 = vmatpush.msra.mxu0 0.0
        %7125 = vmatpush.msra.mxu0 0.0
        %7126 = vmatpush.msra.mxu0 %v6949
        %7127 = vmatmul.f32.gmra.mxu0 %v6930
        %v7128 = vpop.f32.mrf.mxu0
        %v7129 = vadd.f32 0.0, %v7128
        %7130 = vdwg.mxu0
        %v7131 = vpack.c.bf16 %v6989, %v6969
        %v7132 = vpack.c.bf16 %v7029, %v7009
        %v7133 = vpack.c.bf16 %v7069, %v7049
        %v7134 = vpack.c.bf16 %v7109, %v7089
        %v7135 = vpack.c.bf16 %v7129, %v7129
        %v7141 = vunpack.c.l.b16 %v7131
        %v7142 = vunpack.c.h.b16 %v7131
        %v7143 = vunpack.c.l.b16 %v7132
        %v7144 = vunpack.c.h.b16 %v7132
        %v7145 = vunpack.c.l.b16 %v7133
        %v7146 = vunpack.c.h.b16 %v7133
        %v7147 = vunpack.c.l.b16 %v7134
        %v7148 = vunpack.c.h.b16 %v7134
        %v7149 = vunpack.c.l.b16 %v7135
        %v7150 = vpack.c.b16 %v7141, %v7141
        %v7151 = vpack.c.b16 %v7142, %v7142
        %v7152 = vpack.c.b16 %v7143, %v7143
        %v7153 = vpack.c.b16 %v7144, %v7144
        %v7154 = vpack.c.b16 %v7145, %v7145
        %v7155 = vpack.c.b16 %v7146, %v7146
        %v7156 = vpack.c.b16 %v7147, %v7147
        %v7157 = vpack.c.b16 %v7148, %v7148
        %v7158 = vpack.c.b16 %v7149, %v7149
        %v7160 = vpack.i.b16 %v7150, %v7150
        %v7162 = vperm.slane %v7160, 0
        %v7164 = vpack.i.b16 %v7151, %v7151
        %v7166 = vperm.slane %v7164, 0
        %v7168 = vpack.i.b16 %v7152, %v7152
        %v7170 = vperm.slane %v7168, 0
        %v7172 = vpack.i.b16 %v7153, %v7153
        %v7174 = vperm.slane %v7172, 0
        %v7176 = vpack.i.b16 %v7154, %v7154
        %v7178 = vperm.slane %v7176, 0
        %v7180 = vpack.i.b16 %v7155, %v7155
        %v7182 = vperm.slane %v7180, 0
        %v7184 = vpack.i.b16 %v7156, %v7156
        %v7186 = vperm.slane %v7184, 0
        %v7188 = vpack.i.b16 %v7157, %v7157
        %v7190 = vperm.slane %v7188, 0
        %v7192 = vpack.i.b16 %v7158, %v7158
        %v7194 = vperm.slane %v7192, 0
        %v7195 = vunpack.c.l.bf16 %v2564
        %v7196 = vunpack.c.h.bf16 %v2564
        %v7197 = vunpack.c.l.bf16 %v2565
        %v7198 = vunpack.c.h.bf16 %v2565
        %v7199 = vunpack.c.l.bf16 %v2566
        %v7200 = vunpack.c.h.bf16 %v2566
        %v7201 = vunpack.c.l.bf16 %v2567
        %v7202 = vunpack.c.h.bf16 %v2567
        %v7203 = vunpack.c.l.bf16 %v2568
        %v7204 = vunpack.c.l.bf16 %v2569
        %v7205 = vunpack.c.h.bf16 %v2569
        %v7206 = vunpack.c.l.bf16 %v2570
        %v7207 = vunpack.c.h.bf16 %v2570
        %v7208 = vunpack.c.l.bf16 %v2571
        %v7209 = vunpack.c.h.bf16 %v2571
        %v7210 = vunpack.c.l.bf16 %v2572
        %v7211 = vunpack.c.h.bf16 %v2572
        %v7212 = vunpack.c.l.bf16 %v2573
        %v7213 = vunpack.c.l.bf16 %v2574
        %v7214 = vunpack.c.h.bf16 %v2574
        %v7215 = vunpack.c.l.bf16 %v2575
        %v7216 = vunpack.c.h.bf16 %v2575
        %v7217 = vunpack.c.l.bf16 %v2576
        %v7218 = vunpack.c.h.bf16 %v2576
        %v7219 = vunpack.c.l.bf16 %v2577
        %v7220 = vunpack.c.h.bf16 %v2577
        %v7221 = vunpack.c.l.bf16 %v2578
        %v7222 = vunpack.c.l.bf16 %v2579
        %v7223 = vunpack.c.h.bf16 %v2579
        %v7224 = vunpack.c.l.bf16 %v2580
        %v7225 = vunpack.c.h.bf16 %v2580
        %v7226 = vunpack.c.l.bf16 %v2581
        %v7227 = vunpack.c.h.bf16 %v2581
        %v7228 = vunpack.c.l.bf16 %v2582
        %v7229 = vunpack.c.h.bf16 %v2582
        %v7230 = vunpack.c.l.bf16 %v2583
        %v7231 = vunpack.c.l.bf16 %v2584
        %v7232 = vunpack.c.h.bf16 %v2584
        %v7233 = vunpack.c.l.bf16 %v2585
        %v7234 = vunpack.c.h.bf16 %v2585
        %v7235 = vunpack.c.l.bf16 %v2586
        %v7236 = vunpack.c.h.bf16 %v2586
        %v7237 = vunpack.c.l.bf16 %v2587
        %v7238 = vunpack.c.h.bf16 %v2587
        %v7239 = vunpack.c.l.bf16 %v2588
        %v7240 = vunpack.c.l.bf16 %v2589
        %v7241 = vunpack.c.h.bf16 %v2589
        %v7242 = vunpack.c.l.bf16 %v2590
        %v7243 = vunpack.c.h.bf16 %v2590
        %v7244 = vunpack.c.l.bf16 %v2591
        %v7245 = vunpack.c.h.bf16 %v2591
        %v7246 = vunpack.c.l.bf16 %v2592
        %v7247 = vunpack.c.h.bf16 %v2592
        %v7248 = vunpack.c.l.bf16 %v2593
        %v7249 = vunpack.c.l.bf16 %v2594
        %v7250 = vunpack.c.h.bf16 %v2594
        %v7251 = vunpack.c.l.bf16 %v2595
        %v7252 = vunpack.c.h.bf16 %v2595
        %v7253 = vunpack.c.l.bf16 %v2596
        %v7254 = vunpack.c.h.bf16 %v2596
        %v7255 = vunpack.c.l.bf16 %v2597
        %v7256 = vunpack.c.h.bf16 %v2597
        %v7257 = vunpack.c.l.bf16 %v2598
        %v7258 = vunpack.c.l.bf16 %v2599
        %v7259 = vunpack.c.h.bf16 %v2599
        %v7260 = vunpack.c.l.bf16 %v2600
        %v7261 = vunpack.c.h.bf16 %v2600
        %v7262 = vunpack.c.l.bf16 %v2601
        %v7263 = vunpack.c.h.bf16 %v2601
        %v7264 = vunpack.c.l.bf16 %v2602
        %v7265 = vunpack.c.h.bf16 %v2602
        %v7266 = vunpack.c.l.bf16 %v2603
        %v7267 = vunpack.c.l.bf16 %v2604
        %v7268 = vunpack.c.h.bf16 %v2604
        %v7269 = vunpack.c.l.bf16 %v2605
        %v7270 = vunpack.c.h.bf16 %v2605
        %v7271 = vunpack.c.l.bf16 %v2606
        %v7272 = vunpack.c.h.bf16 %v2606
        %v7273 = vunpack.c.l.bf16 %v2607
        %v7274 = vunpack.c.h.bf16 %v2607
        %v7275 = vunpack.c.l.bf16 %v2608
        %v7276 = vunpack.c.l.bf16 %v2609
        %v7277 = vunpack.c.h.bf16 %v2609
        %v7278 = vunpack.c.l.bf16 %v2610
        %v7279 = vunpack.c.h.bf16 %v2610
        %v7280 = vunpack.c.l.bf16 %v2611
        %v7281 = vunpack.c.h.bf16 %v2611
        %v7282 = vunpack.c.l.bf16 %v2612
        %v7283 = vunpack.c.h.bf16 %v2612
        %v7284 = vunpack.c.l.bf16 %v2613
        %v7285 = vunpack.c.l.bf16 %v2614
        %v7286 = vunpack.c.h.bf16 %v2614
        %v7287 = vunpack.c.l.bf16 %v2615
        %v7288 = vunpack.c.h.bf16 %v2615
        %v7289 = vunpack.c.l.bf16 %v2616
        %v7290 = vunpack.c.h.bf16 %v2616
        %v7291 = vunpack.c.l.bf16 %v2617
        %v7292 = vunpack.c.h.bf16 %v2617
        %v7293 = vunpack.c.l.bf16 %v2618
        %v7294 = vunpack.c.l.bf16 %v2619
        %v7295 = vunpack.c.h.bf16 %v2619
        %v7296 = vunpack.c.l.bf16 %v2620
        %v7297 = vunpack.c.h.bf16 %v2620
        %v7298 = vunpack.c.l.bf16 %v2621
        %v7299 = vunpack.c.h.bf16 %v2621
        %v7300 = vunpack.c.l.bf16 %v2622
        %v7301 = vunpack.c.h.bf16 %v2622
        %v7302 = vunpack.c.l.bf16 %v2623
        %v7303 = vunpack.c.l.bf16 %v2624
        %v7304 = vunpack.c.h.bf16 %v2624
        %v7305 = vunpack.c.l.bf16 %v2625
        %v7306 = vunpack.c.h.bf16 %v2625
        %v7307 = vunpack.c.l.bf16 %v2626
        %v7308 = vunpack.c.h.bf16 %v2626
        %v7309 = vunpack.c.l.bf16 %v2627
        %v7310 = vunpack.c.h.bf16 %v2627
        %v7311 = vunpack.c.l.bf16 %v2628
        %v7312 = vunpack.c.l.bf16 %v2629
        %v7313 = vunpack.c.h.bf16 %v2629
        %v7314 = vunpack.c.l.bf16 %v2630
        %v7315 = vunpack.c.h.bf16 %v2630
        %v7316 = vunpack.c.l.bf16 %v2631
        %v7317 = vunpack.c.h.bf16 %v2631
        %v7318 = vunpack.c.l.bf16 %v2632
        %v7319 = vunpack.c.h.bf16 %v2632
        %v7320 = vunpack.c.l.bf16 %v2633
        %v7321 = vunpack.c.l.bf16 %v2634
        %v7322 = vunpack.c.h.bf16 %v2634
        %v7323 = vunpack.c.l.bf16 %v2635
        %v7324 = vunpack.c.h.bf16 %v2635
        %v7325 = vunpack.c.l.bf16 %v2636
        %v7326 = vunpack.c.h.bf16 %v2636
        %v7327 = vunpack.c.l.bf16 %v2637
        %v7328 = vunpack.c.h.bf16 %v2637
        %v7329 = vunpack.c.l.bf16 %v2638
        %v7330 = vunpack.c.l.bf16 %v2639
        %v7331 = vunpack.c.h.bf16 %v2639
        %v7332 = vunpack.c.l.bf16 %v2640
        %v7333 = vunpack.c.h.bf16 %v2640
        %v7334 = vunpack.c.l.bf16 %v2641
        %v7335 = vunpack.c.h.bf16 %v2641
        %v7336 = vunpack.c.l.bf16 %v2642
        %v7337 = vunpack.c.h.bf16 %v2642
        %v7338 = vunpack.c.l.bf16 %v2643
        %v7339 = vunpack.c.l.bf16 %v2644
        %v7340 = vunpack.c.h.bf16 %v2644
        %v7341 = vunpack.c.l.bf16 %v2645
        %v7342 = vunpack.c.h.bf16 %v2645
        %v7343 = vunpack.c.l.bf16 %v2646
        %v7344 = vunpack.c.h.bf16 %v2646
        %v7345 = vunpack.c.l.bf16 %v2647
        %v7346 = vunpack.c.h.bf16 %v2647
        %v7347 = vunpack.c.l.bf16 %v2648
        %v7348 = vunpack.c.l.bf16 %v2649
        %v7349 = vunpack.c.h.bf16 %v2649
        %v7350 = vunpack.c.l.bf16 %v2650
        %v7351 = vunpack.c.h.bf16 %v2650
        %v7352 = vunpack.c.l.bf16 %v2651
        %v7353 = vunpack.c.h.bf16 %v2651
        %v7354 = vunpack.c.l.bf16 %v2652
        %v7355 = vunpack.c.h.bf16 %v2652
        %v7356 = vunpack.c.l.bf16 %v2653
        %v7357 = vunpack.c.l.bf16 %v2654
        %v7358 = vunpack.c.h.bf16 %v2654
        %v7359 = vunpack.c.l.bf16 %v2655
        %v7360 = vunpack.c.h.bf16 %v2655
        %v7361 = vunpack.c.l.bf16 %v2656
        %v7362 = vunpack.c.h.bf16 %v2656
        %v7363 = vunpack.c.l.bf16 %v2657
        %v7364 = vunpack.c.h.bf16 %v2657
        %v7365 = vunpack.c.l.bf16 %v2658
        %v7366 = vunpack.c.l.bf16 %v2659
        %v7367 = vunpack.c.h.bf16 %v2659
        %v7368 = vunpack.c.l.bf16 %v2660
        %v7369 = vunpack.c.h.bf16 %v2660
        %v7370 = vunpack.c.l.bf16 %v2661
        %v7371 = vunpack.c.h.bf16 %v2661
        %v7372 = vunpack.c.l.bf16 %v2662
        %v7373 = vunpack.c.h.bf16 %v2662
        %v7374 = vunpack.c.l.bf16 %v2663
        %v7375 = vunpack.c.l.bf16 %v2664
        %v7376 = vunpack.c.h.bf16 %v2664
        %v7377 = vunpack.c.l.bf16 %v2665
        %v7378 = vunpack.c.h.bf16 %v2665
        %v7379 = vunpack.c.l.bf16 %v2666
        %v7380 = vunpack.c.h.bf16 %v2666
        %v7381 = vunpack.c.l.bf16 %v2667
        %v7382 = vunpack.c.h.bf16 %v2667
        %v7383 = vunpack.c.l.bf16 %v2668
        %v7384 = vunpack.c.l.bf16 %v2669
        %v7385 = vunpack.c.h.bf16 %v2669
        %v7386 = vunpack.c.l.bf16 %v2670
        %v7387 = vunpack.c.h.bf16 %v2670
        %v7388 = vunpack.c.l.bf16 %v2671
        %v7389 = vunpack.c.h.bf16 %v2671
        %v7390 = vunpack.c.l.bf16 %v2672
        %v7391 = vunpack.c.h.bf16 %v2672
        %v7392 = vunpack.c.l.bf16 %v2673
        %v7393 = vunpack.c.l.bf16 %v2674
        %v7394 = vunpack.c.h.bf16 %v2674
        %v7395 = vunpack.c.l.bf16 %v2675
        %v7396 = vunpack.c.h.bf16 %v2675
        %v7397 = vunpack.c.l.bf16 %v2676
        %v7398 = vunpack.c.h.bf16 %v2676
        %v7399 = vunpack.c.l.bf16 %v2677
        %v7400 = vunpack.c.h.bf16 %v2677
        %v7401 = vunpack.c.l.bf16 %v2678
        %v7402 = vunpack.c.l.bf16 %v2679
        %v7403 = vunpack.c.h.bf16 %v2679
        %v7404 = vunpack.c.l.bf16 %v2680
        %v7405 = vunpack.c.h.bf16 %v2680
        %v7406 = vunpack.c.l.bf16 %v2681
        %v7407 = vunpack.c.h.bf16 %v2681
        %v7408 = vunpack.c.l.bf16 %v2682
        %v7409 = vunpack.c.h.bf16 %v2682
        %v7410 = vunpack.c.l.bf16 %v2683
        %v7411 = vunpack.c.l.bf16 %v2684
        %v7412 = vunpack.c.h.bf16 %v2684
        %v7413 = vunpack.c.l.bf16 %v2685
        %v7414 = vunpack.c.h.bf16 %v2685
        %v7415 = vunpack.c.l.bf16 %v2686
        %v7416 = vunpack.c.h.bf16 %v2686
        %v7417 = vunpack.c.l.bf16 %v2687
        %v7418 = vunpack.c.h.bf16 %v2687
        %v7419 = vunpack.c.l.bf16 %v2688
        %v7420 = vunpack.c.l.bf16 %v2689
        %v7421 = vunpack.c.h.bf16 %v2689
        %v7422 = vunpack.c.l.bf16 %v2690
        %v7423 = vunpack.c.h.bf16 %v2690
        %v7424 = vunpack.c.l.bf16 %v2691
        %v7425 = vunpack.c.h.bf16 %v2691
        %v7426 = vunpack.c.l.bf16 %v2692
        %v7427 = vunpack.c.h.bf16 %v2692
        %v7428 = vunpack.c.l.bf16 %v2693
        %v7429 = vunpack.c.l.bf16 %v2694
        %v7430 = vunpack.c.h.bf16 %v2694
        %v7431 = vunpack.c.l.bf16 %v2695
        %v7432 = vunpack.c.h.bf16 %v2695
        %v7433 = vunpack.c.l.bf16 %v2696
        %v7434 = vunpack.c.h.bf16 %v2696
        %v7435 = vunpack.c.l.bf16 %v2697
        %v7436 = vunpack.c.h.bf16 %v2697
        %v7437 = vunpack.c.l.bf16 %v2698
        %v7438 = vunpack.c.l.bf16 %v2699
        %v7439 = vunpack.c.h.bf16 %v2699
        %v7440 = vunpack.c.l.bf16 %v2700
        %v7441 = vunpack.c.h.bf16 %v2700
        %v7442 = vunpack.c.l.bf16 %v2701
        %v7443 = vunpack.c.h.bf16 %v2701
        %v7444 = vunpack.c.l.bf16 %v2702
        %v7445 = vunpack.c.h.bf16 %v2702
        %v7446 = vunpack.c.l.bf16 %v2703
        %v7447 = vunpack.c.l.bf16 %v2704
        %v7448 = vunpack.c.h.bf16 %v2704
        %v7449 = vunpack.c.l.bf16 %v2705
        %v7450 = vunpack.c.h.bf16 %v2705
        %v7451 = vunpack.c.l.bf16 %v2706
        %v7452 = vunpack.c.h.bf16 %v2706
        %v7453 = vunpack.c.l.bf16 %v2707
        %v7454 = vunpack.c.h.bf16 %v2707
        %v7455 = vunpack.c.l.bf16 %v2708
        %v7456 = vunpack.c.l.bf16 %v2709
        %v7457 = vunpack.c.h.bf16 %v2709
        %v7458 = vunpack.c.l.bf16 %v2710
        %v7459 = vunpack.c.h.bf16 %v2710
        %v7460 = vunpack.c.l.bf16 %v2711
        %v7461 = vunpack.c.h.bf16 %v2711
        %v7462 = vunpack.c.l.bf16 %v2712
        %v7463 = vunpack.c.h.bf16 %v2712
        %v7464 = vunpack.c.l.bf16 %v2713
        %v7465 = vunpack.c.l.bf16 %v2714
        %v7466 = vunpack.c.h.bf16 %v2714
        %v7467 = vunpack.c.l.bf16 %v2715
        %v7468 = vunpack.c.h.bf16 %v2715
        %v7469 = vunpack.c.l.bf16 %v2716
        %v7470 = vunpack.c.h.bf16 %v2716
        %v7471 = vunpack.c.l.bf16 %v2717
        %v7472 = vunpack.c.h.bf16 %v2717
        %v7473 = vunpack.c.l.bf16 %v2718
        %v7474 = vunpack.c.l.bf16 %v2719
        %v7475 = vunpack.c.h.bf16 %v2719
        %v7476 = vunpack.c.l.bf16 %v2720
        %v7477 = vunpack.c.h.bf16 %v2720
        %v7478 = vunpack.c.l.bf16 %v2721
        %v7479 = vunpack.c.h.bf16 %v2721
        %v7480 = vunpack.c.l.bf16 %v2722
        %v7481 = vunpack.c.h.bf16 %v2722
        %v7482 = vunpack.c.l.bf16 %v2723
        %v7483 = vunpack.c.l.bf16 %v7162
        %v7484 = vunpack.c.l.bf16 %v7166
        %v7485 = vunpack.c.l.bf16 %v7170
        %v7486 = vunpack.c.l.bf16 %v7174
        %v7487 = vunpack.c.l.bf16 %v7178
        %v7488 = vunpack.c.l.bf16 %v7182
        %v7489 = vunpack.c.l.bf16 %v7186
        %v7490 = vunpack.c.l.bf16 %v7190
        %v7491 = vunpack.c.l.bf16 %v7194
        %v7492 = vmul.f32 %v7195, %v7483
        %v7493 = vmul.f32 %v7196, %v7484
        %v7494 = vmul.f32 %v7197, %v7485
        %v7495 = vmul.f32 %v7198, %v7486
        %v7496 = vmul.f32 %v7199, %v7487
        %v7497 = vmul.f32 %v7200, %v7488
        %v7498 = vmul.f32 %v7201, %v7489
        %v7499 = vmul.f32 %v7202, %v7490
        %v7500 = vmul.f32 %v7203, %v7491
        %v7501 = vmul.f32 %v7204, %v7483
        %v7502 = vmul.f32 %v7205, %v7484
        %v7503 = vmul.f32 %v7206, %v7485
        %v7504 = vmul.f32 %v7207, %v7486
        %v7505 = vmul.f32 %v7208, %v7487
        %v7506 = vmul.f32 %v7209, %v7488
        %v7507 = vmul.f32 %v7210, %v7489
        %v7508 = vmul.f32 %v7211, %v7490
        %v7509 = vmul.f32 %v7212, %v7491
        %v7510 = vmul.f32 %v7213, %v7483
        %v7511 = vmul.f32 %v7214, %v7484
        %v7512 = vmul.f32 %v7215, %v7485
        %v7513 = vmul.f32 %v7216, %v7486
        %v7514 = vmul.f32 %v7217, %v7487
        %v7515 = vmul.f32 %v7218, %v7488
        %v7516 = vmul.f32 %v7219, %v7489
        %v7517 = vmul.f32 %v7220, %v7490
        %v7518 = vmul.f32 %v7221, %v7491
        %v7519 = vmul.f32 %v7222, %v7483
        %v7520 = vmul.f32 %v7223, %v7484
        %v7521 = vmul.f32 %v7224, %v7485
        %v7522 = vmul.f32 %v7225, %v7486
        %v7523 = vmul.f32 %v7226, %v7487
        %v7524 = vmul.f32 %v7227, %v7488
        %v7525 = vmul.f32 %v7228, %v7489
        %v7526 = vmul.f32 %v7229, %v7490
        %v7527 = vmul.f32 %v7230, %v7491
        %v7528 = vmul.f32 %v7231, %v7483
        %v7529 = vmul.f32 %v7232, %v7484
        %v7530 = vmul.f32 %v7233, %v7485
        %v7531 = vmul.f32 %v7234, %v7486
        %v7532 = vmul.f32 %v7235, %v7487
        %v7533 = vmul.f32 %v7236, %v7488
        %v7534 = vmul.f32 %v7237, %v7489
        %v7535 = vmul.f32 %v7238, %v7490
        %v7536 = vmul.f32 %v7239, %v7491
        %v7537 = vmul.f32 %v7240, %v7483
        %v7538 = vmul.f32 %v7241, %v7484
        %v7539 = vmul.f32 %v7242, %v7485
        %v7540 = vmul.f32 %v7243, %v7486
        %v7541 = vmul.f32 %v7244, %v7487
        %v7542 = vmul.f32 %v7245, %v7488
        %v7543 = vmul.f32 %v7246, %v7489
        %v7544 = vmul.f32 %v7247, %v7490
        %v7545 = vmul.f32 %v7248, %v7491
        %v7546 = vmul.f32 %v7249, %v7483
        %v7547 = vmul.f32 %v7250, %v7484
        %v7548 = vmul.f32 %v7251, %v7485
        %v7549 = vmul.f32 %v7252, %v7486
        %v7550 = vmul.f32 %v7253, %v7487
        %v7551 = vmul.f32 %v7254, %v7488
        %v7552 = vmul.f32 %v7255, %v7489
        %v7553 = vmul.f32 %v7256, %v7490
        %v7554 = vmul.f32 %v7257, %v7491
        %v7555 = vmul.f32 %v7258, %v7483
        %v7556 = vmul.f32 %v7259, %v7484
        %v7557 = vmul.f32 %v7260, %v7485
        %v7558 = vmul.f32 %v7261, %v7486
        %v7559 = vmul.f32 %v7262, %v7487
        %v7560 = vmul.f32 %v7263, %v7488
        %v7561 = vmul.f32 %v7264, %v7489
        %v7562 = vmul.f32 %v7265, %v7490
        %v7563 = vmul.f32 %v7266, %v7491
        %v7564 = vmul.f32 %v7267, %v7483
        %v7565 = vmul.f32 %v7268, %v7484
        %v7566 = vmul.f32 %v7269, %v7485
        %v7567 = vmul.f32 %v7270, %v7486
        %v7568 = vmul.f32 %v7271, %v7487
        %v7569 = vmul.f32 %v7272, %v7488
        %v7570 = vmul.f32 %v7273, %v7489
        %v7571 = vmul.f32 %v7274, %v7490
        %v7572 = vmul.f32 %v7275, %v7491
        %v7573 = vmul.f32 %v7276, %v7483
        %v7574 = vmul.f32 %v7277, %v7484
        %v7575 = vmul.f32 %v7278, %v7485
        %v7576 = vmul.f32 %v7279, %v7486
        %v7577 = vmul.f32 %v7280, %v7487
        %v7578 = vmul.f32 %v7281, %v7488
        %v7579 = vmul.f32 %v7282, %v7489
        %v7580 = vmul.f32 %v7283, %v7490
        %v7581 = vmul.f32 %v7284, %v7491
        %v7582 = vmul.f32 %v7285, %v7483
        %v7583 = vmul.f32 %v7286, %v7484
        %v7584 = vmul.f32 %v7287, %v7485
        %v7585 = vmul.f32 %v7288, %v7486
        %v7586 = vmul.f32 %v7289, %v7487
        %v7587 = vmul.f32 %v7290, %v7488
        %v7588 = vmul.f32 %v7291, %v7489
        %v7589 = vmul.f32 %v7292, %v7490
        %v7590 = vmul.f32 %v7293, %v7491
        %v7591 = vmul.f32 %v7294, %v7483
        %v7592 = vmul.f32 %v7295, %v7484
        %v7593 = vmul.f32 %v7296, %v7485
        %v7594 = vmul.f32 %v7297, %v7486
        %v7595 = vmul.f32 %v7298, %v7487
        %v7596 = vmul.f32 %v7299, %v7488
        %v7597 = vmul.f32 %v7300, %v7489
        %v7598 = vmul.f32 %v7301, %v7490
        %v7599 = vmul.f32 %v7302, %v7491
        %v7600 = vmul.f32 %v7303, %v7483
        %v7601 = vmul.f32 %v7304, %v7484
        %v7602 = vmul.f32 %v7305, %v7485
        %v7603 = vmul.f32 %v7306, %v7486
        %v7604 = vmul.f32 %v7307, %v7487
        %v7605 = vmul.f32 %v7308, %v7488
        %v7606 = vmul.f32 %v7309, %v7489
        %v7607 = vmul.f32 %v7310, %v7490
        %v7608 = vmul.f32 %v7311, %v7491
        %v7609 = vmul.f32 %v7312, %v7483
        %v7610 = vmul.f32 %v7313, %v7484
        %v7611 = vmul.f32 %v7314, %v7485
        %v7612 = vmul.f32 %v7315, %v7486
        %v7613 = vmul.f32 %v7316, %v7487
        %v7614 = vmul.f32 %v7317, %v7488
        %v7615 = vmul.f32 %v7318, %v7489
        %v7616 = vmul.f32 %v7319, %v7490
        %v7617 = vmul.f32 %v7320, %v7491
        %v7618 = vmul.f32 %v7321, %v7483
        %v7619 = vmul.f32 %v7322, %v7484
        %v7620 = vmul.f32 %v7323, %v7485
        %v7621 = vmul.f32 %v7324, %v7486
        %v7622 = vmul.f32 %v7325, %v7487
        %v7623 = vmul.f32 %v7326, %v7488
        %v7624 = vmul.f32 %v7327, %v7489
        %v7625 = vmul.f32 %v7328, %v7490
        %v7626 = vmul.f32 %v7329, %v7491
        %v7627 = vmul.f32 %v7330, %v7483
        %v7628 = vmul.f32 %v7331, %v7484
        %v7629 = vmul.f32 %v7332, %v7485
        %v7630 = vmul.f32 %v7333, %v7486
        %v7631 = vmul.f32 %v7334, %v7487
        %v7632 = vmul.f32 %v7335, %v7488
        %v7633 = vmul.f32 %v7336, %v7489
        %v7634 = vmul.f32 %v7337, %v7490
        %v7635 = vmul.f32 %v7338, %v7491
        %v7636 = vmul.f32 %v7339, %v7483
        %v7637 = vmul.f32 %v7340, %v7484
        %v7638 = vmul.f32 %v7341, %v7485
        %v7639 = vmul.f32 %v7342, %v7486
        %v7640 = vmul.f32 %v7343, %v7487
        %v7641 = vmul.f32 %v7344, %v7488
        %v7642 = vmul.f32 %v7345, %v7489
        %v7643 = vmul.f32 %v7346, %v7490
        %v7644 = vmul.f32 %v7347, %v7491
        %v7645 = vmul.f32 %v7348, %v7483
        %v7646 = vmul.f32 %v7349, %v7484
        %v7647 = vmul.f32 %v7350, %v7485
        %v7648 = vmul.f32 %v7351, %v7486
        %v7649 = vmul.f32 %v7352, %v7487
        %v7650 = vmul.f32 %v7353, %v7488
        %v7651 = vmul.f32 %v7354, %v7489
        %v7652 = vmul.f32 %v7355, %v7490
        %v7653 = vmul.f32 %v7356, %v7491
        %v7654 = vmul.f32 %v7357, %v7483
        %v7655 = vmul.f32 %v7358, %v7484
        %v7656 = vmul.f32 %v7359, %v7485
        %v7657 = vmul.f32 %v7360, %v7486
        %v7658 = vmul.f32 %v7361, %v7487
        %v7659 = vmul.f32 %v7362, %v7488
        %v7660 = vmul.f32 %v7363, %v7489
        %v7661 = vmul.f32 %v7364, %v7490
        %v7662 = vmul.f32 %v7365, %v7491
        %v7663 = vmul.f32 %v7366, %v7483
        %v7664 = vmul.f32 %v7367, %v7484
        %v7665 = vmul.f32 %v7368, %v7485
        %v7666 = vmul.f32 %v7369, %v7486
        %v7667 = vmul.f32 %v7370, %v7487
        %v7668 = vmul.f32 %v7371, %v7488
        %v7669 = vmul.f32 %v7372, %v7489
        %v7670 = vmul.f32 %v7373, %v7490
        %v7671 = vmul.f32 %v7374, %v7491
        %v7672 = vmul.f32 %v7375, %v7483
        %v7673 = vmul.f32 %v7376, %v7484
        %v7674 = vmul.f32 %v7377, %v7485
        %v7675 = vmul.f32 %v7378, %v7486
        %v7676 = vmul.f32 %v7379, %v7487
        %v7677 = vmul.f32 %v7380, %v7488
        %v7678 = vmul.f32 %v7381, %v7489
        %v7679 = vmul.f32 %v7382, %v7490
        %v7680 = vmul.f32 %v7383, %v7491
        %v7681 = vmul.f32 %v7384, %v7483
        %v7682 = vmul.f32 %v7385, %v7484
        %v7683 = vmul.f32 %v7386, %v7485
        %v7684 = vmul.f32 %v7387, %v7486
        %v7685 = vmul.f32 %v7388, %v7487
        %v7686 = vmul.f32 %v7389, %v7488
        %v7687 = vmul.f32 %v7390, %v7489
        %v7688 = vmul.f32 %v7391, %v7490
        %v7689 = vmul.f32 %v7392, %v7491
        %v7690 = vmul.f32 %v7393, %v7483
        %v7691 = vmul.f32 %v7394, %v7484
        %v7692 = vmul.f32 %v7395, %v7485
        %v7693 = vmul.f32 %v7396, %v7486
        %v7694 = vmul.f32 %v7397, %v7487
        %v7695 = vmul.f32 %v7398, %v7488
        %v7696 = vmul.f32 %v7399, %v7489
        %v7697 = vmul.f32 %v7400, %v7490
        %v7698 = vmul.f32 %v7401, %v7491
        %v7699 = vmul.f32 %v7402, %v7483
        %v7700 = vmul.f32 %v7403, %v7484
        %v7701 = vmul.f32 %v7404, %v7485
        %v7702 = vmul.f32 %v7405, %v7486
        %v7703 = vmul.f32 %v7406, %v7487
        %v7704 = vmul.f32 %v7407, %v7488
        %v7705 = vmul.f32 %v7408, %v7489
        %v7706 = vmul.f32 %v7409, %v7490
        %v7707 = vmul.f32 %v7410, %v7491
        %v7708 = vmul.f32 %v7411, %v7483
        %v7709 = vmul.f32 %v7412, %v7484
        %v7710 = vmul.f32 %v7413, %v7485
        %v7711 = vmul.f32 %v7414, %v7486
        %v7712 = vmul.f32 %v7415, %v7487
        %v7713 = vmul.f32 %v7416, %v7488
        %v7714 = vmul.f32 %v7417, %v7489
        %v7715 = vmul.f32 %v7418, %v7490
        %v7716 = vmul.f32 %v7419, %v7491
        %v7717 = vmul.f32 %v7420, %v7483
        %v7718 = vmul.f32 %v7421, %v7484
        %v7719 = vmul.f32 %v7422, %v7485
        %v7720 = vmul.f32 %v7423, %v7486
        %v7721 = vmul.f32 %v7424, %v7487
        %v7722 = vmul.f32 %v7425, %v7488
        %v7723 = vmul.f32 %v7426, %v7489
        %v7724 = vmul.f32 %v7427, %v7490
        %v7725 = vmul.f32 %v7428, %v7491
        %v7726 = vmul.f32 %v7429, %v7483
        %v7727 = vmul.f32 %v7430, %v7484
        %v7728 = vmul.f32 %v7431, %v7485
        %v7729 = vmul.f32 %v7432, %v7486
        %v7730 = vmul.f32 %v7433, %v7487
        %v7731 = vmul.f32 %v7434, %v7488
        %v7732 = vmul.f32 %v7435, %v7489
        %v7733 = vmul.f32 %v7436, %v7490
        %v7734 = vmul.f32 %v7437, %v7491
        %v7735 = vmul.f32 %v7438, %v7483
        %v7736 = vmul.f32 %v7439, %v7484
        %v7737 = vmul.f32 %v7440, %v7485
        %v7738 = vmul.f32 %v7441, %v7486
        %v7739 = vmul.f32 %v7442, %v7487
        %v7740 = vmul.f32 %v7443, %v7488
        %v7741 = vmul.f32 %v7444, %v7489
        %v7742 = vmul.f32 %v7445, %v7490
        %v7743 = vmul.f32 %v7446, %v7491
        %v7744 = vmul.f32 %v7447, %v7483
        %v7745 = vmul.f32 %v7448, %v7484
        %v7746 = vmul.f32 %v7449, %v7485
        %v7747 = vmul.f32 %v7450, %v7486
        %v7748 = vmul.f32 %v7451, %v7487
        %v7749 = vmul.f32 %v7452, %v7488
        %v7750 = vmul.f32 %v7453, %v7489
        %v7751 = vmul.f32 %v7454, %v7490
        %v7752 = vmul.f32 %v7455, %v7491
        %v7753 = vmul.f32 %v7456, %v7483
        %v7754 = vmul.f32 %v7457, %v7484
        %v7755 = vmul.f32 %v7458, %v7485
        %v7756 = vmul.f32 %v7459, %v7486
        %v7757 = vmul.f32 %v7460, %v7487
        %v7758 = vmul.f32 %v7461, %v7488
        %v7759 = vmul.f32 %v7462, %v7489
        %v7760 = vmul.f32 %v7463, %v7490
        %v7761 = vmul.f32 %v7464, %v7491
        %v7762 = vmul.f32 %v7465, %v7483
        %v7763 = vmul.f32 %v7466, %v7484
        %v7764 = vmul.f32 %v7467, %v7485
        %v7765 = vmul.f32 %v7468, %v7486
        %v7766 = vmul.f32 %v7469, %v7487
        %v7767 = vmul.f32 %v7470, %v7488
        %v7768 = vmul.f32 %v7471, %v7489
        %v7769 = vmul.f32 %v7472, %v7490
        %v7770 = vmul.f32 %v7473, %v7491
        %v7771 = vmul.f32 %v7474, %v7483
        %v7772 = vmul.f32 %v7475, %v7484
        %v7773 = vmul.f32 %v7476, %v7485
        %v7774 = vmul.f32 %v7477, %v7486
        %v7775 = vmul.f32 %v7478, %v7487
        %v7776 = vmul.f32 %v7479, %v7488
        %v7777 = vmul.f32 %v7480, %v7489
        %v7778 = vmul.f32 %v7481, %v7490
        %v7779 = vmul.f32 %v7482, %v7491
        %v7780 = vpack.c.bf16 %v7493, %v7492
        %v7781 = vpack.c.bf16 %v7495, %v7494
        %v7782 = vpack.c.bf16 %v7497, %v7496
        %v7783 = vpack.c.bf16 %v7499, %v7498
        %v7784 = vpack.c.bf16 %v7500, %v7500
        %v7785 = vpack.c.bf16 %v7502, %v7501
        %v7786 = vpack.c.bf16 %v7504, %v7503
        %v7787 = vpack.c.bf16 %v7506, %v7505
        %v7788 = vpack.c.bf16 %v7508, %v7507
        %v7789 = vpack.c.bf16 %v7509, %v7509
        %v7790 = vpack.c.bf16 %v7511, %v7510
        %v7791 = vpack.c.bf16 %v7513, %v7512
        %v7792 = vpack.c.bf16 %v7515, %v7514
        %v7793 = vpack.c.bf16 %v7517, %v7516
        %v7794 = vpack.c.bf16 %v7518, %v7518
        %v7795 = vpack.c.bf16 %v7520, %v7519
        %v7796 = vpack.c.bf16 %v7522, %v7521
        %v7797 = vpack.c.bf16 %v7524, %v7523
        %v7798 = vpack.c.bf16 %v7526, %v7525
        %v7799 = vpack.c.bf16 %v7527, %v7527
        %v7800 = vpack.c.bf16 %v7529, %v7528
        %v7801 = vpack.c.bf16 %v7531, %v7530
        %v7802 = vpack.c.bf16 %v7533, %v7532
        %v7803 = vpack.c.bf16 %v7535, %v7534
        %v7804 = vpack.c.bf16 %v7536, %v7536
        %v7805 = vpack.c.bf16 %v7538, %v7537
        %v7806 = vpack.c.bf16 %v7540, %v7539
        %v7807 = vpack.c.bf16 %v7542, %v7541
        %v7808 = vpack.c.bf16 %v7544, %v7543
        %v7809 = vpack.c.bf16 %v7545, %v7545
        %v7810 = vpack.c.bf16 %v7547, %v7546
        %v7811 = vpack.c.bf16 %v7549, %v7548
        %v7812 = vpack.c.bf16 %v7551, %v7550
        %v7813 = vpack.c.bf16 %v7553, %v7552
        %v7814 = vpack.c.bf16 %v7554, %v7554
        %v7815 = vpack.c.bf16 %v7556, %v7555
        %v7816 = vpack.c.bf16 %v7558, %v7557
        %v7817 = vpack.c.bf16 %v7560, %v7559
        %v7818 = vpack.c.bf16 %v7562, %v7561
        %v7819 = vpack.c.bf16 %v7563, %v7563
        %v7820 = vpack.c.bf16 %v7565, %v7564
        %v7821 = vpack.c.bf16 %v7567, %v7566
        %v7822 = vpack.c.bf16 %v7569, %v7568
        %v7823 = vpack.c.bf16 %v7571, %v7570
        %v7824 = vpack.c.bf16 %v7572, %v7572
        %v7825 = vpack.c.bf16 %v7574, %v7573
        %v7826 = vpack.c.bf16 %v7576, %v7575
        %v7827 = vpack.c.bf16 %v7578, %v7577
        %v7828 = vpack.c.bf16 %v7580, %v7579
        %v7829 = vpack.c.bf16 %v7581, %v7581
        %v7830 = vpack.c.bf16 %v7583, %v7582
        %v7831 = vpack.c.bf16 %v7585, %v7584
        %v7832 = vpack.c.bf16 %v7587, %v7586
        %v7833 = vpack.c.bf16 %v7589, %v7588
        %v7834 = vpack.c.bf16 %v7590, %v7590
        %v7835 = vpack.c.bf16 %v7592, %v7591
        %v7836 = vpack.c.bf16 %v7594, %v7593
        %v7837 = vpack.c.bf16 %v7596, %v7595
        %v7838 = vpack.c.bf16 %v7598, %v7597
        %v7839 = vpack.c.bf16 %v7599, %v7599
        %v7840 = vpack.c.bf16 %v7601, %v7600
        %v7841 = vpack.c.bf16 %v7603, %v7602
        %v7842 = vpack.c.bf16 %v7605, %v7604
        %v7843 = vpack.c.bf16 %v7607, %v7606
        %v7844 = vpack.c.bf16 %v7608, %v7608
        %v7845 = vpack.c.bf16 %v7610, %v7609
        %v7846 = vpack.c.bf16 %v7612, %v7611
        %v7847 = vpack.c.bf16 %v7614, %v7613
        %v7848 = vpack.c.bf16 %v7616, %v7615
        %v7849 = vpack.c.bf16 %v7617, %v7617
        %v7850 = vpack.c.bf16 %v7619, %v7618
        %v7851 = vpack.c.bf16 %v7621, %v7620
        %v7852 = vpack.c.bf16 %v7623, %v7622
        %v7853 = vpack.c.bf16 %v7625, %v7624
        %v7854 = vpack.c.bf16 %v7626, %v7626
        %v7855 = vpack.c.bf16 %v7628, %v7627
        %v7856 = vpack.c.bf16 %v7630, %v7629
        %v7857 = vpack.c.bf16 %v7632, %v7631
        %v7858 = vpack.c.bf16 %v7634, %v7633
        %v7859 = vpack.c.bf16 %v7635, %v7635
        %v7860 = vpack.c.bf16 %v7637, %v7636
        %v7861 = vpack.c.bf16 %v7639, %v7638
        %v7862 = vpack.c.bf16 %v7641, %v7640
        %v7863 = vpack.c.bf16 %v7643, %v7642
        %v7864 = vpack.c.bf16 %v7644, %v7644
        %v7865 = vpack.c.bf16 %v7646, %v7645
        %v7866 = vpack.c.bf16 %v7648, %v7647
        %v7867 = vpack.c.bf16 %v7650, %v7649
        %v7868 = vpack.c.bf16 %v7652, %v7651
        %v7869 = vpack.c.bf16 %v7653, %v7653
        %v7870 = vpack.c.bf16 %v7655, %v7654
        %v7871 = vpack.c.bf16 %v7657, %v7656
        %v7872 = vpack.c.bf16 %v7659, %v7658
        %v7873 = vpack.c.bf16 %v7661, %v7660
        %v7874 = vpack.c.bf16 %v7662, %v7662
        %v7875 = vpack.c.bf16 %v7664, %v7663
        %v7876 = vpack.c.bf16 %v7666, %v7665
        %v7877 = vpack.c.bf16 %v7668, %v7667
        %v7878 = vpack.c.bf16 %v7670, %v7669
        %v7879 = vpack.c.bf16 %v7671, %v7671
        %v7880 = vpack.c.bf16 %v7673, %v7672
        %v7881 = vpack.c.bf16 %v7675, %v7674
        %v7882 = vpack.c.bf16 %v7677, %v7676
        %v7883 = vpack.c.bf16 %v7679, %v7678
        %v7884 = vpack.c.bf16 %v7680, %v7680
        %v7885 = vpack.c.bf16 %v7682, %v7681
        %v7886 = vpack.c.bf16 %v7684, %v7683
        %v7887 = vpack.c.bf16 %v7686, %v7685
        %v7888 = vpack.c.bf16 %v7688, %v7687
        %v7889 = vpack.c.bf16 %v7689, %v7689
        %v7890 = vpack.c.bf16 %v7691, %v7690
        %v7891 = vpack.c.bf16 %v7693, %v7692
        %v7892 = vpack.c.bf16 %v7695, %v7694
        %v7893 = vpack.c.bf16 %v7697, %v7696
        %v7894 = vpack.c.bf16 %v7698, %v7698
        %v7895 = vpack.c.bf16 %v7700, %v7699
        %v7896 = vpack.c.bf16 %v7702, %v7701
        %v7897 = vpack.c.bf16 %v7704, %v7703
        %v7898 = vpack.c.bf16 %v7706, %v7705
        %v7899 = vpack.c.bf16 %v7707, %v7707
        %v7900 = vpack.c.bf16 %v7709, %v7708
        %v7901 = vpack.c.bf16 %v7711, %v7710
        %v7902 = vpack.c.bf16 %v7713, %v7712
        %v7903 = vpack.c.bf16 %v7715, %v7714
        %v7904 = vpack.c.bf16 %v7716, %v7716
        %v7905 = vpack.c.bf16 %v7718, %v7717
        %v7906 = vpack.c.bf16 %v7720, %v7719
        %v7907 = vpack.c.bf16 %v7722, %v7721
        %v7908 = vpack.c.bf16 %v7724, %v7723
        %v7909 = vpack.c.bf16 %v7725, %v7725
        %v7910 = vpack.c.bf16 %v7727, %v7726
        %v7911 = vpack.c.bf16 %v7729, %v7728
        %v7912 = vpack.c.bf16 %v7731, %v7730
        %v7913 = vpack.c.bf16 %v7733, %v7732
        %v7914 = vpack.c.bf16 %v7734, %v7734
        %v7915 = vpack.c.bf16 %v7736, %v7735
        %v7916 = vpack.c.bf16 %v7738, %v7737
        %v7917 = vpack.c.bf16 %v7740, %v7739
        %v7918 = vpack.c.bf16 %v7742, %v7741
        %v7919 = vpack.c.bf16 %v7743, %v7743
        %v7920 = vpack.c.bf16 %v7745, %v7744
        %v7921 = vpack.c.bf16 %v7747, %v7746
        %v7922 = vpack.c.bf16 %v7749, %v7748
        %v7923 = vpack.c.bf16 %v7751, %v7750
        %v7924 = vpack.c.bf16 %v7752, %v7752
        %v7925 = vpack.c.bf16 %v7754, %v7753
        %v7926 = vpack.c.bf16 %v7756, %v7755
        %v7927 = vpack.c.bf16 %v7758, %v7757
        %v7928 = vpack.c.bf16 %v7760, %v7759
        %v7929 = vpack.c.bf16 %v7761, %v7761
        %v7930 = vpack.c.bf16 %v7763, %v7762
        %v7931 = vpack.c.bf16 %v7765, %v7764
        %v7932 = vpack.c.bf16 %v7767, %v7766
        %v7933 = vpack.c.bf16 %v7769, %v7768
        %v7934 = vpack.c.bf16 %v7770, %v7770
        %v7935 = vpack.c.bf16 %v7772, %v7771
        %v7936 = vpack.c.bf16 %v7774, %v7773
        %v7937 = vpack.c.bf16 %v7776, %v7775
        %v7938 = vpack.c.bf16 %v7778, %v7777
        %v7939 = vpack.c.bf16 %v7779, %v7779
        %7940 = vst [vmem:[#allocation2] sm:$0xff] %v7780
        %7941 = vst [vmem:[#allocation2 + $0x8] sm:$0xff] %v7781
        %7942 = vst [vmem:[#allocation2 + $0x10] sm:$0xff] %v7782
        %7943 = vst [vmem:[#allocation2 + $0x18] sm:$0xff] %v7783
        %7944 = vst [vmem:[#allocation2 + $0x20] sm:$0xf] %v7784
        %7945 = vst [vmem:[#allocation2 + $0x24] sm:$0xff] %v7785
        %7946 = vst [vmem:[#allocation2 + $0x2c] sm:$0xff] %v7786
        %7947 = vst [vmem:[#allocation2 + $0x34] sm:$0xff] %v7787
        %7948 = vst [vmem:[#allocation2 + $0x3c] sm:$0xff] %v7788
        %7949 = vst [vmem:[#allocation2 + $0x44] sm:$0xf] %v7789
        %7950 = vst [vmem:[#allocation2 + $0x48] sm:$0xff] %v7790
        %7951 = vst [vmem:[#allocation2 + $0x50] sm:$0xff] %v7791
        %7952 = vst [vmem:[#allocation2 + $0x58] sm:$0xff] %v7792
        %7953 = vst [vmem:[#allocation2 + $0x60] sm:$0xff] %v7793
        %7954 = vst [vmem:[#allocation2 + $0x68] sm:$0xf] %v7794
        %7955 = vst [vmem:[#allocation2 + $0x6c] sm:$0xff] %v7795
        %7956 = vst [vmem:[#allocation2 + $0x74] sm:$0xff] %v7796
        %7957 = vst [vmem:[#allocation2 + $0x7c] sm:$0xff] %v7797
        %7958 = vst [vmem:[#allocation2 + $0x84] sm:$0xff] %v7798
        %7959 = vst [vmem:[#allocation2 + $0x8c] sm:$0xf] %v7799
        %7960 = vst [vmem:[#allocation2 + $0x90] sm:$0xff] %v7800
        %7961 = vst [vmem:[#allocation2 + $0x98] sm:$0xff] %v7801
        %7962 = vst [vmem:[#allocation2 + $0xa0] sm:$0xff] %v7802
        %7963 = vst [vmem:[#allocation2 + $0xa8] sm:$0xff] %v7803
        %7964 = vst [vmem:[#allocation2 + $0xb0] sm:$0xf] %v7804
        %7965 = vst [vmem:[#allocation2 + $0xb4] sm:$0xff] %v7805
        %7966 = vst [vmem:[#allocation2 + $0xbc] sm:$0xff] %v7806
        %7967 = vst [vmem:[#allocation2 + $0xc4] sm:$0xff] %v7807
        %7968 = vst [vmem:[#allocation2 + $0xcc] sm:$0xff] %v7808
        %7969 = vst [vmem:[#allocation2 + $0xd4] sm:$0xf] %v7809
        %7970 = vst [vmem:[#allocation2 + $0xd8] sm:$0xff] %v7810
        %7971 = vst [vmem:[#allocation2 + $0xe0] sm:$0xff] %v7811
        %7972 = vst [vmem:[#allocation2 + $0xe8] sm:$0xff] %v7812
        %7973 = vst [vmem:[#allocation2 + $0xf0] sm:$0xff] %v7813
        %7974 = vst [vmem:[#allocation2 + $0xf8] sm:$0xf] %v7814
        %7975 = vst [vmem:[#allocation2 + $0xfc] sm:$0xff] %v7815
        %7976 = vst [vmem:[#allocation2 + $0x104] sm:$0xff] %v7816
        %7977 = vst [vmem:[#allocation2 + $0x10c] sm:$0xff] %v7817
        %7978 = vst [vmem:[#allocation2 + $0x114] sm:$0xff] %v7818
        %7979 = vst [vmem:[#allocation2 + $0x11c] sm:$0xf] %v7819
        %7980 = vst [vmem:[#allocation2 + $0x120] sm:$0xff] %v7820
        %7981 = vst [vmem:[#allocation2 + $0x128] sm:$0xff] %v7821
        %7982 = vst [vmem:[#allocation2 + $0x130] sm:$0xff] %v7822
        %7983 = vst [vmem:[#allocation2 + $0x138] sm:$0xff] %v7823
        %7984 = vst [vmem:[#allocation2 + $0x140] sm:$0xf] %v7824
        %7985 = vst [vmem:[#allocation2 + $0x144] sm:$0xff] %v7825
        %7986 = vst [vmem:[#allocation2 + $0x14c] sm:$0xff] %v7826
        %7987 = vst [vmem:[#allocation2 + $0x154] sm:$0xff] %v7827
        %7988 = vst [vmem:[#allocation2 + $0x15c] sm:$0xff] %v7828
        %7989 = vst [vmem:[#allocation2 + $0x164] sm:$0xf] %v7829
        %7990 = vst [vmem:[#allocation2 + $0x168] sm:$0xff] %v7830
        %7991 = vst [vmem:[#allocation2 + $0x170] sm:$0xff] %v7831
        %7992 = vst [vmem:[#allocation2 + $0x178] sm:$0xff] %v7832
        %7993 = vst [vmem:[#allocation2 + $0x180] sm:$0xff] %v7833
        %7994 = vst [vmem:[#allocation2 + $0x188] sm:$0xf] %v7834
        %7995 = vst [vmem:[#allocation2 + $0x18c] sm:$0xff] %v7835
        %7996 = vst [vmem:[#allocation2 + $0x194] sm:$0xff] %v7836
        %7997 = vst [vmem:[#allocation2 + $0x19c] sm:$0xff] %v7837
        %7998 = vst [vmem:[#allocation2 + $0x1a4] sm:$0xff] %v7838
        %7999 = vst [vmem:[#allocation2 + $0x1ac] sm:$0xf] %v7839
        %8000 = vst [vmem:[#allocation2 + $0x1b0] sm:$0xff] %v7840
        %8001 = vst [vmem:[#allocation2 + $0x1b8] sm:$0xff] %v7841
        %8002 = vst [vmem:[#allocation2 + $0x1c0] sm:$0xff] %v7842
        %8003 = vst [vmem:[#allocation2 + $0x1c8] sm:$0xff] %v7843
        %8004 = vst [vmem:[#allocation2 + $0x1d0] sm:$0xf] %v7844
        %8005 = vst [vmem:[#allocation2 + $0x1d4] sm:$0xff] %v7845
        %8006 = vst [vmem:[#allocation2 + $0x1dc] sm:$0xff] %v7846
        %8007 = vst [vmem:[#allocation2 + $0x1e4] sm:$0xff] %v7847
        %8008 = vst [vmem:[#allocation2 + $0x1ec] sm:$0xff] %v7848
        %8009 = vst [vmem:[#allocation2 + $0x1f4] sm:$0xf] %v7849
        %8010 = vst [vmem:[#allocation2 + $0x1f8] sm:$0xff] %v7850
        %8011 = vst [vmem:[#allocation2 + $0x200] sm:$0xff] %v7851
        %8012 = vst [vmem:[#allocation2 + $0x208] sm:$0xff] %v7852
        %8013 = vst [vmem:[#allocation2 + $0x210] sm:$0xff] %v7853
        %8014 = vst [vmem:[#allocation2 + $0x218] sm:$0xf] %v7854
        %8015 = vst [vmem:[#allocation2 + $0x21c] sm:$0xff] %v7855
        %8016 = vst [vmem:[#allocation2 + $0x224] sm:$0xff] %v7856
        %8017 = vst [vmem:[#allocation2 + $0x22c] sm:$0xff] %v7857
        %8018 = vst [vmem:[#allocation2 + $0x234] sm:$0xff] %v7858
        %8019 = vst [vmem:[#allocation2 + $0x23c] sm:$0xf] %v7859
        %8020 = vst [vmem:[#allocation2 + $0x240] sm:$0xff] %v7860
        %8021 = vst [vmem:[#allocation2 + $0x248] sm:$0xff] %v7861
        %8022 = vst [vmem:[#allocation2 + $0x250] sm:$0xff] %v7862
        %8023 = vst [vmem:[#allocation2 + $0x258] sm:$0xff] %v7863
        %8024 = vst [vmem:[#allocation2 + $0x260] sm:$0xf] %v7864
        %8025 = vst [vmem:[#allocation2 + $0x264] sm:$0xff] %v7865
        %8026 = vst [vmem:[#allocation2 + $0x26c] sm:$0xff] %v7866
        %8027 = vst [vmem:[#allocation2 + $0x274] sm:$0xff] %v7867
        %8028 = vst [vmem:[#allocation2 + $0x27c] sm:$0xff] %v7868
        %8029 = vst [vmem:[#allocation2 + $0x284] sm:$0xf] %v7869
        %8030 = vst [vmem:[#allocation2 + $0x288] sm:$0xff] %v7870
        %8031 = vst [vmem:[#allocation2 + $0x290] sm:$0xff] %v7871
        %8032 = vst [vmem:[#allocation2 + $0x298] sm:$0xff] %v7872
        %8033 = vst [vmem:[#allocation2 + $0x2a0] sm:$0xff] %v7873
        %8034 = vst [vmem:[#allocation2 + $0x2a8] sm:$0xf] %v7874
        %8035 = vst [vmem:[#allocation2 + $0x2ac] sm:$0xff] %v7875
        %8036 = vst [vmem:[#allocation2 + $0x2b4] sm:$0xff] %v7876
        %8037 = vst [vmem:[#allocation2 + $0x2bc] sm:$0xff] %v7877
        %8038 = vst [vmem:[#allocation2 + $0x2c4] sm:$0xff] %v7878
        %8039 = vst [vmem:[#allocation2 + $0x2cc] sm:$0xf] %v7879
        %8040 = vst [vmem:[#allocation2 + $0x2d0] sm:$0xff] %v7880
        %8041 = vst [vmem:[#allocation2 + $0x2d8] sm:$0xff] %v7881
        %8042 = vst [vmem:[#allocation2 + $0x2e0] sm:$0xff] %v7882
        %8043 = vst [vmem:[#allocation2 + $0x2e8] sm:$0xff] %v7883
        %8044 = vst [vmem:[#allocation2 + $0x2f0] sm:$0xf] %v7884
        %8045 = vst [vmem:[#allocation2 + $0x2f4] sm:$0xff] %v7885
        %8046 = vst [vmem:[#allocation2 + $0x2fc] sm:$0xff] %v7886
        %8047 = vst [vmem:[#allocation2 + $0x304] sm:$0xff] %v7887
        %8048 = vst [vmem:[#allocation2 + $0x30c] sm:$0xff] %v7888
        %8049 = vst [vmem:[#allocation2 + $0x314] sm:$0xf] %v7889
        %8050 = vst [vmem:[#allocation2 + $0x318] sm:$0xff] %v7890
        %8051 = vst [vmem:[#allocation2 + $0x320] sm:$0xff] %v7891
        %8052 = vst [vmem:[#allocation2 + $0x328] sm:$0xff] %v7892
        %8053 = vst [vmem:[#allocation2 + $0x330] sm:$0xff] %v7893
        %8054 = vst [vmem:[#allocation2 + $0x338] sm:$0xf] %v7894
        %8055 = vst [vmem:[#allocation2 + $0x33c] sm:$0xff] %v7895
        %8056 = vst [vmem:[#allocation2 + $0x344] sm:$0xff] %v7896
        %8057 = vst [vmem:[#allocation2 + $0x34c] sm:$0xff] %v7897
        %8058 = vst [vmem:[#allocation2 + $0x354] sm:$0xff] %v7898
        %8059 = vst [vmem:[#allocation2 + $0x35c] sm:$0xf] %v7899
        %8060 = vst [vmem:[#allocation2 + $0x360] sm:$0xff] %v7900
        %8061 = vst [vmem:[#allocation2 + $0x368] sm:$0xff] %v7901
        %8062 = vst [vmem:[#allocation2 + $0x370] sm:$0xff] %v7902
        %8063 = vst [vmem:[#allocation2 + $0x378] sm:$0xff] %v7903
        %8064 = vst [vmem:[#allocation2 + $0x380] sm:$0xf] %v7904
        %8065 = vst [vmem:[#allocation2 + $0x384] sm:$0xff] %v7905
        %8066 = vst [vmem:[#allocation2 + $0x38c] sm:$0xff] %v7906
        %8067 = vst [vmem:[#allocation2 + $0x394] sm:$0xff] %v7907
        %8068 = vst [vmem:[#allocation2 + $0x39c] sm:$0xff] %v7908
        %8069 = vst [vmem:[#allocation2 + $0x3a4] sm:$0xf] %v7909
        %8070 = vst [vmem:[#allocation2 + $0x3a8] sm:$0xff] %v7910
        %8071 = vst [vmem:[#allocation2 + $0x3b0] sm:$0xff] %v7911
        %8072 = vst [vmem:[#allocation2 + $0x3b8] sm:$0xff] %v7912
        %8073 = vst [vmem:[#allocation2 + $0x3c0] sm:$0xff] %v7913
        %8074 = vst [vmem:[#allocation2 + $0x3c8] sm:$0xf] %v7914
        %8075 = vst [vmem:[#allocation2 + $0x3cc] sm:$0xff] %v7915
        %8076 = vst [vmem:[#allocation2 + $0x3d4] sm:$0xff] %v7916
        %8077 = vst [vmem:[#allocation2 + $0x3dc] sm:$0xff] %v7917
        %8078 = vst [vmem:[#allocation2 + $0x3e4] sm:$0xff] %v7918
        %8079 = vst [vmem:[#allocation2 + $0x3ec] sm:$0xf] %v7919
        %8080 = vst [vmem:[#allocation2 + $0x3f0] sm:$0xff] %v7920
        %8081 = vst [vmem:[#allocation2 + $0x3f8] sm:$0xff] %v7921
        %8082 = vst [vmem:[#allocation2 + $0x400] sm:$0xff] %v7922
        %8083 = vst [vmem:[#allocation2 + $0x408] sm:$0xff] %v7923
        %8084 = vst [vmem:[#allocation2 + $0x410] sm:$0xf] %v7924
        %8085 = vst [vmem:[#allocation2 + $0x414] sm:$0xff] %v7925
        %8086 = vst [vmem:[#allocation2 + $0x41c] sm:$0xff] %v7926
        %8087 = vst [vmem:[#allocation2 + $0x424] sm:$0xff] %v7927
        %8088 = vst [vmem:[#allocation2 + $0x42c] sm:$0xff] %v7928
        %8089 = vst [vmem:[#allocation2 + $0x434] sm:$0xf] %v7929
        %8090 = vst [vmem:[#allocation2 + $0x438] sm:$0xff] %v7930
        %8091 = vst [vmem:[#allocation2 + $0x440] sm:$0xff] %v7931
        %8092 = vst [vmem:[#allocation2 + $0x448] sm:$0xff] %v7932
        %8093 = vst [vmem:[#allocation2 + $0x450] sm:$0xff] %v7933
        %8094 = vst [vmem:[#allocation2 + $0x458] sm:$0xf] %v7934
        %8095 = vst [vmem:[#allocation2 + $0x45c] sm:$0xff] %v7935
        %8096 = vst [vmem:[#allocation2 + $0x464] sm:$0xff] %v7936
        %8097 = vst [vmem:[#allocation2 + $0x46c] sm:$0xff] %v7937
        %8098 = vst [vmem:[#allocation2 + $0x474] sm:$0xff] %v7938
        %8099 = vst [vmem:[#allocation2 + $0x47c] sm:$0xf] %v7939
        %v8100 = vld [vmem:[#allocation2] sm:$0xff]
        %v8101 = vld [vmem:[#allocation2 + $0x8] sm:$0xff]
        %v8102 = vld [vmem:[#allocation2 + $0x10] sm:$0xff]
        %v8103 = vld [vmem:[#allocation2 + $0x18] sm:$0xff]
        %v8104 = vld [vmem:[#allocation2 + $0x20] sm:$0xf]
        %v8105 = vld [vmem:[#allocation2 + $0x24] sm:$0xff]
        %v8106 = vld [vmem:[#allocation2 + $0x2c] sm:$0xff]
        %v8107 = vld [vmem:[#allocation2 + $0x34] sm:$0xff]
        %v8108 = vld [vmem:[#allocation2 + $0x3c] sm:$0xff]
        %v8109 = vld [vmem:[#allocation2 + $0x44] sm:$0xf]
        %v8110 = vld [vmem:[#allocation2 + $0x48] sm:$0xff]
        %v8111 = vld [vmem:[#allocation2 + $0x50] sm:$0xff]
        %v8112 = vld [vmem:[#allocation2 + $0x58] sm:$0xff]
        %v8113 = vld [vmem:[#allocation2 + $0x60] sm:$0xff]
        %v8114 = vld [vmem:[#allocation2 + $0x68] sm:$0xf]
        %v8115 = vld [vmem:[#allocation2 + $0x6c] sm:$0xff]
        %v8116 = vld [vmem:[#allocation2 + $0x74] sm:$0xff]
        %v8117 = vld [vmem:[#allocation2 + $0x7c] sm:$0xff]
        %v8118 = vld [vmem:[#allocation2 + $0x84] sm:$0xff]
        %v8119 = vld [vmem:[#allocation2 + $0x8c] sm:$0xf]
        %v8120 = vld [vmem:[#allocation2 + $0x90] sm:$0xff]
        %v8121 = vld [vmem:[#allocation2 + $0x98] sm:$0xff]
        %v8122 = vld [vmem:[#allocation2 + $0xa0] sm:$0xff]
        %v8123 = vld [vmem:[#allocation2 + $0xa8] sm:$0xff]
        %v8124 = vld [vmem:[#allocation2 + $0xb0] sm:$0xf]
        %v8125 = vld [vmem:[#allocation2 + $0xb4] sm:$0xff]
        %v8126 = vld [vmem:[#allocation2 + $0xbc] sm:$0xff]
        %v8127 = vld [vmem:[#allocation2 + $0xc4] sm:$0xff]
        %v8128 = vld [vmem:[#allocation2 + $0xcc] sm:$0xff]
        %v8129 = vld [vmem:[#allocation2 + $0xd4] sm:$0xf]
        %v8130 = vld [vmem:[#allocation2 + $0xd8] sm:$0xff]
        %v8131 = vld [vmem:[#allocation2 + $0xe0] sm:$0xff]
        %v8132 = vld [vmem:[#allocation2 + $0xe8] sm:$0xff]
        %v8133 = vld [vmem:[#allocation2 + $0xf0] sm:$0xff]
        %v8134 = vld [vmem:[#allocation2 + $0xf8] sm:$0xf]
        %v8135 = vld [vmem:[#allocation2 + $0xfc] sm:$0xff]
        %v8136 = vld [vmem:[#allocation2 + $0x104] sm:$0xff]
        %v8137 = vld [vmem:[#allocation2 + $0x10c] sm:$0xff]
        %v8138 = vld [vmem:[#allocation2 + $0x114] sm:$0xff]
        %v8139 = vld [vmem:[#allocation2 + $0x11c] sm:$0xf]
        %v8140 = vld [vmem:[#allocation2 + $0x120] sm:$0xff]
        %v8141 = vld [vmem:[#allocation2 + $0x128] sm:$0xff]
        %v8142 = vld [vmem:[#allocation2 + $0x130] sm:$0xff]
        %v8143 = vld [vmem:[#allocation2 + $0x138] sm:$0xff]
        %v8144 = vld [vmem:[#allocation2 + $0x140] sm:$0xf]
        %v8145 = vld [vmem:[#allocation2 + $0x144] sm:$0xff]
        %v8146 = vld [vmem:[#allocation2 + $0x14c] sm:$0xff]
        %v8147 = vld [vmem:[#allocation2 + $0x154] sm:$0xff]
        %v8148 = vld [vmem:[#allocation2 + $0x15c] sm:$0xff]
        %v8149 = vld [vmem:[#allocation2 + $0x164] sm:$0xf]
        %v8150 = vld [vmem:[#allocation2 + $0x168] sm:$0xff]
        %v8151 = vld [vmem:[#allocation2 + $0x170] sm:$0xff]
        %v8152 = vld [vmem:[#allocation2 + $0x178] sm:$0xff]
        %v8153 = vld [vmem:[#allocation2 + $0x180] sm:$0xff]
        %v8154 = vld [vmem:[#allocation2 + $0x188] sm:$0xf]
        %v8155 = vld [vmem:[#allocation2 + $0x18c] sm:$0xff]
        %v8156 = vld [vmem:[#allocation2 + $0x194] sm:$0xff]
        %v8157 = vld [vmem:[#allocation2 + $0x19c] sm:$0xff]
        %v8158 = vld [vmem:[#allocation2 + $0x1a4] sm:$0xff]
        %v8159 = vld [vmem:[#allocation2 + $0x1ac] sm:$0xf]
        %v8160 = vld [vmem:[#allocation2 + $0x1b0] sm:$0xff]
        %v8161 = vld [vmem:[#allocation2 + $0x1b8] sm:$0xff]
        %v8162 = vld [vmem:[#allocation2 + $0x1c0] sm:$0xff]
        %v8163 = vld [vmem:[#allocation2 + $0x1c8] sm:$0xff]
        %v8164 = vld [vmem:[#allocation2 + $0x1d0] sm:$0xf]
        %v8165 = vld [vmem:[#allocation2 + $0x1d4] sm:$0xff]
        %v8166 = vld [vmem:[#allocation2 + $0x1dc] sm:$0xff]
        %v8167 = vld [vmem:[#allocation2 + $0x1e4] sm:$0xff]
        %v8168 = vld [vmem:[#allocation2 + $0x1ec] sm:$0xff]
        %v8169 = vld [vmem:[#allocation2 + $0x1f4] sm:$0xf]
        %v8170 = vld [vmem:[#allocation2 + $0x1f8] sm:$0xff]
        %v8171 = vld [vmem:[#allocation2 + $0x200] sm:$0xff]
        %v8172 = vld [vmem:[#allocation2 + $0x208] sm:$0xff]
        %v8173 = vld [vmem:[#allocation2 + $0x210] sm:$0xff]
        %v8174 = vld [vmem:[#allocation2 + $0x218] sm:$0xf]
        %v8175 = vld [vmem:[#allocation2 + $0x21c] sm:$0xff]
        %v8176 = vld [vmem:[#allocation2 + $0x224] sm:$0xff]
        %v8177 = vld [vmem:[#allocation2 + $0x22c] sm:$0xff]
        %v8178 = vld [vmem:[#allocation2 + $0x234] sm:$0xff]
        %v8179 = vld [vmem:[#allocation2 + $0x23c] sm:$0xf]
        %v8180 = vld [vmem:[#allocation2 + $0x240] sm:$0xff]
        %v8181 = vld [vmem:[#allocation2 + $0x248] sm:$0xff]
        %v8182 = vld [vmem:[#allocation2 + $0x250] sm:$0xff]
        %v8183 = vld [vmem:[#allocation2 + $0x258] sm:$0xff]
        %v8184 = vld [vmem:[#allocation2 + $0x260] sm:$0xf]
        %v8185 = vld [vmem:[#allocation2 + $0x264] sm:$0xff]
        %v8186 = vld [vmem:[#allocation2 + $0x26c] sm:$0xff]
        %v8187 = vld [vmem:[#allocation2 + $0x274] sm:$0xff]
        %v8188 = vld [vmem:[#allocation2 + $0x27c] sm:$0xff]
        %v8189 = vld [vmem:[#allocation2 + $0x284] sm:$0xf]
        %v8190 = vld [vmem:[#allocation2 + $0x288] sm:$0xff]
        %v8191 = vld [vmem:[#allocation2 + $0x290] sm:$0xff]
        %v8192 = vld [vmem:[#allocation2 + $0x298] sm:$0xff]
        %v8193 = vld [vmem:[#allocation2 + $0x2a0] sm:$0xff]
        %v8194 = vld [vmem:[#allocation2 + $0x2a8] sm:$0xf]
        %v8195 = vld [vmem:[#allocation2 + $0x2ac] sm:$0xff]
        %v8196 = vld [vmem:[#allocation2 + $0x2b4] sm:$0xff]
        %v8197 = vld [vmem:[#allocation2 + $0x2bc] sm:$0xff]
        %v8198 = vld [vmem:[#allocation2 + $0x2c4] sm:$0xff]
        %v8199 = vld [vmem:[#allocation2 + $0x2cc] sm:$0xf]
        %v8200 = vld [vmem:[#allocation2 + $0x2d0] sm:$0xff]
        %v8201 = vld [vmem:[#allocation2 + $0x2d8] sm:$0xff]
        %v8202 = vld [vmem:[#allocation2 + $0x2e0] sm:$0xff]
        %v8203 = vld [vmem:[#allocation2 + $0x2e8] sm:$0xff]
        %v8204 = vld [vmem:[#allocation2 + $0x2f0] sm:$0xf]
        %v8205 = vld [vmem:[#allocation2 + $0x2f4] sm:$0xff]
        %v8206 = vld [vmem:[#allocation2 + $0x2fc] sm:$0xff]
        %v8207 = vld [vmem:[#allocation2 + $0x304] sm:$0xff]
        %v8208 = vld [vmem:[#allocation2 + $0x30c] sm:$0xff]
        %v8209 = vld [vmem:[#allocation2 + $0x314] sm:$0xf]
        %v8210 = vld [vmem:[#allocation2 + $0x318] sm:$0xff]
        %v8211 = vld [vmem:[#allocation2 + $0x320] sm:$0xff]
        %v8212 = vld [vmem:[#allocation2 + $0x328] sm:$0xff]
        %v8213 = vld [vmem:[#allocation2 + $0x330] sm:$0xff]
        %v8214 = vld [vmem:[#allocation2 + $0x338] sm:$0xf]
        %v8215 = vld [vmem:[#allocation2 + $0x33c] sm:$0xff]
        %v8216 = vld [vmem:[#allocation2 + $0x344] sm:$0xff]
        %v8217 = vld [vmem:[#allocation2 + $0x34c] sm:$0xff]
        %v8218 = vld [vmem:[#allocation2 + $0x354] sm:$0xff]
        %v8219 = vld [vmem:[#allocation2 + $0x35c] sm:$0xf]
        %v8220 = vld [vmem:[#allocation2 + $0x360] sm:$0xff]
        %v8221 = vld [vmem:[#allocation2 + $0x368] sm:$0xff]
        %v8222 = vld [vmem:[#allocation2 + $0x370] sm:$0xff]
        %v8223 = vld [vmem:[#allocation2 + $0x378] sm:$0xff]
        %v8224 = vld [vmem:[#allocation2 + $0x380] sm:$0xf]
        %v8225 = vld [vmem:[#allocation2 + $0x384] sm:$0xff]
        %v8226 = vld [vmem:[#allocation2 + $0x38c] sm:$0xff]
        %v8227 = vld [vmem:[#allocation2 + $0x394] sm:$0xff]
        %v8228 = vld [vmem:[#allocation2 + $0x39c] sm:$0xff]
        %v8229 = vld [vmem:[#allocation2 + $0x3a4] sm:$0xf]
        %v8230 = vld [vmem:[#allocation2 + $0x3a8] sm:$0xff]
        %v8231 = vld [vmem:[#allocation2 + $0x3b0] sm:$0xff]
        %v8232 = vld [vmem:[#allocation2 + $0x3b8] sm:$0xff]
        %v8233 = vld [vmem:[#allocation2 + $0x3c0] sm:$0xff]
        %v8234 = vld [vmem:[#allocation2 + $0x3c8] sm:$0xf]
        %v8235 = vld [vmem:[#allocation2 + $0x3cc] sm:$0xff]
        %v8236 = vld [vmem:[#allocation2 + $0x3d4] sm:$0xff]
        %v8237 = vld [vmem:[#allocation2 + $0x3dc] sm:$0xff]
        %v8238 = vld [vmem:[#allocation2 + $0x3e4] sm:$0xff]
        %v8239 = vld [vmem:[#allocation2 + $0x3ec] sm:$0xf]
        %v8240 = vld [vmem:[#allocation2 + $0x3f0] sm:$0xff]
        %v8241 = vld [vmem:[#allocation2 + $0x3f8] sm:$0xff]
        %v8242 = vld [vmem:[#allocation2 + $0x400] sm:$0xff]
        %v8243 = vld [vmem:[#allocation2 + $0x408] sm:$0xff]
        %v8244 = vld [vmem:[#allocation2 + $0x410] sm:$0xf]
        %v8245 = vld [vmem:[#allocation2 + $0x414] sm:$0xff]
        %v8246 = vld [vmem:[#allocation2 + $0x41c] sm:$0xff]
        %v8247 = vld [vmem:[#allocation2 + $0x424] sm:$0xff]
        %v8248 = vld [vmem:[#allocation2 + $0x42c] sm:$0xff]
        %v8249 = vld [vmem:[#allocation2 + $0x434] sm:$0xf]
        %v8250 = vld [vmem:[#allocation2 + $0x438] sm:$0xff]
        %v8251 = vld [vmem:[#allocation2 + $0x440] sm:$0xff]
        %v8252 = vld [vmem:[#allocation2 + $0x448] sm:$0xff]
        %v8253 = vld [vmem:[#allocation2 + $0x450] sm:$0xff]
        %v8254 = vld [vmem:[#allocation2 + $0x458] sm:$0xf]
        %v8255 = vld [vmem:[#allocation2 + $0x45c] sm:$0xff]
        %v8256 = vld [vmem:[#allocation2 + $0x464] sm:$0xff]
        %v8257 = vld [vmem:[#allocation2 + $0x46c] sm:$0xff]
        %v8258 = vld [vmem:[#allocation2 + $0x474] sm:$0xff]
        %v8259 = vld [vmem:[#allocation2 + $0x47c] sm:$0xf]
        %v8260 = vld [vmem:[#allocation9] sm:$0xf]
        %v8261 = vld [vmem:[#allocation9 + $0x4] sm:$0xf]
        %v8262 = vld [vmem:[#allocation9 + $0x8] sm:$0xf]
        %v8263 = vld [vmem:[#allocation9 + $0xc] sm:$0xf]
        %v8264 = vld [vmem:[#allocation9 + $0x10] sm:$0xf]
        %v8265 = vld [vmem:[#allocation9 + $0x14] sm:$0xf]
        %v8266 = vld [vmem:[#allocation9 + $0x18] sm:$0xf]
        %v8267 = vld [vmem:[#allocation9 + $0x1c] sm:$0xf]
        %v8268 = vld [vmem:[#allocation9 + $0x20] sm:$0xf]
        %v8269 = vld [vmem:[#allocation9 + $0x24] sm:$0xf]
        %v8270 = vld [vmem:[#allocation9 + $0x28] sm:$0xf]
        %v8271 = vld [vmem:[#allocation9 + $0x2c] sm:$0xf]
        %v8272 = vld [vmem:[#allocation9 + $0x30] sm:$0xf]
        %v8273 = vld [vmem:[#allocation9 + $0x34] sm:$0xf]
        %v8274 = vld [vmem:[#allocation9 + $0x38] sm:$0xf]
        %v8275 = vld [vmem:[#allocation9 + $0x3c] sm:$0xf]
        %v8276 = vld [vmem:[#allocation9 + $0x40] sm:$0xf]
        %v8277 = vld [vmem:[#allocation9 + $0x44] sm:$0xf]
        %v8278 = vld [vmem:[#allocation9 + $0x48] sm:$0xf]
        %v8279 = vld [vmem:[#allocation9 + $0x4c] sm:$0xf]
        %v8280 = vld [vmem:[#allocation9 + $0x50] sm:$0xf]
        %v8281 = vld [vmem:[#allocation9 + $0x54] sm:$0xf]
        %v8282 = vld [vmem:[#allocation9 + $0x58] sm:$0xf]
        %v8283 = vld [vmem:[#allocation9 + $0x5c] sm:$0xf]
        %v8284 = vld [vmem:[#allocation9 + $0x60] sm:$0xf]
        %v8285 = vld [vmem:[#allocation9 + $0x64] sm:$0xf]
        %v8286 = vld [vmem:[#allocation9 + $0x68] sm:$0xf]
        %v8287 = vld [vmem:[#allocation9 + $0x6c] sm:$0xf]
        %v8288 = vld [vmem:[#allocation9 + $0x70] sm:$0xf]
        %v8289 = vld [vmem:[#allocation9 + $0x74] sm:$0xf]
        %v8290 = vld [vmem:[#allocation9 + $0x78] sm:$0xf]
        %v8291 = vld [vmem:[#allocation9 + $0x7c] sm:$0xf]
        %v8292 = vld [vmem:[#allocation9 + $0x80] sm:$0xf]
        %v8293 = vld [vmem:[#allocation9 + $0x84] sm:$0xf]
        %v8294 = vld [vmem:[#allocation9 + $0x88] sm:$0xf]
        %v8295 = vld [vmem:[#allocation9 + $0x8c] sm:$0xf]
        %v8296 = vld [vmem:[#allocation9 + $0x90] sm:$0xf]
        %v8297 = vld [vmem:[#allocation9 + $0x94] sm:$0xf]
        %v8298 = vld [vmem:[#allocation9 + $0x98] sm:$0xf]
        %v8299 = vld [vmem:[#allocation9 + $0x9c] sm:$0xf]
        %v8300 = vld [vmem:[#allocation9 + $0xa0] sm:$0xf]
        %v8301 = vld [vmem:[#allocation9 + $0xa4] sm:$0xf]
        %v8302 = vld [vmem:[#allocation9 + $0xa8] sm:$0xf]
        %v8303 = vld [vmem:[#allocation9 + $0xac] sm:$0xf]
        %v8304 = vld [vmem:[#allocation9 + $0xb0] sm:$0xf]
        %v8305 = vld [vmem:[#allocation9 + $0xb4] sm:$0xf]
        %v8306 = vld [vmem:[#allocation9 + $0xb8] sm:$0xf]
        %v8307 = vld [vmem:[#allocation9 + $0xbc] sm:$0xf]
        %v8308 = vld [vmem:[#allocation9 + $0xc0] sm:$0xf]
        %v8309 = vld [vmem:[#allocation9 + $0xc4] sm:$0xf]
        %v8310 = vld [vmem:[#allocation9 + $0xc8] sm:$0xf]
        %v8311 = vld [vmem:[#allocation9 + $0xcc] sm:$0xf]
        %v8312 = vld [vmem:[#allocation9 + $0xd0] sm:$0xf]
        %v8313 = vld [vmem:[#allocation9 + $0xd4] sm:$0xf]
        %v8314 = vld [vmem:[#allocation9 + $0xd8] sm:$0xf]
        %v8315 = vld [vmem:[#allocation9 + $0xdc] sm:$0xf]
        %v8316 = vld [vmem:[#allocation9 + $0xe0] sm:$0xf]
        %v8317 = vld [vmem:[#allocation9 + $0xe4] sm:$0xf]
        %v8318 = vld [vmem:[#allocation9 + $0xe8] sm:$0xf]
        %v8319 = vld [vmem:[#allocation9 + $0xec] sm:$0xf]
        %v8320 = vld [vmem:[#allocation9 + $0xf0] sm:$0xf]
        %v8321 = vld [vmem:[#allocation9 + $0xf4] sm:$0xf]
        %v8322 = vld [vmem:[#allocation9 + $0xf8] sm:$0xf]
        %v8323 = vld [vmem:[#allocation9 + $0xfc] sm:$0xf]
        %v8324 = vld [vmem:[#allocation9 + $0x100] sm:$0xf]
        %v8325 = vld [vmem:[#allocation9 + $0x104] sm:$0xf]
        %v8326 = vld [vmem:[#allocation9 + $0x108] sm:$0xf]
        %v8327 = vld [vmem:[#allocation9 + $0x10c] sm:$0xf]
        %v8328 = vld [vmem:[#allocation9 + $0x110] sm:$0xf]
        %v8329 = vld [vmem:[#allocation9 + $0x114] sm:$0xf]
        %v8330 = vld [vmem:[#allocation9 + $0x118] sm:$0xf]
        %v8331 = vld [vmem:[#allocation9 + $0x11c] sm:$0xf]
        %v8332 = vld [vmem:[#allocation9 + $0x120] sm:$0xf]
        %v8333 = vld [vmem:[#allocation9 + $0x124] sm:$0xf]
        %v8334 = vld [vmem:[#allocation9 + $0x128] sm:$0xf]
        %v8335 = vld [vmem:[#allocation9 + $0x12c] sm:$0xf]
        %v8336 = vld [vmem:[#allocation9 + $0x130] sm:$0xf]
        %v8337 = vld [vmem:[#allocation9 + $0x134] sm:$0xf]
        %v8338 = vld [vmem:[#allocation9 + $0x138] sm:$0xf]
        %v8339 = vld [vmem:[#allocation9 + $0x13c] sm:$0xf]
        %v8340 = vld [vmem:[#allocation9 + $0x140] sm:$0xf]
        %v8341 = vld [vmem:[#allocation9 + $0x144] sm:$0xf]
        %v8342 = vld [vmem:[#allocation9 + $0x148] sm:$0xf]
        %v8343 = vld [vmem:[#allocation9 + $0x14c] sm:$0xf]
        %v8344 = vld [vmem:[#allocation9 + $0x150] sm:$0xf]
        %v8345 = vld [vmem:[#allocation9 + $0x154] sm:$0xf]
        %v8346 = vld [vmem:[#allocation9 + $0x158] sm:$0xf]
        %v8347 = vld [vmem:[#allocation9 + $0x15c] sm:$0xf]
        %v8348 = vld [vmem:[#allocation9 + $0x160] sm:$0xf]
        %v8349 = vld [vmem:[#allocation9 + $0x164] sm:$0xf]
        %v8350 = vld [vmem:[#allocation9 + $0x168] sm:$0xf]
        %v8351 = vld [vmem:[#allocation9 + $0x16c] sm:$0xf]
        %v8352 = vld [vmem:[#allocation9 + $0x170] sm:$0xf]
        %v8353 = vld [vmem:[#allocation9 + $0x174] sm:$0xf]
        %v8354 = vld [vmem:[#allocation9 + $0x178] sm:$0xf]
        %v8355 = vld [vmem:[#allocation9 + $0x17c] sm:$0xf]
        %v8356 = vld [vmem:[#allocation9 + $0x180] sm:$0xf]
        %v8357 = vld [vmem:[#allocation9 + $0x184] sm:$0xf]
        %v8358 = vld [vmem:[#allocation9 + $0x188] sm:$0xf]
        %v8359 = vld [vmem:[#allocation9 + $0x18c] sm:$0xf]
        %v8360 = vld [vmem:[#allocation9 + $0x190] sm:$0xf]
        %v8361 = vld [vmem:[#allocation9 + $0x194] sm:$0xf]
        %v8362 = vld [vmem:[#allocation9 + $0x198] sm:$0xf]
        %v8363 = vld [vmem:[#allocation9 + $0x19c] sm:$0xf]
        %v8364 = vld [vmem:[#allocation9 + $0x1a0] sm:$0xf]
        %v8365 = vld [vmem:[#allocation9 + $0x1a4] sm:$0xf]
        %v8366 = vld [vmem:[#allocation9 + $0x1a8] sm:$0xf]
        %v8367 = vld [vmem:[#allocation9 + $0x1ac] sm:$0xf]
        %v8368 = vld [vmem:[#allocation9 + $0x1b0] sm:$0xf]
        %v8369 = vld [vmem:[#allocation9 + $0x1b4] sm:$0xf]
        %v8370 = vld [vmem:[#allocation9 + $0x1b8] sm:$0xf]
        %v8371 = vld [vmem:[#allocation9 + $0x1bc] sm:$0xf]
        %v8372 = vld [vmem:[#allocation9 + $0x1c0] sm:$0xf]
        %v8373 = vld [vmem:[#allocation9 + $0x1c4] sm:$0xf]
        %v8374 = vld [vmem:[#allocation9 + $0x1c8] sm:$0xf]
        %v8375 = vld [vmem:[#allocation9 + $0x1cc] sm:$0xf]
        %v8376 = vld [vmem:[#allocation9 + $0x1d0] sm:$0xf]
        %v8377 = vld [vmem:[#allocation9 + $0x1d4] sm:$0xf]
        %v8378 = vld [vmem:[#allocation9 + $0x1d8] sm:$0xf]
        %v8379 = vld [vmem:[#allocation9 + $0x1dc] sm:$0xf]
        %v8380 = vld [vmem:[#allocation9 + $0x1e0] sm:$0xf]
        %v8381 = vld [vmem:[#allocation9 + $0x1e4] sm:$0xf]
        %v8382 = vld [vmem:[#allocation9 + $0x1e8] sm:$0xf]
        %v8383 = vld [vmem:[#allocation9 + $0x1ec] sm:$0xf]
        %v8384 = vld [vmem:[#allocation9 + $0x1f0] sm:$0xf]
        %v8385 = vld [vmem:[#allocation9 + $0x1f4] sm:$0xf]
        %v8386 = vld [vmem:[#allocation9 + $0x1f8] sm:$0xf]
        %v8387 = vld [vmem:[#allocation9 + $0x1fc] sm:$0xf]
        %v8388 = vld [vmem:[#allocation9 + $0x200] sm:$0xf]
        %v8389 = vld [vmem:[#allocation9 + $0x204] sm:$0xf]
        %v8390 = vld [vmem:[#allocation9 + $0x208] sm:$0xf]
        %v8391 = vld [vmem:[#allocation9 + $0x20c] sm:$0xf]
        %v8392 = vld [vmem:[#allocation9 + $0x210] sm:$0xf]
        %v8393 = vld [vmem:[#allocation9 + $0x214] sm:$0xf]
        %v8394 = vld [vmem:[#allocation9 + $0x218] sm:$0xf]
        %v8395 = vld [vmem:[#allocation9 + $0x21c] sm:$0xf]
        %v8396 = vld [vmem:[#allocation9 + $0x220] sm:$0xf]
        %v8397 = vld [vmem:[#allocation9 + $0x224] sm:$0xf]
        %v8398 = vld [vmem:[#allocation9 + $0x228] sm:$0xf]
        %v8399 = vld [vmem:[#allocation9 + $0x22c] sm:$0xf]
        %v8400 = vld [vmem:[#allocation9 + $0x230] sm:$0xf]
        %v8401 = vld [vmem:[#allocation9 + $0x234] sm:$0xf]
        %v8402 = vld [vmem:[#allocation9 + $0x238] sm:$0xf]
        %v8403 = vld [vmem:[#allocation9 + $0x23c] sm:$0xf]
        %v8404 = vld [vmem:[%s12] sm:$0x1]
        %v8406 = vperm.slane %v8404, 0
        %v8568 = vunpack.c.l.b16 %v8100
        %v8569 = vunpack.c.h.b16 %v8100
        %v8570 = vunpack.c.l.b16 %v8101
        %v8571 = vunpack.c.h.b16 %v8101
        %v8572 = vunpack.c.l.b16 %v8102
        %v8573 = vunpack.c.h.b16 %v8102
        %v8574 = vunpack.c.l.b16 %v8103
        %v8575 = vunpack.c.h.b16 %v8103
        %v8576 = vunpack.c.l.b16 %v8104
        %v8577 = vunpack.c.l.b16 %v8105
        %v8578 = vunpack.c.h.b16 %v8105
        %v8579 = vunpack.c.l.b16 %v8106
        %v8580 = vunpack.c.h.b16 %v8106
        %v8581 = vunpack.c.l.b16 %v8107
        %v8582 = vunpack.c.h.b16 %v8107
        %v8583 = vunpack.c.l.b16 %v8108
        %v8584 = vunpack.c.h.b16 %v8108
        %v8585 = vunpack.c.l.b16 %v8109
        %v8586 = vunpack.c.l.b16 %v8110
        %v8587 = vunpack.c.h.b16 %v8110
        %v8588 = vunpack.c.l.b16 %v8111
        %v8589 = vunpack.c.h.b16 %v8111
        %v8590 = vunpack.c.l.b16 %v8112
        %v8591 = vunpack.c.h.b16 %v8112
        %v8592 = vunpack.c.l.b16 %v8113
        %v8593 = vunpack.c.h.b16 %v8113
        %v8594 = vunpack.c.l.b16 %v8114
        %v8595 = vunpack.c.l.b16 %v8115
        %v8596 = vunpack.c.h.b16 %v8115
        %v8597 = vunpack.c.l.b16 %v8116
        %v8598 = vunpack.c.h.b16 %v8116
        %v8599 = vunpack.c.l.b16 %v8117
        %v8600 = vunpack.c.h.b16 %v8117
        %v8601 = vunpack.c.l.b16 %v8118
        %v8602 = vunpack.c.h.b16 %v8118
        %v8603 = vunpack.c.l.b16 %v8119
        %v8604 = vunpack.c.l.b16 %v8120
        %v8605 = vunpack.c.h.b16 %v8120
        %v8606 = vunpack.c.l.b16 %v8121
        %v8607 = vunpack.c.h.b16 %v8121
        %v8608 = vunpack.c.l.b16 %v8122
        %v8609 = vunpack.c.h.b16 %v8122
        %v8610 = vunpack.c.l.b16 %v8123
        %v8611 = vunpack.c.h.b16 %v8123
        %v8612 = vunpack.c.l.b16 %v8124
        %v8613 = vunpack.c.l.b16 %v8125
        %v8614 = vunpack.c.h.b16 %v8125
        %v8615 = vunpack.c.l.b16 %v8126
        %v8616 = vunpack.c.h.b16 %v8126
        %v8617 = vunpack.c.l.b16 %v8127
        %v8618 = vunpack.c.h.b16 %v8127
        %v8619 = vunpack.c.l.b16 %v8128
        %v8620 = vunpack.c.h.b16 %v8128
        %v8621 = vunpack.c.l.b16 %v8129
        %v8622 = vunpack.c.l.b16 %v8130
        %v8623 = vunpack.c.h.b16 %v8130
        %v8624 = vunpack.c.l.b16 %v8131
        %v8625 = vunpack.c.h.b16 %v8131
        %v8626 = vunpack.c.l.b16 %v8132
        %v8627 = vunpack.c.h.b16 %v8132
        %v8628 = vunpack.c.l.b16 %v8133
        %v8629 = vunpack.c.h.b16 %v8133
        %v8630 = vunpack.c.l.b16 %v8134
        %v8631 = vunpack.c.l.b16 %v8135
        %v8632 = vunpack.c.h.b16 %v8135
        %v8633 = vunpack.c.l.b16 %v8136
        %v8634 = vunpack.c.h.b16 %v8136
        %v8635 = vunpack.c.l.b16 %v8137
        %v8636 = vunpack.c.h.b16 %v8137
        %v8637 = vunpack.c.l.b16 %v8138
        %v8638 = vunpack.c.h.b16 %v8138
        %v8639 = vunpack.c.l.b16 %v8139
        %v8640 = vunpack.c.l.b16 %v8140
        %v8641 = vunpack.c.h.b16 %v8140
        %v8642 = vunpack.c.l.b16 %v8141
        %v8643 = vunpack.c.h.b16 %v8141
        %v8644 = vunpack.c.l.b16 %v8142
        %v8645 = vunpack.c.h.b16 %v8142
        %v8646 = vunpack.c.l.b16 %v8143
        %v8647 = vunpack.c.h.b16 %v8143
        %v8648 = vunpack.c.l.b16 %v8144
        %v8649 = vunpack.c.l.b16 %v8145
        %v8650 = vunpack.c.h.b16 %v8145
        %v8651 = vunpack.c.l.b16 %v8146
        %v8652 = vunpack.c.h.b16 %v8146
        %v8653 = vunpack.c.l.b16 %v8147
        %v8654 = vunpack.c.h.b16 %v8147
        %v8655 = vunpack.c.l.b16 %v8148
        %v8656 = vunpack.c.h.b16 %v8148
        %v8657 = vunpack.c.l.b16 %v8149
        %v8658 = vunpack.c.l.b16 %v8150
        %v8659 = vunpack.c.h.b16 %v8150
        %v8660 = vunpack.c.l.b16 %v8151
        %v8661 = vunpack.c.h.b16 %v8151
        %v8662 = vunpack.c.l.b16 %v8152
        %v8663 = vunpack.c.h.b16 %v8152
        %v8664 = vunpack.c.l.b16 %v8153
        %v8665 = vunpack.c.h.b16 %v8153
        %v8666 = vunpack.c.l.b16 %v8154
        %v8667 = vunpack.c.l.b16 %v8155
        %v8668 = vunpack.c.h.b16 %v8155
        %v8669 = vunpack.c.l.b16 %v8156
        %v8670 = vunpack.c.h.b16 %v8156
        %v8671 = vunpack.c.l.b16 %v8157
        %v8672 = vunpack.c.h.b16 %v8157
        %v8673 = vunpack.c.l.b16 %v8158
        %v8674 = vunpack.c.h.b16 %v8158
        %v8675 = vunpack.c.l.b16 %v8159
        %v8676 = vunpack.c.l.b16 %v8160
        %v8677 = vunpack.c.h.b16 %v8160
        %v8678 = vunpack.c.l.b16 %v8161
        %v8679 = vunpack.c.h.b16 %v8161
        %v8680 = vunpack.c.l.b16 %v8162
        %v8681 = vunpack.c.h.b16 %v8162
        %v8682 = vunpack.c.l.b16 %v8163
        %v8683 = vunpack.c.h.b16 %v8163
        %v8684 = vunpack.c.l.b16 %v8164
        %v8685 = vunpack.c.l.b16 %v8165
        %v8686 = vunpack.c.h.b16 %v8165
        %v8687 = vunpack.c.l.b16 %v8166
        %v8688 = vunpack.c.h.b16 %v8166
        %v8689 = vunpack.c.l.b16 %v8167
        %v8690 = vunpack.c.h.b16 %v8167
        %v8691 = vunpack.c.l.b16 %v8168
        %v8692 = vunpack.c.h.b16 %v8168
        %v8693 = vunpack.c.l.b16 %v8169
        %v8694 = vunpack.c.l.b16 %v8170
        %v8695 = vunpack.c.h.b16 %v8170
        %v8696 = vunpack.c.l.b16 %v8171
        %v8697 = vunpack.c.h.b16 %v8171
        %v8698 = vunpack.c.l.b16 %v8172
        %v8699 = vunpack.c.h.b16 %v8172
        %v8700 = vunpack.c.l.b16 %v8173
        %v8701 = vunpack.c.h.b16 %v8173
        %v8702 = vunpack.c.l.b16 %v8174
        %v8703 = vunpack.c.l.b16 %v8175
        %v8704 = vunpack.c.h.b16 %v8175
        %v8705 = vunpack.c.l.b16 %v8176
        %v8706 = vunpack.c.h.b16 %v8176
        %v8707 = vunpack.c.l.b16 %v8177
        %v8708 = vunpack.c.h.b16 %v8177
        %v8709 = vunpack.c.l.b16 %v8178
        %v8710 = vunpack.c.h.b16 %v8178
        %v8711 = vunpack.c.l.b16 %v8179
        %v8712 = vunpack.c.l.b16 %v8180
        %v8713 = vunpack.c.h.b16 %v8180
        %v8714 = vunpack.c.l.b16 %v8181
        %v8715 = vunpack.c.h.b16 %v8181
        %v8716 = vunpack.c.l.b16 %v8182
        %v8717 = vunpack.c.h.b16 %v8182
        %v8718 = vunpack.c.l.b16 %v8183
        %v8719 = vunpack.c.h.b16 %v8183
        %v8720 = vunpack.c.l.b16 %v8184
        %v8721 = vunpack.c.l.b16 %v8185
        %v8722 = vunpack.c.h.b16 %v8185
        %v8723 = vunpack.c.l.b16 %v8186
        %v8724 = vunpack.c.h.b16 %v8186
        %v8725 = vunpack.c.l.b16 %v8187
        %v8726 = vunpack.c.h.b16 %v8187
        %v8727 = vunpack.c.l.b16 %v8188
        %v8728 = vunpack.c.h.b16 %v8188
        %v8729 = vunpack.c.l.b16 %v8189
        %v8730 = vunpack.c.l.b16 %v8190
        %v8731 = vunpack.c.h.b16 %v8190
        %v8732 = vunpack.c.l.b16 %v8191
        %v8733 = vunpack.c.h.b16 %v8191
        %v8734 = vunpack.c.l.b16 %v8192
        %v8735 = vunpack.c.h.b16 %v8192
        %v8736 = vunpack.c.l.b16 %v8193
        %v8737 = vunpack.c.h.b16 %v8193
        %v8738 = vunpack.c.l.b16 %v8194
        %v8739 = vunpack.c.l.b16 %v8195
        %v8740 = vunpack.c.h.b16 %v8195
        %v8741 = vunpack.c.l.b16 %v8196
        %v8742 = vunpack.c.h.b16 %v8196
        %v8743 = vunpack.c.l.b16 %v8197
        %v8744 = vunpack.c.h.b16 %v8197
        %v8745 = vunpack.c.l.b16 %v8198
        %v8746 = vunpack.c.h.b16 %v8198
        %v8747 = vunpack.c.l.b16 %v8199
        %v8748 = vunpack.c.l.b16 %v8200
        %v8749 = vunpack.c.h.b16 %v8200
        %v8750 = vunpack.c.l.b16 %v8201
        %v8751 = vunpack.c.h.b16 %v8201
        %v8752 = vunpack.c.l.b16 %v8202
        %v8753 = vunpack.c.h.b16 %v8202
        %v8754 = vunpack.c.l.b16 %v8203
        %v8755 = vunpack.c.h.b16 %v8203
        %v8756 = vunpack.c.l.b16 %v8204
        %v8757 = vunpack.c.l.b16 %v8205
        %v8758 = vunpack.c.h.b16 %v8205
        %v8759 = vunpack.c.l.b16 %v8206
        %v8760 = vunpack.c.h.b16 %v8206
        %v8761 = vunpack.c.l.b16 %v8207
        %v8762 = vunpack.c.h.b16 %v8207
        %v8763 = vunpack.c.l.b16 %v8208
        %v8764 = vunpack.c.h.b16 %v8208
        %v8765 = vunpack.c.l.b16 %v8209
        %v8766 = vunpack.c.l.b16 %v8210
        %v8767 = vunpack.c.h.b16 %v8210
        %v8768 = vunpack.c.l.b16 %v8211
        %v8769 = vunpack.c.h.b16 %v8211
        %v8770 = vunpack.c.l.b16 %v8212
        %v8771 = vunpack.c.h.b16 %v8212
        %v8772 = vunpack.c.l.b16 %v8213
        %v8773 = vunpack.c.h.b16 %v8213
        %v8774 = vunpack.c.l.b16 %v8214
        %v8775 = vunpack.c.l.b16 %v8215
        %v8776 = vunpack.c.h.b16 %v8215
        %v8777 = vunpack.c.l.b16 %v8216
        %v8778 = vunpack.c.h.b16 %v8216
        %v8779 = vunpack.c.l.b16 %v8217
        %v8780 = vunpack.c.h.b16 %v8217
        %v8781 = vunpack.c.l.b16 %v8218
        %v8782 = vunpack.c.h.b16 %v8218
        %v8783 = vunpack.c.l.b16 %v8219
        %v8784 = vunpack.c.l.b16 %v8220
        %v8785 = vunpack.c.h.b16 %v8220
        %v8786 = vunpack.c.l.b16 %v8221
        %v8787 = vunpack.c.h.b16 %v8221
        %v8788 = vunpack.c.l.b16 %v8222
        %v8789 = vunpack.c.h.b16 %v8222
        %v8790 = vunpack.c.l.b16 %v8223
        %v8791 = vunpack.c.h.b16 %v8223
        %v8792 = vunpack.c.l.b16 %v8224
        %v8793 = vunpack.c.l.b16 %v8225
        %v8794 = vunpack.c.h.b16 %v8225
        %v8795 = vunpack.c.l.b16 %v8226
        %v8796 = vunpack.c.h.b16 %v8226
        %v8797 = vunpack.c.l.b16 %v8227
        %v8798 = vunpack.c.h.b16 %v8227
        %v8799 = vunpack.c.l.b16 %v8228
        %v8800 = vunpack.c.h.b16 %v8228
        %v8801 = vunpack.c.l.b16 %v8229
        %v8802 = vunpack.c.l.b16 %v8230
        %v8803 = vunpack.c.h.b16 %v8230
        %v8804 = vunpack.c.l.b16 %v8231
        %v8805 = vunpack.c.h.b16 %v8231
        %v8806 = vunpack.c.l.b16 %v8232
        %v8807 = vunpack.c.h.b16 %v8232
        %v8808 = vunpack.c.l.b16 %v8233
        %v8809 = vunpack.c.h.b16 %v8233
        %v8810 = vunpack.c.l.b16 %v8234
        %v8811 = vunpack.c.l.b16 %v8235
        %v8812 = vunpack.c.h.b16 %v8235
        %v8813 = vunpack.c.l.b16 %v8236
        %v8814 = vunpack.c.h.b16 %v8236
        %v8815 = vunpack.c.l.b16 %v8237
        %v8816 = vunpack.c.h.b16 %v8237
        %v8817 = vunpack.c.l.b16 %v8238
        %v8818 = vunpack.c.h.b16 %v8238
        %v8819 = vunpack.c.l.b16 %v8239
        %v8820 = vunpack.c.l.b16 %v8240
        %v8821 = vunpack.c.h.b16 %v8240
        %v8822 = vunpack.c.l.b16 %v8241
        %v8823 = vunpack.c.h.b16 %v8241
        %v8824 = vunpack.c.l.b16 %v8242
        %v8825 = vunpack.c.h.b16 %v8242
        %v8826 = vunpack.c.l.b16 %v8243
        %v8827 = vunpack.c.h.b16 %v8243
        %v8828 = vunpack.c.l.b16 %v8244
        %v8829 = vunpack.c.l.b16 %v8245
        %v8830 = vunpack.c.h.b16 %v8245
        %v8831 = vunpack.c.l.b16 %v8246
        %v8832 = vunpack.c.h.b16 %v8246
        %v8833 = vunpack.c.l.b16 %v8247
        %v8834 = vunpack.c.h.b16 %v8247
        %v8835 = vunpack.c.l.b16 %v8248
        %v8836 = vunpack.c.h.b16 %v8248
        %v8837 = vunpack.c.l.b16 %v8249
        %v8838 = vunpack.c.l.b16 %v8250
        %v8839 = vunpack.c.h.b16 %v8250
        %v8840 = vunpack.c.l.b16 %v8251
        %v8841 = vunpack.c.h.b16 %v8251
        %v8842 = vunpack.c.l.b16 %v8252
        %v8843 = vunpack.c.h.b16 %v8252
        %v8844 = vunpack.c.l.b16 %v8253
        %v8845 = vunpack.c.h.b16 %v8253
        %v8846 = vunpack.c.l.b16 %v8254
        %v8847 = vunpack.c.l.b16 %v8255
        %v8848 = vunpack.c.h.b16 %v8255
        %v8849 = vunpack.c.l.b16 %v8256
        %v8850 = vunpack.c.h.b16 %v8256
        %v8851 = vunpack.c.l.b16 %v8257
        %v8852 = vunpack.c.h.b16 %v8257
        %v8853 = vunpack.c.l.b16 %v8258
        %v8854 = vunpack.c.h.b16 %v8258
        %v8855 = vunpack.c.l.b16 %v8259
        %v8856 = vpack.c.b16 %v8577, %v8568
        %v8857 = vpack.c.b16 %v8578, %v8569
        %v8858 = vpack.c.b16 %v8579, %v8570
        %v8859 = vpack.c.b16 %v8580, %v8571
        %v8860 = vpack.c.b16 %v8581, %v8572
        %v8861 = vpack.c.b16 %v8582, %v8573
        %v8862 = vpack.c.b16 %v8583, %v8574
        %v8863 = vpack.c.b16 %v8584, %v8575
        %v8864 = vpack.c.b16 %v8585, %v8576
        %v8865 = vpack.c.b16 %v8595, %v8586
        %v8866 = vpack.c.b16 %v8596, %v8587
        %v8867 = vpack.c.b16 %v8597, %v8588
        %v8868 = vpack.c.b16 %v8598, %v8589
        %v8869 = vpack.c.b16 %v8599, %v8590
        %v8870 = vpack.c.b16 %v8600, %v8591
        %v8871 = vpack.c.b16 %v8601, %v8592
        %v8872 = vpack.c.b16 %v8602, %v8593
        %v8873 = vpack.c.b16 %v8603, %v8594
        %v8874 = vpack.c.b16 %v8613, %v8604
        %v8875 = vpack.c.b16 %v8614, %v8605
        %v8876 = vpack.c.b16 %v8615, %v8606
        %v8877 = vpack.c.b16 %v8616, %v8607
        %v8878 = vpack.c.b16 %v8617, %v8608
        %v8879 = vpack.c.b16 %v8618, %v8609
        %v8880 = vpack.c.b16 %v8619, %v8610
        %v8881 = vpack.c.b16 %v8620, %v8611
        %v8882 = vpack.c.b16 %v8621, %v8612
        %v8883 = vpack.c.b16 %v8631, %v8622
        %v8884 = vpack.c.b16 %v8632, %v8623
        %v8885 = vpack.c.b16 %v8633, %v8624
        %v8886 = vpack.c.b16 %v8634, %v8625
        %v8887 = vpack.c.b16 %v8635, %v8626
        %v8888 = vpack.c.b16 %v8636, %v8627
        %v8889 = vpack.c.b16 %v8637, %v8628
        %v8890 = vpack.c.b16 %v8638, %v8629
        %v8891 = vpack.c.b16 %v8639, %v8630
        %v8892 = vpack.c.b16 %v8649, %v8640
        %v8893 = vpack.c.b16 %v8650, %v8641
        %v8894 = vpack.c.b16 %v8651, %v8642
        %v8895 = vpack.c.b16 %v8652, %v8643
        %v8896 = vpack.c.b16 %v8653, %v8644
        %v8897 = vpack.c.b16 %v8654, %v8645
        %v8898 = vpack.c.b16 %v8655, %v8646
        %v8899 = vpack.c.b16 %v8656, %v8647
        %v8900 = vpack.c.b16 %v8657, %v8648
        %v8901 = vpack.c.b16 %v8667, %v8658
        %v8902 = vpack.c.b16 %v8668, %v8659
        %v8903 = vpack.c.b16 %v8669, %v8660
        %v8904 = vpack.c.b16 %v8670, %v8661
        %v8905 = vpack.c.b16 %v8671, %v8662
        %v8906 = vpack.c.b16 %v8672, %v8663
        %v8907 = vpack.c.b16 %v8673, %v8664
        %v8908 = vpack.c.b16 %v8674, %v8665
        %v8909 = vpack.c.b16 %v8675, %v8666
        %v8910 = vpack.c.b16 %v8685, %v8676
        %v8911 = vpack.c.b16 %v8686, %v8677
        %v8912 = vpack.c.b16 %v8687, %v8678
        %v8913 = vpack.c.b16 %v8688, %v8679
        %v8914 = vpack.c.b16 %v8689, %v8680
        %v8915 = vpack.c.b16 %v8690, %v8681
        %v8916 = vpack.c.b16 %v8691, %v8682
        %v8917 = vpack.c.b16 %v8692, %v8683
        %v8918 = vpack.c.b16 %v8693, %v8684
        %v8919 = vpack.c.b16 %v8703, %v8694
        %v8920 = vpack.c.b16 %v8704, %v8695
        %v8921 = vpack.c.b16 %v8705, %v8696
        %v8922 = vpack.c.b16 %v8706, %v8697
        %v8923 = vpack.c.b16 %v8707, %v8698
        %v8924 = vpack.c.b16 %v8708, %v8699
        %v8925 = vpack.c.b16 %v8709, %v8700
        %v8926 = vpack.c.b16 %v8710, %v8701
        %v8927 = vpack.c.b16 %v8711, %v8702
        %v8928 = vpack.c.b16 %v8721, %v8712
        %v8929 = vpack.c.b16 %v8722, %v8713
        %v8930 = vpack.c.b16 %v8723, %v8714
        %v8931 = vpack.c.b16 %v8724, %v8715
        %v8932 = vpack.c.b16 %v8725, %v8716
        %v8933 = vpack.c.b16 %v8726, %v8717
        %v8934 = vpack.c.b16 %v8727, %v8718
        %v8935 = vpack.c.b16 %v8728, %v8719
        %v8936 = vpack.c.b16 %v8729, %v8720
        %v8937 = vpack.c.b16 %v8739, %v8730
        %v8938 = vpack.c.b16 %v8740, %v8731
        %v8939 = vpack.c.b16 %v8741, %v8732
        %v8940 = vpack.c.b16 %v8742, %v8733
        %v8941 = vpack.c.b16 %v8743, %v8734
        %v8942 = vpack.c.b16 %v8744, %v8735
        %v8943 = vpack.c.b16 %v8745, %v8736
        %v8944 = vpack.c.b16 %v8746, %v8737
        %v8945 = vpack.c.b16 %v8747, %v8738
        %v8946 = vpack.c.b16 %v8757, %v8748
        %v8947 = vpack.c.b16 %v8758, %v8749
        %v8948 = vpack.c.b16 %v8759, %v8750
        %v8949 = vpack.c.b16 %v8760, %v8751
        %v8950 = vpack.c.b16 %v8761, %v8752
        %v8951 = vpack.c.b16 %v8762, %v8753
        %v8952 = vpack.c.b16 %v8763, %v8754
        %v8953 = vpack.c.b16 %v8764, %v8755
        %v8954 = vpack.c.b16 %v8765, %v8756
        %v8955 = vpack.c.b16 %v8775, %v8766
        %v8956 = vpack.c.b16 %v8776, %v8767
        %v8957 = vpack.c.b16 %v8777, %v8768
        %v8958 = vpack.c.b16 %v8778, %v8769
        %v8959 = vpack.c.b16 %v8779, %v8770
        %v8960 = vpack.c.b16 %v8780, %v8771
        %v8961 = vpack.c.b16 %v8781, %v8772
        %v8962 = vpack.c.b16 %v8782, %v8773
        %v8963 = vpack.c.b16 %v8783, %v8774
        %v8964 = vpack.c.b16 %v8793, %v8784
        %v8965 = vpack.c.b16 %v8794, %v8785
        %v8966 = vpack.c.b16 %v8795, %v8786
        %v8967 = vpack.c.b16 %v8796, %v8787
        %v8968 = vpack.c.b16 %v8797, %v8788
        %v8969 = vpack.c.b16 %v8798, %v8789
        %v8970 = vpack.c.b16 %v8799, %v8790
        %v8971 = vpack.c.b16 %v8800, %v8791
        %v8972 = vpack.c.b16 %v8801, %v8792
        %v8973 = vpack.c.b16 %v8811, %v8802
        %v8974 = vpack.c.b16 %v8812, %v8803
        %v8975 = vpack.c.b16 %v8813, %v8804
        %v8976 = vpack.c.b16 %v8814, %v8805
        %v8977 = vpack.c.b16 %v8815, %v8806
        %v8978 = vpack.c.b16 %v8816, %v8807
        %v8979 = vpack.c.b16 %v8817, %v8808
        %v8980 = vpack.c.b16 %v8818, %v8809
        %v8981 = vpack.c.b16 %v8819, %v8810
        %v8982 = vpack.c.b16 %v8829, %v8820
        %v8983 = vpack.c.b16 %v8830, %v8821
        %v8984 = vpack.c.b16 %v8831, %v8822
        %v8985 = vpack.c.b16 %v8832, %v8823
        %v8986 = vpack.c.b16 %v8833, %v8824
        %v8987 = vpack.c.b16 %v8834, %v8825
        %v8988 = vpack.c.b16 %v8835, %v8826
        %v8989 = vpack.c.b16 %v8836, %v8827
        %v8990 = vpack.c.b16 %v8837, %v8828
        %v8991 = vpack.c.b16 %v8847, %v8838
        %v8992 = vpack.c.b16 %v8848, %v8839
        %v8993 = vpack.c.b16 %v8849, %v8840
        %v8994 = vpack.c.b16 %v8850, %v8841
        %v8995 = vpack.c.b16 %v8851, %v8842
        %v8996 = vpack.c.b16 %v8852, %v8843
        %v8997 = vpack.c.b16 %v8853, %v8844
        %v8998 = vpack.c.b16 %v8854, %v8845
        %v8999 = vpack.c.b16 %v8855, %v8846
        %v9288 = vunpack.c.l.b16 %v8260
        %v9289 = vunpack.c.l.b16 %v8261
        %v9290 = vunpack.c.l.b16 %v8262
        %v9291 = vunpack.c.l.b16 %v8263
        %v9292 = vunpack.c.l.b16 %v8264
        %v9293 = vunpack.c.l.b16 %v8265
        %v9294 = vunpack.c.l.b16 %v8266
        %v9295 = vunpack.c.l.b16 %v8267
        %v9296 = vunpack.c.l.b16 %v8268
        %v9297 = vunpack.c.l.b16 %v8269
        %v9298 = vunpack.c.l.b16 %v8270
        %v9299 = vunpack.c.l.b16 %v8271
        %v9300 = vunpack.c.l.b16 %v8272
        %v9301 = vunpack.c.l.b16 %v8273
        %v9302 = vunpack.c.l.b16 %v8274
        %v9303 = vunpack.c.l.b16 %v8275
        %v9304 = vunpack.c.l.b16 %v8276
        %v9305 = vunpack.c.l.b16 %v8277
        %v9306 = vunpack.c.l.b16 %v8278
        %v9307 = vunpack.c.l.b16 %v8279
        %v9308 = vunpack.c.l.b16 %v8280
        %v9309 = vunpack.c.l.b16 %v8281
        %v9310 = vunpack.c.l.b16 %v8282
        %v9311 = vunpack.c.l.b16 %v8283
        %v9312 = vunpack.c.l.b16 %v8284
        %v9313 = vunpack.c.l.b16 %v8285
        %v9314 = vunpack.c.l.b16 %v8286
        %v9315 = vunpack.c.l.b16 %v8287
        %v9316 = vunpack.c.l.b16 %v8288
        %v9317 = vunpack.c.l.b16 %v8289
        %v9318 = vunpack.c.l.b16 %v8290
        %v9319 = vunpack.c.l.b16 %v8291
        %v9320 = vunpack.c.l.b16 %v8292
        %v9321 = vunpack.c.l.b16 %v8293
        %v9322 = vunpack.c.l.b16 %v8294
        %v9323 = vunpack.c.l.b16 %v8295
        %v9324 = vunpack.c.l.b16 %v8296
        %v9325 = vunpack.c.l.b16 %v8297
        %v9326 = vunpack.c.l.b16 %v8298
        %v9327 = vunpack.c.l.b16 %v8299
        %v9328 = vunpack.c.l.b16 %v8300
        %v9329 = vunpack.c.l.b16 %v8301
        %v9330 = vunpack.c.l.b16 %v8302
        %v9331 = vunpack.c.l.b16 %v8303
        %v9332 = vunpack.c.l.b16 %v8304
        %v9333 = vunpack.c.l.b16 %v8305
        %v9334 = vunpack.c.l.b16 %v8306
        %v9335 = vunpack.c.l.b16 %v8307
        %v9336 = vunpack.c.l.b16 %v8308
        %v9337 = vunpack.c.l.b16 %v8309
        %v9338 = vunpack.c.l.b16 %v8310
        %v9339 = vunpack.c.l.b16 %v8311
        %v9340 = vunpack.c.l.b16 %v8312
        %v9341 = vunpack.c.l.b16 %v8313
        %v9342 = vunpack.c.l.b16 %v8314
        %v9343 = vunpack.c.l.b16 %v8315
        %v9344 = vunpack.c.l.b16 %v8316
        %v9345 = vunpack.c.l.b16 %v8317
        %v9346 = vunpack.c.l.b16 %v8318
        %v9347 = vunpack.c.l.b16 %v8319
        %v9348 = vunpack.c.l.b16 %v8320
        %v9349 = vunpack.c.l.b16 %v8321
        %v9350 = vunpack.c.l.b16 %v8322
        %v9351 = vunpack.c.l.b16 %v8323
        %v9352 = vunpack.c.l.b16 %v8324
        %v9353 = vunpack.c.l.b16 %v8325
        %v9354 = vunpack.c.l.b16 %v8326
        %v9355 = vunpack.c.l.b16 %v8327
        %v9356 = vunpack.c.l.b16 %v8328
        %v9357 = vunpack.c.l.b16 %v8329
        %v9358 = vunpack.c.l.b16 %v8330
        %v9359 = vunpack.c.l.b16 %v8331
        %v9360 = vunpack.c.l.b16 %v8332
        %v9361 = vunpack.c.l.b16 %v8333
        %v9362 = vunpack.c.l.b16 %v8334
        %v9363 = vunpack.c.l.b16 %v8335
        %v9364 = vunpack.c.l.b16 %v8336
        %v9365 = vunpack.c.l.b16 %v8337
        %v9366 = vunpack.c.l.b16 %v8338
        %v9367 = vunpack.c.l.b16 %v8339
        %v9368 = vunpack.c.l.b16 %v8340
        %v9369 = vunpack.c.l.b16 %v8341
        %v9370 = vunpack.c.l.b16 %v8342
        %v9371 = vunpack.c.l.b16 %v8343
        %v9372 = vunpack.c.l.b16 %v8344
        %v9373 = vunpack.c.l.b16 %v8345
        %v9374 = vunpack.c.l.b16 %v8346
        %v9375 = vunpack.c.l.b16 %v8347
        %v9376 = vunpack.c.l.b16 %v8348
        %v9377 = vunpack.c.l.b16 %v8349
        %v9378 = vunpack.c.l.b16 %v8350
        %v9379 = vunpack.c.l.b16 %v8351
        %v9380 = vunpack.c.l.b16 %v8352
        %v9381 = vunpack.c.l.b16 %v8353
        %v9382 = vunpack.c.l.b16 %v8354
        %v9383 = vunpack.c.l.b16 %v8355
        %v9384 = vunpack.c.l.b16 %v8356
        %v9385 = vunpack.c.l.b16 %v8357
        %v9386 = vunpack.c.l.b16 %v8358
        %v9387 = vunpack.c.l.b16 %v8359
        %v9388 = vunpack.c.l.b16 %v8360
        %v9389 = vunpack.c.l.b16 %v8361
        %v9390 = vunpack.c.l.b16 %v8362
        %v9391 = vunpack.c.l.b16 %v8363
        %v9392 = vunpack.c.l.b16 %v8364
        %v9393 = vunpack.c.l.b16 %v8365
        %v9394 = vunpack.c.l.b16 %v8366
        %v9395 = vunpack.c.l.b16 %v8367
        %v9396 = vunpack.c.l.b16 %v8368
        %v9397 = vunpack.c.l.b16 %v8369
        %v9398 = vunpack.c.l.b16 %v8370
        %v9399 = vunpack.c.l.b16 %v8371
        %v9400 = vunpack.c.l.b16 %v8372
        %v9401 = vunpack.c.l.b16 %v8373
        %v9402 = vunpack.c.l.b16 %v8374
        %v9403 = vunpack.c.l.b16 %v8375
        %v9404 = vunpack.c.l.b16 %v8376
        %v9405 = vunpack.c.l.b16 %v8377
        %v9406 = vunpack.c.l.b16 %v8378
        %v9407 = vunpack.c.l.b16 %v8379
        %v9408 = vunpack.c.l.b16 %v8380
        %v9409 = vunpack.c.l.b16 %v8381
        %v9410 = vunpack.c.l.b16 %v8382
        %v9411 = vunpack.c.l.b16 %v8383
        %v9412 = vunpack.c.l.b16 %v8384
        %v9413 = vunpack.c.l.b16 %v8385
        %v9414 = vunpack.c.l.b16 %v8386
        %v9415 = vunpack.c.l.b16 %v8387
        %v9416 = vunpack.c.l.b16 %v8388
        %v9417 = vunpack.c.l.b16 %v8389
        %v9418 = vunpack.c.l.b16 %v8390
        %v9419 = vunpack.c.l.b16 %v8391
        %v9420 = vunpack.c.l.b16 %v8392
        %v9421 = vunpack.c.l.b16 %v8393
        %v9422 = vunpack.c.l.b16 %v8394
        %v9423 = vunpack.c.l.b16 %v8395
        %v9424 = vunpack.c.l.b16 %v8396
        %v9425 = vunpack.c.l.b16 %v8397
        %v9426 = vunpack.c.l.b16 %v8398
        %v9427 = vunpack.c.l.b16 %v8399
        %v9428 = vunpack.c.l.b16 %v8400
        %v9429 = vunpack.c.l.b16 %v8401
        %v9430 = vunpack.c.l.b16 %v8402
        %v9431 = vunpack.c.l.b16 %v8403
        %v9432 = vpack.c.b16 %v9289, %v9288
        %v9433 = vpack.c.b16 %v9291, %v9290
        %v9434 = vpack.c.b16 %v9293, %v9292
        %v9435 = vpack.c.b16 %v9295, %v9294
        %v9436 = vpack.c.b16 %v9297, %v9296
        %v9437 = vpack.c.b16 %v9299, %v9298
        %v9438 = vpack.c.b16 %v9301, %v9300
        %v9439 = vpack.c.b16 %v9303, %v9302
        %v9440 = vpack.c.b16 %v9305, %v9304
        %v9441 = vpack.c.b16 %v9307, %v9306
        %v9442 = vpack.c.b16 %v9309, %v9308
        %v9443 = vpack.c.b16 %v9311, %v9310
        %v9444 = vpack.c.b16 %v9313, %v9312
        %v9445 = vpack.c.b16 %v9315, %v9314
        %v9446 = vpack.c.b16 %v9317, %v9316
        %v9447 = vpack.c.b16 %v9319, %v9318
        %v9448 = vpack.c.b16 %v9321, %v9320
        %v9449 = vpack.c.b16 %v9323, %v9322
        %v9450 = vpack.c.b16 %v9325, %v9324
        %v9451 = vpack.c.b16 %v9327, %v9326
        %v9452 = vpack.c.b16 %v9329, %v9328
        %v9453 = vpack.c.b16 %v9331, %v9330
        %v9454 = vpack.c.b16 %v9333, %v9332
        %v9455 = vpack.c.b16 %v9335, %v9334
        %v9456 = vpack.c.b16 %v9337, %v9336
        %v9457 = vpack.c.b16 %v9339, %v9338
        %v9458 = vpack.c.b16 %v9341, %v9340
        %v9459 = vpack.c.b16 %v9343, %v9342
        %v9460 = vpack.c.b16 %v9345, %v9344
        %v9461 = vpack.c.b16 %v9347, %v9346
        %v9462 = vpack.c.b16 %v9349, %v9348
        %v9463 = vpack.c.b16 %v9351, %v9350
        %v9464 = vpack.c.b16 %v9353, %v9352
        %v9465 = vpack.c.b16 %v9355, %v9354
        %v9466 = vpack.c.b16 %v9357, %v9356
        %v9467 = vpack.c.b16 %v9359, %v9358
        %v9468 = vpack.c.b16 %v9361, %v9360
        %v9469 = vpack.c.b16 %v9363, %v9362
        %v9470 = vpack.c.b16 %v9365, %v9364
        %v9471 = vpack.c.b16 %v9367, %v9366
        %v9472 = vpack.c.b16 %v9369, %v9368
        %v9473 = vpack.c.b16 %v9371, %v9370
        %v9474 = vpack.c.b16 %v9373, %v9372
        %v9475 = vpack.c.b16 %v9375, %v9374
        %v9476 = vpack.c.b16 %v9377, %v9376
        %v9477 = vpack.c.b16 %v9379, %v9378
        %v9478 = vpack.c.b16 %v9381, %v9380
        %v9479 = vpack.c.b16 %v9383, %v9382
        %v9480 = vpack.c.b16 %v9385, %v9384
        %v9481 = vpack.c.b16 %v9387, %v9386
        %v9482 = vpack.c.b16 %v9389, %v9388
        %v9483 = vpack.c.b16 %v9391, %v9390
        %v9484 = vpack.c.b16 %v9393, %v9392
        %v9485 = vpack.c.b16 %v9395, %v9394
        %v9486 = vpack.c.b16 %v9397, %v9396
        %v9487 = vpack.c.b16 %v9399, %v9398
        %v9488 = vpack.c.b16 %v9401, %v9400
        %v9489 = vpack.c.b16 %v9403, %v9402
        %v9490 = vpack.c.b16 %v9405, %v9404
        %v9491 = vpack.c.b16 %v9407, %v9406
        %v9492 = vpack.c.b16 %v9409, %v9408
        %v9493 = vpack.c.b16 %v9411, %v9410
        %v9494 = vpack.c.b16 %v9413, %v9412
        %v9495 = vpack.c.b16 %v9415, %v9414
        %v9496 = vpack.c.b16 %v9417, %v9416
        %v9497 = vpack.c.b16 %v9419, %v9418
        %v9498 = vpack.c.b16 %v9421, %v9420
        %v9499 = vpack.c.b16 %v9423, %v9422
        %v9500 = vpack.c.b16 %v9425, %v9424
        %v9501 = vpack.c.b16 %v9427, %v9426
        %v9502 = vpack.c.b16 %v9429, %v9428
        %v9503 = vpack.c.b16 %v9431, %v9430
        %9576 = vmatpush.bf16.msra.mxu0 %v9439
        %9577 = vmatpush.bf16.msra.mxu0 %v9438
        %9578 = vmatpush.bf16.msra.mxu0 %v9437
        %9579 = vmatpush.bf16.msra.mxu0 %v9436
        %9580 = vmatpush.bf16.msra.mxu0 %v9435
        %9581 = vmatpush.bf16.msra.mxu0 %v9434
        %9582 = vmatpush.bf16.msra.mxu0 %v9433
        %9583 = vmatpush.bf16.msra.mxu0 %v9432
        %9584 = vmatmul.bf16.gmra.mxu0 %v8856
        %v9585 = vpop.f32.mrf.mxu0
        %v9586 = vadd.f32 %v8406, %v9585
        %v9587 = vpop.f32.mrf.mxu0
        %v9588 = vadd.f32 %v8406, %v9587
        %9589 = vmatmul.bf16.gmra.mxu0 %v8865
        %v9590 = vpop.f32.mrf.mxu0
        %v9591 = vadd.f32 %v8406, %v9590
        %v9592 = vpop.f32.mrf.mxu0
        %v9593 = vadd.f32 %v8406, %v9592
        %9594 = vmatmul.bf16.gmra.mxu0 %v8874
        %v9595 = vpop.f32.mrf.mxu0
        %v9596 = vadd.f32 %v8406, %v9595
        %v9597 = vpop.f32.mrf.mxu0
        %v9598 = vadd.f32 %v8406, %v9597
        %9599 = vmatmul.bf16.gmra.mxu0 %v8883
        %v9600 = vpop.f32.mrf.mxu0
        %v9601 = vadd.f32 %v8406, %v9600
        %v9602 = vpop.f32.mrf.mxu0
        %v9603 = vadd.f32 %v8406, %v9602
        %9604 = vmatmul.bf16.gmra.mxu0 %v8892
        %v9605 = vpop.f32.mrf.mxu0
        %v9606 = vadd.f32 %v8406, %v9605
        %v9607 = vpop.f32.mrf.mxu0
        %v9608 = vadd.f32 %v8406, %v9607
        %9609 = vmatmul.bf16.gmra.mxu0 %v8901
        %v9610 = vpop.f32.mrf.mxu0
        %v9611 = vadd.f32 %v8406, %v9610
        %v9612 = vpop.f32.mrf.mxu0
        %v9613 = vadd.f32 %v8406, %v9612
        %9614 = vmatmul.bf16.gmra.mxu0 %v8910
        %v9615 = vpop.f32.mrf.mxu0
        %v9616 = vadd.f32 %v8406, %v9615
        %v9617 = vpop.f32.mrf.mxu0
        %v9618 = vadd.f32 %v8406, %v9617
        %9619 = vmatmul.bf16.gmra.mxu0 %v8919
        %v9620 = vpop.f32.mrf.mxu0
        %v9621 = vadd.f32 %v8406, %v9620
        %v9622 = vpop.f32.mrf.mxu0
        %v9623 = vadd.f32 %v8406, %v9622
        %9624 = vmatmul.bf16.gmra.mxu0 %v8928
        %v9625 = vpop.f32.mrf.mxu0
        %v9626 = vadd.f32 %v8406, %v9625
        %v9627 = vpop.f32.mrf.mxu0
        %v9628 = vadd.f32 %v8406, %v9627
        %9629 = vmatmul.bf16.gmra.mxu0 %v8937
        %v9630 = vpop.f32.mrf.mxu0
        %v9631 = vadd.f32 %v8406, %v9630
        %v9632 = vpop.f32.mrf.mxu0
        %v9633 = vadd.f32 %v8406, %v9632
        %9634 = vmatmul.bf16.gmra.mxu0 %v8946
        %v9635 = vpop.f32.mrf.mxu0
        %v9636 = vadd.f32 %v8406, %v9635
        %v9637 = vpop.f32.mrf.mxu0
        %v9638 = vadd.f32 %v8406, %v9637
        %9639 = vmatmul.bf16.gmra.mxu0 %v8955
        %v9640 = vpop.f32.mrf.mxu0
        %v9641 = vadd.f32 %v8406, %v9640
        %v9642 = vpop.f32.mrf.mxu0
        %v9643 = vadd.f32 %v8406, %v9642
        %9644 = vmatmul.bf16.gmra.mxu0 %v8964
        %v9645 = vpop.f32.mrf.mxu0
        %v9646 = vadd.f32 %v8406, %v9645
        %v9647 = vpop.f32.mrf.mxu0
        %v9648 = vadd.f32 %v8406, %v9647
        %9649 = vmatmul.bf16.gmra.mxu0 %v8973
        %v9650 = vpop.f32.mrf.mxu0
        %v9651 = vadd.f32 %v8406, %v9650
        %v9652 = vpop.f32.mrf.mxu0
        %v9653 = vadd.f32 %v8406, %v9652
        %9654 = vmatmul.bf16.gmra.mxu0 %v8982
        %v9655 = vpop.f32.mrf.mxu0
        %v9656 = vadd.f32 %v8406, %v9655
        %v9657 = vpop.f32.mrf.mxu0
        %v9658 = vadd.f32 %v8406, %v9657
        %9659 = vmatmul.bf16.gmra.mxu0 %v8991
        %v9660 = vpop.f32.mrf.mxu0
        %v9661 = vadd.f32 %v8406, %v9660
        %v9662 = vpop.f32.mrf.mxu0
        %v9663 = vadd.f32 %v8406, %v9662
        %9664 = vdwg.mxu0
        %9665 = vmatpush.bf16.msra.mxu0 %v9447
        %9666 = vmatpush.bf16.msra.mxu0 %v9446
        %9667 = vmatpush.bf16.msra.mxu0 %v9445
        %9668 = vmatpush.bf16.msra.mxu0 %v9444
        %9669 = vmatpush.bf16.msra.mxu0 %v9443
        %9670 = vmatpush.bf16.msra.mxu0 %v9442
        %9671 = vmatpush.bf16.msra.mxu0 %v9441
        %9672 = vmatpush.bf16.msra.mxu0 %v9440
        %9673 = vmatmul.bf16.gmra.mxu0 %v8857
        %v9674 = vpop.f32.mrf.mxu0
        %v9675 = vadd.f32 %v9586, %v9674
        %v9676 = vpop.f32.mrf.mxu0
        %v9677 = vadd.f32 %v9588, %v9676
        %9678 = vmatmul.bf16.gmra.mxu0 %v8866
        %v9679 = vpop.f32.mrf.mxu0
        %v9680 = vadd.f32 %v9591, %v9679
        %v9681 = vpop.f32.mrf.mxu0
        %v9682 = vadd.f32 %v9593, %v9681
        %9683 = vmatmul.bf16.gmra.mxu0 %v8875
        %v9684 = vpop.f32.mrf.mxu0
        %v9685 = vadd.f32 %v9596, %v9684
        %v9686 = vpop.f32.mrf.mxu0
        %v9687 = vadd.f32 %v9598, %v9686
        %9688 = vmatmul.bf16.gmra.mxu0 %v8884
        %v9689 = vpop.f32.mrf.mxu0
        %v9690 = vadd.f32 %v9601, %v9689
        %v9691 = vpop.f32.mrf.mxu0
        %v9692 = vadd.f32 %v9603, %v9691
        %9693 = vmatmul.bf16.gmra.mxu0 %v8893
        %v9694 = vpop.f32.mrf.mxu0
        %v9695 = vadd.f32 %v9606, %v9694
        %v9696 = vpop.f32.mrf.mxu0
        %v9697 = vadd.f32 %v9608, %v9696
        %9698 = vmatmul.bf16.gmra.mxu0 %v8902
        %v9699 = vpop.f32.mrf.mxu0
        %v9700 = vadd.f32 %v9611, %v9699
        %v9701 = vpop.f32.mrf.mxu0
        %v9702 = vadd.f32 %v9613, %v9701
        %9703 = vmatmul.bf16.gmra.mxu0 %v8911
        %v9704 = vpop.f32.mrf.mxu0
        %v9705 = vadd.f32 %v9616, %v9704
        %v9706 = vpop.f32.mrf.mxu0
        %v9707 = vadd.f32 %v9618, %v9706
        %9708 = vmatmul.bf16.gmra.mxu0 %v8920
        %v9709 = vpop.f32.mrf.mxu0
        %v9710 = vadd.f32 %v9621, %v9709
        %v9711 = vpop.f32.mrf.mxu0
        %v9712 = vadd.f32 %v9623, %v9711
        %9713 = vmatmul.bf16.gmra.mxu0 %v8929
        %v9714 = vpop.f32.mrf.mxu0
        %v9715 = vadd.f32 %v9626, %v9714
        %v9716 = vpop.f32.mrf.mxu0
        %v9717 = vadd.f32 %v9628, %v9716
        %9718 = vmatmul.bf16.gmra.mxu0 %v8938
        %v9719 = vpop.f32.mrf.mxu0
        %v9720 = vadd.f32 %v9631, %v9719
        %v9721 = vpop.f32.mrf.mxu0
        %v9722 = vadd.f32 %v9633, %v9721
        %9723 = vmatmul.bf16.gmra.mxu0 %v8947
        %v9724 = vpop.f32.mrf.mxu0
        %v9725 = vadd.f32 %v9636, %v9724
        %v9726 = vpop.f32.mrf.mxu0
        %v9727 = vadd.f32 %v9638, %v9726
        %9728 = vmatmul.bf16.gmra.mxu0 %v8956
        %v9729 = vpop.f32.mrf.mxu0
        %v9730 = vadd.f32 %v9641, %v9729
        %v9731 = vpop.f32.mrf.mxu0
        %v9732 = vadd.f32 %v9643, %v9731
        %9733 = vmatmul.bf16.gmra.mxu0 %v8965
        %v9734 = vpop.f32.mrf.mxu0
        %v9735 = vadd.f32 %v9646, %v9734
        %v9736 = vpop.f32.mrf.mxu0
        %v9737 = vadd.f32 %v9648, %v9736
        %9738 = vmatmul.bf16.gmra.mxu0 %v8974
        %v9739 = vpop.f32.mrf.mxu0
        %v9740 = vadd.f32 %v9651, %v9739
        %v9741 = vpop.f32.mrf.mxu0
        %v9742 = vadd.f32 %v9653, %v9741
        %9743 = vmatmul.bf16.gmra.mxu0 %v8983
        %v9744 = vpop.f32.mrf.mxu0
        %v9745 = vadd.f32 %v9656, %v9744
        %v9746 = vpop.f32.mrf.mxu0
        %v9747 = vadd.f32 %v9658, %v9746
        %9748 = vmatmul.bf16.gmra.mxu0 %v8992
        %v9749 = vpop.f32.mrf.mxu0
        %v9750 = vadd.f32 %v9661, %v9749
        %v9751 = vpop.f32.mrf.mxu0
        %v9752 = vadd.f32 %v9663, %v9751
        %9753 = vdwg.mxu0
        %9754 = vmatpush.bf16.msra.mxu0 %v9455
        %9755 = vmatpush.bf16.msra.mxu0 %v9454
        %9756 = vmatpush.bf16.msra.mxu0 %v9453
        %9757 = vmatpush.bf16.msra.mxu0 %v9452
        %9758 = vmatpush.bf16.msra.mxu0 %v9451
        %9759 = vmatpush.bf16.msra.mxu0 %v9450
        %9760 = vmatpush.bf16.msra.mxu0 %v9449
        %9761 = vmatpush.bf16.msra.mxu0 %v9448
        %9762 = vmatmul.bf16.gmra.mxu0 %v8858
        %v9763 = vpop.f32.mrf.mxu0
        %v9764 = vadd.f32 %v9675, %v9763
        %v9765 = vpop.f32.mrf.mxu0
        %v9766 = vadd.f32 %v9677, %v9765
        %9767 = vmatmul.bf16.gmra.mxu0 %v8867
        %v9768 = vpop.f32.mrf.mxu0
        %v9769 = vadd.f32 %v9680, %v9768
        %v9770 = vpop.f32.mrf.mxu0
        %v9771 = vadd.f32 %v9682, %v9770
        %9772 = vmatmul.bf16.gmra.mxu0 %v8876
        %v9773 = vpop.f32.mrf.mxu0
        %v9774 = vadd.f32 %v9685, %v9773
        %v9775 = vpop.f32.mrf.mxu0
        %v9776 = vadd.f32 %v9687, %v9775
        %9777 = vmatmul.bf16.gmra.mxu0 %v8885
        %v9778 = vpop.f32.mrf.mxu0
        %v9779 = vadd.f32 %v9690, %v9778
        %v9780 = vpop.f32.mrf.mxu0
        %v9781 = vadd.f32 %v9692, %v9780
        %9782 = vmatmul.bf16.gmra.mxu0 %v8894
        %v9783 = vpop.f32.mrf.mxu0
        %v9784 = vadd.f32 %v9695, %v9783
        %v9785 = vpop.f32.mrf.mxu0
        %v9786 = vadd.f32 %v9697, %v9785
        %9787 = vmatmul.bf16.gmra.mxu0 %v8903
        %v9788 = vpop.f32.mrf.mxu0
        %v9789 = vadd.f32 %v9700, %v9788
        %v9790 = vpop.f32.mrf.mxu0
        %v9791 = vadd.f32 %v9702, %v9790
        %9792 = vmatmul.bf16.gmra.mxu0 %v8912
        %v9793 = vpop.f32.mrf.mxu0
        %v9794 = vadd.f32 %v9705, %v9793
        %v9795 = vpop.f32.mrf.mxu0
        %v9796 = vadd.f32 %v9707, %v9795
        %9797 = vmatmul.bf16.gmra.mxu0 %v8921
        %v9798 = vpop.f32.mrf.mxu0
        %v9799 = vadd.f32 %v9710, %v9798
        %v9800 = vpop.f32.mrf.mxu0
        %v9801 = vadd.f32 %v9712, %v9800
        %9802 = vmatmul.bf16.gmra.mxu0 %v8930
        %v9803 = vpop.f32.mrf.mxu0
        %v9804 = vadd.f32 %v9715, %v9803
        %v9805 = vpop.f32.mrf.mxu0
        %v9806 = vadd.f32 %v9717, %v9805
        %9807 = vmatmul.bf16.gmra.mxu0 %v8939
        %v9808 = vpop.f32.mrf.mxu0
        %v9809 = vadd.f32 %v9720, %v9808
        %v9810 = vpop.f32.mrf.mxu0
        %v9811 = vadd.f32 %v9722, %v9810
        %9812 = vmatmul.bf16.gmra.mxu0 %v8948
        %v9813 = vpop.f32.mrf.mxu0
        %v9814 = vadd.f32 %v9725, %v9813
        %v9815 = vpop.f32.mrf.mxu0
        %v9816 = vadd.f32 %v9727, %v9815
        %9817 = vmatmul.bf16.gmra.mxu0 %v8957
        %v9818 = vpop.f32.mrf.mxu0
        %v9819 = vadd.f32 %v9730, %v9818
        %v9820 = vpop.f32.mrf.mxu0
        %v9821 = vadd.f32 %v9732, %v9820
        %9822 = vmatmul.bf16.gmra.mxu0 %v8966
        %v9823 = vpop.f32.mrf.mxu0
        %v9824 = vadd.f32 %v9735, %v9823
        %v9825 = vpop.f32.mrf.mxu0
        %v9826 = vadd.f32 %v9737, %v9825
        %9827 = vmatmul.bf16.gmra.mxu0 %v8975
        %v9828 = vpop.f32.mrf.mxu0
        %v9829 = vadd.f32 %v9740, %v9828
        %v9830 = vpop.f32.mrf.mxu0
        %v9831 = vadd.f32 %v9742, %v9830
        %9832 = vmatmul.bf16.gmra.mxu0 %v8984
        %v9833 = vpop.f32.mrf.mxu0
        %v9834 = vadd.f32 %v9745, %v9833
        %v9835 = vpop.f32.mrf.mxu0
        %v9836 = vadd.f32 %v9747, %v9835
        %9837 = vmatmul.bf16.gmra.mxu0 %v8993
        %v9838 = vpop.f32.mrf.mxu0
        %v9839 = vadd.f32 %v9750, %v9838
        %v9840 = vpop.f32.mrf.mxu0
        %v9841 = vadd.f32 %v9752, %v9840
        %9842 = vdwg.mxu0
        %9843 = vmatpush.bf16.msra.mxu0 %v9463
        %9844 = vmatpush.bf16.msra.mxu0 %v9462
        %9845 = vmatpush.bf16.msra.mxu0 %v9461
        %9846 = vmatpush.bf16.msra.mxu0 %v9460
        %9847 = vmatpush.bf16.msra.mxu0 %v9459
        %9848 = vmatpush.bf16.msra.mxu0 %v9458
        %9849 = vmatpush.bf16.msra.mxu0 %v9457
        %9850 = vmatpush.bf16.msra.mxu0 %v9456
        %9851 = vmatmul.bf16.gmra.mxu0 %v8859
        %v9852 = vpop.f32.mrf.mxu0
        %v9853 = vadd.f32 %v9764, %v9852
        %v9854 = vpop.f32.mrf.mxu0
        %v9855 = vadd.f32 %v9766, %v9854
        %9856 = vmatmul.bf16.gmra.mxu0 %v8868
        %v9857 = vpop.f32.mrf.mxu0
        %v9858 = vadd.f32 %v9769, %v9857
        %v9859 = vpop.f32.mrf.mxu0
        %v9860 = vadd.f32 %v9771, %v9859
        %9861 = vmatmul.bf16.gmra.mxu0 %v8877
        %v9862 = vpop.f32.mrf.mxu0
        %v9863 = vadd.f32 %v9774, %v9862
        %v9864 = vpop.f32.mrf.mxu0
        %v9865 = vadd.f32 %v9776, %v9864
        %9866 = vmatmul.bf16.gmra.mxu0 %v8886
        %v9867 = vpop.f32.mrf.mxu0
        %v9868 = vadd.f32 %v9779, %v9867
        %v9869 = vpop.f32.mrf.mxu0
        %v9870 = vadd.f32 %v9781, %v9869
        %9871 = vmatmul.bf16.gmra.mxu0 %v8895
        %v9872 = vpop.f32.mrf.mxu0
        %v9873 = vadd.f32 %v9784, %v9872
        %v9874 = vpop.f32.mrf.mxu0
        %v9875 = vadd.f32 %v9786, %v9874
        %9876 = vmatmul.bf16.gmra.mxu0 %v8904
        %v9877 = vpop.f32.mrf.mxu0
        %v9878 = vadd.f32 %v9789, %v9877
        %v9879 = vpop.f32.mrf.mxu0
        %v9880 = vadd.f32 %v9791, %v9879
        %9881 = vmatmul.bf16.gmra.mxu0 %v8913
        %v9882 = vpop.f32.mrf.mxu0
        %v9883 = vadd.f32 %v9794, %v9882
        %v9884 = vpop.f32.mrf.mxu0
        %v9885 = vadd.f32 %v9796, %v9884
        %9886 = vmatmul.bf16.gmra.mxu0 %v8922
        %v9887 = vpop.f32.mrf.mxu0
        %v9888 = vadd.f32 %v9799, %v9887
        %v9889 = vpop.f32.mrf.mxu0
        %v9890 = vadd.f32 %v9801, %v9889
        %9891 = vmatmul.bf16.gmra.mxu0 %v8931
        %v9892 = vpop.f32.mrf.mxu0
        %v9893 = vadd.f32 %v9804, %v9892
        %v9894 = vpop.f32.mrf.mxu0
        %v9895 = vadd.f32 %v9806, %v9894
        %9896 = vmatmul.bf16.gmra.mxu0 %v8940
        %v9897 = vpop.f32.mrf.mxu0
        %v9898 = vadd.f32 %v9809, %v9897
        %v9899 = vpop.f32.mrf.mxu0
        %v9900 = vadd.f32 %v9811, %v9899
        %9901 = vmatmul.bf16.gmra.mxu0 %v8949
        %v9902 = vpop.f32.mrf.mxu0
        %v9903 = vadd.f32 %v9814, %v9902
        %v9904 = vpop.f32.mrf.mxu0
        %v9905 = vadd.f32 %v9816, %v9904
        %9906 = vmatmul.bf16.gmra.mxu0 %v8958
        %v9907 = vpop.f32.mrf.mxu0
        %v9908 = vadd.f32 %v9819, %v9907
        %v9909 = vpop.f32.mrf.mxu0
        %v9910 = vadd.f32 %v9821, %v9909
        %9911 = vmatmul.bf16.gmra.mxu0 %v8967
        %v9912 = vpop.f32.mrf.mxu0
        %v9913 = vadd.f32 %v9824, %v9912
        %v9914 = vpop.f32.mrf.mxu0
        %v9915 = vadd.f32 %v9826, %v9914
        %9916 = vmatmul.bf16.gmra.mxu0 %v8976
        %v9917 = vpop.f32.mrf.mxu0
        %v9918 = vadd.f32 %v9829, %v9917
        %v9919 = vpop.f32.mrf.mxu0
        %v9920 = vadd.f32 %v9831, %v9919
        %9921 = vmatmul.bf16.gmra.mxu0 %v8985
        %v9922 = vpop.f32.mrf.mxu0
        %v9923 = vadd.f32 %v9834, %v9922
        %v9924 = vpop.f32.mrf.mxu0
        %v9925 = vadd.f32 %v9836, %v9924
        %9926 = vmatmul.bf16.gmra.mxu0 %v8994
        %v9927 = vpop.f32.mrf.mxu0
        %v9928 = vadd.f32 %v9839, %v9927
        %v9929 = vpop.f32.mrf.mxu0
        %v9930 = vadd.f32 %v9841, %v9929
        %9931 = vdwg.mxu0
        %9932 = vmatpush.bf16.msra.mxu0 %v9471
        %9933 = vmatpush.bf16.msra.mxu0 %v9470
        %9934 = vmatpush.bf16.msra.mxu0 %v9469
        %9935 = vmatpush.bf16.msra.mxu0 %v9468
        %9936 = vmatpush.bf16.msra.mxu0 %v9467
        %9937 = vmatpush.bf16.msra.mxu0 %v9466
        %9938 = vmatpush.bf16.msra.mxu0 %v9465
        %9939 = vmatpush.bf16.msra.mxu0 %v9464
        %9940 = vmatmul.bf16.gmra.mxu0 %v8860
        %v9941 = vpop.f32.mrf.mxu0
        %v9942 = vadd.f32 %v9853, %v9941
        %v9943 = vpop.f32.mrf.mxu0
        %v9944 = vadd.f32 %v9855, %v9943
        %9945 = vmatmul.bf16.gmra.mxu0 %v8869
        %v9946 = vpop.f32.mrf.mxu0
        %v9947 = vadd.f32 %v9858, %v9946
        %v9948 = vpop.f32.mrf.mxu0
        %v9949 = vadd.f32 %v9860, %v9948
        %9950 = vmatmul.bf16.gmra.mxu0 %v8878
        %v9951 = vpop.f32.mrf.mxu0
        %v9952 = vadd.f32 %v9863, %v9951
        %v9953 = vpop.f32.mrf.mxu0
        %v9954 = vadd.f32 %v9865, %v9953
        %9955 = vmatmul.bf16.gmra.mxu0 %v8887
        %v9956 = vpop.f32.mrf.mxu0
        %v9957 = vadd.f32 %v9868, %v9956
        %v9958 = vpop.f32.mrf.mxu0
        %v9959 = vadd.f32 %v9870, %v9958
        %9960 = vmatmul.bf16.gmra.mxu0 %v8896
        %v9961 = vpop.f32.mrf.mxu0
        %v9962 = vadd.f32 %v9873, %v9961
        %v9963 = vpop.f32.mrf.mxu0
        %v9964 = vadd.f32 %v9875, %v9963
        %9965 = vmatmul.bf16.gmra.mxu0 %v8905
        %v9966 = vpop.f32.mrf.mxu0
        %v9967 = vadd.f32 %v9878, %v9966
        %v9968 = vpop.f32.mrf.mxu0
        %v9969 = vadd.f32 %v9880, %v9968
        %9970 = vmatmul.bf16.gmra.mxu0 %v8914
        %v9971 = vpop.f32.mrf.mxu0
        %v9972 = vadd.f32 %v9883, %v9971
        %v9973 = vpop.f32.mrf.mxu0
        %v9974 = vadd.f32 %v9885, %v9973
        %9975 = vmatmul.bf16.gmra.mxu0 %v8923
        %v9976 = vpop.f32.mrf.mxu0
        %v9977 = vadd.f32 %v9888, %v9976
        %v9978 = vpop.f32.mrf.mxu0
        %v9979 = vadd.f32 %v9890, %v9978
        %9980 = vmatmul.bf16.gmra.mxu0 %v8932
        %v9981 = vpop.f32.mrf.mxu0
        %v9982 = vadd.f32 %v9893, %v9981
        %v9983 = vpop.f32.mrf.mxu0
        %v9984 = vadd.f32 %v9895, %v9983
        %9985 = vmatmul.bf16.gmra.mxu0 %v8941
        %v9986 = vpop.f32.mrf.mxu0
        %v9987 = vadd.f32 %v9898, %v9986
        %v9988 = vpop.f32.mrf.mxu0
        %v9989 = vadd.f32 %v9900, %v9988
        %9990 = vmatmul.bf16.gmra.mxu0 %v8950
        %v9991 = vpop.f32.mrf.mxu0
        %v9992 = vadd.f32 %v9903, %v9991
        %v9993 = vpop.f32.mrf.mxu0
        %v9994 = vadd.f32 %v9905, %v9993
        %9995 = vmatmul.bf16.gmra.mxu0 %v8959
        %v9996 = vpop.f32.mrf.mxu0
        %v9997 = vadd.f32 %v9908, %v9996
        %v9998 = vpop.f32.mrf.mxu0
        %v9999 = vadd.f32 %v9910, %v9998
        %10000 = vmatmul.bf16.gmra.mxu0 %v8968
        %v10001 = vpop.f32.mrf.mxu0
        %v10002 = vadd.f32 %v9913, %v10001
        %v10003 = vpop.f32.mrf.mxu0
        %v10004 = vadd.f32 %v9915, %v10003
        %10005 = vmatmul.bf16.gmra.mxu0 %v8977
        %v10006 = vpop.f32.mrf.mxu0
        %v10007 = vadd.f32 %v9918, %v10006
        %v10008 = vpop.f32.mrf.mxu0
        %v10009 = vadd.f32 %v9920, %v10008
        %10010 = vmatmul.bf16.gmra.mxu0 %v8986
        %v10011 = vpop.f32.mrf.mxu0
        %v10012 = vadd.f32 %v9923, %v10011
        %v10013 = vpop.f32.mrf.mxu0
        %v10014 = vadd.f32 %v9925, %v10013
        %10015 = vmatmul.bf16.gmra.mxu0 %v8995
        %v10016 = vpop.f32.mrf.mxu0
        %v10017 = vadd.f32 %v9928, %v10016
        %v10018 = vpop.f32.mrf.mxu0
        %v10019 = vadd.f32 %v9930, %v10018
        %10020 = vdwg.mxu0
        %10021 = vmatpush.bf16.msra.mxu0 %v9479
        %10022 = vmatpush.bf16.msra.mxu0 %v9478
        %10023 = vmatpush.bf16.msra.mxu0 %v9477
        %10024 = vmatpush.bf16.msra.mxu0 %v9476
        %10025 = vmatpush.bf16.msra.mxu0 %v9475
        %10026 = vmatpush.bf16.msra.mxu0 %v9474
        %10027 = vmatpush.bf16.msra.mxu0 %v9473
        %10028 = vmatpush.bf16.msra.mxu0 %v9472
        %10029 = vmatmul.bf16.gmra.mxu0 %v8861
        %v10030 = vpop.f32.mrf.mxu0
        %v10031 = vadd.f32 %v9942, %v10030
        %v10032 = vpop.f32.mrf.mxu0
        %v10033 = vadd.f32 %v9944, %v10032
        %10034 = vmatmul.bf16.gmra.mxu0 %v8870
        %v10035 = vpop.f32.mrf.mxu0
        %v10036 = vadd.f32 %v9947, %v10035
        %v10037 = vpop.f32.mrf.mxu0
        %v10038 = vadd.f32 %v9949, %v10037
        %10039 = vmatmul.bf16.gmra.mxu0 %v8879
        %v10040 = vpop.f32.mrf.mxu0
        %v10041 = vadd.f32 %v9952, %v10040
        %v10042 = vpop.f32.mrf.mxu0
        %v10043 = vadd.f32 %v9954, %v10042
        %10044 = vmatmul.bf16.gmra.mxu0 %v8888
        %v10045 = vpop.f32.mrf.mxu0
        %v10046 = vadd.f32 %v9957, %v10045
        %v10047 = vpop.f32.mrf.mxu0
        %v10048 = vadd.f32 %v9959, %v10047
        %10049 = vmatmul.bf16.gmra.mxu0 %v8897
        %v10050 = vpop.f32.mrf.mxu0
        %v10051 = vadd.f32 %v9962, %v10050
        %v10052 = vpop.f32.mrf.mxu0
        %v10053 = vadd.f32 %v9964, %v10052
        %10054 = vmatmul.bf16.gmra.mxu0 %v8906
        %v10055 = vpop.f32.mrf.mxu0
        %v10056 = vadd.f32 %v9967, %v10055
        %v10057 = vpop.f32.mrf.mxu0
        %v10058 = vadd.f32 %v9969, %v10057
        %10059 = vmatmul.bf16.gmra.mxu0 %v8915
        %v10060 = vpop.f32.mrf.mxu0
        %v10061 = vadd.f32 %v9972, %v10060
        %v10062 = vpop.f32.mrf.mxu0
        %v10063 = vadd.f32 %v9974, %v10062
        %10064 = vmatmul.bf16.gmra.mxu0 %v8924
        %v10065 = vpop.f32.mrf.mxu0
        %v10066 = vadd.f32 %v9977, %v10065
        %v10067 = vpop.f32.mrf.mxu0
        %v10068 = vadd.f32 %v9979, %v10067
        %10069 = vmatmul.bf16.gmra.mxu0 %v8933
        %v10070 = vpop.f32.mrf.mxu0
        %v10071 = vadd.f32 %v9982, %v10070
        %v10072 = vpop.f32.mrf.mxu0
        %v10073 = vadd.f32 %v9984, %v10072
        %10074 = vmatmul.bf16.gmra.mxu0 %v8942
        %v10075 = vpop.f32.mrf.mxu0
        %v10076 = vadd.f32 %v9987, %v10075
        %v10077 = vpop.f32.mrf.mxu0
        %v10078 = vadd.f32 %v9989, %v10077
        %10079 = vmatmul.bf16.gmra.mxu0 %v8951
        %v10080 = vpop.f32.mrf.mxu0
        %v10081 = vadd.f32 %v9992, %v10080
        %v10082 = vpop.f32.mrf.mxu0
        %v10083 = vadd.f32 %v9994, %v10082
        %10084 = vmatmul.bf16.gmra.mxu0 %v8960
        %v10085 = vpop.f32.mrf.mxu0
        %v10086 = vadd.f32 %v9997, %v10085
        %v10087 = vpop.f32.mrf.mxu0
        %v10088 = vadd.f32 %v9999, %v10087
        %10089 = vmatmul.bf16.gmra.mxu0 %v8969
        %v10090 = vpop.f32.mrf.mxu0
        %v10091 = vadd.f32 %v10002, %v10090
        %v10092 = vpop.f32.mrf.mxu0
        %v10093 = vadd.f32 %v10004, %v10092
        %10094 = vmatmul.bf16.gmra.mxu0 %v8978
        %v10095 = vpop.f32.mrf.mxu0
        %v10096 = vadd.f32 %v10007, %v10095
        %v10097 = vpop.f32.mrf.mxu0
        %v10098 = vadd.f32 %v10009, %v10097
        %10099 = vmatmul.bf16.gmra.mxu0 %v8987
        %v10100 = vpop.f32.mrf.mxu0
        %v10101 = vadd.f32 %v10012, %v10100
        %v10102 = vpop.f32.mrf.mxu0
        %v10103 = vadd.f32 %v10014, %v10102
        %10104 = vmatmul.bf16.gmra.mxu0 %v8996
        %v10105 = vpop.f32.mrf.mxu0
        %v10106 = vadd.f32 %v10017, %v10105
        %v10107 = vpop.f32.mrf.mxu0
        %v10108 = vadd.f32 %v10019, %v10107
        %10109 = vdwg.mxu0
        %10110 = vmatpush.bf16.msra.mxu0 %v9487
        %10111 = vmatpush.bf16.msra.mxu0 %v9486
        %10112 = vmatpush.bf16.msra.mxu0 %v9485
        %10113 = vmatpush.bf16.msra.mxu0 %v9484
        %10114 = vmatpush.bf16.msra.mxu0 %v9483
        %10115 = vmatpush.bf16.msra.mxu0 %v9482
        %10116 = vmatpush.bf16.msra.mxu0 %v9481
        %10117 = vmatpush.bf16.msra.mxu0 %v9480
        %10118 = vmatmul.bf16.gmra.mxu0 %v8862
        %v10119 = vpop.f32.mrf.mxu0
        %v10120 = vadd.f32 %v10031, %v10119
        %v10121 = vpop.f32.mrf.mxu0
        %v10122 = vadd.f32 %v10033, %v10121
        %10123 = vmatmul.bf16.gmra.mxu0 %v8871
        %v10124 = vpop.f32.mrf.mxu0
        %v10125 = vadd.f32 %v10036, %v10124
        %v10126 = vpop.f32.mrf.mxu0
        %v10127 = vadd.f32 %v10038, %v10126
        %10128 = vmatmul.bf16.gmra.mxu0 %v8880
        %v10129 = vpop.f32.mrf.mxu0
        %v10130 = vadd.f32 %v10041, %v10129
        %v10131 = vpop.f32.mrf.mxu0
        %v10132 = vadd.f32 %v10043, %v10131
        %10133 = vmatmul.bf16.gmra.mxu0 %v8889
        %v10134 = vpop.f32.mrf.mxu0
        %v10135 = vadd.f32 %v10046, %v10134
        %v10136 = vpop.f32.mrf.mxu0
        %v10137 = vadd.f32 %v10048, %v10136
        %10138 = vmatmul.bf16.gmra.mxu0 %v8898
        %v10139 = vpop.f32.mrf.mxu0
        %v10140 = vadd.f32 %v10051, %v10139
        %v10141 = vpop.f32.mrf.mxu0
        %v10142 = vadd.f32 %v10053, %v10141
        %10143 = vmatmul.bf16.gmra.mxu0 %v8907
        %v10144 = vpop.f32.mrf.mxu0
        %v10145 = vadd.f32 %v10056, %v10144
        %v10146 = vpop.f32.mrf.mxu0
        %v10147 = vadd.f32 %v10058, %v10146
        %10148 = vmatmul.bf16.gmra.mxu0 %v8916
        %v10149 = vpop.f32.mrf.mxu0
        %v10150 = vadd.f32 %v10061, %v10149
        %v10151 = vpop.f32.mrf.mxu0
        %v10152 = vadd.f32 %v10063, %v10151
        %10153 = vmatmul.bf16.gmra.mxu0 %v8925
        %v10154 = vpop.f32.mrf.mxu0
        %v10155 = vadd.f32 %v10066, %v10154
        %v10156 = vpop.f32.mrf.mxu0
        %v10157 = vadd.f32 %v10068, %v10156
        %10158 = vmatmul.bf16.gmra.mxu0 %v8934
        %v10159 = vpop.f32.mrf.mxu0
        %v10160 = vadd.f32 %v10071, %v10159
        %v10161 = vpop.f32.mrf.mxu0
        %v10162 = vadd.f32 %v10073, %v10161
        %10163 = vmatmul.bf16.gmra.mxu0 %v8943
        %v10164 = vpop.f32.mrf.mxu0
        %v10165 = vadd.f32 %v10076, %v10164
        %v10166 = vpop.f32.mrf.mxu0
        %v10167 = vadd.f32 %v10078, %v10166
        %10168 = vmatmul.bf16.gmra.mxu0 %v8952
        %v10169 = vpop.f32.mrf.mxu0
        %v10170 = vadd.f32 %v10081, %v10169
        %v10171 = vpop.f32.mrf.mxu0
        %v10172 = vadd.f32 %v10083, %v10171
        %10173 = vmatmul.bf16.gmra.mxu0 %v8961
        %v10174 = vpop.f32.mrf.mxu0
        %v10175 = vadd.f32 %v10086, %v10174
        %v10176 = vpop.f32.mrf.mxu0
        %v10177 = vadd.f32 %v10088, %v10176
        %10178 = vmatmul.bf16.gmra.mxu0 %v8970
        %v10179 = vpop.f32.mrf.mxu0
        %v10180 = vadd.f32 %v10091, %v10179
        %v10181 = vpop.f32.mrf.mxu0
        %v10182 = vadd.f32 %v10093, %v10181
        %10183 = vmatmul.bf16.gmra.mxu0 %v8979
        %v10184 = vpop.f32.mrf.mxu0
        %v10185 = vadd.f32 %v10096, %v10184
        %v10186 = vpop.f32.mrf.mxu0
        %v10187 = vadd.f32 %v10098, %v10186
        %10188 = vmatmul.bf16.gmra.mxu0 %v8988
        %v10189 = vpop.f32.mrf.mxu0
        %v10190 = vadd.f32 %v10101, %v10189
        %v10191 = vpop.f32.mrf.mxu0
        %v10192 = vadd.f32 %v10103, %v10191
        %10193 = vmatmul.bf16.gmra.mxu0 %v8997
        %v10194 = vpop.f32.mrf.mxu0
        %v10195 = vadd.f32 %v10106, %v10194
        %v10196 = vpop.f32.mrf.mxu0
        %v10197 = vadd.f32 %v10108, %v10196
        %10198 = vdwg.mxu0
        %10199 = vmatpush.bf16.msra.mxu0 %v9495
        %10200 = vmatpush.bf16.msra.mxu0 %v9494
        %10201 = vmatpush.bf16.msra.mxu0 %v9493
        %10202 = vmatpush.bf16.msra.mxu0 %v9492
        %10203 = vmatpush.bf16.msra.mxu0 %v9491
        %10204 = vmatpush.bf16.msra.mxu0 %v9490
        %10205 = vmatpush.bf16.msra.mxu0 %v9489
        %10206 = vmatpush.bf16.msra.mxu0 %v9488
        %10207 = vmatmul.bf16.gmra.mxu0 %v8863
        %v10208 = vpop.f32.mrf.mxu0
        %v10209 = vadd.f32 %v10120, %v10208
        %v10210 = vpop.f32.mrf.mxu0
        %v10211 = vadd.f32 %v10122, %v10210
        %10212 = vmatmul.bf16.gmra.mxu0 %v8872
        %v10213 = vpop.f32.mrf.mxu0
        %v10214 = vadd.f32 %v10125, %v10213
        %v10215 = vpop.f32.mrf.mxu0
        %v10216 = vadd.f32 %v10127, %v10215
        %10217 = vmatmul.bf16.gmra.mxu0 %v8881
        %v10218 = vpop.f32.mrf.mxu0
        %v10219 = vadd.f32 %v10130, %v10218
        %v10220 = vpop.f32.mrf.mxu0
        %v10221 = vadd.f32 %v10132, %v10220
        %10222 = vmatmul.bf16.gmra.mxu0 %v8890
        %v10223 = vpop.f32.mrf.mxu0
        %v10224 = vadd.f32 %v10135, %v10223
        %v10225 = vpop.f32.mrf.mxu0
        %v10226 = vadd.f32 %v10137, %v10225
        %10227 = vmatmul.bf16.gmra.mxu0 %v8899
        %v10228 = vpop.f32.mrf.mxu0
        %v10229 = vadd.f32 %v10140, %v10228
        %v10230 = vpop.f32.mrf.mxu0
        %v10231 = vadd.f32 %v10142, %v10230
        %10232 = vmatmul.bf16.gmra.mxu0 %v8908
        %v10233 = vpop.f32.mrf.mxu0
        %v10234 = vadd.f32 %v10145, %v10233
        %v10235 = vpop.f32.mrf.mxu0
        %v10236 = vadd.f32 %v10147, %v10235
        %10237 = vmatmul.bf16.gmra.mxu0 %v8917
        %v10238 = vpop.f32.mrf.mxu0
        %v10239 = vadd.f32 %v10150, %v10238
        %v10240 = vpop.f32.mrf.mxu0
        %v10241 = vadd.f32 %v10152, %v10240
        %10242 = vmatmul.bf16.gmra.mxu0 %v8926
        %v10243 = vpop.f32.mrf.mxu0
        %v10244 = vadd.f32 %v10155, %v10243
        %v10245 = vpop.f32.mrf.mxu0
        %v10246 = vadd.f32 %v10157, %v10245
        %10247 = vmatmul.bf16.gmra.mxu0 %v8935
        %v10248 = vpop.f32.mrf.mxu0
        %v10249 = vadd.f32 %v10160, %v10248
        %v10250 = vpop.f32.mrf.mxu0
        %v10251 = vadd.f32 %v10162, %v10250
        %10252 = vmatmul.bf16.gmra.mxu0 %v8944
        %v10253 = vpop.f32.mrf.mxu0
        %v10254 = vadd.f32 %v10165, %v10253
        %v10255 = vpop.f32.mrf.mxu0
        %v10256 = vadd.f32 %v10167, %v10255
        %10257 = vmatmul.bf16.gmra.mxu0 %v8953
        %v10258 = vpop.f32.mrf.mxu0
        %v10259 = vadd.f32 %v10170, %v10258
        %v10260 = vpop.f32.mrf.mxu0
        %v10261 = vadd.f32 %v10172, %v10260
        %10262 = vmatmul.bf16.gmra.mxu0 %v8962
        %v10263 = vpop.f32.mrf.mxu0
        %v10264 = vadd.f32 %v10175, %v10263
        %v10265 = vpop.f32.mrf.mxu0
        %v10266 = vadd.f32 %v10177, %v10265
        %10267 = vmatmul.bf16.gmra.mxu0 %v8971
        %v10268 = vpop.f32.mrf.mxu0
        %v10269 = vadd.f32 %v10180, %v10268
        %v10270 = vpop.f32.mrf.mxu0
        %v10271 = vadd.f32 %v10182, %v10270
        %10272 = vmatmul.bf16.gmra.mxu0 %v8980
        %v10273 = vpop.f32.mrf.mxu0
        %v10274 = vadd.f32 %v10185, %v10273
        %v10275 = vpop.f32.mrf.mxu0
        %v10276 = vadd.f32 %v10187, %v10275
        %10277 = vmatmul.bf16.gmra.mxu0 %v8989
        %v10278 = vpop.f32.mrf.mxu0
        %v10279 = vadd.f32 %v10190, %v10278
        %v10280 = vpop.f32.mrf.mxu0
        %v10281 = vadd.f32 %v10192, %v10280
        %10282 = vmatmul.bf16.gmra.mxu0 %v8998
        %v10283 = vpop.f32.mrf.mxu0
        %v10284 = vadd.f32 %v10195, %v10283
        %v10285 = vpop.f32.mrf.mxu0
        %v10286 = vadd.f32 %v10197, %v10285
        %10287 = vdwg.mxu0
        %10288 = vmatpush.bf16.msra.mxu0 %v9503
        %10289 = vmatpush.bf16.msra.mxu0 %v9502
        %10290 = vmatpush.bf16.msra.mxu0 %v9501
        %10291 = vmatpush.bf16.msra.mxu0 %v9500
        %10292 = vmatpush.bf16.msra.mxu0 %v9499
        %10293 = vmatpush.bf16.msra.mxu0 %v9498
        %10294 = vmatpush.bf16.msra.mxu0 %v9497
        %10295 = vmatpush.bf16.msra.mxu0 %v9496
        %10296 = vmatmul.bf16.gmra.mxu0 %v8864
        %v10297 = vpop.f32.mrf.mxu0
        %v10298 = vadd.f32 %v10209, %v10297
        %v10299 = vpop.f32.mrf.mxu0
        %v10300 = vadd.f32 %v10211, %v10299
        %10301 = vmatmul.bf16.gmra.mxu0 %v8873
        %v10302 = vpop.f32.mrf.mxu0
        %v10303 = vadd.f32 %v10214, %v10302
        %v10304 = vpop.f32.mrf.mxu0
        %v10305 = vadd.f32 %v10216, %v10304
        %10306 = vmatmul.bf16.gmra.mxu0 %v8882
        %v10307 = vpop.f32.mrf.mxu0
        %v10308 = vadd.f32 %v10219, %v10307
        %v10309 = vpop.f32.mrf.mxu0
        %v10310 = vadd.f32 %v10221, %v10309
        %10311 = vmatmul.bf16.gmra.mxu0 %v8891
        %v10312 = vpop.f32.mrf.mxu0
        %v10313 = vadd.f32 %v10224, %v10312
        %v10314 = vpop.f32.mrf.mxu0
        %v10315 = vadd.f32 %v10226, %v10314
        %10316 = vmatmul.bf16.gmra.mxu0 %v8900
        %v10317 = vpop.f32.mrf.mxu0
        %v10318 = vadd.f32 %v10229, %v10317
        %v10319 = vpop.f32.mrf.mxu0
        %v10320 = vadd.f32 %v10231, %v10319
        %10321 = vmatmul.bf16.gmra.mxu0 %v8909
        %v10322 = vpop.f32.mrf.mxu0
        %v10323 = vadd.f32 %v10234, %v10322
        %v10324 = vpop.f32.mrf.mxu0
        %v10325 = vadd.f32 %v10236, %v10324
        %10326 = vmatmul.bf16.gmra.mxu0 %v8918
        %v10327 = vpop.f32.mrf.mxu0
        %v10328 = vadd.f32 %v10239, %v10327
        %v10329 = vpop.f32.mrf.mxu0
        %v10330 = vadd.f32 %v10241, %v10329
        %10331 = vmatmul.bf16.gmra.mxu0 %v8927
        %v10332 = vpop.f32.mrf.mxu0
        %v10333 = vadd.f32 %v10244, %v10332
        %v10334 = vpop.f32.mrf.mxu0
        %v10335 = vadd.f32 %v10246, %v10334
        %10336 = vmatmul.bf16.gmra.mxu0 %v8936
        %v10337 = vpop.f32.mrf.mxu0
        %v10338 = vadd.f32 %v10249, %v10337
        %v10339 = vpop.f32.mrf.mxu0
        %v10340 = vadd.f32 %v10251, %v10339
        %10341 = vmatmul.bf16.gmra.mxu0 %v8945
        %v10342 = vpop.f32.mrf.mxu0
        %v10343 = vadd.f32 %v10254, %v10342
        %v10344 = vpop.f32.mrf.mxu0
        %v10345 = vadd.f32 %v10256, %v10344
        %10346 = vmatmul.bf16.gmra.mxu0 %v8954
        %v10347 = vpop.f32.mrf.mxu0
        %v10348 = vadd.f32 %v10259, %v10347
        %v10349 = vpop.f32.mrf.mxu0
        %v10350 = vadd.f32 %v10261, %v10349
        %10351 = vmatmul.bf16.gmra.mxu0 %v8963
        %v10352 = vpop.f32.mrf.mxu0
        %v10353 = vadd.f32 %v10264, %v10352
        %v10354 = vpop.f32.mrf.mxu0
        %v10355 = vadd.f32 %v10266, %v10354
        %10356 = vmatmul.bf16.gmra.mxu0 %v8972
        %v10357 = vpop.f32.mrf.mxu0
        %v10358 = vadd.f32 %v10269, %v10357
        %v10359 = vpop.f32.mrf.mxu0
        %v10360 = vadd.f32 %v10271, %v10359
        %10361 = vmatmul.bf16.gmra.mxu0 %v8981
        %v10362 = vpop.f32.mrf.mxu0
        %v10363 = vadd.f32 %v10274, %v10362
        %v10364 = vpop.f32.mrf.mxu0
        %v10365 = vadd.f32 %v10276, %v10364
        %10366 = vmatmul.bf16.gmra.mxu0 %v8990
        %v10367 = vpop.f32.mrf.mxu0
        %v10368 = vadd.f32 %v10279, %v10367
        %v10369 = vpop.f32.mrf.mxu0
        %v10370 = vadd.f32 %v10281, %v10369
        %10371 = vmatmul.bf16.gmra.mxu0 %v8999
        %v10372 = vpop.f32.mrf.mxu0
        %v10373 = vadd.f32 %v10284, %v10372
        %v10374 = vpop.f32.mrf.mxu0
        %v10375 = vadd.f32 %v10286, %v10374
        %10376 = vdwg.mxu0
        %v10377 = vld [vmem:[#allocation10] sm:$0xff]
        %v10378 = vld [vmem:[#allocation10 + $0x8] sm:$0xff]
        %v10379 = vld [vmem:[#allocation10 + $0x10] sm:$0xff]
        %v10380 = vld [vmem:[#allocation10 + $0x18] sm:$0xff]
        %v10381 = vld [vmem:[#allocation10 + $0x20] sm:$0xff]
        %v10382 = vld [vmem:[#allocation10 + $0x28] sm:$0xff]
        %v10383 = vld [vmem:[#allocation10 + $0x30] sm:$0xff]
        %v10384 = vld [vmem:[#allocation10 + $0x38] sm:$0xff]
        %v10385 = vld [vmem:[#allocation10 + $0x40] sm:$0xff]
        %v10386 = vld [vmem:[#allocation10 + $0x48] sm:$0xff]
        %v10387 = vld [vmem:[#allocation10 + $0x50] sm:$0xff]
        %v10388 = vld [vmem:[#allocation10 + $0x58] sm:$0xff]
        %v10389 = vld [vmem:[#allocation10 + $0x60] sm:$0xff]
        %v10390 = vld [vmem:[#allocation10 + $0x68] sm:$0xff]
        %v10391 = vld [vmem:[#allocation10 + $0x70] sm:$0xff]
        %v10392 = vld [vmem:[#allocation10 + $0x78] sm:$0xff]
        %v10393 = vld [vmem:[%s13] sm:$0x1]
        %v10394 = vld [vmem:[%s14] sm:$0x1]
        %v10395 = vld [vmem:[#allocation3] sm:$0x1]
        %10396 = vmatpush.msra.mxu0 %v10335
        %10397 = vmatpush.msra.mxu0 %v10333
        %10398 = vmatpush.msra.mxu0 %v10330
        %10399 = vmatpush.msra.mxu0 %v10328
        %10400 = vmatpush.msra.mxu0 %v10325
        %10401 = vmatpush.msra.mxu0 %v10323
        %10402 = vmatpush.msra.mxu0 %v10320
        %10403 = vmatpush.msra.mxu0 %v10318
        %10404 = vmatpush.msra.mxu0 %v10315
        %10405 = vmatpush.msra.mxu0 %v10313
        %10406 = vmatpush.msra.mxu0 %v10310
        %10407 = vmatpush.msra.mxu0 %v10308
        %10408 = vmatpush.msra.mxu0 %v10305
        %10409 = vmatpush.msra.mxu0 %v10303
        %10410 = vmatpush.msra.mxu0 %v10300
        %10411 = vmatpush.msra.mxu0 %v10298
        %10412 = vmatmul.f32.gmra.mxu0 1.0
        %v10413 = vpop.f32.mrf.mxu0
        %v10414 = vadd.f32 0.0, %v10413
        %10415 = vdwg.mxu0
        %10416 = vmatpush.msra.mxu0 %v10375
        %10417 = vmatpush.msra.mxu0 %v10373
        %10418 = vmatpush.msra.mxu0 %v10370
        %10419 = vmatpush.msra.mxu0 %v10368
        %10420 = vmatpush.msra.mxu0 %v10365
        %10421 = vmatpush.msra.mxu0 %v10363
        %10422 = vmatpush.msra.mxu0 %v10360
        %10423 = vmatpush.msra.mxu0 %v10358
        %10424 = vmatpush.msra.mxu0 %v10355
        %10425 = vmatpush.msra.mxu0 %v10353
        %10426 = vmatpush.msra.mxu0 %v10350
        %10427 = vmatpush.msra.mxu0 %v10348
        %10428 = vmatpush.msra.mxu0 %v10345
        %10429 = vmatpush.msra.mxu0 %v10343
        %10430 = vmatpush.msra.mxu0 %v10340
        %10431 = vmatpush.msra.mxu0 %v10338
        %10432 = vmatmul.f32.gmra.mxu0 1.0
        %v10433 = vpop.f32.mrf.mxu0
        %v10434 = vadd.f32 %v10414, %v10433
        %10435 = vdwg.mxu0
        %v10436 = vmul.f32 %v10434, 0.00390625
        %v10437 = vmul.f32 %v10298, %v10298
        %v10438 = vmul.f32 %v10300, %v10300
        %v10439 = vmul.f32 %v10303, %v10303
        %v10440 = vmul.f32 %v10305, %v10305
        %v10441 = vmul.f32 %v10308, %v10308
        %v10442 = vmul.f32 %v10310, %v10310
        %v10443 = vmul.f32 %v10313, %v10313
        %v10444 = vmul.f32 %v10315, %v10315
        %v10445 = vmul.f32 %v10318, %v10318
        %v10446 = vmul.f32 %v10320, %v10320
        %v10447 = vmul.f32 %v10323, %v10323
        %v10448 = vmul.f32 %v10325, %v10325
        %v10449 = vmul.f32 %v10328, %v10328
        %v10450 = vmul.f32 %v10330, %v10330
        %v10451 = vmul.f32 %v10333, %v10333
        %v10452 = vmul.f32 %v10335, %v10335
        %v10453 = vmul.f32 %v10338, %v10338
        %v10454 = vmul.f32 %v10340, %v10340
        %v10455 = vmul.f32 %v10343, %v10343
        %v10456 = vmul.f32 %v10345, %v10345
        %v10457 = vmul.f32 %v10348, %v10348
        %v10458 = vmul.f32 %v10350, %v10350
        %v10459 = vmul.f32 %v10353, %v10353
        %v10460 = vmul.f32 %v10355, %v10355
        %v10461 = vmul.f32 %v10358, %v10358
        %v10462 = vmul.f32 %v10360, %v10360
        %v10463 = vmul.f32 %v10363, %v10363
        %v10464 = vmul.f32 %v10365, %v10365
        %v10465 = vmul.f32 %v10368, %v10368
        %v10466 = vmul.f32 %v10370, %v10370
        %v10467 = vmul.f32 %v10373, %v10373
        %v10468 = vmul.f32 %v10375, %v10375
        %10469 = vmatpush.msra.mxu0 %v10452
        %10470 = vmatpush.msra.mxu0 %v10451
        %10471 = vmatpush.msra.mxu0 %v10450
        %10472 = vmatpush.msra.mxu0 %v10449
        %10473 = vmatpush.msra.mxu0 %v10448
        %10474 = vmatpush.msra.mxu0 %v10447
        %10475 = vmatpush.msra.mxu0 %v10446
        %10476 = vmatpush.msra.mxu0 %v10445
        %10477 = vmatpush.msra.mxu0 %v10444
        %10478 = vmatpush.msra.mxu0 %v10443
        %10479 = vmatpush.msra.mxu0 %v10442
        %10480 = vmatpush.msra.mxu0 %v10441
        %10481 = vmatpush.msra.mxu0 %v10440
        %10482 = vmatpush.msra.mxu0 %v10439
        %10483 = vmatpush.msra.mxu0 %v10438
        %10484 = vmatpush.msra.mxu0 %v10437
        %10485 = vmatmul.f32.gmra.mxu0 1.0
        %v10486 = vpop.f32.mrf.mxu0
        %v10487 = vadd.f32 0.0, %v10486
        %10488 = vdwg.mxu0
        %10489 = vmatpush.msra.mxu0 %v10468
        %10490 = vmatpush.msra.mxu0 %v10467
        %10491 = vmatpush.msra.mxu0 %v10466
        %10492 = vmatpush.msra.mxu0 %v10465
        %10493 = vmatpush.msra.mxu0 %v10464
        %10494 = vmatpush.msra.mxu0 %v10463
        %10495 = vmatpush.msra.mxu0 %v10462
        %10496 = vmatpush.msra.mxu0 %v10461
        %10497 = vmatpush.msra.mxu0 %v10460
        %10498 = vmatpush.msra.mxu0 %v10459
        %10499 = vmatpush.msra.mxu0 %v10458
        %10500 = vmatpush.msra.mxu0 %v10457
        %10501 = vmatpush.msra.mxu0 %v10456
        %10502 = vmatpush.msra.mxu0 %v10455
        %10503 = vmatpush.msra.mxu0 %v10454
        %10504 = vmatpush.msra.mxu0 %v10453
        %10505 = vmatmul.f32.gmra.mxu0 1.0
        %v10506 = vpop.f32.mrf.mxu0
        %v10507 = vadd.f32 %v10487, %v10506
        %10508 = vdwg.mxu0
        %v10509 = vmul.f32 %v10507, 0.00390625
        %10510 = vmatpush.msra.mxu0 %v10392
        %10511 = vmatpush.msra.mxu0 %v10391
        %10512 = vmatpush.msra.mxu0 %v10390
        %10513 = vmatpush.msra.mxu0 %v10389
        %10514 = vmatpush.msra.mxu0 %v10388
        %10515 = vmatpush.msra.mxu0 %v10387
        %10516 = vmatpush.msra.mxu0 %v10386
        %10517 = vmatpush.msra.mxu0 %v10385
        %10518 = vmatpush.msra.mxu0 %v10384
        %10519 = vmatpush.msra.mxu0 %v10383
        %10520 = vmatpush.msra.mxu0 %v10382
        %10521 = vmatpush.msra.mxu0 %v10381
        %10522 = vmatpush.msra.mxu0 %v10380
        %10523 = vmatpush.msra.mxu0 %v10379
        %10524 = vmatpush.msra.mxu0 %v10378
        %10525 = vmatpush.msra.mxu0 %v10377
        %10526 = vmatmul.f32.gmra.mxu0 %v10436
        %v10527 = vpop.f32.mrf.mxu0
        %v10528 = vadd.f32 0.0, %v10527
        %10529 = vdwg.mxu0
        %10530 = vmatpush.msra.mxu0 %v10392
        %10531 = vmatpush.msra.mxu0 %v10391
        %10532 = vmatpush.msra.mxu0 %v10390
        %10533 = vmatpush.msra.mxu0 %v10389
        %10534 = vmatpush.msra.mxu0 %v10388
        %10535 = vmatpush.msra.mxu0 %v10387
        %10536 = vmatpush.msra.mxu0 %v10386
        %10537 = vmatpush.msra.mxu0 %v10385
        %10538 = vmatpush.msra.mxu0 %v10384
        %10539 = vmatpush.msra.mxu0 %v10383
        %10540 = vmatpush.msra.mxu0 %v10382
        %10541 = vmatpush.msra.mxu0 %v10381
        %10542 = vmatpush.msra.mxu0 %v10380
        %10543 = vmatpush.msra.mxu0 %v10379
        %10544 = vmatpush.msra.mxu0 %v10378
        %10545 = vmatpush.msra.mxu0 %v10377
        %10546 = vmatmul.f32.gmra.mxu0 %v10509
        %v10547 = vpop.f32.mrf.mxu0
        %v10548 = vadd.f32 0.0, %v10547
        %10549 = vdwg.mxu0
        %v10550 = vperm.slane %v10528, 0
        %v10551 = vsub.f32 %v10298, %v10550
        %v10552 = vsub.f32 %v10300, %v10550
        %v10553 = vsub.f32 %v10303, %v10550
        %v10554 = vsub.f32 %v10305, %v10550
        %v10555 = vsub.f32 %v10308, %v10550
        %v10556 = vsub.f32 %v10310, %v10550
        %v10557 = vsub.f32 %v10313, %v10550
        %v10558 = vsub.f32 %v10315, %v10550
        %v10559 = vsub.f32 %v10318, %v10550
        %v10560 = vsub.f32 %v10320, %v10550
        %v10561 = vsub.f32 %v10323, %v10550
        %v10562 = vsub.f32 %v10325, %v10550
        %v10563 = vsub.f32 %v10328, %v10550
        %v10564 = vsub.f32 %v10330, %v10550
        %v10565 = vsub.f32 %v10333, %v10550
        %v10566 = vsub.f32 %v10335, %v10550
        %v10567 = vsub.f32 %v10338, %v10550
        %v10568 = vsub.f32 %v10340, %v10550
        %v10569 = vsub.f32 %v10343, %v10550
        %v10570 = vsub.f32 %v10345, %v10550
        %v10571 = vsub.f32 %v10348, %v10550
        %v10572 = vsub.f32 %v10350, %v10550
        %v10573 = vsub.f32 %v10353, %v10550
        %v10574 = vsub.f32 %v10355, %v10550
        %v10575 = vsub.f32 %v10358, %v10550
        %v10576 = vsub.f32 %v10360, %v10550
        %v10577 = vsub.f32 %v10363, %v10550
        %v10578 = vsub.f32 %v10365, %v10550
        %v10579 = vsub.f32 %v10368, %v10550
        %v10580 = vsub.f32 %v10370, %v10550
        %v10581 = vsub.f32 %v10373, %v10550
        %v10582 = vsub.f32 %v10375, %v10550
        %v10583 = vmul.f32 %v10528, %v10528
        %v10584 = vsub.f32 %v10548, %v10583
        %v10585 = vadd.f32 %v10584, 1e-05
        %v10586 = vrsqrt.pop %v10585
        %v10587 = vmul.f32 %v10586, %v10585
        %v10588 = vmul.f32 %v10587, %v10586
        %v10589 = vmul.f32 0.5, %v10588
        %v10590 = vsub.f32 1.5, %v10589
        %v10591 = vmul.f32 %v10586, %v10590
        %vm10592 = vweird.f32 %v10585
        %vm10593 = vweird.f32 %v10586
        %vm10594 = vmor %vm10592, %vm10593
        %v10595 = vsel %vm10594, %v10586, %v10591
        %v10596 = vperm.slane %v10595, 0
        %v10597 = vmul.f32 %v10551, %v10596
        %v10598 = vmul.f32 %v10552, %v10596
        %v10599 = vmul.f32 %v10553, %v10596
        %v10600 = vmul.f32 %v10554, %v10596
        %v10601 = vmul.f32 %v10555, %v10596
        %v10602 = vmul.f32 %v10556, %v10596
        %v10603 = vmul.f32 %v10557, %v10596
        %v10604 = vmul.f32 %v10558, %v10596
        %v10605 = vmul.f32 %v10559, %v10596
        %v10606 = vmul.f32 %v10560, %v10596
        %v10607 = vmul.f32 %v10561, %v10596
        %v10608 = vmul.f32 %v10562, %v10596
        %v10609 = vmul.f32 %v10563, %v10596
        %v10610 = vmul.f32 %v10564, %v10596
        %v10611 = vmul.f32 %v10565, %v10596
        %v10612 = vmul.f32 %v10566, %v10596
        %v10613 = vmul.f32 %v10567, %v10596
        %v10614 = vmul.f32 %v10568, %v10596
        %v10615 = vmul.f32 %v10569, %v10596
        %v10616 = vmul.f32 %v10570, %v10596
        %v10617 = vmul.f32 %v10571, %v10596
        %v10618 = vmul.f32 %v10572, %v10596
        %v10619 = vmul.f32 %v10573, %v10596
        %v10620 = vmul.f32 %v10574, %v10596
        %v10621 = vmul.f32 %v10575, %v10596
        %v10622 = vmul.f32 %v10576, %v10596
        %v10623 = vmul.f32 %v10577, %v10596
        %v10624 = vmul.f32 %v10578, %v10596
        %v10625 = vmul.f32 %v10579, %v10596
        %v10626 = vmul.f32 %v10580, %v10596
        %v10627 = vmul.f32 %v10581, %v10596
        %v10628 = vmul.f32 %v10582, %v10596
        %v10630 = vperm.slane %v10393, 0
        %v10632 = vmul.f32 %v10597, %v10630
        %v10633 = vmul.f32 %v10598, %v10630
        %v10634 = vmul.f32 %v10599, %v10630
        %v10635 = vmul.f32 %v10600, %v10630
        %v10636 = vmul.f32 %v10601, %v10630
        %v10637 = vmul.f32 %v10602, %v10630
        %v10638 = vmul.f32 %v10603, %v10630
        %v10639 = vmul.f32 %v10604, %v10630
        %v10640 = vmul.f32 %v10605, %v10630
        %v10641 = vmul.f32 %v10606, %v10630
        %v10642 = vmul.f32 %v10607, %v10630
        %v10643 = vmul.f32 %v10608, %v10630
        %v10644 = vmul.f32 %v10609, %v10630
        %v10645 = vmul.f32 %v10610, %v10630
        %v10646 = vmul.f32 %v10611, %v10630
        %v10647 = vmul.f32 %v10612, %v10630
        %v10648 = vmul.f32 %v10613, %v10630
        %v10649 = vmul.f32 %v10614, %v10630
        %v10650 = vmul.f32 %v10615, %v10630
        %v10651 = vmul.f32 %v10616, %v10630
        %v10652 = vmul.f32 %v10617, %v10630
        %v10653 = vmul.f32 %v10618, %v10630
        %v10654 = vmul.f32 %v10619, %v10630
        %v10655 = vmul.f32 %v10620, %v10630
        %v10656 = vmul.f32 %v10621, %v10630
        %v10657 = vmul.f32 %v10622, %v10630
        %v10658 = vmul.f32 %v10623, %v10630
        %v10659 = vmul.f32 %v10624, %v10630
        %v10660 = vmul.f32 %v10625, %v10630
        %v10661 = vmul.f32 %v10626, %v10630
        %v10662 = vmul.f32 %v10627, %v10630
        %v10663 = vmul.f32 %v10628, %v10630
        %v10665 = vperm.slane %v10394, 0
        %v10667 = vadd.f32 %v10632, %v10665
        %v10668 = vadd.f32 %v10633, %v10665
        %v10669 = vadd.f32 %v10634, %v10665
        %v10670 = vadd.f32 %v10635, %v10665
        %v10671 = vadd.f32 %v10636, %v10665
        %v10672 = vadd.f32 %v10637, %v10665
        %v10673 = vadd.f32 %v10638, %v10665
        %v10674 = vadd.f32 %v10639, %v10665
        %v10675 = vadd.f32 %v10640, %v10665
        %v10676 = vadd.f32 %v10641, %v10665
        %v10677 = vadd.f32 %v10642, %v10665
        %v10678 = vadd.f32 %v10643, %v10665
        %v10679 = vadd.f32 %v10644, %v10665
        %v10680 = vadd.f32 %v10645, %v10665
        %v10681 = vadd.f32 %v10646, %v10665
        %v10682 = vadd.f32 %v10647, %v10665
        %v10683 = vadd.f32 %v10648, %v10665
        %v10684 = vadd.f32 %v10649, %v10665
        %v10685 = vadd.f32 %v10650, %v10665
        %v10686 = vadd.f32 %v10651, %v10665
        %v10687 = vadd.f32 %v10652, %v10665
        %v10688 = vadd.f32 %v10653, %v10665
        %v10689 = vadd.f32 %v10654, %v10665
        %v10690 = vadd.f32 %v10655, %v10665
        %v10691 = vadd.f32 %v10656, %v10665
        %v10692 = vadd.f32 %v10657, %v10665
        %v10693 = vadd.f32 %v10658, %v10665
        %v10694 = vadd.f32 %v10659, %v10665
        %v10695 = vadd.f32 %v10660, %v10665
        %v10696 = vadd.f32 %v10661, %v10665
        %v10697 = vadd.f32 %v10662, %v10665
        %v10698 = vadd.f32 %v10663, %v10665
        %vm10699 = vcmp.ge.f32.partialorder %v10667, 0.0
        %vm10700 = vcmp.ge.f32.partialorder %v10668, 0.0
        %vm10701 = vcmp.ge.f32.partialorder %v10669, 0.0
        %vm10702 = vcmp.ge.f32.partialorder %v10670, 0.0
        %vm10703 = vcmp.ge.f32.partialorder %v10671, 0.0
        %vm10704 = vcmp.ge.f32.partialorder %v10672, 0.0
        %vm10705 = vcmp.ge.f32.partialorder %v10673, 0.0
        %vm10706 = vcmp.ge.f32.partialorder %v10674, 0.0
        %vm10707 = vcmp.ge.f32.partialorder %v10675, 0.0
        %vm10708 = vcmp.ge.f32.partialorder %v10676, 0.0
        %vm10709 = vcmp.ge.f32.partialorder %v10677, 0.0
        %vm10710 = vcmp.ge.f32.partialorder %v10678, 0.0
        %vm10711 = vcmp.ge.f32.partialorder %v10679, 0.0
        %vm10712 = vcmp.ge.f32.partialorder %v10680, 0.0
        %vm10713 = vcmp.ge.f32.partialorder %v10681, 0.0
        %vm10714 = vcmp.ge.f32.partialorder %v10682, 0.0
        %vm10715 = vcmp.ge.f32.partialorder %v10683, 0.0
        %vm10716 = vcmp.ge.f32.partialorder %v10684, 0.0
        %vm10717 = vcmp.ge.f32.partialorder %v10685, 0.0
        %vm10718 = vcmp.ge.f32.partialorder %v10686, 0.0
        %vm10719 = vcmp.ge.f32.partialorder %v10687, 0.0
        %vm10720 = vcmp.ge.f32.partialorder %v10688, 0.0
        %vm10721 = vcmp.ge.f32.partialorder %v10689, 0.0
        %vm10722 = vcmp.ge.f32.partialorder %v10690, 0.0
        %vm10723 = vcmp.ge.f32.partialorder %v10691, 0.0
        %vm10724 = vcmp.ge.f32.partialorder %v10692, 0.0
        %vm10725 = vcmp.ge.f32.partialorder %v10693, 0.0
        %vm10726 = vcmp.ge.f32.partialorder %v10694, 0.0
        %vm10727 = vcmp.ge.f32.partialorder %v10695, 0.0
        %vm10728 = vcmp.ge.f32.partialorder %v10696, 0.0
        %vm10729 = vcmp.ge.f32.partialorder %v10697, 0.0
        %vm10730 = vcmp.ge.f32.partialorder %v10698, 0.0
        %v10732 = vperm.slane %v10395, 0
        %10733 = vset.pattern.permute.xlu0 0
        %10734 = vperm.xlu0 %10733, %v10732
        %v10735 = vpop.permute.xlu0 %10734
        %v10737 = vmul.f32 %v10735, %v10667
        %v10738 = vmul.f32 %v10735, %v10668
        %v10739 = vmul.f32 %v10735, %v10669
        %v10740 = vmul.f32 %v10735, %v10670
        %v10741 = vmul.f32 %v10735, %v10671
        %v10742 = vmul.f32 %v10735, %v10672
        %v10743 = vmul.f32 %v10735, %v10673
        %v10744 = vmul.f32 %v10735, %v10674
        %v10745 = vmul.f32 %v10735, %v10675
        %v10746 = vmul.f32 %v10735, %v10676
        %v10747 = vmul.f32 %v10735, %v10677
        %v10748 = vmul.f32 %v10735, %v10678
        %v10749 = vmul.f32 %v10735, %v10679
        %v10750 = vmul.f32 %v10735, %v10680
        %v10751 = vmul.f32 %v10735, %v10681
        %v10752 = vmul.f32 %v10735, %v10682
        %v10753 = vmul.f32 %v10735, %v10683
        %v10754 = vmul.f32 %v10735, %v10684
        %v10755 = vmul.f32 %v10735, %v10685
        %v10756 = vmul.f32 %v10735, %v10686
        %v10757 = vmul.f32 %v10735, %v10687
        %v10758 = vmul.f32 %v10735, %v10688
        %v10759 = vmul.f32 %v10735, %v10689
        %v10760 = vmul.f32 %v10735, %v10690
        %v10761 = vmul.f32 %v10735, %v10691
        %v10762 = vmul.f32 %v10735, %v10692
        %v10763 = vmul.f32 %v10735, %v10693
        %v10764 = vmul.f32 %v10735, %v10694
        %v10765 = vmul.f32 %v10735, %v10695
        %v10766 = vmul.f32 %v10735, %v10696
        %v10767 = vmul.f32 %v10735, %v10697
        %v10768 = vmul.f32 %v10735, %v10698
        %v10769 = vsel %vm10699, %v10667, %v10737
        %v10770 = vsel %vm10700, %v10668, %v10738
        %v10771 = vsel %vm10701, %v10669, %v10739
        %v10772 = vsel %vm10702, %v10670, %v10740
        %v10773 = vsel %vm10703, %v10671, %v10741
        %v10774 = vsel %vm10704, %v10672, %v10742
        %v10775 = vsel %vm10705, %v10673, %v10743
        %v10776 = vsel %vm10706, %v10674, %v10744
        %v10777 = vsel %vm10707, %v10675, %v10745
        %v10778 = vsel %vm10708, %v10676, %v10746
        %v10779 = vsel %vm10709, %v10677, %v10747
        %v10780 = vsel %vm10710, %v10678, %v10748
        %v10781 = vsel %vm10711, %v10679, %v10749
        %v10782 = vsel %vm10712, %v10680, %v10750
        %v10783 = vsel %vm10713, %v10681, %v10751
        %v10784 = vsel %vm10714, %v10682, %v10752
        %v10785 = vsel %vm10715, %v10683, %v10753
        %v10786 = vsel %vm10716, %v10684, %v10754
        %v10787 = vsel %vm10717, %v10685, %v10755
        %v10788 = vsel %vm10718, %v10686, %v10756
        %v10789 = vsel %vm10719, %v10687, %v10757
        %v10790 = vsel %vm10720, %v10688, %v10758
        %v10791 = vsel %vm10721, %v10689, %v10759
        %v10792 = vsel %vm10722, %v10690, %v10760
        %v10793 = vsel %vm10723, %v10691, %v10761
        %v10794 = vsel %vm10724, %v10692, %v10762
        %v10795 = vsel %vm10725, %v10693, %v10763
        %v10796 = vsel %vm10726, %v10694, %v10764
        %v10797 = vsel %vm10727, %v10695, %v10765
        %v10798 = vsel %vm10728, %v10696, %v10766
        %v10799 = vsel %vm10729, %v10697, %v10767
        %v10800 = vsel %vm10730, %v10698, %v10768
        %10801 = vst [vmem:[%s635] sm:$0xff] %v10769
        %10802 = vst [vmem:[%s635 + $0x8] sm:$0xff] %v10770
        %10803 = vst [vmem:[%s635 + $0x10] sm:$0xff] %v10771
        %10804 = vst [vmem:[%s635 + $0x18] sm:$0xff] %v10772
        %10805 = vst [vmem:[%s635 + $0x20] sm:$0xff] %v10773
        %10806 = vst [vmem:[%s635 + $0x28] sm:$0xff] %v10774
        %10807 = vst [vmem:[%s635 + $0x30] sm:$0xff] %v10775
        %10808 = vst [vmem:[%s635 + $0x38] sm:$0xff] %v10776
        %10809 = vst [vmem:[%s635 + $0x40] sm:$0xff] %v10777
        %10810 = vst [vmem:[%s635 + $0x48] sm:$0xff] %v10778
        %10811 = vst [vmem:[%s635 + $0x50] sm:$0xff] %v10779
        %10812 = vst [vmem:[%s635 + $0x58] sm:$0xff] %v10780
        %10813 = vst [vmem:[%s635 + $0x60] sm:$0xff] %v10781
        %10814 = vst [vmem:[%s635 + $0x68] sm:$0xff] %v10782
        %10815 = vst [vmem:[%s635 + $0x70] sm:$0xff] %v10783
        %10816 = vst [vmem:[%s635 + $0x78] sm:$0xff] %v10784
        %10817 = vst [vmem:[%s635 + $0x80] sm:$0xff] %v10785
        %10818 = vst [vmem:[%s635 + $0x88] sm:$0xff] %v10786
        %10819 = vst [vmem:[%s635 + $0x90] sm:$0xff] %v10787
        %10820 = vst [vmem:[%s635 + $0x98] sm:$0xff] %v10788
        %10821 = vst [vmem:[%s635 + $0xa0] sm:$0xff] %v10789
        %10822 = vst [vmem:[%s635 + $0xa8] sm:$0xff] %v10790
        %10823 = vst [vmem:[%s635 + $0xb0] sm:$0xff] %v10791
        %10824 = vst [vmem:[%s635 + $0xb8] sm:$0xff] %v10792
        %10825 = vst [vmem:[%s635 + $0xc0] sm:$0xff] %v10793
        %10826 = vst [vmem:[%s635 + $0xc8] sm:$0xff] %v10794
        %10827 = vst [vmem:[%s635 + $0xd0] sm:$0xff] %v10795
        %10828 = vst [vmem:[%s635 + $0xd8] sm:$0xff] %v10796
        %10829 = vst [vmem:[%s635 + $0xe0] sm:$0xff] %v10797
        %10830 = vst [vmem:[%s635 + $0xe8] sm:$0xff] %v10798
        %10831 = vst [vmem:[%s635 + $0xf0] sm:$0xff] %v10799
        %10832 = vst [vmem:[%s635 + $0xf8] sm:$0xff] %v10800
        %s10833 = sand.u32 %s413, 1
        %s10834 = scalar_lea.sflag [#allocation6], %s10833
        %s10835 = sand.u32 %s413, 1
        %s10836 = smul.addr %s10835, 256
        %s10837 = scalar_lea.vmem [#allocation12], %s10836
        // Predicated region
        $region105: #{tpu_custom_call.1} parent=87 // pred_check
          %p10838 = pneg %p423
        $region106: #{tpu_custom_call.1} parent=87 // pred_check_branch
          %10840 = sbr.rel (%p10838) target = $region108
        $region107: #{tpu_custom_call.1} parent=87 // pred_region
          %10842 = vsyncadd %s10834, 0
          %s10843 = smul.addr %s38, 32
          %s10844 = smul.addr %s10843, 8
          %s10845 = scalar_lea.hbm %s17, %s10844
          %s10846 = sshll.u32 %s10837, 4
          %s10847 = int_to_ptr.vmem [resolvable:$true] %s10846
          %s10848 = sshll.u32 %s10845, 4
          %s10849 = int_to_ptr.hbm [resolvable:$true] %s10848
          %10854 = dma.vmem_to_hbm [thread:$0]  %s10847, 4096, %s10849, %s10834, 128, 128, 8
        $region108: #{tpu_custom_call.1} parent=87 // pred_fallthru
          _
      $region88: #{tpu_custom_call.1} parent=5 // pred_fallthru
        _
      %p10855 = scmp.le.s32.totalorder 2, %s33
      // Predicated region
      $region109: #{tpu_custom_call.1} parent=5 // pred_check
        %p10856 = pneg %p10855
      $region110: #{tpu_custom_call.1} parent=5 // pred_check_branch
        %10858 = sbr.rel (%p10856) target = $region112
      $region111: #{tpu_custom_call.1} parent=5 // pred_region
        %s10859 = ssub.s32 %s33, 2
        // Predicated region
        $region113: #{tpu_custom_call.1} parent=111 // pred_check
          %p10860 = pneg %p429
        $region114: #{tpu_custom_call.1} parent=111 // pred_check_branch
          %10862 = sbr.rel (%p10860) target = $region116
        $region115: #{tpu_custom_call.1} parent=111 // pred_region
          %s10863 = sand.u32 %s414, 1
          %s10864 = scalar_lea.sflag [#allocation6], %s10863
          %s10865 = sand.u32 %s414, 1
          %s10866 = smul.addr %s10865, 256
          %s10867 = scalar_lea.vmem [#allocation12], %s10866
          %10869 = dma.done %s10864, 4096
        $region116: #{tpu_custom_call.1} parent=111 // pred_fallthru
          _
      $region112: #{tpu_custom_call.1} parent=5 // pred_fallthru
        _
    $region6: #{tpu_custom_call.1} parent=1 // loop_footer
      %s37 = sadd.s32 1, %s33
    $region7: #{tpu_custom_call.1} parent=1 // loop_footer_branch
      %32 = sbr.rel target = $region3
    $region8: #{tpu_custom_call.1} parent=1 // loop_exit
      _
    %10870 = vsyncpa [#allocation5], 1
    %s10871 = scalar_lea.sflag [#allocation5], 1
    %10872 = vsyncpa %s10871, 1
    %10873 = vsyncpa [#allocation8], 1
    %10874 = vsyncpa [#allocation11], 1
    %10875 = vsyncpa [#allocation6], 1
    %s10876 = scalar_lea.sflag [#allocation6], 1
    %10877 = vsyncpa %s10876, 1

</llo_original>
